<compile_context>
chip_gen: v6e
topology: v6e:2x2x1
jax: 0.10.0
libtpu: 0.0.40
codegen_flags: <defaults>
</compile_context>

<pallas_src>
import jax
import jax.numpy as jnp
from jax.experimental import pallas as pl
from jax.experimental.pallas import tpu as pltpu

KSIZE = 4   # conv kernel size (4x4, stride 2, pad 1 throughout)


# ----------------------------------------------------------------------------
# Fused Pallas kernel: conv1 -> conv2 -> conv3 -> lin1 -> lin2 -> mu/logvar head
# ----------------------------------------------------------------------------
def _encoder_kernel(x0_ref,
                    wl1_ref, cg1_ref, bc1_ref,
                    cg2_ref, bc2_ref,
                    cg3_ref, bc3_ref,
                    bl1_ref, bl2_ref, bh_ref,
                    wl2_hbm, wl3_hbm, l1_hbm, l2_hbm, lh_hbm,
                    o_ref,
                    wl2_v, wl3_v, l1_v, l2_v, lh_v, sem):
    f32, bf16 = jnp.float32, jnp.bfloat16

    # Kick off the DMA of the big late-stage weights so it overlaps conv1/conv2 compute.
    copies = (
        pltpu.make_async_copy(wl2_hbm, wl2_v, sem.at[0]),
        pltpu.make_async_copy(wl3_hbm, wl3_v, sem.at[1]),
        pltpu.make_async_copy(l1_hbm, l1_v, sem.at[2]),
        pltpu.make_async_copy(l2_hbm, l2_v, sem.at[3]),
        pltpu.make_async_copy(lh_hbm, lh_v, sem.at[4]),
    )
    for cp in copies:
        cp.start()

    def conv(x, wl_ref, cg_ref, b_ref):
        # x: (Cin*Hin, B*Win) -> (Cout*Hout, B*Wout); stride-2/pad-1 conv as matmul pairs.
        xb = x.astype(bf16)
        acc = None
        for kw in range(cg_ref.shape[0]):
            g = jnp.dot(xb, cg_ref[kw], preferred_element_type=f32)      # width gather (exact)
            y = jnp.dot(wl_ref[kw], g.astype(bf16), preferred_element_type=f32)
            acc = y if acc is None else acc + y
        return jnp.maximum(acc + b_ref[...], 0.0)                        # bias + ReLU in f32

    x = conv(x0_ref[...], wl1_ref, cg1_ref, bc1_ref)      # (32*16, B*16)
    copies[0].wait()
    x = conv(x, wl2_v, cg2_ref, bc2_ref)                  # (32*8,  B*8)
    copies[1].wait()
    x = conv(x, wl3_v, cg3_ref, bc3_ref)                  # (32*4,  B*4), cols ordered (w, b)
    copies[2].wait()

    # NCHW flatten + lin1: conv3's output columns were permuted to (w, b) order at weight
    # prep time (folded into cg3), so each w-block is just a static lane slice.
    w3 = l1_v.shape[0]
    bsz = x.shape[1] // w3
    h = None
    for w in range(w3):
        xw = x[:, w * bsz:(w + 1) * bsz].astype(bf16)                    # (128, B)
        y = jnp.dot(l1_v[w], xw, preferred_element_type=f32)             # (256, B)
        h = y if h is None else h + y
    h = jnp.maximum(h + bl1_ref[...], 0.0)

    copies[3].wait()
    h = jnp.maximum(jnp.dot(l2_v[...], h.astype(bf16), preferred_element_type=f32)
                    + bl2_ref[...], 0.0)
    copies[4].wait()
    o_ref[...] = (jnp.dot(lh_v[...], h.astype(bf16), preferred_element_type=f32)
                  + bh_ref[...])


# ----------------------------------------------------------------------------
# Host-side one-time weight preparation
# ----------------------------------------------------------------------------
def _conv_as_matmuls(w, b, c_in, h_in, w_in, batch):
    """Fold a Conv2d(k=4, s=2, p=1) (PyTorch OIHW weights) into per-kw (WL, CG) factors."""
    f32 = jnp.float32
    c_out = w.shape[0]
    h_out, w_out = h_in // 2, w_in // 2

    # Row-gather (+pad) indices: kh = h - 2*oh + 1; out-of-range taps hit the zero padding.
    oh = jnp.arange(h_out)[:, None]
    hh = jnp.arange(h_in)[None, :]
    kh_idx = hh - 2 * oh + 1                                    # (h_out, h_in)
    valid = (kh_idx >= 0) & (kh_idx < KSIZE)
    kh_clip = jnp.clip(kh_idx, 0, KSIZE - 1)

    eye_b = jnp.eye(batch, dtype=f32)
    ow = jnp.arange(w_out)

    wls, cgs = [], []
    for kw in range(KSIZE):
        # CG[kw][b*w_in + c, b*w_out + ow] = 1 iff c == 2*ow + kw - 1 (pad handled by OOB -> 0)
        base = jax.nn.one_hot(2 * ow + kw - 1, w_in, dtype=f32).T       # (w_in, w_out)
        cgs.append(jnp.kron(eye_b, base))                               # (B*w_in, B*w_out)
        # WL[kw][co*h_out + oh, ci*h_in + h] = w[co, ci, h - 2*oh + 1, kw] (0 outside kernel)
        w_kw = w[:, :, :, kw]                                           # (Co, Ci, K)
        gath = w_kw[:, :, kh_clip]                                      # (Co, Ci, h_out, h_in)
        gath = jnp.where(valid[None, None, :, :], gath, 0.0)
        wls.append(jnp.transpose(gath, (0, 2, 1, 3)).reshape(c_out * h_out, c_in * h_in))

    bias_col = jnp.repeat(b, h_out)[:, None]                            # (c_out*h_out, 1)
    return jnp.stack(wls), jnp.stack(cgs), bias_col, c_out, h_out, w_out


def make_encoder_forward(params, img_size=(1, 32, 32), batch=2, latent_dim=10, num_prop=2):
    n_chan, H, W = img_size
    if H == W == 64:
        raise NotImplementedError("conv_64 not wired; use 32x32 images")
    assert (H, W) == (32, 32), "fused kernel is specialized to 32x32 inputs"
    f32, bf16 = jnp.float32, jnp.bfloat16
    hidden = params["lin2_w"].shape[0]                 # 256
    n_out = (latent_dim + num_prop) * 2                # 24

    # conv stack folded into matmul factors (one-time weight prep)
    wl1, cg1, bc1, c1, h1, w1 = _conv_as_matmuls(
        params["conv1_w"], params["conv1_b"], n_chan, H, W, batch)
    wl2, cg2, bc2, c2, h2, w2 = _conv_as_matmuls(
        params["conv2_w"], params["conv2_b"], c1, h1, w1, batch)
    wl3, cg3, bc3, c3, h3, w3 = _conv_as_matmuls(
        params["conv3_w"], params["conv3_b"], c2, h2, w2, batch)

    # Fold the (b, w) -> (w, b) output-column permutation into cg3, so the flatten+lin1
    # stage only needs static lane slices of conv3's output (no tc gather matmuls).
    bb = jnp.arange(batch)[:, None]
    ww = jnp.arange(w3)[None, :]
    rows = (bb * w3 + ww).reshape(-1)
    cols = (ww * batch + bb).reshape(-1)
    perm = jnp.zeros((batch * w3, batch * w3), f32).at[rows, cols].set(1.0)
    cg3 = jnp.matmul(cg3, perm)

    # flatten (NCHW order) + lin1, folded per w-block
    rows3 = c3 * h3                                     # 128
    assert params["lin1_w"].shape[0] == rows3 * w3      # 512
    lin1_r = params["lin1_w"].reshape(rows3, w3, hidden)
    l1 = jnp.stack([lin1_r[:, w, :].T for w in range(w3)])              # (w3, 256, 128)
    bl1 = params["lin1_b"][:, None]
    l2 = params["lin2_w"].T
    bl2 = params["lin2_b"][:, None]
    lh = params["mlv_w"].T                                              # (24, 256), no padding
    bh = params["mlv_b"][:, None]                                       # (24, 1)

    # bf16 for every matmul operand (accumulation stays f32 in-kernel); biases stay f32.
    wl1, wl2, wl3 = (a.astype(bf16) for a in (wl1, wl2, wl3))
    cg1, cg2, cg3 = (a.astype(bf16) for a in (cg1, cg2, cg3))
    l1, l2, lh = l1.astype(bf16), l2.astype(bf16), lh.astype(bf16)

    small = (wl1, cg1, bc1, cg2, bc2, cg3, bc3, bl1, bl2, bh)   # auto-DMA'd (needed early / tiny)
    big = (wl2, wl3, l1, l2, lh)                                # manual async-copied (overlapped)
    x0_shape = (n_chan * H, batch * W)

    # rough cost estimate (helps XLA schedule the tiny surrounding glue)
    flops = 0
    for wl, cg in ((wl1, cg1), (wl2, cg2), (wl3, cg3)):
        k, ro, ri = wl.shape
        _, ci, co = cg.shape
        flops += k * 2 * (ri * ci * co + ro * ri * co)
    flops += w3 * 2 * hidden * rows3 * batch
    flops += 2 * hidden * hidden * batch + 2 * n_out * hidden * batch
    bytes_accessed = (x0_shape[0] * x0_shape[1] * 4 + n_out * batch * 4
                      + sum(int(a.size) * a.dtype.itemsize for a in small + big))

    def _spec(shape):
        nd = len(shape)
        return pl.BlockSpec(shape, lambda nd=nd: (0,) * nd)

    in_specs = ([_spec(x0_shape)]
                + [_spec(tuple(a.shape)) for a in small]
                + [pl.BlockSpec(memory_space=pl.ANY)] * len(big))

    fused = pl.pallas_call(
        _encoder_kernel,
        out_shape=jax.ShapeDtypeStruct((n_out, batch), f32),
        in_specs=in_specs,
        out_specs=_spec((n_out, batch)),
        scratch_shapes=[pltpu.VMEM(tuple(a.shape), bf16) for a in big]
                       + [pltpu.SemaphoreType.DMA((len(big),))],
        cost_estimate=pl.CostEstimate(flops=int(flops), transcendentals=0,
                                      bytes_accessed=int(bytes_accessed)),
        # Footprint is ~2 MiB (bf16 weights + scratch); 16 MiB is safe on v5e/v6e/v7x.
        compiler_params=pltpu.CompilerParams(vmem_limit_bytes=16 * 1024 * 1024),
    )

    @jax.jit
    def forward(x, label=None, prop=None):
        # label/prop are accepted but unused, exactly like the PyTorch module.
        B = x.shape[0]
        assert B == batch, "kernel was specialized for a fixed batch size"
        x0 = jnp.transpose(x, (1, 2, 0, 3)).reshape(n_chan * H, B * W)   # X0[c*H+h, b*W+w]
        out = fused(x0, *small, *big)                                    # (24, B)
        ml = out.T.reshape(-1, latent_dim + num_prop, 2)
        mu, logvar = ml[..., 0], ml[..., 1]
        return (mu[:, :latent_dim], mu[:, latent_dim:],
                logvar[:, :latent_dim], logvar[:, latent_dim:])

    return forward


# ----------------------------------------------------------------------------
# Parameters (PyTorch layouts: conv OIHW; linear stored as (in, out))
# ----------------------------------------------------------------------------
def init_params(key, img_size=(1, 32, 32), latent_dim=10, num_prop=2):
    hid_channels = 32
    kernel_size = 4
    hidden_dim = 256
    n_chan = img_size[0]
    flat = hid_channels * kernel_size * kernel_size    # 512

    def nrm(k, shape, scale=0.05):
        return (scale * jax.random.normal(k, shape)).astype(jnp.float32)

    keys = jax.random.split(key, 12)
    return {
        "conv1_w": nrm(keys[0], (hid_channels, n_chan, 4, 4)),
        "conv1_b": nrm(keys[1], (hid_channels,)),
        "conv2_w": nrm(keys[2], (hid_channels, hid_channels, 4, 4)),
        "conv2_b": nrm(keys[3], (hid_channels,)),
        "conv3_w": nrm(keys[4], (hid_channels, hid_channels, 4, 4)),
        "conv3_b": nrm(keys[5], (hid_channels,)),
        "lin1_w": nrm(keys[6], (flat, hidden_dim)),
        "lin1_b": nrm(keys[7], (hidden_dim,)),
        "lin2_w": nrm(keys[8], (hidden_dim, hidden_dim)),
        "lin2_b": nrm(keys[9], (hidden_dim,)),
        "mlv_w": nrm(keys[10], (hidden_dim, (latent_dim + num_prop) * 2)),
        "mlv_b": nrm(keys[11], ((latent_dim + num_prop) * 2,)),
    }


# ----------------------------------------------------------------------------
# Pure-JAX reference (for validation only)
# ----------------------------------------------------------------------------
def reference_forward(params, x, latent_dim=10, num_prop=2):
    hp = jax.lax.Precision.HIGHEST

    def conv(x, w, b):
        y = jax.lax.conv_general_dilated(
            x, w, (2, 2), ((1, 1), (1, 1)),
            dimension_numbers=("NCHW", "OIHW", "NCHW"), precision=hp)
        return jnp.maximum(y + b[None, :, None, None], 0.0)

    x = conv(x, params["conv1_w"], params["conv1_b"])
    x = conv(x, params["conv2_w"], params["conv2_b"])
    x = conv(x, params["conv3_w"], params["conv3_b"])
    xz = x.reshape(x.shape[0], -1)
    xz = jnp.maximum(jnp.dot(xz, params["lin1_w"], precision=hp) + params["lin1_b"], 0.0)
    xz = jnp.maximum(jnp.dot(xz, params["lin2_w"], precision=hp) + params["lin2_b"], 0.0)
    ml = jnp.dot(xz, params["mlv_w"], precision=hp) + params["mlv_b"]
    ml = ml.reshape(-1, latent_dim + num_prop, 2)
    mu, logvar = ml[..., 0], ml[..., 1]
    return (mu[:, :latent_dim], mu[:, latent_dim:],
            logvar[:, :latent_dim], logvar[:, latent_dim:])


# ----------------------------------------------------------------------------
if __name__ == "__main__":
    key = jax.random.PRNGKey(0)
    k_param, k_x, k_lbl = jax.random.split(key, 3)

    img_size = (1, 32, 32)
    batch = 2
    latent_dim, num_prop = 10, 2

    params = init_params(k_param, img_size, latent_dim, num_prop)
    x = jax.random.normal(k_x, (batch, *img_size), dtype=jnp.float32)
    label = jax.random.normal(k_lbl, (batch,), dtype=jnp.float32)   # unused, as in PyTorch

    forward = make_encoder_forward(params, img_size, batch, latent_dim, num_prop)
    outs = jax.block_until_ready(forward(x, label))
    mu_z, mu_p, lv_z, lv_p = outs

    assert mu_z.shape == (batch, latent_dim)
    assert mu_p.shape == (batch, num_prop)
    assert lv_z.shape == (batch, latent_dim)
    assert lv_p.shape == (batch, num_prop)
    assert all(bool(jnp.all(jnp.isfinite(t))) for t in outs)

    # correctness vs pure-JAX reference of the same module
    # (bf16 matmul operands with f32 accumulation give ~1e-3 typical error; a genuine
    #  indexing/semantics bug would be ~0.05-0.1, so 1e-2 still catches real mistakes)
    refs = reference_forward(params, x, latent_dim, num_prop)
    max_err = max(float(jnp.max(jnp.abs(a - b))) for a, b in zip(outs, refs))
    assert max_err < 1e-2, f"mismatch vs reference: {max_err}"

    print("KERNEL_OK")
</pallas_src>

<mosaic_0001>
module attributes {stable_mosaic.version = 11 : i64} {
  func.func @_encoder_kernel(%arg0: memref<32x64xf32, #tpu.memory_space<vmem>>, %arg1: memref<4x512x32xbf16, #tpu.memory_space<vmem>>, %arg2: memref<4x64x32xbf16, #tpu.memory_space<vmem>>, %arg3: memref<512x1xf32, #tpu.memory_space<vmem>>, %arg4: memref<4x32x16xbf16, #tpu.memory_space<vmem>>, %arg5: memref<256x1xf32, #tpu.memory_space<vmem>>, %arg6: memref<4x16x8xbf16, #tpu.memory_space<vmem>>, %arg7: memref<128x1xf32, #tpu.memory_space<vmem>>, %arg8: memref<256x1xf32, #tpu.memory_space<vmem>>, %arg9: memref<256x1xf32, #tpu.memory_space<vmem>>, %arg10: memref<24x1xf32, #tpu.memory_space<vmem>>, %arg11: memref<4x256x512xbf16, #tpu.memory_space<any>>, %arg12: memref<4x128x256xbf16, #tpu.memory_space<any>>, %arg13: memref<4x256x128xbf16, #tpu.memory_space<any>>, %arg14: memref<256x256xbf16, #tpu.memory_space<any>>, %arg15: memref<24x256xbf16, #tpu.memory_space<any>>, %arg16: memref<24x2xf32, #tpu.memory_space<vmem>>, %arg17: memref<4x256x512xbf16, #tpu.memory_space<vmem>>, %arg18: memref<4x128x256xbf16, #tpu.memory_space<vmem>>, %arg19: memref<4x256x128xbf16, #tpu.memory_space<vmem>>, %arg20: memref<256x256xbf16, #tpu.memory_space<vmem>>, %arg21: memref<24x256xbf16, #tpu.memory_space<vmem>>, %arg22: memref<5x!tpu.dma_semaphore, #tpu.memory_space<semaphore_mem>>) attributes {dimension_semantics = [], scalar_prefetch = 0 : i64, scratch_operands = 6 : i64, tpu.core_type = #tpu.core_type<tc>} {
    %c0_i32 = arith.constant 0 : i32
    %0 = tpu.memref_slice %arg22[%c0_i32] : memref<5x!tpu.dma_semaphore, #tpu.memory_space<semaphore_mem>> -> memref<1x!tpu.dma_semaphore, #tpu.memory_space<semaphore_mem>>
    %1 = tpu.memref_squeeze %0 : memref<1x!tpu.dma_semaphore, #tpu.memory_space<semaphore_mem>> -> memref<!tpu.dma_semaphore, #tpu.memory_space<semaphore_mem>>
    tpu.enqueue_dma source(%arg11 : memref<4x256x512xbf16, #tpu.memory_space<any>>) target(%arg17 : memref<4x256x512xbf16, #tpu.memory_space<vmem>>) target_semaphore(%1 : memref<!tpu.dma_semaphore, #tpu.memory_space<semaphore_mem>>)
    %c1_i32 = arith.constant 1 : i32
    %2 = tpu.memref_slice %arg22[%c1_i32] : memref<5x!tpu.dma_semaphore, #tpu.memory_space<semaphore_mem>> -> memref<1x!tpu.dma_semaphore, #tpu.memory_space<semaphore_mem>>
    %3 = tpu.memref_squeeze %2 : memref<1x!tpu.dma_semaphore, #tpu.memory_space<semaphore_mem>> -> memref<!tpu.dma_semaphore, #tpu.memory_space<semaphore_mem>>
    tpu.enqueue_dma source(%arg12 : memref<4x128x256xbf16, #tpu.memory_space<any>>) target(%arg18 : memref<4x128x256xbf16, #tpu.memory_space<vmem>>) target_semaphore(%3 : memref<!tpu.dma_semaphore, #tpu.memory_space<semaphore_mem>>)
    %c2_i32 = arith.constant 2 : i32
    %4 = tpu.memref_slice %arg22[%c2_i32] : memref<5x!tpu.dma_semaphore, #tpu.memory_space<semaphore_mem>> -> memref<1x!tpu.dma_semaphore, #tpu.memory_space<semaphore_mem>>
    %5 = tpu.memref_squeeze %4 : memref<1x!tpu.dma_semaphore, #tpu.memory_space<semaphore_mem>> -> memref<!tpu.dma_semaphore, #tpu.memory_space<semaphore_mem>>
    tpu.enqueue_dma source(%arg13 : memref<4x256x128xbf16, #tpu.memory_space<any>>) target(%arg19 : memref<4x256x128xbf16, #tpu.memory_space<vmem>>) target_semaphore(%5 : memref<!tpu.dma_semaphore, #tpu.memory_space<semaphore_mem>>)
    %c3_i32 = arith.constant 3 : i32
    %6 = tpu.memref_slice %arg22[%c3_i32] : memref<5x!tpu.dma_semaphore, #tpu.memory_space<semaphore_mem>> -> memref<1x!tpu.dma_semaphore, #tpu.memory_space<semaphore_mem>>
    %7 = tpu.memref_squeeze %6 : memref<1x!tpu.dma_semaphore, #tpu.memory_space<semaphore_mem>> -> memref<!tpu.dma_semaphore, #tpu.memory_space<semaphore_mem>>
    tpu.enqueue_dma source(%arg14 : memref<256x256xbf16, #tpu.memory_space<any>>) target(%arg20 : memref<256x256xbf16, #tpu.memory_space<vmem>>) target_semaphore(%7 : memref<!tpu.dma_semaphore, #tpu.memory_space<semaphore_mem>>)
    %c4_i32 = arith.constant 4 : i32
    %8 = tpu.memref_slice %arg22[%c4_i32] : memref<5x!tpu.dma_semaphore, #tpu.memory_space<semaphore_mem>> -> memref<1x!tpu.dma_semaphore, #tpu.memory_space<semaphore_mem>>
    %9 = tpu.memref_squeeze %8 : memref<1x!tpu.dma_semaphore, #tpu.memory_space<semaphore_mem>> -> memref<!tpu.dma_semaphore, #tpu.memory_space<semaphore_mem>>
    tpu.enqueue_dma source(%arg15 : memref<24x256xbf16, #tpu.memory_space<any>>) target(%arg21 : memref<24x256xbf16, #tpu.memory_space<vmem>>) target_semaphore(%9 : memref<!tpu.dma_semaphore, #tpu.memory_space<semaphore_mem>>)
    %c0 = arith.constant 0 : index
    %c0_0 = arith.constant 0 : index
    %10 = vector.load %arg0[%c0, %c0_0] : memref<32x64xf32, #tpu.memory_space<vmem>>, vector<32x64xf32>
    %11 = arith.truncf %10 : vector<32x64xf32> to vector<32x64xbf16>
    %c0_1 = arith.constant 0 : index
    %c0_2 = arith.constant 0 : index
    %c0_3 = arith.constant 0 : index
    %12 = vector.load %arg2[%c0_1, %c0_2, %c0_3] : memref<4x64x32xbf16, #tpu.memory_space<vmem>>, vector<1x64x32xbf16>
    %13 = vector.shape_cast %12 : vector<1x64x32xbf16> to vector<64x32xbf16>
    %cst = arith.constant dense<0.000000e+00> : vector<32x32xf32>
    %14 = tpu.matmul %11, %13, %cst {dimension_numbers = #tpu.dot_dimension_numbers<[1], [0], [0], [1], [0, 0, 1, 1], [], []>} : vector<32x64xbf16>, vector<64x32xbf16>, vector<32x32xf32> -> vector<32x32xf32>
    %c0_4 = arith.constant 0 : index
    %c0_5 = arith.constant 0 : index
    %c0_6 = arith.constant 0 : index
    %15 = vector.load %arg1[%c0_4, %c0_5, %c0_6] : memref<4x512x32xbf16, #tpu.memory_space<vmem>>, vector<1x512x32xbf16>
    %16 = vector.shape_cast %15 : vector<1x512x32xbf16> to vector<512x32xbf16>
    %17 = arith.truncf %14 : vector<32x32xf32> to vector<32x32xbf16>
    %cst_7 = arith.constant dense<0.000000e+00> : vector<512x32xf32>
    %18 = tpu.matmul %16, %17, %cst_7 {dimension_numbers = #tpu.dot_dimension_numbers<[1], [0], [0], [1], [0, 0, 1, 1], [], []>} : vector<512x32xbf16>, vector<32x32xbf16>, vector<512x32xf32> -> vector<512x32xf32>
    %c1 = arith.constant 1 : index
    %c0_8 = arith.constant 0 : index
    %c0_9 = arith.constant 0 : index
    %19 = vector.load %arg2[%c1, %c0_8, %c0_9] : memref<4x64x32xbf16, #tpu.memory_space<vmem>>, vector<1x64x32xbf16>
    %20 = vector.shape_cast %19 : vector<1x64x32xbf16> to vector<64x32xbf16>
    %cst_10 = arith.constant dense<0.000000e+00> : vector<32x32xf32>
    %21 = tpu.matmul %11, %20, %cst_10 {dimension_numbers = #tpu.dot_dimension_numbers<[1], [0], [0], [1], [0, 0, 1, 1], [], []>} : vector<32x64xbf16>, vector<64x32xbf16>, vector<32x32xf32> -> vector<32x32xf32>
    %c1_11 = arith.constant 1 : index
    %c0_12 = arith.constant 0 : index
    %c0_13 = arith.constant 0 : index
    %22 = vector.load %arg1[%c1_11, %c0_12, %c0_13] : memref<4x512x32xbf16, #tpu.memory_space<vmem>>, vector<1x512x32xbf16>
    %23 = vector.shape_cast %22 : vector<1x512x32xbf16> to vector<512x32xbf16>
    %24 = arith.truncf %21 : vector<32x32xf32> to vector<32x32xbf16>
    %cst_14 = arith.constant dense<0.000000e+00> : vector<512x32xf32>
    %25 = tpu.matmul %23, %24, %cst_14 {dimension_numbers = #tpu.dot_dimension_numbers<[1], [0], [0], [1], [0, 0, 1, 1], [], []>} : vector<512x32xbf16>, vector<32x32xbf16>, vector<512x32xf32> -> vector<512x32xf32>
    %26 = arith.addf %18, %25 : vector<512x32xf32>
    %c2 = arith.constant 2 : index
    %c0_15 = arith.constant 0 : index
    %c0_16 = arith.constant 0 : index
    %27 = vector.load %arg2[%c2, %c0_15, %c0_16] : memref<4x64x32xbf16, #tpu.memory_space<vmem>>, vector<1x64x32xbf16>
    %28 = vector.shape_cast %27 : vector<1x64x32xbf16> to vector<64x32xbf16>
    %cst_17 = arith.constant dense<0.000000e+00> : vector<32x32xf32>
    %29 = tpu.matmul %11, %28, %cst_17 {dimension_numbers = #tpu.dot_dimension_numbers<[1], [0], [0], [1], [0, 0, 1, 1], [], []>} : vector<32x64xbf16>, vector<64x32xbf16>, vector<32x32xf32> -> vector<32x32xf32>
    %c2_18 = arith.constant 2 : index
    %c0_19 = arith.constant 0 : index
    %c0_20 = arith.constant 0 : index
    %30 = vector.load %arg1[%c2_18, %c0_19, %c0_20] : memref<4x512x32xbf16, #tpu.memory_space<vmem>>, vector<1x512x32xbf16>
    %31 = vector.shape_cast %30 : vector<1x512x32xbf16> to vector<512x32xbf16>
    %32 = arith.truncf %29 : vector<32x32xf32> to vector<32x32xbf16>
    %cst_21 = arith.constant dense<0.000000e+00> : vector<512x32xf32>
    %33 = tpu.matmul %31, %32, %cst_21 {dimension_numbers = #tpu.dot_dimension_numbers<[1], [0], [0], [1], [0, 0, 1, 1], [], []>} : vector<512x32xbf16>, vector<32x32xbf16>, vector<512x32xf32> -> vector<512x32xf32>
    %34 = arith.addf %26, %33 : vector<512x32xf32>
    %c3 = arith.constant 3 : index
    %c0_22 = arith.constant 0 : index
    %c0_23 = arith.constant 0 : index
    %35 = vector.load %arg2[%c3, %c0_22, %c0_23] : memref<4x64x32xbf16, #tpu.memory_space<vmem>>, vector<1x64x32xbf16>
    %36 = vector.shape_cast %35 : vector<1x64x32xbf16> to vector<64x32xbf16>
    %cst_24 = arith.constant dense<0.000000e+00> : vector<32x32xf32>
    %37 = tpu.matmul %11, %36, %cst_24 {dimension_numbers = #tpu.dot_dimension_numbers<[1], [0], [0], [1], [0, 0, 1, 1], [], []>} : vector<32x64xbf16>, vector<64x32xbf16>, vector<32x32xf32> -> vector<32x32xf32>
    %c3_25 = arith.constant 3 : index
    %c0_26 = arith.constant 0 : index
    %c0_27 = arith.constant 0 : index
    %38 = vector.load %arg1[%c3_25, %c0_26, %c0_27] : memref<4x512x32xbf16, #tpu.memory_space<vmem>>, vector<1x512x32xbf16>
    %39 = vector.shape_cast %38 : vector<1x512x32xbf16> to vector<512x32xbf16>
    %40 = arith.truncf %37 : vector<32x32xf32> to vector<32x32xbf16>
    %cst_28 = arith.constant dense<0.000000e+00> : vector<512x32xf32>
    %41 = tpu.matmul %39, %40, %cst_28 {dimension_numbers = #tpu.dot_dimension_numbers<[1], [0], [0], [1], [0, 0, 1, 1], [], []>} : vector<512x32xbf16>, vector<32x32xbf16>, vector<512x32xf32> -> vector<512x32xf32>
    %42 = arith.addf %34, %41 : vector<512x32xf32>
    %c0_29 = arith.constant 0 : index
    %c0_30 = arith.constant 0 : index
    %43 = vector.load %arg3[%c0_29, %c0_30] : memref<512x1xf32, #tpu.memory_space<vmem>>, vector<512x1xf32>
    %44 = vector.broadcast %43 : vector<512x1xf32> to vector<512x32xf32>
    %45 = arith.addf %42, %44 : vector<512x32xf32>
    %cst_31 = arith.constant 0.000000e+00 : f32
    %46 = vector.broadcast %cst_31 : f32 to vector<512x32xf32>
    %47 = arith.maximumf %45, %46 : vector<512x32xf32>
    %c0_i32_32 = arith.constant 0 : i32
    %48 = tpu.memref_slice %arg22[%c0_i32_32] : memref<5x!tpu.dma_semaphore, #tpu.memory_space<semaphore_mem>> -> memref<1x!tpu.dma_semaphore, #tpu.memory_space<semaphore_mem>>
    %49 = tpu.memref_squeeze %48 : memref<1x!tpu.dma_semaphore, #tpu.memory_space<semaphore_mem>> -> memref<!tpu.dma_semaphore, #tpu.memory_space<semaphore_mem>>
    tpu.wait_dma2 semaphore(%49 : memref<!tpu.dma_semaphore, #tpu.memory_space<semaphore_mem>>) src(%arg11 : memref<4x256x512xbf16, #tpu.memory_space<any>>) dst(%arg17 : memref<4x256x512xbf16, #tpu.memory_space<vmem>>)
    %50 = arith.truncf %47 : vector<512x32xf32> to vector<512x32xbf16>
    %c0_33 = arith.constant 0 : index
    %c0_34 = arith.constant 0 : index
    %c0_35 = arith.constant 0 : index
    %51 = vector.load %arg4[%c0_33, %c0_34, %c0_35] : memref<4x32x16xbf16, #tpu.memory_space<vmem>>, vector<1x32x16xbf16>
    %52 = vector.shape_cast %51 : vector<1x32x16xbf16> to vector<32x16xbf16>
    %cst_36 = arith.constant dense<0.000000e+00> : vector<512x16xf32>
    %53 = tpu.matmul %50, %52, %cst_36 {dimension_numbers = #tpu.dot_dimension_numbers<[1], [0], [0], [1], [0, 0, 1, 1], [], []>} : vector<512x32xbf16>, vector<32x16xbf16>, vector<512x16xf32> -> vector<512x16xf32>
    %c0_37 = arith.constant 0 : index
    %c0_38 = arith.constant 0 : index
    %c0_39 = arith.constant 0 : index
    %54 = vector.load %arg17[%c0_37, %c0_38, %c0_39] : memref<4x256x512xbf16, #tpu.memory_space<vmem>>, vector<1x256x512xbf16>
    %55 = vector.shape_cast %54 : vector<1x256x512xbf16> to vector<256x512xbf16>
    %56 = arith.truncf %53 : vector<512x16xf32> to vector<512x16xbf16>
    %cst_40 = arith.constant dense<0.000000e+00> : vector<256x16xf32>
    %57 = tpu.matmul %55, %56, %cst_40 {dimension_numbers = #tpu.dot_dimension_numbers<[1], [0], [0], [1], [0, 0, 1, 1], [], []>} : vector<256x512xbf16>, vector<512x16xbf16>, vector<256x16xf32> -> vector<256x16xf32>
    %c1_41 = arith.constant 1 : index
    %c0_42 = arith.constant 0 : index
    %c0_43 = arith.constant 0 : index
    %58 = vector.load %arg4[%c1_41, %c0_42, %c0_43] : memref<4x32x16xbf16, #tpu.memory_space<vmem>>, vector<1x32x16xbf16>
    %59 = vector.shape_cast %58 : vector<1x32x16xbf16> to vector<32x16xbf16>
    %cst_44 = arith.constant dense<0.000000e+00> : vector<512x16xf32>
    %60 = tpu.matmul %50, %59, %cst_44 {dimension_numbers = #tpu.dot_dimension_numbers<[1], [0], [0], [1], [0, 0, 1, 1], [], []>} : vector<512x32xbf16>, vector<32x16xbf16>, vector<512x16xf32> -> vector<512x16xf32>
    %c1_45 = arith.constant 1 : index
    %c0_46 = arith.constant 0 : index
    %c0_47 = arith.constant 0 : index
    %61 = vector.load %arg17[%c1_45, %c0_46, %c0_47] : memref<4x256x512xbf16, #tpu.memory_space<vmem>>, vector<1x256x512xbf16>
    %62 = vector.shape_cast %61 : vector<1x256x512xbf16> to vector<256x512xbf16>
    %63 = arith.truncf %60 : vector<512x16xf32> to vector<512x16xbf16>
    %cst_48 = arith.constant dense<0.000000e+00> : vector<256x16xf32>
    %64 = tpu.matmul %62, %63, %cst_48 {dimension_numbers = #tpu.dot_dimension_numbers<[1], [0], [0], [1], [0, 0, 1, 1], [], []>} : vector<256x512xbf16>, vector<512x16xbf16>, vector<256x16xf32> -> vector<256x16xf32>
    %65 = arith.addf %57, %64 : vector<256x16xf32>
    %c2_49 = arith.constant 2 : index
    %c0_50 = arith.constant 0 : index
    %c0_51 = arith.constant 0 : index
    %66 = vector.load %arg4[%c2_49, %c0_50, %c0_51] : memref<4x32x16xbf16, #tpu.memory_space<vmem>>, vector<1x32x16xbf16>
    %67 = vector.shape_cast %66 : vector<1x32x16xbf16> to vector<32x16xbf16>
    %cst_52 = arith.constant dense<0.000000e+00> : vector<512x16xf32>
    %68 = tpu.matmul %50, %67, %cst_52 {dimension_numbers = #tpu.dot_dimension_numbers<[1], [0], [0], [1], [0, 0, 1, 1], [], []>} : vector<512x32xbf16>, vector<32x16xbf16>, vector<512x16xf32> -> vector<512x16xf32>
    %c2_53 = arith.constant 2 : index
    %c0_54 = arith.constant 0 : index
    %c0_55 = arith.constant 0 : index
    %69 = vector.load %arg17[%c2_53, %c0_54, %c0_55] : memref<4x256x512xbf16, #tpu.memory_space<vmem>>, vector<1x256x512xbf16>
    %70 = vector.shape_cast %69 : vector<1x256x512xbf16> to vector<256x512xbf16>
    %71 = arith.truncf %68 : vector<512x16xf32> to vector<512x16xbf16>
    %cst_56 = arith.constant dense<0.000000e+00> : vector<256x16xf32>
    %72 = tpu.matmul %70, %71, %cst_56 {dimension_numbers = #tpu.dot_dimension_numbers<[1], [0], [0], [1], [0, 0, 1, 1], [], []>} : vector<256x512xbf16>, vector<512x16xbf16>, vector<256x16xf32> -> vector<256x16xf32>
    %73 = arith.addf %65, %72 : vector<256x16xf32>
    %c3_57 = arith.constant 3 : index
    %c0_58 = arith.constant 0 : index
    %c0_59 = arith.constant 0 : index
    %74 = vector.load %arg4[%c3_57, %c0_58, %c0_59] : memref<4x32x16xbf16, #tpu.memory_space<vmem>>, vector<1x32x16xbf16>
    %75 = vector.shape_cast %74 : vector<1x32x16xbf16> to vector<32x16xbf16>
    %cst_60 = arith.constant dense<0.000000e+00> : vector<512x16xf32>
    %76 = tpu.matmul %50, %75, %cst_60 {dimension_numbers = #tpu.dot_dimension_numbers<[1], [0], [0], [1], [0, 0, 1, 1], [], []>} : vector<512x32xbf16>, vector<32x16xbf16>, vector<512x16xf32> -> vector<512x16xf32>
    %c3_61 = arith.constant 3 : index
    %c0_62 = arith.constant 0 : index
    %c0_63 = arith.constant 0 : index
    %77 = vector.load %arg17[%c3_61, %c0_62, %c0_63] : memref<4x256x512xbf16, #tpu.memory_space<vmem>>, vector<1x256x512xbf16>
    %78 = vector.shape_cast %77 : vector<1x256x512xbf16> to vector<256x512xbf16>
    %79 = arith.truncf %76 : vector<512x16xf32> to vector<512x16xbf16>
    %cst_64 = arith.constant dense<0.000000e+00> : vector<256x16xf32>
    %80 = tpu.matmul %78, %79, %cst_64 {dimension_numbers = #tpu.dot_dimension_numbers<[1], [0], [0], [1], [0, 0, 1, 1], [], []>} : vector<256x512xbf16>, vector<512x16xbf16>, vector<256x16xf32> -> vector<256x16xf32>
    %81 = arith.addf %73, %80 : vector<256x16xf32>
    %c0_65 = arith.constant 0 : index
    %c0_66 = arith.constant 0 : index
    %82 = vector.load %arg5[%c0_65, %c0_66] : memref<256x1xf32, #tpu.memory_space<vmem>>, vector<256x1xf32>
    %83 = vector.broadcast %82 : vector<256x1xf32> to vector<256x16xf32>
    %84 = arith.addf %81, %83 : vector<256x16xf32>
    %cst_67 = arith.constant 0.000000e+00 : f32
    %85 = vector.broadcast %cst_67 : f32 to vector<256x16xf32>
    %86 = arith.maximumf %84, %85 : vector<256x16xf32>
    %c1_i32_68 = arith.constant 1 : i32
    %87 = tpu.memref_slice %arg22[%c1_i32_68] : memref<5x!tpu.dma_semaphore, #tpu.memory_space<semaphore_mem>> -> memref<1x!tpu.dma_semaphore, #tpu.memory_space<semaphore_mem>>
    %88 = tpu.memref_squeeze %87 : memref<1x!tpu.dma_semaphore, #tpu.memory_space<semaphore_mem>> -> memref<!tpu.dma_semaphore, #tpu.memory_space<semaphore_mem>>
    tpu.wait_dma2 semaphore(%88 : memref<!tpu.dma_semaphore, #tpu.memory_space<semaphore_mem>>) src(%arg12 : memref<4x128x256xbf16, #tpu.memory_space<any>>) dst(%arg18 : memref<4x128x256xbf16, #tpu.memory_space<vmem>>)
    %89 = arith.truncf %86 : vector<256x16xf32> to vector<256x16xbf16>
    %c0_69 = arith.constant 0 : index
    %c0_70 = arith.constant 0 : index
    %c0_71 = arith.constant 0 : index
    %90 = vector.load %arg6[%c0_69, %c0_70, %c0_71] : memref<4x16x8xbf16, #tpu.memory_space<vmem>>, vector<1x16x8xbf16>
    %91 = vector.shape_cast %90 : vector<1x16x8xbf16> to vector<16x8xbf16>
    %cst_72 = arith.constant dense<0.000000e+00> : vector<256x8xf32>
    %92 = tpu.matmul %89, %91, %cst_72 {dimension_numbers = #tpu.dot_dimension_numbers<[1], [0], [0], [1], [0, 0, 1, 1], [], []>} : vector<256x16xbf16>, vector<16x8xbf16>, vector<256x8xf32> -> vector<256x8xf32>
    %c0_73 = arith.constant 0 : index
    %c0_74 = arith.constant 0 : index
    %c0_75 = arith.constant 0 : index
    %93 = vector.load %arg18[%c0_73, %c0_74, %c0_75] : memref<4x128x256xbf16, #tpu.memory_space<vmem>>, vector<1x128x256xbf16>
    %94 = vector.shape_cast %93 : vector<1x128x256xbf16> to vector<128x256xbf16>
    %95 = arith.truncf %92 : vector<256x8xf32> to vector<256x8xbf16>
    %cst_76 = arith.constant dense<0.000000e+00> : vector<128x8xf32>
    %96 = tpu.matmul %94, %95, %cst_76 {dimension_numbers = #tpu.dot_dimension_numbers<[1], [0], [0], [1], [0, 0, 1, 1], [], []>} : vector<128x256xbf16>, vector<256x8xbf16>, vector<128x8xf32> -> vector<128x8xf32>
    %c1_77 = arith.constant 1 : index
    %c0_78 = arith.constant 0 : index
    %c0_79 = arith.constant 0 : index
    %97 = vector.load %arg6[%c1_77, %c0_78, %c0_79] : memref<4x16x8xbf16, #tpu.memory_space<vmem>>, vector<1x16x8xbf16>
    %98 = vector.shape_cast %97 : vector<1x16x8xbf16> to vector<16x8xbf16>
    %cst_80 = arith.constant dense<0.000000e+00> : vector<256x8xf32>
    %99 = tpu.matmul %89, %98, %cst_80 {dimension_numbers = #tpu.dot_dimension_numbers<[1], [0], [0], [1], [0, 0, 1, 1], [], []>} : vector<256x16xbf16>, vector<16x8xbf16>, vector<256x8xf32> -> vector<256x8xf32>
    %c1_81 = arith.constant 1 : index
    %c0_82 = arith.constant 0 : index
    %c0_83 = arith.constant 0 : index
    %100 = vector.load %arg18[%c1_81, %c0_82, %c0_83] : memref<4x128x256xbf16, #tpu.memory_space<vmem>>, vector<1x128x256xbf16>
    %101 = vector.shape_cast %100 : vector<1x128x256xbf16> to vector<128x256xbf16>
    %102 = arith.truncf %99 : vector<256x8xf32> to vector<256x8xbf16>
    %cst_84 = arith.constant dense<0.000000e+00> : vector<128x8xf32>
    %103 = tpu.matmul %101, %102, %cst_84 {dimension_numbers = #tpu.dot_dimension_numbers<[1], [0], [0], [1], [0, 0, 1, 1], [], []>} : vector<128x256xbf16>, vector<256x8xbf16>, vector<128x8xf32> -> vector<128x8xf32>
    %104 = arith.addf %96, %103 : vector<128x8xf32>
    %c2_85 = arith.constant 2 : index
    %c0_86 = arith.constant 0 : index
    %c0_87 = arith.constant 0 : index
    %105 = vector.load %arg6[%c2_85, %c0_86, %c0_87] : memref<4x16x8xbf16, #tpu.memory_space<vmem>>, vector<1x16x8xbf16>
    %106 = vector.shape_cast %105 : vector<1x16x8xbf16> to vector<16x8xbf16>
    %cst_88 = arith.constant dense<0.000000e+00> : vector<256x8xf32>
    %107 = tpu.matmul %89, %106, %cst_88 {dimension_numbers = #tpu.dot_dimension_numbers<[1], [0], [0], [1], [0, 0, 1, 1], [], []>} : vector<256x16xbf16>, vector<16x8xbf16>, vector<256x8xf32> -> vector<256x8xf32>
    %c2_89 = arith.constant 2 : index
    %c0_90 = arith.constant 0 : index
    %c0_91 = arith.constant 0 : index
    %108 = vector.load %arg18[%c2_89, %c0_90, %c0_91] : memref<4x128x256xbf16, #tpu.memory_space<vmem>>, vector<1x128x256xbf16>
    %109 = vector.shape_cast %108 : vector<1x128x256xbf16> to vector<128x256xbf16>
    %110 = arith.truncf %107 : vector<256x8xf32> to vector<256x8xbf16>
    %cst_92 = arith.constant dense<0.000000e+00> : vector<128x8xf32>
    %111 = tpu.matmul %109, %110, %cst_92 {dimension_numbers = #tpu.dot_dimension_numbers<[1], [0], [0], [1], [0, 0, 1, 1], [], []>} : vector<128x256xbf16>, vector<256x8xbf16>, vector<128x8xf32> -> vector<128x8xf32>
    %112 = arith.addf %104, %111 : vector<128x8xf32>
    %c3_93 = arith.constant 3 : index
    %c0_94 = arith.constant 0 : index
    %c0_95 = arith.constant 0 : index
    %113 = vector.load %arg6[%c3_93, %c0_94, %c0_95] : memref<4x16x8xbf16, #tpu.memory_space<vmem>>, vector<1x16x8xbf16>
    %114 = vector.shape_cast %113 : vector<1x16x8xbf16> to vector<16x8xbf16>
    %cst_96 = arith.constant dense<0.000000e+00> : vector<256x8xf32>
    %115 = tpu.matmul %89, %114, %cst_96 {dimension_numbers = #tpu.dot_dimension_numbers<[1], [0], [0], [1], [0, 0, 1, 1], [], []>} : vector<256x16xbf16>, vector<16x8xbf16>, vector<256x8xf32> -> vector<256x8xf32>
    %c3_97 = arith.constant 3 : index
    %c0_98 = arith.constant 0 : index
    %c0_99 = arith.constant 0 : index
    %116 = vector.load %arg18[%c3_97, %c0_98, %c0_99] : memref<4x128x256xbf16, #tpu.memory_space<vmem>>, vector<1x128x256xbf16>
    %117 = vector.shape_cast %116 : vector<1x128x256xbf16> to vector<128x256xbf16>
    %118 = arith.truncf %115 : vector<256x8xf32> to vector<256x8xbf16>
    %cst_100 = arith.constant dense<0.000000e+00> : vector<128x8xf32>
    %119 = tpu.matmul %117, %118, %cst_100 {dimension_numbers = #tpu.dot_dimension_numbers<[1], [0], [0], [1], [0, 0, 1, 1], [], []>} : vector<128x256xbf16>, vector<256x8xbf16>, vector<128x8xf32> -> vector<128x8xf32>
    %120 = arith.addf %112, %119 : vector<128x8xf32>
    %c0_101 = arith.constant 0 : index
    %c0_102 = arith.constant 0 : index
    %121 = vector.load %arg7[%c0_101, %c0_102] : memref<128x1xf32, #tpu.memory_space<vmem>>, vector<128x1xf32>
    %122 = vector.broadcast %121 : vector<128x1xf32> to vector<128x8xf32>
    %123 = arith.addf %120, %122 : vector<128x8xf32>
    %cst_103 = arith.constant 0.000000e+00 : f32
    %124 = vector.broadcast %cst_103 : f32 to vector<128x8xf32>
    %125 = arith.maximumf %123, %124 : vector<128x8xf32>
    %c2_i32_104 = arith.constant 2 : i32
    %126 = tpu.memref_slice %arg22[%c2_i32_104] : memref<5x!tpu.dma_semaphore, #tpu.memory_space<semaphore_mem>> -> memref<1x!tpu.dma_semaphore, #tpu.memory_space<semaphore_mem>>
    %127 = tpu.memref_squeeze %126 : memref<1x!tpu.dma_semaphore, #tpu.memory_space<semaphore_mem>> -> memref<!tpu.dma_semaphore, #tpu.memory_space<semaphore_mem>>
    tpu.wait_dma2 semaphore(%127 : memref<!tpu.dma_semaphore, #tpu.memory_space<semaphore_mem>>) src(%arg13 : memref<4x256x128xbf16, #tpu.memory_space<any>>) dst(%arg19 : memref<4x256x128xbf16, #tpu.memory_space<vmem>>)
    %128 = vector.extract_strided_slice %125 {offsets = [0, 0], sizes = [128, 2], strides = [1, 1]} : vector<128x8xf32> to vector<128x2xf32>
    %129 = arith.truncf %128 : vector<128x2xf32> to vector<128x2xbf16>
    %c0_105 = arith.constant 0 : index
    %c0_106 = arith.constant 0 : index
    %c0_107 = arith.constant 0 : index
    %130 = vector.load %arg19[%c0_105, %c0_106, %c0_107] : memref<4x256x128xbf16, #tpu.memory_space<vmem>>, vector<1x256x128xbf16>
    %131 = vector.shape_cast %130 : vector<1x256x128xbf16> to vector<256x128xbf16>
    %cst_108 = arith.constant dense<0.000000e+00> : vector<256x2xf32>
    %132 = tpu.matmul %131, %129, %cst_108 {dimension_numbers = #tpu.dot_dimension_numbers<[1], [0], [0], [1], [0, 0, 1, 1], [], []>} : vector<256x128xbf16>, vector<128x2xbf16>, vector<256x2xf32> -> vector<256x2xf32>
    %133 = vector.extract_strided_slice %125 {offsets = [0, 2], sizes = [128, 2], strides = [1, 1]} : vector<128x8xf32> to vector<128x2xf32>
    %134 = arith.truncf %133 : vector<128x2xf32> to vector<128x2xbf16>
    %c1_109 = arith.constant 1 : index
    %c0_110 = arith.constant 0 : index
    %c0_111 = arith.constant 0 : index
    %135 = vector.load %arg19[%c1_109, %c0_110, %c0_111] : memref<4x256x128xbf16, #tpu.memory_space<vmem>>, vector<1x256x128xbf16>
    %136 = vector.shape_cast %135 : vector<1x256x128xbf16> to vector<256x128xbf16>
    %cst_112 = arith.constant dense<0.000000e+00> : vector<256x2xf32>
    %137 = tpu.matmul %136, %134, %cst_112 {dimension_numbers = #tpu.dot_dimension_numbers<[1], [0], [0], [1], [0, 0, 1, 1], [], []>} : vector<256x128xbf16>, vector<128x2xbf16>, vector<256x2xf32> -> vector<256x2xf32>
    %138 = arith.addf %132, %137 : vector<256x2xf32>
    %139 = vector.extract_strided_slice %125 {offsets = [0, 4], sizes = [128, 2], strides = [1, 1]} : vector<128x8xf32> to vector<128x2xf32>
    %140 = arith.truncf %139 : vector<128x2xf32> to vector<128x2xbf16>
    %c2_113 = arith.constant 2 : index
    %c0_114 = arith.constant 0 : index
    %c0_115 = arith.constant 0 : index
    %141 = vector.load %arg19[%c2_113, %c0_114, %c0_115] : memref<4x256x128xbf16, #tpu.memory_space<vmem>>, vector<1x256x128xbf16>
    %142 = vector.shape_cast %141 : vector<1x256x128xbf16> to vector<256x128xbf16>
    %cst_116 = arith.constant dense<0.000000e+00> : vector<256x2xf32>
    %143 = tpu.matmul %142, %140, %cst_116 {dimension_numbers = #tpu.dot_dimension_numbers<[1], [0], [0], [1], [0, 0, 1, 1], [], []>} : vector<256x128xbf16>, vector<128x2xbf16>, vector<256x2xf32> -> vector<256x2xf32>
    %144 = arith.addf %138, %143 : vector<256x2xf32>
    %145 = vector.extract_strided_slice %125 {offsets = [0, 6], sizes = [128, 2], strides = [1, 1]} : vector<128x8xf32> to vector<128x2xf32>
    %146 = arith.truncf %145 : vector<128x2xf32> to vector<128x2xbf16>
    %c3_117 = arith.constant 3 : index
    %c0_118 = arith.constant 0 : index
    %c0_119 = arith.constant 0 : index
    %147 = vector.load %arg19[%c3_117, %c0_118, %c0_119] : memref<4x256x128xbf16, #tpu.memory_space<vmem>>, vector<1x256x128xbf16>
    %148 = vector.shape_cast %147 : vector<1x256x128xbf16> to vector<256x128xbf16>
    %cst_120 = arith.constant dense<0.000000e+00> : vector<256x2xf32>
    %149 = tpu.matmul %148, %146, %cst_120 {dimension_numbers = #tpu.dot_dimension_numbers<[1], [0], [0], [1], [0, 0, 1, 1], [], []>} : vector<256x128xbf16>, vector<128x2xbf16>, vector<256x2xf32> -> vector<256x2xf32>
    %150 = arith.addf %144, %149 : vector<256x2xf32>
    %c0_121 = arith.constant 0 : index
    %c0_122 = arith.constant 0 : index
    %151 = vector.load %arg8[%c0_121, %c0_122] : memref<256x1xf32, #tpu.memory_space<vmem>>, vector<256x1xf32>
    %152 = vector.broadcast %151 : vector<256x1xf32> to vector<256x2xf32>
    %153 = arith.addf %150, %152 : vector<256x2xf32>
    %cst_123 = arith.constant 0.000000e+00 : f32
    %154 = vector.broadcast %cst_123 : f32 to vector<256x2xf32>
    %155 = arith.maximumf %153, %154 : vector<256x2xf32>
    %c3_i32_124 = arith.constant 3 : i32
    %156 = tpu.memref_slice %arg22[%c3_i32_124] : memref<5x!tpu.dma_semaphore, #tpu.memory_space<semaphore_mem>> -> memref<1x!tpu.dma_semaphore, #tpu.memory_space<semaphore_mem>>
    %157 = tpu.memref_squeeze %156 : memref<1x!tpu.dma_semaphore, #tpu.memory_space<semaphore_mem>> -> memref<!tpu.dma_semaphore, #tpu.memory_space<semaphore_mem>>
    tpu.wait_dma2 semaphore(%157 : memref<!tpu.dma_semaphore, #tpu.memory_space<semaphore_mem>>) src(%arg14 : memref<256x256xbf16, #tpu.memory_space<any>>) dst(%arg20 : memref<256x256xbf16, #tpu.memory_space<vmem>>)
    %c0_125 = arith.constant 0 : index
    %c0_126 = arith.constant 0 : index
    %158 = vector.load %arg20[%c0_125, %c0_126] : memref<256x256xbf16, #tpu.memory_space<vmem>>, vector<256x256xbf16>
    %159 = arith.truncf %155 : vector<256x2xf32> to vector<256x2xbf16>
    %cst_127 = arith.constant dense<0.000000e+00> : vector<256x2xf32>
    %160 = tpu.matmul %158, %159, %cst_127 {dimension_numbers = #tpu.dot_dimension_numbers<[1], [0], [0], [1], [0, 0, 1, 1], [], []>} : vector<256x256xbf16>, vector<256x2xbf16>, vector<256x2xf32> -> vector<256x2xf32>
    %c0_128 = arith.constant 0 : index
    %c0_129 = arith.constant 0 : index
    %161 = vector.load %arg9[%c0_128, %c0_129] : memref<256x1xf32, #tpu.memory_space<vmem>>, vector<256x1xf32>
    %162 = vector.broadcast %161 : vector<256x1xf32> to vector<256x2xf32>
    %163 = arith.addf %160, %162 : vector<256x2xf32>
    %cst_130 = arith.constant 0.000000e+00 : f32
    %164 = vector.broadcast %cst_130 : f32 to vector<256x2xf32>
    %165 = arith.maximumf %163, %164 : vector<256x2xf32>
    %c4_i32_131 = arith.constant 4 : i32
    %166 = tpu.memref_slice %arg22[%c4_i32_131] : memref<5x!tpu.dma_semaphore, #tpu.memory_space<semaphore_mem>> -> memref<1x!tpu.dma_semaphore, #tpu.memory_space<semaphore_mem>>
    %167 = tpu.memref_squeeze %166 : memref<1x!tpu.dma_semaphore, #tpu.memory_space<semaphore_mem>> -> memref<!tpu.dma_semaphore, #tpu.memory_space<semaphore_mem>>
    tpu.wait_dma2 semaphore(%167 : memref<!tpu.dma_semaphore, #tpu.memory_space<semaphore_mem>>) src(%arg15 : memref<24x256xbf16, #tpu.memory_space<any>>) dst(%arg21 : memref<24x256xbf16, #tpu.memory_space<vmem>>)
    %c0_132 = arith.constant 0 : index
    %c0_133 = arith.constant 0 : index
    %168 = vector.load %arg21[%c0_132, %c0_133] : memref<24x256xbf16, #tpu.memory_space<vmem>>, vector<24x256xbf16>
    %169 = arith.truncf %165 : vector<256x2xf32> to vector<256x2xbf16>
    %cst_134 = arith.constant dense<0.000000e+00> : vector<24x2xf32>
    %170 = tpu.matmul %168, %169, %cst_134 {dimension_numbers = #tpu.dot_dimension_numbers<[1], [0], [0], [1], [0, 0, 1, 1], [], []>} : vector<24x256xbf16>, vector<256x2xbf16>, vector<24x2xf32> -> vector<24x2xf32>
    %c0_135 = arith.constant 0 : index
    %c0_136 = arith.constant 0 : index
    %171 = vector.load %arg10[%c0_135, %c0_136] : memref<24x1xf32, #tpu.memory_space<vmem>>, vector<24x1xf32>
    %172 = vector.broadcast %171 : vector<24x1xf32> to vector<24x2xf32>
    %173 = arith.addf %170, %172 : vector<24x2xf32>
    %c0_137 = arith.constant 0 : index
    %c0_138 = arith.constant 0 : index
    %174 = vector.load %arg16[%c0_137, %c0_138] : memref<24x2xf32, #tpu.memory_space<vmem>>, vector<24x2xf32>
    tpu.vector_store %arg16[%c0_137, %c0_138], %173 {strides = array<i32>} : memref<24x2xf32, #tpu.memory_space<vmem>>, vector<24x2xf32>,
    return
  }
}

</mosaic_0001>

<llo_original>
// kernel: forward.1
$region0: #{forward.1}
  #allocation0 [shape = 'u32[]', space=smem, size = 0x4, offset = 0x4, fixed_abs, tag = 'smem constant byte address 0x4 - core index']
  #allocation1 [shape = 'u32[144,128]{1,0:T(1,128)}', space=vmem, size = 0x12000, scoped, tag = 'internal scratch']
  #allocation2 [shape = 'bf16[4,256,512]{2,1,0:T(8,128)(2,1)}', space=vmem, size = 0x100000, scoped, tag = 'scratch operand']
  #allocation3 [shape = 'bf16[4,128,256]{2,1,0:T(8,128)(2,1)}', space=vmem, size = 0x40000, scoped, tag = 'scratch operand']
  #allocation4 [shape = 'bf16[4,256,128]{2,1,0:T(8,128)(2,1)}', space=vmem, size = 0x40000, scoped, tag = 'scratch operand']
  #allocation5 [shape = 'bf16[256,256]{1,0:T(8,128)(2,1)}', space=vmem, size = 0x20000, scoped, tag = 'scratch operand']
  #allocation6 [shape = 'bf16[24,256]{1,0:T(8,128)(2,1)}', space=vmem, size = 0x3000, scoped, tag = 'scratch operand']
  #allocation7 [shape = 's32[5]{0}', space=sflag, size = 0x14, scoped, tag = 'scratch operand']
  #allocation19 [shape = 's32[]', space=sflag, size = 0x4, offset = 0, fixed_abs, tag = 'sflag constant byte address 0x0 - dummy sync flag']
  #allocation20 [shape = 's32[]', space=sflag, size = 0x4, offset = 0, fixed_abs, tag = 'sflag constant byte address 0x0 - dummy sync flag']
  #allocation21 [shape = 'u32[]', space=smem, size = 0x4, offset = 0x44, fixed_abs, tag = 'smem constant byte address 0x44 - assertion arg 0']
  #allocation22 [shape = 'u32[]', space=smem, size = 0x4, offset = 0x48, fixed_abs, tag = 'smem constant byte address 0x48 - assertion arg 1']
  #allocation23 [shape = 's32[]', space=sflag, size = 0x4, offset = 0, fixed_abs, tag = 'sflag constant byte address 0x0 - dummy sync flag']
  #allocation24 [shape = 's32[]', space=sflag, size = 0x4, offset = 0, fixed_abs, tag = 'sflag constant byte address 0x0 - dummy sync flag']
  #allocation25 [shape = 's32[]', space=sflag, size = 0x4, offset = 0, fixed_abs, tag = 'sflag constant byte address 0x0 - dummy sync flag']
  #allocation26 [shape = 's32[]', space=sflag, size = 0x4, offset = 0, fixed_abs, tag = 'sflag constant byte address 0x0 - dummy sync flag']
  #allocation27 [shape = 's32[]', space=sflag, size = 0x4, offset = 0, fixed_abs, tag = 'sflag constant byte address 0x0 - dummy sync flag']
  #allocation28 [shape = 's32[]', space=sflag, size = 0x4, offset = 0, fixed_abs, tag = 'sflag constant byte address 0x0 - dummy sync flag']
  #allocation29 [shape = 's32[]', space=sflag, size = 0x4, offset = 0, fixed_abs, tag = 'sflag constant byte address 0x0 - dummy sync flag']
  %s0 = inlined_call_operand.vmem [shape: f32[32,64], index: 0, kind: input, shape index: {}]
  %s1 = inlined_call_operand.hbm [shape: bf16[4,512,32], index: 1, kind: input, shape index: {}]
  %s2 = inlined_call_operand.hbm [shape: bf16[4,64,32], index: 2, kind: input, shape index: {}]
  %s3 = inlined_call_operand.hbm [shape: f32[512,1], index: 3, kind: input, shape index: {}]
  %s4 = inlined_call_operand.vmem [shape: bf16[4,32,16], index: 4, kind: input, shape index: {}]
  %s5 = inlined_call_operand.hbm [shape: f32[256,1], index: 5, kind: input, shape index: {}]
  %s6 = inlined_call_operand.vmem [shape: bf16[4,16,8], index: 6, kind: input, shape index: {}]
  %s7 = inlined_call_operand.vmem [shape: f32[128,1], index: 7, kind: input, shape index: {}]
  %s8 = inlined_call_operand.hbm [shape: f32[256,1], index: 8, kind: input, shape index: {}]
  %s9 = inlined_call_operand.hbm [shape: f32[256,1], index: 9, kind: input, shape index: {}]
  %s10 = inlined_call_operand.hbm [shape: f32[24,1], index: 10, kind: input, shape index: {}]
  %s11 = inlined_call_operand.hbm [shape: bf16[4,256,512], index: 11, kind: input, shape index: {}]
  %s12 = inlined_call_operand.hbm [shape: bf16[4,128,256], index: 12, kind: input, shape index: {}]
  %s13 = inlined_call_operand.hbm [shape: bf16[4,256,128], index: 13, kind: input, shape index: {}]
  %s14 = inlined_call_operand.hbm [shape: bf16[256,256], index: 14, kind: input, shape index: {}]
  %s15 = inlined_call_operand.vmem [shape: bf16[24,256], index: 15, kind: input, shape index: {}]
  %s16 = inlined_call_operand.vmem [shape: f32[24,2], index: 16, kind: output, shape index: {}]
  %s17 = sld [smem:[#allocation0]]
  $region132: #{forward.1} parent=0
    _
  %s19 = ssub.s32 1, %s17
  %s20 = scalar_select 0, %s19, %s17
  $region1: #{forward.1} parent=0
    #allocation8 [shape = 'u8[524288]{0}', space=vmem, size = 0x80000, scoped, tag = 'input window, operand 1, single buffered']
    #allocation9 [shape = 's32[1]{0}', space=sflag, size = 0x4, scoped, tag = 'scoped memory for forward.1']
    #allocation10 [shape = 'u8[65536]{0}', space=vmem, size = 0x10000, scoped, tag = 'input window, operand 2, single buffered']
    #allocation11 [shape = 's32[1]{0}', space=sflag, size = 0x4, scoped, tag = 'scoped memory for forward.1']
    #allocation12 [shape = 'u8[262144]{0}', space=vmem, size = 0x40000, scoped, tag = 'input window, operand 3, single buffered']
    #allocation13 [shape = 'u8[131072]{0}', space=vmem, size = 0x20000, scoped, tag = 'input window, operand 5, single buffered']
    #allocation14 [shape = 's32[1]{0}', space=sflag, size = 0x4, scoped, tag = 'scoped memory for forward.1']
    #allocation15 [shape = 'u8[131072]{0}', space=vmem, size = 0x20000, scoped, tag = 'input window, operand 8, single buffered']
    #allocation16 [shape = 'u8[131072]{0}', space=vmem, size = 0x20000, scoped, tag = 'input window, operand 9, single buffered']
    #allocation17 [shape = 's32[1]{0}', space=sflag, size = 0x4, scoped, tag = 'scoped memory for forward.1']
    #allocation18 [shape = 'u8[12288]{0}', space=vmem, size = 0x3000, scoped, tag = 'input window, operand 10, single buffered']
    %21 = vsyncpa [#allocation9], 0
    %22 = vsyncpa [#allocation11], 0
    %23 = vsyncpa [#allocation14], 0
    %24 = vsyncpa [#allocation17], 0
    // Predicated region
    $region2: #{forward.1} parent=1 // pred_check
      _
    $region3: #{forward.1} parent=1 // pred_check_branch
      %26 = sbr.rel (0) target = $region5
    $region4: #{forward.1} parent=1 // pred_region
      _
    $region5: #{forward.1} parent=1 // pred_fallthru
      _
    // Predicated region
    $region6: #{forward.1} parent=1 // pred_check
      _
    $region7: #{forward.1} parent=1 // pred_check_branch
      %28 = sbr.rel (0) target = $region9
    $region8: #{forward.1} parent=1 // pred_region
      %s30 = ssub.s32 16384, 16384
      %31 = vsyncadd [#allocation9], %s30
      %s32 = sshll.u32 [#allocation8], 4
      %s33 = int_to_ptr.vmem [resolvable:$true] %s32
      %38 = dma.hbm_to_vmem [thread:$0]  %s1, 16384, %s33, [#allocation9], 64, 64, 4
    $region9: #{forward.1} parent=1 // pred_fallthru
      _
    // Predicated region
    $region10: #{forward.1} parent=1 // pred_check
      _
    $region11: #{forward.1} parent=1 // pred_check_branch
      %40 = sbr.rel (0) target = $region13
    $region12: #{forward.1} parent=1 // pred_region
      %s42 = ssub.s32 2048, 2048
      %43 = vsyncadd [#allocation11], %s42
      %s44 = sshll.u32 [#allocation10], 4
      %s45 = int_to_ptr.vmem [resolvable:$true] %s44
      %50 = dma.hbm_to_vmem [thread:$0]  %s2, 2048, %s45, [#allocation11], 64, 64, 4
    $region13: #{forward.1} parent=1 // pred_fallthru
      _
    // Predicated region
    $region14: #{forward.1} parent=1 // pred_check
      _
    $region15: #{forward.1} parent=1 // pred_check_branch
      %52 = sbr.rel (0) target = $region17
    $region16: #{forward.1} parent=1 // pred_region
      %s54 = ssub.s32 8192, 8192
      %55 = vsyncadd [#allocation11], %s54
      %s56 = sshll.u32 [#allocation12], 4
      %s57 = int_to_ptr.vmem [resolvable:$true] %s56
      %62 = dma.hbm_to_vmem [thread:$0]  %s3, 8192, %s57, [#allocation11], 128, 128, 8
    $region17: #{forward.1} parent=1 // pred_fallthru
      _
    // Predicated region
    $region18: #{forward.1} parent=1 // pred_check
      _
    $region19: #{forward.1} parent=1 // pred_check_branch
      %64 = sbr.rel (0) target = $region21
    $region20: #{forward.1} parent=1 // pred_region
      _
    $region21: #{forward.1} parent=1 // pred_fallthru
      _
    // Predicated region
    $region22: #{forward.1} parent=1 // pred_check
      _
    $region23: #{forward.1} parent=1 // pred_check_branch
      %66 = sbr.rel (0) target = $region25
    $region24: #{forward.1} parent=1 // pred_region
      %s68 = ssub.s32 4096, 4096
      %69 = vsyncadd [#allocation14], %s68
      %s70 = sshll.u32 [#allocation13], 4
      %s71 = int_to_ptr.vmem [resolvable:$true] %s70
      %76 = dma.hbm_to_vmem [thread:$0]  %s5, 4096, %s71, [#allocation14], 128, 128, 8
    $region25: #{forward.1} parent=1 // pred_fallthru
      _
    // Predicated region
    $region26: #{forward.1} parent=1 // pred_check
      _
    $region27: #{forward.1} parent=1 // pred_check_branch
      %78 = sbr.rel (0) target = $region29
    $region28: #{forward.1} parent=1 // pred_region
      _
    $region29: #{forward.1} parent=1 // pred_fallthru
      _
    // Predicated region
    $region30: #{forward.1} parent=1 // pred_check
      _
    $region31: #{forward.1} parent=1 // pred_check_branch
      %80 = sbr.rel (0) target = $region33
    $region32: #{forward.1} parent=1 // pred_region
      _
    $region33: #{forward.1} parent=1 // pred_fallthru
      _
    // Predicated region
    $region34: #{forward.1} parent=1 // pred_check
      _
    $region35: #{forward.1} parent=1 // pred_check_branch
      %82 = sbr.rel (0) target = $region37
    $region36: #{forward.1} parent=1 // pred_region
      %s84 = ssub.s32 4096, 4096
      %85 = vsyncadd [#allocation14], %s84
      %s86 = sshll.u32 [#allocation15], 4
      %s87 = int_to_ptr.vmem [resolvable:$true] %s86
      %92 = dma.hbm_to_vmem [thread:$0]  %s8, 4096, %s87, [#allocation14], 128, 128, 8
    $region37: #{forward.1} parent=1 // pred_fallthru
      _
    // Predicated region
    $region38: #{forward.1} parent=1 // pred_check
      _
    $region39: #{forward.1} parent=1 // pred_check_branch
      %94 = sbr.rel (0) target = $region41
    $region40: #{forward.1} parent=1 // pred_region
      %s96 = ssub.s32 4096, 4096
      %97 = vsyncadd [#allocation17], %s96
      %s98 = sshll.u32 [#allocation16], 4
      %s99 = int_to_ptr.vmem [resolvable:$true] %s98
      %104 = dma.hbm_to_vmem [thread:$0]  %s9, 4096, %s99, [#allocation17], 128, 128, 8
    $region41: #{forward.1} parent=1 // pred_fallthru
      _
    // Predicated region
    $region42: #{forward.1} parent=1 // pred_check
      _
    $region43: #{forward.1} parent=1 // pred_check_branch
      %106 = sbr.rel (0) target = $region45
    $region44: #{forward.1} parent=1 // pred_region
      %s108 = ssub.s32 384, 384
      %109 = vsyncadd [#allocation17], %s108
      %s110 = sshll.u32 [#allocation18], 4
      %s111 = int_to_ptr.vmem [resolvable:$true] %s110
      %116 = dma.hbm_to_vmem [thread:$0]  %s10, 384, %s111, [#allocation17], 128, 128, 8
    $region45: #{forward.1} parent=1 // pred_fallthru
      _
    // Predicated region
    $region46: #{forward.1} parent=1 // pred_check
      _
    $region47: #{forward.1} parent=1 // pred_check_branch
      %118 = sbr.rel (0) target = $region49
    $region48: #{forward.1} parent=1 // pred_region
      %119 = dma.done [#allocation9], 16384
    $region49: #{forward.1} parent=1 // pred_fallthru
      _
    // Predicated region
    $region50: #{forward.1} parent=1 // pred_check
      _
    $region51: #{forward.1} parent=1 // pred_check_branch
      %121 = sbr.rel (0) target = $region53
    $region52: #{forward.1} parent=1 // pred_region
      %122 = dma.done [#allocation11], 2048
    $region53: #{forward.1} parent=1 // pred_fallthru
      _
    // Predicated region
    $region54: #{forward.1} parent=1 // pred_check
      _
    $region55: #{forward.1} parent=1 // pred_check_branch
      %124 = sbr.rel (0) target = $region57
    $region56: #{forward.1} parent=1 // pred_region
      %125 = dma.done [#allocation11], 8192
    $region57: #{forward.1} parent=1 // pred_fallthru
      _
    // Predicated region
    $region58: #{forward.1} parent=1 // pred_check
      _
    $region59: #{forward.1} parent=1 // pred_check_branch
      %127 = sbr.rel (0) target = $region61
    $region60: #{forward.1} parent=1 // pred_region
      %128 = dma.done [#allocation14], 4096
    $region61: #{forward.1} parent=1 // pred_fallthru
      _
    // Predicated region
    $region62: #{forward.1} parent=1 // pred_check
      _
    $region63: #{forward.1} parent=1 // pred_check_branch
      %130 = sbr.rel (0) target = $region65
    $region64: #{forward.1} parent=1 // pred_region
      %131 = dma.done [#allocation14], 4096
    $region65: #{forward.1} parent=1 // pred_fallthru
      _
    // Predicated region
    $region66: #{forward.1} parent=1 // pred_check
      _
    $region67: #{forward.1} parent=1 // pred_check_branch
      %133 = sbr.rel (0) target = $region69
    $region68: #{forward.1} parent=1 // pred_region
      %134 = dma.done [#allocation17], 4096
    $region69: #{forward.1} parent=1 // pred_fallthru
      _
    // Predicated region
    $region70: #{forward.1} parent=1 // pred_check
      _
    $region71: #{forward.1} parent=1 // pred_check_branch
      %136 = sbr.rel (0) target = $region73
    $region72: #{forward.1} parent=1 // pred_region
      %137 = dma.done [#allocation17], 384
    $region73: #{forward.1} parent=1 // pred_fallthru
      _
    // Predicated region
    $region74: #{forward.1} parent=1 // pred_check
      _
    $region75: #{forward.1} parent=1 // pred_check_branch
      %140 = sbr.rel target = $region77
    $region76: #{forward.1} parent=1 // pred_region
      %141 = sst [smem:[#allocation21]] [#allocation20]
      %142 = sst [smem:[#allocation22]] [#allocation19]
    $region77: #{forward.1} parent=1 // pred_fallthru
      _
    %144 = shalt.err (0)
    %s146 = sshll.u32 [#allocation2], 4
    %s147 = int_to_ptr.vmem [resolvable:$true] %s146
    %149 = dma.hbm_to_vmem [thread:$0]  %s11, 32768, %s147, [#allocation7]
    %s150 = scalar_lea.sflag [#allocation7], 1
    // Predicated region
    $region78: #{forward.1} parent=1 // pred_check
      _
    $region79: #{forward.1} parent=1 // pred_check_branch
      %152 = sbr.rel target = $region81
    $region80: #{forward.1} parent=1 // pred_region
      %153 = sst [smem:[#allocation21]] [#allocation24]
      %154 = sst [smem:[#allocation22]] [#allocation23]
    $region81: #{forward.1} parent=1 // pred_fallthru
      _
    %156 = shalt.err (0)
    %s158 = sshll.u32 [#allocation3], 4
    %s159 = int_to_ptr.vmem [resolvable:$true] %s158
    %161 = dma.hbm_to_vmem [thread:$0]  %s12, 8192, %s159, %s150
    %s162 = scalar_lea.sflag [#allocation7], 2
    // Predicated region
    $region82: #{forward.1} parent=1 // pred_check
      _
    $region83: #{forward.1} parent=1 // pred_check_branch
      %164 = sbr.rel target = $region85
    $region84: #{forward.1} parent=1 // pred_region
      %165 = sst [smem:[#allocation21]] [#allocation26]
      %166 = sst [smem:[#allocation22]] [#allocation25]
    $region85: #{forward.1} parent=1 // pred_fallthru
      _
    %168 = shalt.err (0)
    %s170 = sshll.u32 [#allocation4], 4
    %s171 = int_to_ptr.vmem [resolvable:$true] %s170
    %173 = dma.hbm_to_vmem [thread:$0]  %s13, 8192, %s171, %s162
    %s174 = scalar_lea.sflag [#allocation7], 3
    // Predicated region
    $region86: #{forward.1} parent=1 // pred_check
      _
    $region87: #{forward.1} parent=1 // pred_check_branch
      %176 = sbr.rel target = $region89
    $region88: #{forward.1} parent=1 // pred_region
      %177 = sst [smem:[#allocation21]] [#allocation28]
      %178 = sst [smem:[#allocation22]] [#allocation27]
    $region89: #{forward.1} parent=1 // pred_fallthru
      _
    %180 = shalt.err (0)
    %s182 = sshll.u32 [#allocation5], 4
    %s183 = int_to_ptr.vmem [resolvable:$true] %s182
    %185 = dma.hbm_to_vmem [thread:$0]  %s14, 4096, %s183, %s174
    %s186 = scalar_lea.sflag [#allocation7], 4
    %p188 = scmp.lt.u32.totalorder 24, 8
    %p189 = pneg %p188
    // Predicated region
    $region90: #{forward.1} parent=1 // pred_check
      _
    $region91: #{forward.1} parent=1 // pred_check_branch
      %191 = sbr.rel (%p188) target = $region93
    $region92: #{forward.1} parent=1 // pred_region
      %s207 = sand.u32 24, 7
      %p208 = scmp.eq.s32.totalorder %s207, 0
      // Predicated region
      $region105: #{forward.1} parent=92 // pred_check
        %p209 = pneg %p208
      $region106: #{forward.1} parent=92 // pred_check_branch
        %211 = sbr.rel (%p209) target = $region108
      $region107: #{forward.1} parent=92 // pred_region
        loop: start=0, step=1, limit=1
        $region109: #{forward.1} parent=107 // loop_pre_header
          _
        $region110: #{forward.1} parent=107 // loop_header
          %s213 = sphi 0, %s217
          %p214 = scmp.ge.s32.totalorder %s213, 1
          %s218 = sphi %s15, %s15
          %s219 = sphi [#allocation6], [#allocation6]
        $region111: #{forward.1} parent=107 // loop_header_branch
          %216 = sbr.rel (%p214) target = $region115
        $region112: #{forward.1} parent=107 // loop_body
          %v220 = vld [vmem:[%s218] sm:$0xff]
          %221 = vst [vmem:[%s219] sm:$0xff] %v220
          %v222 = vld [vmem:[%s218 + $0x8] sm:$0xff]
          %223 = vst [vmem:[%s219 + $0x8] sm:$0xff] %v222
          %v224 = vld [vmem:[%s218 + $0x10] sm:$0xff]
          %225 = vst [vmem:[%s219 + $0x10] sm:$0xff] %v224
        $region113: #{forward.1} parent=107 // loop_footer
          %s217 = sadd.s32 1, %s213
        $region114: #{forward.1} parent=107 // loop_footer_branch
          %212 = sbr.rel target = $region110
        $region115: #{forward.1} parent=107 // loop_exit
          _
      $region108: #{forward.1} parent=92 // pred_fallthru
        _
      %p226 = pneg %p208
      // Predicated region
      $region116: #{forward.1} parent=92 // pred_check
        _
      $region117: #{forward.1} parent=92 // pred_check_branch
        %228 = sbr.rel (%p208) target = $region119
      $region118: #{forward.1} parent=92 // pred_region
        %s229 = sand.u32 24, 7
      $region119: #{forward.1} parent=92 // pred_fallthru
        _
    $region93: #{forward.1} parent=1 // pred_fallthru
      _
    // Predicated region
    $region94: #{forward.1} parent=1 // pred_check
      %p192 = pneg %p188
    $region95: #{forward.1} parent=1 // pred_check_branch
      %194 = sbr.rel (%p192) target = $region97
    $region96: #{forward.1} parent=1 // pred_region
      %s195 = sshll.u32 1, 24
      %s196 = ssub.s32 %s195, 1
      loop: start=0, step=1, limit=1
      $region98: #{forward.1} parent=96 // loop_pre_header
        _
      $region99: #{forward.1} parent=96 // loop_header
        %s198 = sphi 0, %s202
        %p199 = scmp.ge.s32.totalorder %s198, 1
        %s203 = sphi %s15, %s15
        %s204 = sphi [#allocation6], [#allocation6]
      $region100: #{forward.1} parent=96 // loop_header_branch
        %201 = sbr.rel (%p199) target = $region104
      $region101: #{forward.1} parent=96 // loop_body
        %v205 = vld [vmem:[%s203] sm:%s196]
        %206 = vst [vmem:[%s204] sm:%s196] %v205
      $region102: #{forward.1} parent=96 // loop_footer
        %s202 = sadd.s32 1, %s198
      $region103: #{forward.1} parent=96 // loop_footer_branch
        %197 = sbr.rel target = $region99
      $region104: #{forward.1} parent=96 // loop_exit
        _
    $region97: #{forward.1} parent=1 // pred_fallthru
      _
    // Predicated region
    $region120: #{forward.1} parent=1 // pred_check
      _
    $region121: #{forward.1} parent=1 // pred_check_branch
      %232 = sbr.rel (0) target = $region123
    $region122: #{forward.1} parent=1 // pred_region
      %233 = vsyncadd %s186, 384
    $region123: #{forward.1} parent=1 // pred_fallthru
      _
    %v234 = vld [vmem:[%s0] sm:$0xff]
    %v235 = vld [vmem:[%s0 + $0x8] sm:$0xff]
    %v236 = vld [vmem:[%s0 + $0x10] sm:$0xff]
    %v237 = vld [vmem:[%s0 + $0x18] sm:$0xff]
    %v238 = vpack.c.bf16 %v235, %v234
    %v239 = vpack.c.bf16 %v237, %v236
    %v240 = vld [vmem:[#allocation10] sm:$0xf]
    %v241 = vld [vmem:[#allocation10 + $0x4] sm:$0xf]
    %v242 = vld [vmem:[#allocation10 + $0x8] sm:$0xf]
    %v243 = vld [vmem:[#allocation10 + $0xc] sm:$0xf]
    %v244 = vld [vmem:[#allocation10 + $0x10] sm:$0xf]
    %v245 = vld [vmem:[#allocation10 + $0x14] sm:$0xf]
    %v246 = vld [vmem:[#allocation10 + $0x18] sm:$0xf]
    %v247 = vld [vmem:[#allocation10 + $0x1c] sm:$0xf]
    %v256 = vunpack.c.l.b16 %v240
    %v257 = vunpack.c.l.b16 %v241
    %v258 = vunpack.c.l.b16 %v242
    %v259 = vunpack.c.l.b16 %v243
    %v260 = vunpack.c.l.b16 %v244
    %v261 = vunpack.c.l.b16 %v245
    %v262 = vunpack.c.l.b16 %v246
    %v263 = vunpack.c.l.b16 %v247
    %v264 = vpack.c.b16 %v257, %v256
    %v265 = vpack.c.b16 %v259, %v258
    %v266 = vpack.c.b16 %v261, %v260
    %v267 = vpack.c.b16 %v263, %v262
    %vm272 = vcmask 523264
    %v274 = vsel %vm272, %v238, 0
    %v277 = vsel %vm272, %v239, 0
    %279 = vmatprep.subr.bf16.mxu0 0
    %280 = vmatpush1.bf16.msra.mxu0 0
    %281 = vmatprep.subr.bf16.mxu0 0
    %282 = vmatpush1.bf16.msra.mxu0 0
    %283 = vmatprep.subr.bf16.mxu0 0
    %284 = vmatpush1.bf16.msra.mxu0 0
    %285 = vmatprep.subr.bf16.mxu0 0
    %286 = vmatpush1.bf16.msra.mxu0 0
    %287 = vmatprep.subr.bf16.mxu0 0
    %288 = vmatpush1.bf16.msra.mxu0 %v267
    %289 = vmatprep.subr.bf16.mxu0 0
    %290 = vmatpush1.bf16.msra.mxu0 %v266
    %291 = vmatprep.subr.bf16.mxu0 0
    %292 = vmatpush1.bf16.msra.mxu0 %v265
    %293 = vmatprep.subr.bf16.mxu0 0
    %294 = vmatpush1.bf16.msra.mxu0 %v264
    %295 = vmatprep.subr.bf16.mxu0 0
    %296 = vmatpush2.bf16.msra.mxu0 0
    %297 = vmatprep.subr.bf16.mxu0 0
    %298 = vmatpush2.bf16.msra.mxu0 0
    %299 = vmatprep.subr.bf16.mxu0 0
    %300 = vmatpush2.bf16.msra.mxu0 0
    %301 = vmatprep.subr.bf16.mxu0 0
    %302 = vmatpush2.bf16.msra.mxu0 0
    %303 = vmatprep.subr.bf16.mxu0 0
    %304 = vmatpush2.bf16.msra.mxu0 0
    %305 = vmatprep.subr.bf16.mxu0 0
    %306 = vmatpush2.bf16.msra.mxu0 0
    %307 = vmatprep.subr.bf16.mxu0 0
    %308 = vmatpush2.bf16.msra.mxu0 0
    %309 = vmatprep.subr.bf16.mxu0 0
    %310 = vmatpush2.bf16.msra.mxu0 0
    %311 = vmatprep.mubr.bf16.mxu0 0
    %312 = vmatmul.mubr.bf16.gmra.mxu0 %v274
    %v313 = vpop.f32.mrf.mxu0
    %v314 = vadd.f32 0.0, %v313
    %v315 = vpop.f32.mrf.mxu0
    %v316 = vpop.f32.mrf.mxu0
    %v317 = vadd.f32 0.0, %v316
    %v318 = vpop.f32.mrf.mxu0
    %319 = vmatprep.mubr.bf16.mxu0 0
    %320 = vmatmul.mubr.bf16.gmra.mxu0 %v277
    %v321 = vpop.f32.mrf.mxu0
    %v322 = vadd.f32 0.0, %v321
    %v323 = vpop.f32.mrf.mxu0
    %v324 = vpop.f32.mrf.mxu0
    %v325 = vadd.f32 0.0, %v324
    %v326 = vpop.f32.mrf.mxu0
    %327 = vdwg.mxu0
    %v328 = vld [vmem:[#allocation8] sm:$0xf]
    %v329 = vld [vmem:[#allocation8 + $0x4] sm:$0xf]
    %v330 = vld [vmem:[#allocation8 + $0x8] sm:$0xf]
    %v331 = vld [vmem:[#allocation8 + $0xc] sm:$0xf]
    %v332 = vld [vmem:[#allocation8 + $0x10] sm:$0xf]
    %v333 = vld [vmem:[#allocation8 + $0x14] sm:$0xf]
    %v334 = vld [vmem:[#allocation8 + $0x18] sm:$0xf]
    %v335 = vld [vmem:[#allocation8 + $0x1c] sm:$0xf]
    %v336 = vld [vmem:[#allocation8 + $0x20] sm:$0xf]
    %v337 = vld [vmem:[#allocation8 + $0x24] sm:$0xf]
    %v338 = vld [vmem:[#allocation8 + $0x28] sm:$0xf]
    %v339 = vld [vmem:[#allocation8 + $0x2c] sm:$0xf]
    %v340 = vld [vmem:[#allocation8 + $0x30] sm:$0xf]
    %v341 = vld [vmem:[#allocation8 + $0x34] sm:$0xf]
    %v342 = vld [vmem:[#allocation8 + $0x38] sm:$0xf]
    %v343 = vld [vmem:[#allocation8 + $0x3c] sm:$0xf]
    %v344 = vld [vmem:[#allocation8 + $0x40] sm:$0xf]
    %v345 = vld [vmem:[#allocation8 + $0x44] sm:$0xf]
    %v346 = vld [vmem:[#allocation8 + $0x48] sm:$0xf]
    %v347 = vld [vmem:[#allocation8 + $0x4c] sm:$0xf]
    %v348 = vld [vmem:[#allocation8 + $0x50] sm:$0xf]
    %v349 = vld [vmem:[#allocation8 + $0x54] sm:$0xf]
    %v350 = vld [vmem:[#allocation8 + $0x58] sm:$0xf]
    %v351 = vld [vmem:[#allocation8 + $0x5c] sm:$0xf]
    %v352 = vld [vmem:[#allocation8 + $0x60] sm:$0xf]
    %v353 = vld [vmem:[#allocation8 + $0x64] sm:$0xf]
    %v354 = vld [vmem:[#allocation8 + $0x68] sm:$0xf]
    %v355 = vld [vmem:[#allocation8 + $0x6c] sm:$0xf]
    %v356 = vld [vmem:[#allocation8 + $0x70] sm:$0xf]
    %v357 = vld [vmem:[#allocation8 + $0x74] sm:$0xf]
    %v358 = vld [vmem:[#allocation8 + $0x78] sm:$0xf]
    %v359 = vld [vmem:[#allocation8 + $0x7c] sm:$0xf]
    %v360 = vld [vmem:[#allocation8 + $0x80] sm:$0xf]
    %v361 = vld [vmem:[#allocation8 + $0x84] sm:$0xf]
    %v362 = vld [vmem:[#allocation8 + $0x88] sm:$0xf]
    %v363 = vld [vmem:[#allocation8 + $0x8c] sm:$0xf]
    %v364 = vld [vmem:[#allocation8 + $0x90] sm:$0xf]
    %v365 = vld [vmem:[#allocation8 + $0x94] sm:$0xf]
    %v366 = vld [vmem:[#allocation8 + $0x98] sm:$0xf]
    %v367 = vld [vmem:[#allocation8 + $0x9c] sm:$0xf]
    %v368 = vld [vmem:[#allocation8 + $0xa0] sm:$0xf]
    %v369 = vld [vmem:[#allocation8 + $0xa4] sm:$0xf]
    %v370 = vld [vmem:[#allocation8 + $0xa8] sm:$0xf]
    %v371 = vld [vmem:[#allocation8 + $0xac] sm:$0xf]
    %v372 = vld [vmem:[#allocation8 + $0xb0] sm:$0xf]
    %v373 = vld [vmem:[#allocation8 + $0xb4] sm:$0xf]
    %v374 = vld [vmem:[#allocation8 + $0xb8] sm:$0xf]
    %v375 = vld [vmem:[#allocation8 + $0xbc] sm:$0xf]
    %v376 = vld [vmem:[#allocation8 + $0xc0] sm:$0xf]
    %v377 = vld [vmem:[#allocation8 + $0xc4] sm:$0xf]
    %v378 = vld [vmem:[#allocation8 + $0xc8] sm:$0xf]
    %v379 = vld [vmem:[#allocation8 + $0xcc] sm:$0xf]
    %v380 = vld [vmem:[#allocation8 + $0xd0] sm:$0xf]
    %v381 = vld [vmem:[#allocation8 + $0xd4] sm:$0xf]
    %v382 = vld [vmem:[#allocation8 + $0xd8] sm:$0xf]
    %v383 = vld [vmem:[#allocation8 + $0xdc] sm:$0xf]
    %v384 = vld [vmem:[#allocation8 + $0xe0] sm:$0xf]
    %v385 = vld [vmem:[#allocation8 + $0xe4] sm:$0xf]
    %v386 = vld [vmem:[#allocation8 + $0xe8] sm:$0xf]
    %v387 = vld [vmem:[#allocation8 + $0xec] sm:$0xf]
    %v388 = vld [vmem:[#allocation8 + $0xf0] sm:$0xf]
    %v389 = vld [vmem:[#allocation8 + $0xf4] sm:$0xf]
    %v390 = vld [vmem:[#allocation8 + $0xf8] sm:$0xf]
    %v391 = vld [vmem:[#allocation8 + $0xfc] sm:$0xf]
    %v392 = vpack.c.bf16 %v317, %v314
    %v393 = vpack.c.bf16 %v325, %v322
    %s394 = scalar_lea.vmem [#allocation10], 32
    %v395 = vld [vmem:[%s394] sm:$0xf]
    %v396 = vld [vmem:[%s394 + $0x4] sm:$0xf]
    %v397 = vld [vmem:[%s394 + $0x8] sm:$0xf]
    %v398 = vld [vmem:[%s394 + $0xc] sm:$0xf]
    %v399 = vld [vmem:[%s394 + $0x10] sm:$0xf]
    %v400 = vld [vmem:[%s394 + $0x14] sm:$0xf]
    %v401 = vld [vmem:[%s394 + $0x18] sm:$0xf]
    %v402 = vld [vmem:[%s394 + $0x1c] sm:$0xf]
    %v411 = vunpack.c.l.b16 %v395
    %v412 = vunpack.c.l.b16 %v396
    %v413 = vunpack.c.l.b16 %v397
    %v414 = vunpack.c.l.b16 %v398
    %v415 = vunpack.c.l.b16 %v399
    %v416 = vunpack.c.l.b16 %v400
    %v417 = vunpack.c.l.b16 %v401
    %v418 = vunpack.c.l.b16 %v402
    %v419 = vpack.c.b16 %v412, %v411
    %v420 = vpack.c.b16 %v414, %v413
    %v421 = vpack.c.b16 %v416, %v415
    %v422 = vpack.c.b16 %v418, %v417
    %427 = vmatprep.subr.bf16.mxu0 0
    %428 = vmatpush1.bf16.msra.mxu0 0
    %429 = vmatprep.subr.bf16.mxu0 0
    %430 = vmatpush1.bf16.msra.mxu0 0
    %431 = vmatprep.subr.bf16.mxu0 0
    %432 = vmatpush1.bf16.msra.mxu0 0
    %433 = vmatprep.subr.bf16.mxu0 0
    %434 = vmatpush1.bf16.msra.mxu0 0
    %435 = vmatprep.subr.bf16.mxu0 0
    %436 = vmatpush1.bf16.msra.mxu0 %v422
    %437 = vmatprep.subr.bf16.mxu0 0
    %438 = vmatpush1.bf16.msra.mxu0 %v421
    %439 = vmatprep.subr.bf16.mxu0 0
    %440 = vmatpush1.bf16.msra.mxu0 %v420
    %441 = vmatprep.subr.bf16.mxu0 0
    %442 = vmatpush1.bf16.msra.mxu0 %v419
    %443 = vmatprep.subr.bf16.mxu0 0
    %444 = vmatpush2.bf16.msra.mxu0 0
    %445 = vmatprep.subr.bf16.mxu0 0
    %446 = vmatpush2.bf16.msra.mxu0 0
    %447 = vmatprep.subr.bf16.mxu0 0
    %448 = vmatpush2.bf16.msra.mxu0 0
    %449 = vmatprep.subr.bf16.mxu0 0
    %450 = vmatpush2.bf16.msra.mxu0 0
    %451 = vmatprep.subr.bf16.mxu0 0
    %452 = vmatpush2.bf16.msra.mxu0 0
    %453 = vmatprep.subr.bf16.mxu0 0
    %454 = vmatpush2.bf16.msra.mxu0 0
    %455 = vmatprep.subr.bf16.mxu0 0
    %456 = vmatpush2.bf16.msra.mxu0 0
    %457 = vmatprep.subr.bf16.mxu0 0
    %458 = vmatpush2.bf16.msra.mxu0 0
    %459 = vmatprep.mubr.bf16.mxu0 0
    %460 = vmatmul.mubr.bf16.gmra.mxu0 %v274
    %v461 = vpop.f32.mrf.mxu0
    %v462 = vadd.f32 0.0, %v461
    %v463 = vpop.f32.mrf.mxu0
    %v464 = vpop.f32.mrf.mxu0
    %v465 = vadd.f32 0.0, %v464
    %v466 = vpop.f32.mrf.mxu0
    %467 = vmatprep.mubr.bf16.mxu0 0
    %468 = vmatmul.mubr.bf16.gmra.mxu0 %v277
    %v469 = vpop.f32.mrf.mxu0
    %v470 = vadd.f32 0.0, %v469
    %v471 = vpop.f32.mrf.mxu0
    %v472 = vpop.f32.mrf.mxu0
    %v473 = vadd.f32 0.0, %v472
    %v474 = vpop.f32.mrf.mxu0
    %475 = vdwg.mxu0
    %s476 = scalar_lea.vmem [#allocation8], 256
    %v477 = vld [vmem:[%s476] sm:$0xf]
    %v478 = vld [vmem:[%s476 + $0x4] sm:$0xf]
    %v479 = vld [vmem:[%s476 + $0x8] sm:$0xf]
    %v480 = vld [vmem:[%s476 + $0xc] sm:$0xf]
    %v481 = vld [vmem:[%s476 + $0x10] sm:$0xf]
    %v482 = vld [vmem:[%s476 + $0x14] sm:$0xf]
    %v483 = vld [vmem:[%s476 + $0x18] sm:$0xf]
    %v484 = vld [vmem:[%s476 + $0x1c] sm:$0xf]
    %v485 = vld [vmem:[%s476 + $0x20] sm:$0xf]
    %v486 = vld [vmem:[%s476 + $0x24] sm:$0xf]
    %v487 = vld [vmem:[%s476 + $0x28] sm:$0xf]
    %v488 = vld [vmem:[%s476 + $0x2c] sm:$0xf]
    %v489 = vld [vmem:[%s476 + $0x30] sm:$0xf]
    %v490 = vld [vmem:[%s476 + $0x34] sm:$0xf]
    %v491 = vld [vmem:[%s476 + $0x38] sm:$0xf]
    %v492 = vld [vmem:[%s476 + $0x3c] sm:$0xf]
    %v493 = vld [vmem:[%s476 + $0x40] sm:$0xf]
    %v494 = vld [vmem:[%s476 + $0x44] sm:$0xf]
    %v495 = vld [vmem:[%s476 + $0x48] sm:$0xf]
    %v496 = vld [vmem:[%s476 + $0x4c] sm:$0xf]
    %v497 = vld [vmem:[%s476 + $0x50] sm:$0xf]
    %v498 = vld [vmem:[%s476 + $0x54] sm:$0xf]
    %v499 = vld [vmem:[%s476 + $0x58] sm:$0xf]
    %v500 = vld [vmem:[%s476 + $0x5c] sm:$0xf]
    %v501 = vld [vmem:[%s476 + $0x60] sm:$0xf]
    %v502 = vld [vmem:[%s476 + $0x64] sm:$0xf]
    %v503 = vld [vmem:[%s476 + $0x68] sm:$0xf]
    %v504 = vld [vmem:[%s476 + $0x6c] sm:$0xf]
    %v505 = vld [vmem:[%s476 + $0x70] sm:$0xf]
    %v506 = vld [vmem:[%s476 + $0x74] sm:$0xf]
    %v507 = vld [vmem:[%s476 + $0x78] sm:$0xf]
    %v508 = vld [vmem:[%s476 + $0x7c] sm:$0xf]
    %v509 = vld [vmem:[%s476 + $0x80] sm:$0xf]
    %v510 = vld [vmem:[%s476 + $0x84] sm:$0xf]
    %v511 = vld [vmem:[%s476 + $0x88] sm:$0xf]
    %v512 = vld [vmem:[%s476 + $0x8c] sm:$0xf]
    %v513 = vld [vmem:[%s476 + $0x90] sm:$0xf]
    %v514 = vld [vmem:[%s476 + $0x94] sm:$0xf]
    %v515 = vld [vmem:[%s476 + $0x98] sm:$0xf]
    %v516 = vld [vmem:[%s476 + $0x9c] sm:$0xf]
    %v517 = vld [vmem:[%s476 + $0xa0] sm:$0xf]
    %v518 = vld [vmem:[%s476 + $0xa4] sm:$0xf]
    %v519 = vld [vmem:[%s476 + $0xa8] sm:$0xf]
    %v520 = vld [vmem:[%s476 + $0xac] sm:$0xf]
    %v521 = vld [vmem:[%s476 + $0xb0] sm:$0xf]
    %v522 = vld [vmem:[%s476 + $0xb4] sm:$0xf]
    %v523 = vld [vmem:[%s476 + $0xb8] sm:$0xf]
    %v524 = vld [vmem:[%s476 + $0xbc] sm:$0xf]
    %v525 = vld [vmem:[%s476 + $0xc0] sm:$0xf]
    %v526 = vld [vmem:[%s476 + $0xc4] sm:$0xf]
    %v527 = vld [vmem:[%s476 + $0xc8] sm:$0xf]
    %v528 = vld [vmem:[%s476 + $0xcc] sm:$0xf]
    %v529 = vld [vmem:[%s476 + $0xd0] sm:$0xf]
    %v530 = vld [vmem:[%s476 + $0xd4] sm:$0xf]
    %v531 = vld [vmem:[%s476 + $0xd8] sm:$0xf]
    %v532 = vld [vmem:[%s476 + $0xdc] sm:$0xf]
    %v533 = vld [vmem:[%s476 + $0xe0] sm:$0xf]
    %v534 = vld [vmem:[%s476 + $0xe4] sm:$0xf]
    %v535 = vld [vmem:[%s476 + $0xe8] sm:$0xf]
    %v536 = vld [vmem:[%s476 + $0xec] sm:$0xf]
    %v537 = vld [vmem:[%s476 + $0xf0] sm:$0xf]
    %v538 = vld [vmem:[%s476 + $0xf4] sm:$0xf]
    %v539 = vld [vmem:[%s476 + $0xf8] sm:$0xf]
    %v540 = vld [vmem:[%s476 + $0xfc] sm:$0xf]
    %v541 = vpack.c.bf16 %v465, %v462
    %v542 = vpack.c.bf16 %v473, %v470
    %v607 = vunpack.c.l.b16 %v477
    %v608 = vunpack.c.l.b16 %v478
    %v609 = vunpack.c.l.b16 %v479
    %v610 = vunpack.c.l.b16 %v480
    %v611 = vunpack.c.l.b16 %v481
    %v612 = vunpack.c.l.b16 %v482
    %v613 = vunpack.c.l.b16 %v483
    %v614 = vunpack.c.l.b16 %v484
    %v615 = vunpack.c.l.b16 %v485
    %v616 = vunpack.c.l.b16 %v486
    %v617 = vunpack.c.l.b16 %v487
    %v618 = vunpack.c.l.b16 %v488
    %v619 = vunpack.c.l.b16 %v489
    %v620 = vunpack.c.l.b16 %v490
    %v621 = vunpack.c.l.b16 %v491
    %v622 = vunpack.c.l.b16 %v492
    %v623 = vunpack.c.l.b16 %v493
    %v624 = vunpack.c.l.b16 %v494
    %v625 = vunpack.c.l.b16 %v495
    %v626 = vunpack.c.l.b16 %v496
    %v627 = vunpack.c.l.b16 %v497
    %v628 = vunpack.c.l.b16 %v498
    %v629 = vunpack.c.l.b16 %v499
    %v630 = vunpack.c.l.b16 %v500
    %v631 = vunpack.c.l.b16 %v501
    %v632 = vunpack.c.l.b16 %v502
    %v633 = vunpack.c.l.b16 %v503
    %v634 = vunpack.c.l.b16 %v504
    %v635 = vunpack.c.l.b16 %v505
    %v636 = vunpack.c.l.b16 %v506
    %v637 = vunpack.c.l.b16 %v507
    %v638 = vunpack.c.l.b16 %v508
    %v639 = vunpack.c.l.b16 %v509
    %v640 = vunpack.c.l.b16 %v510
    %v641 = vunpack.c.l.b16 %v511
    %v642 = vunpack.c.l.b16 %v512
    %v643 = vunpack.c.l.b16 %v513
    %v644 = vunpack.c.l.b16 %v514
    %v645 = vunpack.c.l.b16 %v515
    %v646 = vunpack.c.l.b16 %v516
    %v647 = vunpack.c.l.b16 %v517
    %v648 = vunpack.c.l.b16 %v518
    %v649 = vunpack.c.l.b16 %v519
    %v650 = vunpack.c.l.b16 %v520
    %v651 = vunpack.c.l.b16 %v521
    %v652 = vunpack.c.l.b16 %v522
    %v653 = vunpack.c.l.b16 %v523
    %v654 = vunpack.c.l.b16 %v524
    %v655 = vunpack.c.l.b16 %v525
    %v656 = vunpack.c.l.b16 %v526
    %v657 = vunpack.c.l.b16 %v527
    %v658 = vunpack.c.l.b16 %v528
    %v659 = vunpack.c.l.b16 %v529
    %v660 = vunpack.c.l.b16 %v530
    %v661 = vunpack.c.l.b16 %v531
    %v662 = vunpack.c.l.b16 %v532
    %v663 = vunpack.c.l.b16 %v533
    %v664 = vunpack.c.l.b16 %v534
    %v665 = vunpack.c.l.b16 %v535
    %v666 = vunpack.c.l.b16 %v536
    %v667 = vunpack.c.l.b16 %v537
    %v668 = vunpack.c.l.b16 %v538
    %v669 = vunpack.c.l.b16 %v539
    %v670 = vunpack.c.l.b16 %v540
    %v671 = vpack.c.b16 %v608, %v607
    %v672 = vpack.c.b16 %v610, %v609
    %v673 = vpack.c.b16 %v612, %v611
    %v674 = vpack.c.b16 %v614, %v613
    %v675 = vpack.c.b16 %v616, %v615
    %v676 = vpack.c.b16 %v618, %v617
    %v677 = vpack.c.b16 %v620, %v619
    %v678 = vpack.c.b16 %v622, %v621
    %v679 = vpack.c.b16 %v624, %v623
    %v680 = vpack.c.b16 %v626, %v625
    %v681 = vpack.c.b16 %v628, %v627
    %v682 = vpack.c.b16 %v630, %v629
    %v683 = vpack.c.b16 %v632, %v631
    %v684 = vpack.c.b16 %v634, %v633
    %v685 = vpack.c.b16 %v636, %v635
    %v686 = vpack.c.b16 %v638, %v637
    %v687 = vpack.c.b16 %v640, %v639
    %v688 = vpack.c.b16 %v642, %v641
    %v689 = vpack.c.b16 %v644, %v643
    %v690 = vpack.c.b16 %v646, %v645
    %v691 = vpack.c.b16 %v648, %v647
    %v692 = vpack.c.b16 %v650, %v649
    %v693 = vpack.c.b16 %v652, %v651
    %v694 = vpack.c.b16 %v654, %v653
    %v695 = vpack.c.b16 %v656, %v655
    %v696 = vpack.c.b16 %v658, %v657
    %v697 = vpack.c.b16 %v660, %v659
    %v698 = vpack.c.b16 %v662, %v661
    %v699 = vpack.c.b16 %v664, %v663
    %v700 = vpack.c.b16 %v666, %v665
    %v701 = vpack.c.b16 %v668, %v667
    %v702 = vpack.c.b16 %v670, %v669
    %vm703 = vcmask 261120
    %v705 = vsel %vm703, %v671, 0
    %v708 = vsel %vm703, %v672, 0
    %v711 = vsel %vm703, %v673, 0
    %v714 = vsel %vm703, %v674, 0
    %v717 = vsel %vm703, %v675, 0
    %v720 = vsel %vm703, %v676, 0
    %v723 = vsel %vm703, %v677, 0
    %v726 = vsel %vm703, %v678, 0
    %v729 = vsel %vm703, %v679, 0
    %v732 = vsel %vm703, %v680, 0
    %v735 = vsel %vm703, %v681, 0
    %v738 = vsel %vm703, %v682, 0
    %v741 = vsel %vm703, %v683, 0
    %v744 = vsel %vm703, %v684, 0
    %v747 = vsel %vm703, %v685, 0
    %v750 = vsel %vm703, %v686, 0
    %v753 = vsel %vm703, %v687, 0
    %v756 = vsel %vm703, %v688, 0
    %v759 = vsel %vm703, %v689, 0
    %v762 = vsel %vm703, %v690, 0
    %v765 = vsel %vm703, %v691, 0
    %v768 = vsel %vm703, %v692, 0
    %v771 = vsel %vm703, %v693, 0
    %v774 = vsel %vm703, %v694, 0
    %v777 = vsel %vm703, %v695, 0
    %v780 = vsel %vm703, %v696, 0
    %v783 = vsel %vm703, %v697, 0
    %v786 = vsel %vm703, %v698, 0
    %v789 = vsel %vm703, %v699, 0
    %v792 = vsel %vm703, %v700, 0
    %v795 = vsel %vm703, %v701, 0
    %v798 = vsel %vm703, %v702, 0
    %800 = vmatprep.subr.bf16.mxu0 0
    %801 = vmatpush1.bf16.msra.mxu0 0
    %802 = vmatprep.subr.bf16.mxu0 0
    %803 = vmatpush1.bf16.msra.mxu0 0
    %804 = vmatprep.subr.bf16.mxu0 0
    %805 = vmatpush1.bf16.msra.mxu0 0
    %806 = vmatprep.subr.bf16.mxu0 0
    %807 = vmatpush1.bf16.msra.mxu0 0
    %808 = vmatprep.subr.bf16.mxu0 0
    %809 = vmatpush1.bf16.msra.mxu0 0
    %810 = vmatprep.subr.bf16.mxu0 0
    %811 = vmatpush1.bf16.msra.mxu0 0
    %812 = vmatprep.subr.bf16.mxu0 0
    %813 = vmatpush1.bf16.msra.mxu0 %v542
    %814 = vmatprep.subr.bf16.mxu0 0
    %815 = vmatpush1.bf16.msra.mxu0 %v541
    %816 = vmatprep.subr.bf16.mxu0 0
    %817 = vmatpush2.bf16.msra.mxu0 0
    %818 = vmatprep.subr.bf16.mxu0 0
    %819 = vmatpush2.bf16.msra.mxu0 0
    %820 = vmatprep.subr.bf16.mxu0 0
    %821 = vmatpush2.bf16.msra.mxu0 0
    %822 = vmatprep.subr.bf16.mxu0 0
    %823 = vmatpush2.bf16.msra.mxu0 0
    %824 = vmatprep.subr.bf16.mxu0 0
    %825 = vmatpush2.bf16.msra.mxu0 0
    %826 = vmatprep.subr.bf16.mxu0 0
    %827 = vmatpush2.bf16.msra.mxu0 0
    %828 = vmatprep.subr.bf16.mxu0 0
    %829 = vmatpush2.bf16.msra.mxu0 0
    %830 = vmatprep.subr.bf16.mxu0 0
    %831 = vmatpush2.bf16.msra.mxu0 0
    %832 = vmatprep.mubr.bf16.mxu0 0
    %833 = vmatmul.mubr.bf16.gmra.mxu0 %v705
    %v834 = vpop.f32.mrf.mxu0
    %v835 = vadd.f32 0.0, %v834
    %v836 = vpop.f32.mrf.mxu0
    %v837 = vpop.f32.mrf.mxu0
    %v838 = vadd.f32 0.0, %v837
    %v839 = vpop.f32.mrf.mxu0
    %840 = vmatprep.mubr.bf16.mxu0 0
    %841 = vmatmul.mubr.bf16.gmra.mxu0 %v708
    %v842 = vpop.f32.mrf.mxu0
    %v843 = vadd.f32 0.0, %v842
    %v844 = vpop.f32.mrf.mxu0
    %v845 = vpop.f32.mrf.mxu0
    %v846 = vadd.f32 0.0, %v845
    %v847 = vpop.f32.mrf.mxu0
    %848 = vmatprep.mubr.bf16.mxu0 0
    %849 = vmatmul.mubr.bf16.gmra.mxu0 %v711
    %v850 = vpop.f32.mrf.mxu0
    %v851 = vadd.f32 0.0, %v850
    %v852 = vpop.f32.mrf.mxu0
    %v853 = vpop.f32.mrf.mxu0
    %v854 = vadd.f32 0.0, %v853
    %v855 = vpop.f32.mrf.mxu0
    %856 = vmatprep.mubr.bf16.mxu0 0
    %857 = vmatmul.mubr.bf16.gmra.mxu0 %v714
    %v858 = vpop.f32.mrf.mxu0
    %v859 = vadd.f32 0.0, %v858
    %v860 = vpop.f32.mrf.mxu0
    %v861 = vpop.f32.mrf.mxu0
    %v862 = vadd.f32 0.0, %v861
    %v863 = vpop.f32.mrf.mxu0
    %864 = vmatprep.mubr.bf16.mxu0 0
    %865 = vmatmul.mubr.bf16.gmra.mxu0 %v717
    %v866 = vpop.f32.mrf.mxu0
    %v867 = vadd.f32 0.0, %v866
    %v868 = vpop.f32.mrf.mxu0
    %v869 = vpop.f32.mrf.mxu0
    %v870 = vadd.f32 0.0, %v869
    %v871 = vpop.f32.mrf.mxu0
    %872 = vmatprep.mubr.bf16.mxu0 0
    %873 = vmatmul.mubr.bf16.gmra.mxu0 %v720
    %v874 = vpop.f32.mrf.mxu0
    %v875 = vadd.f32 0.0, %v874
    %v876 = vpop.f32.mrf.mxu0
    %v877 = vpop.f32.mrf.mxu0
    %v878 = vadd.f32 0.0, %v877
    %v879 = vpop.f32.mrf.mxu0
    %880 = vmatprep.mubr.bf16.mxu0 0
    %881 = vmatmul.mubr.bf16.gmra.mxu0 %v723
    %v882 = vpop.f32.mrf.mxu0
    %v883 = vadd.f32 0.0, %v882
    %v884 = vpop.f32.mrf.mxu0
    %v885 = vpop.f32.mrf.mxu0
    %v886 = vadd.f32 0.0, %v885
    %v887 = vpop.f32.mrf.mxu0
    %888 = vmatprep.mubr.bf16.mxu0 0
    %889 = vmatmul.mubr.bf16.gmra.mxu0 %v726
    %v890 = vpop.f32.mrf.mxu0
    %v891 = vadd.f32 0.0, %v890
    %v892 = vpop.f32.mrf.mxu0
    %v893 = vpop.f32.mrf.mxu0
    %v894 = vadd.f32 0.0, %v893
    %v895 = vpop.f32.mrf.mxu0
    %896 = vmatprep.mubr.bf16.mxu0 0
    %897 = vmatmul.mubr.bf16.gmra.mxu0 %v729
    %v898 = vpop.f32.mrf.mxu0
    %v899 = vadd.f32 0.0, %v898
    %v900 = vpop.f32.mrf.mxu0
    %v901 = vpop.f32.mrf.mxu0
    %v902 = vadd.f32 0.0, %v901
    %v903 = vpop.f32.mrf.mxu0
    %904 = vmatprep.mubr.bf16.mxu0 0
    %905 = vmatmul.mubr.bf16.gmra.mxu0 %v732
    %v906 = vpop.f32.mrf.mxu0
    %v907 = vadd.f32 0.0, %v906
    %v908 = vpop.f32.mrf.mxu0
    %v909 = vpop.f32.mrf.mxu0
    %v910 = vadd.f32 0.0, %v909
    %v911 = vpop.f32.mrf.mxu0
    %912 = vmatprep.mubr.bf16.mxu0 0
    %913 = vmatmul.mubr.bf16.gmra.mxu0 %v735
    %v914 = vpop.f32.mrf.mxu0
    %v915 = vadd.f32 0.0, %v914
    %v916 = vpop.f32.mrf.mxu0
    %v917 = vpop.f32.mrf.mxu0
    %v918 = vadd.f32 0.0, %v917
    %v919 = vpop.f32.mrf.mxu0
    %920 = vmatprep.mubr.bf16.mxu0 0
    %921 = vmatmul.mubr.bf16.gmra.mxu0 %v738
    %v922 = vpop.f32.mrf.mxu0
    %v923 = vadd.f32 0.0, %v922
    %v924 = vpop.f32.mrf.mxu0
    %v925 = vpop.f32.mrf.mxu0
    %v926 = vadd.f32 0.0, %v925
    %v927 = vpop.f32.mrf.mxu0
    %928 = vmatprep.mubr.bf16.mxu0 0
    %929 = vmatmul.mubr.bf16.gmra.mxu0 %v741
    %v930 = vpop.f32.mrf.mxu0
    %v931 = vadd.f32 0.0, %v930
    %v932 = vpop.f32.mrf.mxu0
    %v933 = vpop.f32.mrf.mxu0
    %v934 = vadd.f32 0.0, %v933
    %v935 = vpop.f32.mrf.mxu0
    %936 = vmatprep.mubr.bf16.mxu0 0
    %937 = vmatmul.mubr.bf16.gmra.mxu0 %v744
    %v938 = vpop.f32.mrf.mxu0
    %v939 = vadd.f32 0.0, %v938
    %v940 = vpop.f32.mrf.mxu0
    %v941 = vpop.f32.mrf.mxu0
    %v942 = vadd.f32 0.0, %v941
    %v943 = vpop.f32.mrf.mxu0
    %944 = vmatprep.mubr.bf16.mxu0 0
    %945 = vmatmul.mubr.bf16.gmra.mxu0 %v747
    %v946 = vpop.f32.mrf.mxu0
    %v947 = vadd.f32 0.0, %v946
    %v948 = vpop.f32.mrf.mxu0
    %v949 = vpop.f32.mrf.mxu0
    %v950 = vadd.f32 0.0, %v949
    %v951 = vpop.f32.mrf.mxu0
    %952 = vmatprep.mubr.bf16.mxu0 0
    %953 = vmatmul.mubr.bf16.gmra.mxu0 %v750
    %v954 = vpop.f32.mrf.mxu0
    %v955 = vadd.f32 0.0, %v954
    %v956 = vpop.f32.mrf.mxu0
    %v957 = vpop.f32.mrf.mxu0
    %v958 = vadd.f32 0.0, %v957
    %v959 = vpop.f32.mrf.mxu0
    %960 = vmatprep.mubr.bf16.mxu0 0
    %961 = vmatmul.mubr.bf16.gmra.mxu0 %v753
    %v962 = vpop.f32.mrf.mxu0
    %v963 = vadd.f32 0.0, %v962
    %v964 = vpop.f32.mrf.mxu0
    %v965 = vpop.f32.mrf.mxu0
    %v966 = vadd.f32 0.0, %v965
    %v967 = vpop.f32.mrf.mxu0
    %968 = vmatprep.mubr.bf16.mxu0 0
    %969 = vmatmul.mubr.bf16.gmra.mxu0 %v756
    %v970 = vpop.f32.mrf.mxu0
    %v971 = vadd.f32 0.0, %v970
    %v972 = vpop.f32.mrf.mxu0
    %v973 = vpop.f32.mrf.mxu0
    %v974 = vadd.f32 0.0, %v973
    %v975 = vpop.f32.mrf.mxu0
    %976 = vmatprep.mubr.bf16.mxu0 0
    %977 = vmatmul.mubr.bf16.gmra.mxu0 %v759
    %v978 = vpop.f32.mrf.mxu0
    %v979 = vadd.f32 0.0, %v978
    %v980 = vpop.f32.mrf.mxu0
    %v981 = vpop.f32.mrf.mxu0
    %v982 = vadd.f32 0.0, %v981
    %v983 = vpop.f32.mrf.mxu0
    %984 = vmatprep.mubr.bf16.mxu0 0
    %985 = vmatmul.mubr.bf16.gmra.mxu0 %v762
    %v986 = vpop.f32.mrf.mxu0
    %v987 = vadd.f32 0.0, %v986
    %v988 = vpop.f32.mrf.mxu0
    %v989 = vpop.f32.mrf.mxu0
    %v990 = vadd.f32 0.0, %v989
    %v991 = vpop.f32.mrf.mxu0
    %992 = vmatprep.mubr.bf16.mxu0 0
    %993 = vmatmul.mubr.bf16.gmra.mxu0 %v765
    %v994 = vpop.f32.mrf.mxu0
    %v995 = vadd.f32 0.0, %v994
    %v996 = vpop.f32.mrf.mxu0
    %v997 = vpop.f32.mrf.mxu0
    %v998 = vadd.f32 0.0, %v997
    %v999 = vpop.f32.mrf.mxu0
    %1000 = vmatprep.mubr.bf16.mxu0 0
    %1001 = vmatmul.mubr.bf16.gmra.mxu0 %v768
    %v1002 = vpop.f32.mrf.mxu0
    %v1003 = vadd.f32 0.0, %v1002
    %v1004 = vpop.f32.mrf.mxu0
    %v1005 = vpop.f32.mrf.mxu0
    %v1006 = vadd.f32 0.0, %v1005
    %v1007 = vpop.f32.mrf.mxu0
    %1008 = vmatprep.mubr.bf16.mxu0 0
    %1009 = vmatmul.mubr.bf16.gmra.mxu0 %v771
    %v1010 = vpop.f32.mrf.mxu0
    %v1011 = vadd.f32 0.0, %v1010
    %v1012 = vpop.f32.mrf.mxu0
    %v1013 = vpop.f32.mrf.mxu0
    %v1014 = vadd.f32 0.0, %v1013
    %v1015 = vpop.f32.mrf.mxu0
    %1016 = vmatprep.mubr.bf16.mxu0 0
    %1017 = vmatmul.mubr.bf16.gmra.mxu0 %v774
    %v1018 = vpop.f32.mrf.mxu0
    %v1019 = vadd.f32 0.0, %v1018
    %v1020 = vpop.f32.mrf.mxu0
    %v1021 = vpop.f32.mrf.mxu0
    %v1022 = vadd.f32 0.0, %v1021
    %v1023 = vpop.f32.mrf.mxu0
    %1024 = vmatprep.mubr.bf16.mxu0 0
    %1025 = vmatmul.mubr.bf16.gmra.mxu0 %v777
    %v1026 = vpop.f32.mrf.mxu0
    %v1027 = vadd.f32 0.0, %v1026
    %v1028 = vpop.f32.mrf.mxu0
    %v1029 = vpop.f32.mrf.mxu0
    %v1030 = vadd.f32 0.0, %v1029
    %v1031 = vpop.f32.mrf.mxu0
    %1032 = vmatprep.mubr.bf16.mxu0 0
    %1033 = vmatmul.mubr.bf16.gmra.mxu0 %v780
    %v1034 = vpop.f32.mrf.mxu0
    %v1035 = vadd.f32 0.0, %v1034
    %v1036 = vpop.f32.mrf.mxu0
    %v1037 = vpop.f32.mrf.mxu0
    %v1038 = vadd.f32 0.0, %v1037
    %v1039 = vpop.f32.mrf.mxu0
    %1040 = vmatprep.mubr.bf16.mxu0 0
    %1041 = vmatmul.mubr.bf16.gmra.mxu0 %v783
    %v1042 = vpop.f32.mrf.mxu0
    %v1043 = vadd.f32 0.0, %v1042
    %v1044 = vpop.f32.mrf.mxu0
    %v1045 = vpop.f32.mrf.mxu0
    %v1046 = vadd.f32 0.0, %v1045
    %v1047 = vpop.f32.mrf.mxu0
    %1048 = vmatprep.mubr.bf16.mxu0 0
    %1049 = vmatmul.mubr.bf16.gmra.mxu0 %v786
    %v1050 = vpop.f32.mrf.mxu0
    %v1051 = vadd.f32 0.0, %v1050
    %v1052 = vpop.f32.mrf.mxu0
    %v1053 = vpop.f32.mrf.mxu0
    %v1054 = vadd.f32 0.0, %v1053
    %v1055 = vpop.f32.mrf.mxu0
    %1056 = vmatprep.mubr.bf16.mxu0 0
    %1057 = vmatmul.mubr.bf16.gmra.mxu0 %v789
    %v1058 = vpop.f32.mrf.mxu0
    %v1059 = vadd.f32 0.0, %v1058
    %v1060 = vpop.f32.mrf.mxu0
    %v1061 = vpop.f32.mrf.mxu0
    %v1062 = vadd.f32 0.0, %v1061
    %v1063 = vpop.f32.mrf.mxu0
    %1064 = vmatprep.mubr.bf16.mxu0 0
    %1065 = vmatmul.mubr.bf16.gmra.mxu0 %v792
    %v1066 = vpop.f32.mrf.mxu0
    %v1067 = vadd.f32 0.0, %v1066
    %v1068 = vpop.f32.mrf.mxu0
    %v1069 = vpop.f32.mrf.mxu0
    %v1070 = vadd.f32 0.0, %v1069
    %v1071 = vpop.f32.mrf.mxu0
    %1072 = vmatprep.mubr.bf16.mxu0 0
    %1073 = vmatmul.mubr.bf16.gmra.mxu0 %v795
    %v1074 = vpop.f32.mrf.mxu0
    %v1075 = vadd.f32 0.0, %v1074
    %v1076 = vpop.f32.mrf.mxu0
    %v1077 = vpop.f32.mrf.mxu0
    %v1078 = vadd.f32 0.0, %v1077
    %v1079 = vpop.f32.mrf.mxu0
    %1080 = vmatprep.mubr.bf16.mxu0 0
    %1081 = vmatmul.mubr.bf16.gmra.mxu0 %v798
    %v1082 = vpop.f32.mrf.mxu0
    %v1083 = vadd.f32 0.0, %v1082
    %v1084 = vpop.f32.mrf.mxu0
    %v1085 = vpop.f32.mrf.mxu0
    %v1086 = vadd.f32 0.0, %v1085
    %v1087 = vpop.f32.mrf.mxu0
    %1088 = vdwg.mxu0
    %v1153 = vunpack.c.l.b16 %v328
    %v1154 = vunpack.c.l.b16 %v329
    %v1155 = vunpack.c.l.b16 %v330
    %v1156 = vunpack.c.l.b16 %v331
    %v1157 = vunpack.c.l.b16 %v332
    %v1158 = vunpack.c.l.b16 %v333
    %v1159 = vunpack.c.l.b16 %v334
    %v1160 = vunpack.c.l.b16 %v335
    %v1161 = vunpack.c.l.b16 %v336
    %v1162 = vunpack.c.l.b16 %v337
    %v1163 = vunpack.c.l.b16 %v338
    %v1164 = vunpack.c.l.b16 %v339
    %v1165 = vunpack.c.l.b16 %v340
    %v1166 = vunpack.c.l.b16 %v341
    %v1167 = vunpack.c.l.b16 %v342
    %v1168 = vunpack.c.l.b16 %v343
    %v1169 = vunpack.c.l.b16 %v344
    %v1170 = vunpack.c.l.b16 %v345
    %v1171 = vunpack.c.l.b16 %v346
    %v1172 = vunpack.c.l.b16 %v347
    %v1173 = vunpack.c.l.b16 %v348
    %v1174 = vunpack.c.l.b16 %v349
    %v1175 = vunpack.c.l.b16 %v350
    %v1176 = vunpack.c.l.b16 %v351
    %v1177 = vunpack.c.l.b16 %v352
    %v1178 = vunpack.c.l.b16 %v353
    %v1179 = vunpack.c.l.b16 %v354
    %v1180 = vunpack.c.l.b16 %v355
    %v1181 = vunpack.c.l.b16 %v356
    %v1182 = vunpack.c.l.b16 %v357
    %v1183 = vunpack.c.l.b16 %v358
    %v1184 = vunpack.c.l.b16 %v359
    %v1185 = vunpack.c.l.b16 %v360
    %v1186 = vunpack.c.l.b16 %v361
    %v1187 = vunpack.c.l.b16 %v362
    %v1188 = vunpack.c.l.b16 %v363
    %v1189 = vunpack.c.l.b16 %v364
    %v1190 = vunpack.c.l.b16 %v365
    %v1191 = vunpack.c.l.b16 %v366
    %v1192 = vunpack.c.l.b16 %v367
    %v1193 = vunpack.c.l.b16 %v368
    %v1194 = vunpack.c.l.b16 %v369
    %v1195 = vunpack.c.l.b16 %v370
    %v1196 = vunpack.c.l.b16 %v371
    %v1197 = vunpack.c.l.b16 %v372
    %v1198 = vunpack.c.l.b16 %v373
    %v1199 = vunpack.c.l.b16 %v374
    %v1200 = vunpack.c.l.b16 %v375
    %v1201 = vunpack.c.l.b16 %v376
    %v1202 = vunpack.c.l.b16 %v377
    %v1203 = vunpack.c.l.b16 %v378
    %v1204 = vunpack.c.l.b16 %v379
    %v1205 = vunpack.c.l.b16 %v380
    %v1206 = vunpack.c.l.b16 %v381
    %v1207 = vunpack.c.l.b16 %v382
    %v1208 = vunpack.c.l.b16 %v383
    %v1209 = vunpack.c.l.b16 %v384
    %v1210 = vunpack.c.l.b16 %v385
    %v1211 = vunpack.c.l.b16 %v386
    %v1212 = vunpack.c.l.b16 %v387
    %v1213 = vunpack.c.l.b16 %v388
    %v1214 = vunpack.c.l.b16 %v389
    %v1215 = vunpack.c.l.b16 %v390
    %v1216 = vunpack.c.l.b16 %v391
    %v1217 = vpack.c.b16 %v1154, %v1153
    %v1218 = vpack.c.b16 %v1156, %v1155
    %v1219 = vpack.c.b16 %v1158, %v1157
    %v1220 = vpack.c.b16 %v1160, %v1159
    %v1221 = vpack.c.b16 %v1162, %v1161
    %v1222 = vpack.c.b16 %v1164, %v1163
    %v1223 = vpack.c.b16 %v1166, %v1165
    %v1224 = vpack.c.b16 %v1168, %v1167
    %v1225 = vpack.c.b16 %v1170, %v1169
    %v1226 = vpack.c.b16 %v1172, %v1171
    %v1227 = vpack.c.b16 %v1174, %v1173
    %v1228 = vpack.c.b16 %v1176, %v1175
    %v1229 = vpack.c.b16 %v1178, %v1177
    %v1230 = vpack.c.b16 %v1180, %v1179
    %v1231 = vpack.c.b16 %v1182, %v1181
    %v1232 = vpack.c.b16 %v1184, %v1183
    %v1233 = vpack.c.b16 %v1186, %v1185
    %v1234 = vpack.c.b16 %v1188, %v1187
    %v1235 = vpack.c.b16 %v1190, %v1189
    %v1236 = vpack.c.b16 %v1192, %v1191
    %v1237 = vpack.c.b16 %v1194, %v1193
    %v1238 = vpack.c.b16 %v1196, %v1195
    %v1239 = vpack.c.b16 %v1198, %v1197
    %v1240 = vpack.c.b16 %v1200, %v1199
    %v1241 = vpack.c.b16 %v1202, %v1201
    %v1242 = vpack.c.b16 %v1204, %v1203
    %v1243 = vpack.c.b16 %v1206, %v1205
    %v1244 = vpack.c.b16 %v1208, %v1207
    %v1245 = vpack.c.b16 %v1210, %v1209
    %v1246 = vpack.c.b16 %v1212, %v1211
    %v1247 = vpack.c.b16 %v1214, %v1213
    %v1248 = vpack.c.b16 %v1216, %v1215
    %v1250 = vsel %vm703, %v1217, 0
    %v1253 = vsel %vm703, %v1218, 0
    %v1256 = vsel %vm703, %v1219, 0
    %v1259 = vsel %vm703, %v1220, 0
    %v1262 = vsel %vm703, %v1221, 0
    %v1265 = vsel %vm703, %v1222, 0
    %v1268 = vsel %vm703, %v1223, 0
    %v1271 = vsel %vm703, %v1224, 0
    %v1274 = vsel %vm703, %v1225, 0
    %v1277 = vsel %vm703, %v1226, 0
    %v1280 = vsel %vm703, %v1227, 0
    %v1283 = vsel %vm703, %v1228, 0
    %v1286 = vsel %vm703, %v1229, 0
    %v1289 = vsel %vm703, %v1230, 0
    %v1292 = vsel %vm703, %v1231, 0
    %v1295 = vsel %vm703, %v1232, 0
    %v1298 = vsel %vm703, %v1233, 0
    %v1301 = vsel %vm703, %v1234, 0
    %v1304 = vsel %vm703, %v1235, 0
    %v1307 = vsel %vm703, %v1236, 0
    %v1310 = vsel %vm703, %v1237, 0
    %v1313 = vsel %vm703, %v1238, 0
    %v1316 = vsel %vm703, %v1239, 0
    %v1319 = vsel %vm703, %v1240, 0
    %v1322 = vsel %vm703, %v1241, 0
    %v1325 = vsel %vm703, %v1242, 0
    %v1328 = vsel %vm703, %v1243, 0
    %v1331 = vsel %vm703, %v1244, 0
    %v1334 = vsel %vm703, %v1245, 0
    %v1337 = vsel %vm703, %v1246, 0
    %v1340 = vsel %vm703, %v1247, 0
    %v1343 = vsel %vm703, %v1248, 0
    %1345 = vmatprep.subr.bf16.mxu0 0
    %1346 = vmatpush1.bf16.msra.mxu0 0
    %1347 = vmatprep.subr.bf16.mxu0 0
    %1348 = vmatpush1.bf16.msra.mxu0 0
    %1349 = vmatprep.subr.bf16.mxu0 0
    %1350 = vmatpush1.bf16.msra.mxu0 0
    %1351 = vmatprep.subr.bf16.mxu0 0
    %1352 = vmatpush1.bf16.msra.mxu0 0
    %1353 = vmatprep.subr.bf16.mxu0 0
    %1354 = vmatpush1.bf16.msra.mxu0 0
    %1355 = vmatprep.subr.bf16.mxu0 0
    %1356 = vmatpush1.bf16.msra.mxu0 0
    %1357 = vmatprep.subr.bf16.mxu0 0
    %1358 = vmatpush1.bf16.msra.mxu0 %v393
    %1359 = vmatprep.subr.bf16.mxu0 0
    %1360 = vmatpush1.bf16.msra.mxu0 %v392
    %1361 = vmatprep.subr.bf16.mxu0 0
    %1362 = vmatpush2.bf16.msra.mxu0 0
    %1363 = vmatprep.subr.bf16.mxu0 0
    %1364 = vmatpush2.bf16.msra.mxu0 0
    %1365 = vmatprep.subr.bf16.mxu0 0
    %1366 = vmatpush2.bf16.msra.mxu0 0
    %1367 = vmatprep.subr.bf16.mxu0 0
    %1368 = vmatpush2.bf16.msra.mxu0 0
    %1369 = vmatprep.subr.bf16.mxu0 0
    %1370 = vmatpush2.bf16.msra.mxu0 0
    %1371 = vmatprep.subr.bf16.mxu0 0
    %1372 = vmatpush2.bf16.msra.mxu0 0
    %1373 = vmatprep.subr.bf16.mxu0 0
    %1374 = vmatpush2.bf16.msra.mxu0 0
    %1375 = vmatprep.subr.bf16.mxu0 0
    %1376 = vmatpush2.bf16.msra.mxu0 0
    %1377 = vmatprep.mubr.bf16.mxu0 0
    %1378 = vmatmul.mubr.bf16.gmra.mxu0 %v1250
    %v1379 = vpop.f32.mrf.mxu0
    %v1380 = vadd.f32 %v835, %v1379
    %v1381 = vpop.f32.mrf.mxu0
    %v1382 = vpop.f32.mrf.mxu0
    %v1383 = vadd.f32 %v838, %v1382
    %v1384 = vpop.f32.mrf.mxu0
    %1385 = vmatprep.mubr.bf16.mxu0 0
    %1386 = vmatmul.mubr.bf16.gmra.mxu0 %v1253
    %v1387 = vpop.f32.mrf.mxu0
    %v1388 = vadd.f32 %v843, %v1387
    %v1389 = vpop.f32.mrf.mxu0
    %v1390 = vpop.f32.mrf.mxu0
    %v1391 = vadd.f32 %v846, %v1390
    %v1392 = vpop.f32.mrf.mxu0
    %1393 = vmatprep.mubr.bf16.mxu0 0
    %1394 = vmatmul.mubr.bf16.gmra.mxu0 %v1256
    %v1395 = vpop.f32.mrf.mxu0
    %v1396 = vadd.f32 %v851, %v1395
    %v1397 = vpop.f32.mrf.mxu0
    %v1398 = vpop.f32.mrf.mxu0
    %v1399 = vadd.f32 %v854, %v1398
    %v1400 = vpop.f32.mrf.mxu0
    %1401 = vmatprep.mubr.bf16.mxu0 0
    %1402 = vmatmul.mubr.bf16.gmra.mxu0 %v1259
    %v1403 = vpop.f32.mrf.mxu0
    %v1404 = vadd.f32 %v859, %v1403
    %v1405 = vpop.f32.mrf.mxu0
    %v1406 = vpop.f32.mrf.mxu0
    %v1407 = vadd.f32 %v862, %v1406
    %v1408 = vpop.f32.mrf.mxu0
    %1409 = vmatprep.mubr.bf16.mxu0 0
    %1410 = vmatmul.mubr.bf16.gmra.mxu0 %v1262
    %v1411 = vpop.f32.mrf.mxu0
    %v1412 = vadd.f32 %v867, %v1411
    %v1413 = vpop.f32.mrf.mxu0
    %v1414 = vpop.f32.mrf.mxu0
    %v1415 = vadd.f32 %v870, %v1414
    %v1416 = vpop.f32.mrf.mxu0
    %1417 = vmatprep.mubr.bf16.mxu0 0
    %1418 = vmatmul.mubr.bf16.gmra.mxu0 %v1265
    %v1419 = vpop.f32.mrf.mxu0
    %v1420 = vadd.f32 %v875, %v1419
    %v1421 = vpop.f32.mrf.mxu0
    %v1422 = vpop.f32.mrf.mxu0
    %v1423 = vadd.f32 %v878, %v1422
    %v1424 = vpop.f32.mrf.mxu0
    %1425 = vmatprep.mubr.bf16.mxu0 0
    %1426 = vmatmul.mubr.bf16.gmra.mxu0 %v1268
    %v1427 = vpop.f32.mrf.mxu0
    %v1428 = vadd.f32 %v883, %v1427
    %v1429 = vpop.f32.mrf.mxu0
    %v1430 = vpop.f32.mrf.mxu0
    %v1431 = vadd.f32 %v886, %v1430
    %v1432 = vpop.f32.mrf.mxu0
    %1433 = vmatprep.mubr.bf16.mxu0 0
    %1434 = vmatmul.mubr.bf16.gmra.mxu0 %v1271
    %v1435 = vpop.f32.mrf.mxu0
    %v1436 = vadd.f32 %v891, %v1435
    %v1437 = vpop.f32.mrf.mxu0
    %v1438 = vpop.f32.mrf.mxu0
    %v1439 = vadd.f32 %v894, %v1438
    %v1440 = vpop.f32.mrf.mxu0
    %1441 = vmatprep.mubr.bf16.mxu0 0
    %1442 = vmatmul.mubr.bf16.gmra.mxu0 %v1274
    %v1443 = vpop.f32.mrf.mxu0
    %v1444 = vadd.f32 %v899, %v1443
    %v1445 = vpop.f32.mrf.mxu0
    %v1446 = vpop.f32.mrf.mxu0
    %v1447 = vadd.f32 %v902, %v1446
    %v1448 = vpop.f32.mrf.mxu0
    %1449 = vmatprep.mubr.bf16.mxu0 0
    %1450 = vmatmul.mubr.bf16.gmra.mxu0 %v1277
    %v1451 = vpop.f32.mrf.mxu0
    %v1452 = vadd.f32 %v907, %v1451
    %v1453 = vpop.f32.mrf.mxu0
    %v1454 = vpop.f32.mrf.mxu0
    %v1455 = vadd.f32 %v910, %v1454
    %v1456 = vpop.f32.mrf.mxu0
    %1457 = vmatprep.mubr.bf16.mxu0 0
    %1458 = vmatmul.mubr.bf16.gmra.mxu0 %v1280
    %v1459 = vpop.f32.mrf.mxu0
    %v1460 = vadd.f32 %v915, %v1459
    %v1461 = vpop.f32.mrf.mxu0
    %v1462 = vpop.f32.mrf.mxu0
    %v1463 = vadd.f32 %v918, %v1462
    %v1464 = vpop.f32.mrf.mxu0
    %1465 = vmatprep.mubr.bf16.mxu0 0
    %1466 = vmatmul.mubr.bf16.gmra.mxu0 %v1283
    %v1467 = vpop.f32.mrf.mxu0
    %v1468 = vadd.f32 %v923, %v1467
    %v1469 = vpop.f32.mrf.mxu0
    %v1470 = vpop.f32.mrf.mxu0
    %v1471 = vadd.f32 %v926, %v1470
    %v1472 = vpop.f32.mrf.mxu0
    %1473 = vmatprep.mubr.bf16.mxu0 0
    %1474 = vmatmul.mubr.bf16.gmra.mxu0 %v1286
    %v1475 = vpop.f32.mrf.mxu0
    %v1476 = vadd.f32 %v931, %v1475
    %v1477 = vpop.f32.mrf.mxu0
    %v1478 = vpop.f32.mrf.mxu0
    %v1479 = vadd.f32 %v934, %v1478
    %v1480 = vpop.f32.mrf.mxu0
    %1481 = vmatprep.mubr.bf16.mxu0 0
    %1482 = vmatmul.mubr.bf16.gmra.mxu0 %v1289
    %v1483 = vpop.f32.mrf.mxu0
    %v1484 = vadd.f32 %v939, %v1483
    %v1485 = vpop.f32.mrf.mxu0
    %v1486 = vpop.f32.mrf.mxu0
    %v1487 = vadd.f32 %v942, %v1486
    %v1488 = vpop.f32.mrf.mxu0
    %1489 = vmatprep.mubr.bf16.mxu0 0
    %1490 = vmatmul.mubr.bf16.gmra.mxu0 %v1292
    %v1491 = vpop.f32.mrf.mxu0
    %v1492 = vadd.f32 %v947, %v1491
    %v1493 = vpop.f32.mrf.mxu0
    %v1494 = vpop.f32.mrf.mxu0
    %v1495 = vadd.f32 %v950, %v1494
    %v1496 = vpop.f32.mrf.mxu0
    %1497 = vmatprep.mubr.bf16.mxu0 0
    %1498 = vmatmul.mubr.bf16.gmra.mxu0 %v1295
    %v1499 = vpop.f32.mrf.mxu0
    %v1500 = vadd.f32 %v955, %v1499
    %v1501 = vpop.f32.mrf.mxu0
    %v1502 = vpop.f32.mrf.mxu0
    %v1503 = vadd.f32 %v958, %v1502
    %v1504 = vpop.f32.mrf.mxu0
    %1505 = vmatprep.mubr.bf16.mxu0 0
    %1506 = vmatmul.mubr.bf16.gmra.mxu0 %v1298
    %v1507 = vpop.f32.mrf.mxu0
    %v1508 = vadd.f32 %v963, %v1507
    %v1509 = vpop.f32.mrf.mxu0
    %v1510 = vpop.f32.mrf.mxu0
    %v1511 = vadd.f32 %v966, %v1510
    %v1512 = vpop.f32.mrf.mxu0
    %1513 = vmatprep.mubr.bf16.mxu0 0
    %1514 = vmatmul.mubr.bf16.gmra.mxu0 %v1301
    %v1515 = vpop.f32.mrf.mxu0
    %v1516 = vadd.f32 %v971, %v1515
    %v1517 = vpop.f32.mrf.mxu0
    %v1518 = vpop.f32.mrf.mxu0
    %v1519 = vadd.f32 %v974, %v1518
    %v1520 = vpop.f32.mrf.mxu0
    %1521 = vmatprep.mubr.bf16.mxu0 0
    %1522 = vmatmul.mubr.bf16.gmra.mxu0 %v1304
    %v1523 = vpop.f32.mrf.mxu0
    %v1524 = vadd.f32 %v979, %v1523
    %v1525 = vpop.f32.mrf.mxu0
    %v1526 = vpop.f32.mrf.mxu0
    %v1527 = vadd.f32 %v982, %v1526
    %v1528 = vpop.f32.mrf.mxu0
    %1529 = vmatprep.mubr.bf16.mxu0 0
    %1530 = vmatmul.mubr.bf16.gmra.mxu0 %v1307
    %v1531 = vpop.f32.mrf.mxu0
    %v1532 = vadd.f32 %v987, %v1531
    %v1533 = vpop.f32.mrf.mxu0
    %v1534 = vpop.f32.mrf.mxu0
    %v1535 = vadd.f32 %v990, %v1534
    %v1536 = vpop.f32.mrf.mxu0
    %1537 = vmatprep.mubr.bf16.mxu0 0
    %1538 = vmatmul.mubr.bf16.gmra.mxu0 %v1310
    %v1539 = vpop.f32.mrf.mxu0
    %v1540 = vadd.f32 %v995, %v1539
    %v1541 = vpop.f32.mrf.mxu0
    %v1542 = vpop.f32.mrf.mxu0
    %v1543 = vadd.f32 %v998, %v1542
    %v1544 = vpop.f32.mrf.mxu0
    %1545 = vmatprep.mubr.bf16.mxu0 0
    %1546 = vmatmul.mubr.bf16.gmra.mxu0 %v1313
    %v1547 = vpop.f32.mrf.mxu0
    %v1548 = vadd.f32 %v1003, %v1547
    %v1549 = vpop.f32.mrf.mxu0
    %v1550 = vpop.f32.mrf.mxu0
    %v1551 = vadd.f32 %v1006, %v1550
    %v1552 = vpop.f32.mrf.mxu0
    %1553 = vmatprep.mubr.bf16.mxu0 0
    %1554 = vmatmul.mubr.bf16.gmra.mxu0 %v1316
    %v1555 = vpop.f32.mrf.mxu0
    %v1556 = vadd.f32 %v1011, %v1555
    %v1557 = vpop.f32.mrf.mxu0
    %v1558 = vpop.f32.mrf.mxu0
    %v1559 = vadd.f32 %v1014, %v1558
    %v1560 = vpop.f32.mrf.mxu0
    %1561 = vmatprep.mubr.bf16.mxu0 0
    %1562 = vmatmul.mubr.bf16.gmra.mxu0 %v1319
    %v1563 = vpop.f32.mrf.mxu0
    %v1564 = vadd.f32 %v1019, %v1563
    %v1565 = vpop.f32.mrf.mxu0
    %v1566 = vpop.f32.mrf.mxu0
    %v1567 = vadd.f32 %v1022, %v1566
    %v1568 = vpop.f32.mrf.mxu0
    %1569 = vmatprep.mubr.bf16.mxu0 0
    %1570 = vmatmul.mubr.bf16.gmra.mxu0 %v1322
    %v1571 = vpop.f32.mrf.mxu0
    %v1572 = vadd.f32 %v1027, %v1571
    %v1573 = vpop.f32.mrf.mxu0
    %v1574 = vpop.f32.mrf.mxu0
    %v1575 = vadd.f32 %v1030, %v1574
    %v1576 = vpop.f32.mrf.mxu0
    %1577 = vmatprep.mubr.bf16.mxu0 0
    %1578 = vmatmul.mubr.bf16.gmra.mxu0 %v1325
    %v1579 = vpop.f32.mrf.mxu0
    %v1580 = vadd.f32 %v1035, %v1579
    %v1581 = vpop.f32.mrf.mxu0
    %v1582 = vpop.f32.mrf.mxu0
    %v1583 = vadd.f32 %v1038, %v1582
    %v1584 = vpop.f32.mrf.mxu0
    %1585 = vmatprep.mubr.bf16.mxu0 0
    %1586 = vmatmul.mubr.bf16.gmra.mxu0 %v1328
    %v1587 = vpop.f32.mrf.mxu0
    %v1588 = vadd.f32 %v1043, %v1587
    %v1589 = vpop.f32.mrf.mxu0
    %v1590 = vpop.f32.mrf.mxu0
    %v1591 = vadd.f32 %v1046, %v1590
    %v1592 = vpop.f32.mrf.mxu0
    %1593 = vmatprep.mubr.bf16.mxu0 0
    %1594 = vmatmul.mubr.bf16.gmra.mxu0 %v1331
    %v1595 = vpop.f32.mrf.mxu0
    %v1596 = vadd.f32 %v1051, %v1595
    %v1597 = vpop.f32.mrf.mxu0
    %v1598 = vpop.f32.mrf.mxu0
    %v1599 = vadd.f32 %v1054, %v1598
    %v1600 = vpop.f32.mrf.mxu0
    %1601 = vmatprep.mubr.bf16.mxu0 0
    %1602 = vmatmul.mubr.bf16.gmra.mxu0 %v1334
    %v1603 = vpop.f32.mrf.mxu0
    %v1604 = vadd.f32 %v1059, %v1603
    %v1605 = vpop.f32.mrf.mxu0
    %v1606 = vpop.f32.mrf.mxu0
    %v1607 = vadd.f32 %v1062, %v1606
    %v1608 = vpop.f32.mrf.mxu0
    %1609 = vmatprep.mubr.bf16.mxu0 0
    %1610 = vmatmul.mubr.bf16.gmra.mxu0 %v1337
    %v1611 = vpop.f32.mrf.mxu0
    %v1612 = vadd.f32 %v1067, %v1611
    %v1613 = vpop.f32.mrf.mxu0
    %v1614 = vpop.f32.mrf.mxu0
    %v1615 = vadd.f32 %v1070, %v1614
    %v1616 = vpop.f32.mrf.mxu0
    %1617 = vmatprep.mubr.bf16.mxu0 0
    %1618 = vmatmul.mubr.bf16.gmra.mxu0 %v1340
    %v1619 = vpop.f32.mrf.mxu0
    %v1620 = vadd.f32 %v1075, %v1619
    %v1621 = vpop.f32.mrf.mxu0
    %v1622 = vpop.f32.mrf.mxu0
    %v1623 = vadd.f32 %v1078, %v1622
    %v1624 = vpop.f32.mrf.mxu0
    %1625 = vmatprep.mubr.bf16.mxu0 0
    %1626 = vmatmul.mubr.bf16.gmra.mxu0 %v1343
    %v1627 = vpop.f32.mrf.mxu0
    %v1628 = vadd.f32 %v1083, %v1627
    %v1629 = vpop.f32.mrf.mxu0
    %v1630 = vpop.f32.mrf.mxu0
    %v1631 = vadd.f32 %v1086, %v1630
    %v1632 = vpop.f32.mrf.mxu0
    %1633 = vdwg.mxu0
    %s1634 = scalar_lea.vmem [#allocation10], 64
    %v1635 = vld [vmem:[%s1634] sm:$0xf]
    %v1636 = vld [vmem:[%s1634 + $0x4] sm:$0xf]
    %v1637 = vld [vmem:[%s1634 + $0x8] sm:$0xf]
    %v1638 = vld [vmem:[%s1634 + $0xc] sm:$0xf]
    %v1639 = vld [vmem:[%s1634 + $0x10] sm:$0xf]
    %v1640 = vld [vmem:[%s1634 + $0x14] sm:$0xf]
    %v1641 = vld [vmem:[%s1634 + $0x18] sm:$0xf]
    %v1642 = vld [vmem:[%s1634 + $0x1c] sm:$0xf]
    %v1651 = vunpack.c.l.b16 %v1635
    %v1652 = vunpack.c.l.b16 %v1636
    %v1653 = vunpack.c.l.b16 %v1637
    %v1654 = vunpack.c.l.b16 %v1638
    %v1655 = vunpack.c.l.b16 %v1639
    %v1656 = vunpack.c.l.b16 %v1640
    %v1657 = vunpack.c.l.b16 %v1641
    %v1658 = vunpack.c.l.b16 %v1642
    %v1659 = vpack.c.b16 %v1652, %v1651
    %v1660 = vpack.c.b16 %v1654, %v1653
    %v1661 = vpack.c.b16 %v1656, %v1655
    %v1662 = vpack.c.b16 %v1658, %v1657
    %1667 = vmatprep.subr.bf16.mxu0 0
    %1668 = vmatpush1.bf16.msra.mxu0 0
    %1669 = vmatprep.subr.bf16.mxu0 0
    %1670 = vmatpush1.bf16.msra.mxu0 0
    %1671 = vmatprep.subr.bf16.mxu0 0
    %1672 = vmatpush1.bf16.msra.mxu0 0
    %1673 = vmatprep.subr.bf16.mxu0 0
    %1674 = vmatpush1.bf16.msra.mxu0 0
    %1675 = vmatprep.subr.bf16.mxu0 0
    %1676 = vmatpush1.bf16.msra.mxu0 %v1662
    %1677 = vmatprep.subr.bf16.mxu0 0
    %1678 = vmatpush1.bf16.msra.mxu0 %v1661
    %1679 = vmatprep.subr.bf16.mxu0 0
    %1680 = vmatpush1.bf16.msra.mxu0 %v1660
    %1681 = vmatprep.subr.bf16.mxu0 0
    %1682 = vmatpush1.bf16.msra.mxu0 %v1659
    %1683 = vmatprep.subr.bf16.mxu0 0
    %1684 = vmatpush2.bf16.msra.mxu0 0
    %1685 = vmatprep.subr.bf16.mxu0 0
    %1686 = vmatpush2.bf16.msra.mxu0 0
    %1687 = vmatprep.subr.bf16.mxu0 0
    %1688 = vmatpush2.bf16.msra.mxu0 0
    %1689 = vmatprep.subr.bf16.mxu0 0
    %1690 = vmatpush2.bf16.msra.mxu0 0
    %1691 = vmatprep.subr.bf16.mxu0 0
    %1692 = vmatpush2.bf16.msra.mxu0 0
    %1693 = vmatprep.subr.bf16.mxu0 0
    %1694 = vmatpush2.bf16.msra.mxu0 0
    %1695 = vmatprep.subr.bf16.mxu0 0
    %1696 = vmatpush2.bf16.msra.mxu0 0
    %1697 = vmatprep.subr.bf16.mxu0 0
    %1698 = vmatpush2.bf16.msra.mxu0 0
    %1699 = vmatprep.mubr.bf16.mxu0 0
    %1700 = vmatmul.mubr.bf16.gmra.mxu0 %v274
    %v1701 = vpop.f32.mrf.mxu0
    %v1702 = vadd.f32 0.0, %v1701
    %v1703 = vpop.f32.mrf.mxu0
    %v1704 = vpop.f32.mrf.mxu0
    %v1705 = vadd.f32 0.0, %v1704
    %v1706 = vpop.f32.mrf.mxu0
    %1707 = vmatprep.mubr.bf16.mxu0 0
    %1708 = vmatmul.mubr.bf16.gmra.mxu0 %v277
    %v1709 = vpop.f32.mrf.mxu0
    %v1710 = vadd.f32 0.0, %v1709
    %v1711 = vpop.f32.mrf.mxu0
    %v1712 = vpop.f32.mrf.mxu0
    %v1713 = vadd.f32 0.0, %v1712
    %v1714 = vpop.f32.mrf.mxu0
    %1715 = vdwg.mxu0
    %s1716 = scalar_lea.vmem [#allocation8], 512
    %v1717 = vld [vmem:[%s1716] sm:$0xf]
    %v1718 = vld [vmem:[%s1716 + $0x4] sm:$0xf]
    %v1719 = vld [vmem:[%s1716 + $0x8] sm:$0xf]
    %v1720 = vld [vmem:[%s1716 + $0xc] sm:$0xf]
    %v1721 = vld [vmem:[%s1716 + $0x10] sm:$0xf]
    %v1722 = vld [vmem:[%s1716 + $0x14] sm:$0xf]
    %v1723 = vld [vmem:[%s1716 + $0x18] sm:$0xf]
    %v1724 = vld [vmem:[%s1716 + $0x1c] sm:$0xf]
    %v1725 = vld [vmem:[%s1716 + $0x20] sm:$0xf]
    %v1726 = vld [vmem:[%s1716 + $0x24] sm:$0xf]
    %v1727 = vld [vmem:[%s1716 + $0x28] sm:$0xf]
    %v1728 = vld [vmem:[%s1716 + $0x2c] sm:$0xf]
    %v1729 = vld [vmem:[%s1716 + $0x30] sm:$0xf]
    %v1730 = vld [vmem:[%s1716 + $0x34] sm:$0xf]
    %v1731 = vld [vmem:[%s1716 + $0x38] sm:$0xf]
    %v1732 = vld [vmem:[%s1716 + $0x3c] sm:$0xf]
    %v1733 = vld [vmem:[%s1716 + $0x40] sm:$0xf]
    %v1734 = vld [vmem:[%s1716 + $0x44] sm:$0xf]
    %v1735 = vld [vmem:[%s1716 + $0x48] sm:$0xf]
    %v1736 = vld [vmem:[%s1716 + $0x4c] sm:$0xf]
    %v1737 = vld [vmem:[%s1716 + $0x50] sm:$0xf]
    %v1738 = vld [vmem:[%s1716 + $0x54] sm:$0xf]
    %v1739 = vld [vmem:[%s1716 + $0x58] sm:$0xf]
    %v1740 = vld [vmem:[%s1716 + $0x5c] sm:$0xf]
    %v1741 = vld [vmem:[%s1716 + $0x60] sm:$0xf]
    %v1742 = vld [vmem:[%s1716 + $0x64] sm:$0xf]
    %v1743 = vld [vmem:[%s1716 + $0x68] sm:$0xf]
    %v1744 = vld [vmem:[%s1716 + $0x6c] sm:$0xf]
    %v1745 = vld [vmem:[%s1716 + $0x70] sm:$0xf]
    %v1746 = vld [vmem:[%s1716 + $0x74] sm:$0xf]
    %v1747 = vld [vmem:[%s1716 + $0x78] sm:$0xf]
    %v1748 = vld [vmem:[%s1716 + $0x7c] sm:$0xf]
    %v1749 = vld [vmem:[%s1716 + $0x80] sm:$0xf]
    %v1750 = vld [vmem:[%s1716 + $0x84] sm:$0xf]
    %v1751 = vld [vmem:[%s1716 + $0x88] sm:$0xf]
    %v1752 = vld [vmem:[%s1716 + $0x8c] sm:$0xf]
    %v1753 = vld [vmem:[%s1716 + $0x90] sm:$0xf]
    %v1754 = vld [vmem:[%s1716 + $0x94] sm:$0xf]
    %v1755 = vld [vmem:[%s1716 + $0x98] sm:$0xf]
    %v1756 = vld [vmem:[%s1716 + $0x9c] sm:$0xf]
    %v1757 = vld [vmem:[%s1716 + $0xa0] sm:$0xf]
    %v1758 = vld [vmem:[%s1716 + $0xa4] sm:$0xf]
    %v1759 = vld [vmem:[%s1716 + $0xa8] sm:$0xf]
    %v1760 = vld [vmem:[%s1716 + $0xac] sm:$0xf]
    %v1761 = vld [vmem:[%s1716 + $0xb0] sm:$0xf]
    %v1762 = vld [vmem:[%s1716 + $0xb4] sm:$0xf]
    %v1763 = vld [vmem:[%s1716 + $0xb8] sm:$0xf]
    %v1764 = vld [vmem:[%s1716 + $0xbc] sm:$0xf]
    %v1765 = vld [vmem:[%s1716 + $0xc0] sm:$0xf]
    %v1766 = vld [vmem:[%s1716 + $0xc4] sm:$0xf]
    %v1767 = vld [vmem:[%s1716 + $0xc8] sm:$0xf]
    %v1768 = vld [vmem:[%s1716 + $0xcc] sm:$0xf]
    %v1769 = vld [vmem:[%s1716 + $0xd0] sm:$0xf]
    %v1770 = vld [vmem:[%s1716 + $0xd4] sm:$0xf]
    %v1771 = vld [vmem:[%s1716 + $0xd8] sm:$0xf]
    %v1772 = vld [vmem:[%s1716 + $0xdc] sm:$0xf]
    %v1773 = vld [vmem:[%s1716 + $0xe0] sm:$0xf]
    %v1774 = vld [vmem:[%s1716 + $0xe4] sm:$0xf]
    %v1775 = vld [vmem:[%s1716 + $0xe8] sm:$0xf]
    %v1776 = vld [vmem:[%s1716 + $0xec] sm:$0xf]
    %v1777 = vld [vmem:[%s1716 + $0xf0] sm:$0xf]
    %v1778 = vld [vmem:[%s1716 + $0xf4] sm:$0xf]
    %v1779 = vld [vmem:[%s1716 + $0xf8] sm:$0xf]
    %v1780 = vld [vmem:[%s1716 + $0xfc] sm:$0xf]
    %v1781 = vpack.c.bf16 %v1705, %v1702
    %v1782 = vpack.c.bf16 %v1713, %v1710
    %v1847 = vunpack.c.l.b16 %v1717
    %v1848 = vunpack.c.l.b16 %v1718
    %v1849 = vunpack.c.l.b16 %v1719
    %v1850 = vunpack.c.l.b16 %v1720
    %v1851 = vunpack.c.l.b16 %v1721
    %v1852 = vunpack.c.l.b16 %v1722
    %v1853 = vunpack.c.l.b16 %v1723
    %v1854 = vunpack.c.l.b16 %v1724
    %v1855 = vunpack.c.l.b16 %v1725
    %v1856 = vunpack.c.l.b16 %v1726
    %v1857 = vunpack.c.l.b16 %v1727
    %v1858 = vunpack.c.l.b16 %v1728
    %v1859 = vunpack.c.l.b16 %v1729
    %v1860 = vunpack.c.l.b16 %v1730
    %v1861 = vunpack.c.l.b16 %v1731
    %v1862 = vunpack.c.l.b16 %v1732
    %v1863 = vunpack.c.l.b16 %v1733
    %v1864 = vunpack.c.l.b16 %v1734
    %v1865 = vunpack.c.l.b16 %v1735
    %v1866 = vunpack.c.l.b16 %v1736
    %v1867 = vunpack.c.l.b16 %v1737
    %v1868 = vunpack.c.l.b16 %v1738
    %v1869 = vunpack.c.l.b16 %v1739
    %v1870 = vunpack.c.l.b16 %v1740
    %v1871 = vunpack.c.l.b16 %v1741
    %v1872 = vunpack.c.l.b16 %v1742
    %v1873 = vunpack.c.l.b16 %v1743
    %v1874 = vunpack.c.l.b16 %v1744
    %v1875 = vunpack.c.l.b16 %v1745
    %v1876 = vunpack.c.l.b16 %v1746
    %v1877 = vunpack.c.l.b16 %v1747
    %v1878 = vunpack.c.l.b16 %v1748
    %v1879 = vunpack.c.l.b16 %v1749
    %v1880 = vunpack.c.l.b16 %v1750
    %v1881 = vunpack.c.l.b16 %v1751
    %v1882 = vunpack.c.l.b16 %v1752
    %v1883 = vunpack.c.l.b16 %v1753
    %v1884 = vunpack.c.l.b16 %v1754
    %v1885 = vunpack.c.l.b16 %v1755
    %v1886 = vunpack.c.l.b16 %v1756
    %v1887 = vunpack.c.l.b16 %v1757
    %v1888 = vunpack.c.l.b16 %v1758
    %v1889 = vunpack.c.l.b16 %v1759
    %v1890 = vunpack.c.l.b16 %v1760
    %v1891 = vunpack.c.l.b16 %v1761
    %v1892 = vunpack.c.l.b16 %v1762
    %v1893 = vunpack.c.l.b16 %v1763
    %v1894 = vunpack.c.l.b16 %v1764
    %v1895 = vunpack.c.l.b16 %v1765
    %v1896 = vunpack.c.l.b16 %v1766
    %v1897 = vunpack.c.l.b16 %v1767
    %v1898 = vunpack.c.l.b16 %v1768
    %v1899 = vunpack.c.l.b16 %v1769
    %v1900 = vunpack.c.l.b16 %v1770
    %v1901 = vunpack.c.l.b16 %v1771
    %v1902 = vunpack.c.l.b16 %v1772
    %v1903 = vunpack.c.l.b16 %v1773
    %v1904 = vunpack.c.l.b16 %v1774
    %v1905 = vunpack.c.l.b16 %v1775
    %v1906 = vunpack.c.l.b16 %v1776
    %v1907 = vunpack.c.l.b16 %v1777
    %v1908 = vunpack.c.l.b16 %v1778
    %v1909 = vunpack.c.l.b16 %v1779
    %v1910 = vunpack.c.l.b16 %v1780
    %v1911 = vpack.c.b16 %v1848, %v1847
    %v1912 = vpack.c.b16 %v1850, %v1849
    %v1913 = vpack.c.b16 %v1852, %v1851
    %v1914 = vpack.c.b16 %v1854, %v1853
    %v1915 = vpack.c.b16 %v1856, %v1855
    %v1916 = vpack.c.b16 %v1858, %v1857
    %v1917 = vpack.c.b16 %v1860, %v1859
    %v1918 = vpack.c.b16 %v1862, %v1861
    %v1919 = vpack.c.b16 %v1864, %v1863
    %v1920 = vpack.c.b16 %v1866, %v1865
    %v1921 = vpack.c.b16 %v1868, %v1867
    %v1922 = vpack.c.b16 %v1870, %v1869
    %v1923 = vpack.c.b16 %v1872, %v1871
    %v1924 = vpack.c.b16 %v1874, %v1873
    %v1925 = vpack.c.b16 %v1876, %v1875
    %v1926 = vpack.c.b16 %v1878, %v1877
    %v1927 = vpack.c.b16 %v1880, %v1879
    %v1928 = vpack.c.b16 %v1882, %v1881
    %v1929 = vpack.c.b16 %v1884, %v1883
    %v1930 = vpack.c.b16 %v1886, %v1885
    %v1931 = vpack.c.b16 %v1888, %v1887
    %v1932 = vpack.c.b16 %v1890, %v1889
    %v1933 = vpack.c.b16 %v1892, %v1891
    %v1934 = vpack.c.b16 %v1894, %v1893
    %v1935 = vpack.c.b16 %v1896, %v1895
    %v1936 = vpack.c.b16 %v1898, %v1897
    %v1937 = vpack.c.b16 %v1900, %v1899
    %v1938 = vpack.c.b16 %v1902, %v1901
    %v1939 = vpack.c.b16 %v1904, %v1903
    %v1940 = vpack.c.b16 %v1906, %v1905
    %v1941 = vpack.c.b16 %v1908, %v1907
    %v1942 = vpack.c.b16 %v1910, %v1909
    %v1944 = vsel %vm703, %v1911, 0
    %v1947 = vsel %vm703, %v1912, 0
    %v1950 = vsel %vm703, %v1913, 0
    %v1953 = vsel %vm703, %v1914, 0
    %v1956 = vsel %vm703, %v1915, 0
    %v1959 = vsel %vm703, %v1916, 0
    %v1962 = vsel %vm703, %v1917, 0
    %v1965 = vsel %vm703, %v1918, 0
    %v1968 = vsel %vm703, %v1919, 0
    %v1971 = vsel %vm703, %v1920, 0
    %v1974 = vsel %vm703, %v1921, 0
    %v1977 = vsel %vm703, %v1922, 0
    %v1980 = vsel %vm703, %v1923, 0
    %v1983 = vsel %vm703, %v1924, 0
    %v1986 = vsel %vm703, %v1925, 0
    %v1989 = vsel %vm703, %v1926, 0
    %v1992 = vsel %vm703, %v1927, 0
    %v1995 = vsel %vm703, %v1928, 0
    %v1998 = vsel %vm703, %v1929, 0
    %v2001 = vsel %vm703, %v1930, 0
    %v2004 = vsel %vm703, %v1931, 0
    %v2007 = vsel %vm703, %v1932, 0
    %v2010 = vsel %vm703, %v1933, 0
    %v2013 = vsel %vm703, %v1934, 0
    %v2016 = vsel %vm703, %v1935, 0
    %v2019 = vsel %vm703, %v1936, 0
    %v2022 = vsel %vm703, %v1937, 0
    %v2025 = vsel %vm703, %v1938, 0
    %v2028 = vsel %vm703, %v1939, 0
    %v2031 = vsel %vm703, %v1940, 0
    %v2034 = vsel %vm703, %v1941, 0
    %v2037 = vsel %vm703, %v1942, 0
    %2039 = vmatprep.subr.bf16.mxu0 0
    %2040 = vmatpush1.bf16.msra.mxu0 0
    %2041 = vmatprep.subr.bf16.mxu0 0
    %2042 = vmatpush1.bf16.msra.mxu0 0
    %2043 = vmatprep.subr.bf16.mxu0 0
    %2044 = vmatpush1.bf16.msra.mxu0 0
    %2045 = vmatprep.subr.bf16.mxu0 0
    %2046 = vmatpush1.bf16.msra.mxu0 0
    %2047 = vmatprep.subr.bf16.mxu0 0
    %2048 = vmatpush1.bf16.msra.mxu0 0
    %2049 = vmatprep.subr.bf16.mxu0 0
    %2050 = vmatpush1.bf16.msra.mxu0 0
    %2051 = vmatprep.subr.bf16.mxu0 0
    %2052 = vmatpush1.bf16.msra.mxu0 %v1782
    %2053 = vmatprep.subr.bf16.mxu0 0
    %2054 = vmatpush1.bf16.msra.mxu0 %v1781
    %2055 = vmatprep.subr.bf16.mxu0 0
    %2056 = vmatpush2.bf16.msra.mxu0 0
    %2057 = vmatprep.subr.bf16.mxu0 0
    %2058 = vmatpush2.bf16.msra.mxu0 0
    %2059 = vmatprep.subr.bf16.mxu0 0
    %2060 = vmatpush2.bf16.msra.mxu0 0
    %2061 = vmatprep.subr.bf16.mxu0 0
    %2062 = vmatpush2.bf16.msra.mxu0 0
    %2063 = vmatprep.subr.bf16.mxu0 0
    %2064 = vmatpush2.bf16.msra.mxu0 0
    %2065 = vmatprep.subr.bf16.mxu0 0
    %2066 = vmatpush2.bf16.msra.mxu0 0
    %2067 = vmatprep.subr.bf16.mxu0 0
    %2068 = vmatpush2.bf16.msra.mxu0 0
    %2069 = vmatprep.subr.bf16.mxu0 0
    %2070 = vmatpush2.bf16.msra.mxu0 0
    %2071 = vmatprep.mubr.bf16.mxu0 0
    %2072 = vmatmul.mubr.bf16.gmra.mxu0 %v1944
    %v2073 = vpop.f32.mrf.mxu0
    %v2074 = vadd.f32 0.0, %v2073
    %v2075 = vpop.f32.mrf.mxu0
    %v2076 = vpop.f32.mrf.mxu0
    %v2077 = vadd.f32 0.0, %v2076
    %v2078 = vpop.f32.mrf.mxu0
    %2079 = vmatprep.mubr.bf16.mxu0 0
    %2080 = vmatmul.mubr.bf16.gmra.mxu0 %v1947
    %v2081 = vpop.f32.mrf.mxu0
    %v2082 = vadd.f32 0.0, %v2081
    %v2083 = vpop.f32.mrf.mxu0
    %v2084 = vpop.f32.mrf.mxu0
    %v2085 = vadd.f32 0.0, %v2084
    %v2086 = vpop.f32.mrf.mxu0
    %2087 = vmatprep.mubr.bf16.mxu0 0
    %2088 = vmatmul.mubr.bf16.gmra.mxu0 %v1950
    %v2089 = vpop.f32.mrf.mxu0
    %v2090 = vadd.f32 0.0, %v2089
    %v2091 = vpop.f32.mrf.mxu0
    %v2092 = vpop.f32.mrf.mxu0
    %v2093 = vadd.f32 0.0, %v2092
    %v2094 = vpop.f32.mrf.mxu0
    %2095 = vmatprep.mubr.bf16.mxu0 0
    %2096 = vmatmul.mubr.bf16.gmra.mxu0 %v1953
    %v2097 = vpop.f32.mrf.mxu0
    %v2098 = vadd.f32 0.0, %v2097
    %v2099 = vpop.f32.mrf.mxu0
    %v2100 = vpop.f32.mrf.mxu0
    %v2101 = vadd.f32 0.0, %v2100
    %v2102 = vpop.f32.mrf.mxu0
    %2103 = vmatprep.mubr.bf16.mxu0 0
    %2104 = vmatmul.mubr.bf16.gmra.mxu0 %v1956
    %v2105 = vpop.f32.mrf.mxu0
    %v2106 = vadd.f32 0.0, %v2105
    %v2107 = vpop.f32.mrf.mxu0
    %v2108 = vpop.f32.mrf.mxu0
    %v2109 = vadd.f32 0.0, %v2108
    %v2110 = vpop.f32.mrf.mxu0
    %2111 = vmatprep.mubr.bf16.mxu0 0
    %2112 = vmatmul.mubr.bf16.gmra.mxu0 %v1959
    %v2113 = vpop.f32.mrf.mxu0
    %v2114 = vadd.f32 0.0, %v2113
    %v2115 = vpop.f32.mrf.mxu0
    %v2116 = vpop.f32.mrf.mxu0
    %v2117 = vadd.f32 0.0, %v2116
    %v2118 = vpop.f32.mrf.mxu0
    %2119 = vmatprep.mubr.bf16.mxu0 0
    %2120 = vmatmul.mubr.bf16.gmra.mxu0 %v1962
    %v2121 = vpop.f32.mrf.mxu0
    %v2122 = vadd.f32 0.0, %v2121
    %v2123 = vpop.f32.mrf.mxu0
    %v2124 = vpop.f32.mrf.mxu0
    %v2125 = vadd.f32 0.0, %v2124
    %v2126 = vpop.f32.mrf.mxu0
    %2127 = vmatprep.mubr.bf16.mxu0 0
    %2128 = vmatmul.mubr.bf16.gmra.mxu0 %v1965
    %v2129 = vpop.f32.mrf.mxu0
    %v2130 = vadd.f32 0.0, %v2129
    %v2131 = vpop.f32.mrf.mxu0
    %v2132 = vpop.f32.mrf.mxu0
    %v2133 = vadd.f32 0.0, %v2132
    %v2134 = vpop.f32.mrf.mxu0
    %2135 = vmatprep.mubr.bf16.mxu0 0
    %2136 = vmatmul.mubr.bf16.gmra.mxu0 %v1968
    %v2137 = vpop.f32.mrf.mxu0
    %v2138 = vadd.f32 0.0, %v2137
    %v2139 = vpop.f32.mrf.mxu0
    %v2140 = vpop.f32.mrf.mxu0
    %v2141 = vadd.f32 0.0, %v2140
    %v2142 = vpop.f32.mrf.mxu0
    %2143 = vmatprep.mubr.bf16.mxu0 0
    %2144 = vmatmul.mubr.bf16.gmra.mxu0 %v1971
    %v2145 = vpop.f32.mrf.mxu0
    %v2146 = vadd.f32 0.0, %v2145
    %v2147 = vpop.f32.mrf.mxu0
    %v2148 = vpop.f32.mrf.mxu0
    %v2149 = vadd.f32 0.0, %v2148
    %v2150 = vpop.f32.mrf.mxu0
    %2151 = vmatprep.mubr.bf16.mxu0 0
    %2152 = vmatmul.mubr.bf16.gmra.mxu0 %v1974
    %v2153 = vpop.f32.mrf.mxu0
    %v2154 = vadd.f32 0.0, %v2153
    %v2155 = vpop.f32.mrf.mxu0
    %v2156 = vpop.f32.mrf.mxu0
    %v2157 = vadd.f32 0.0, %v2156
    %v2158 = vpop.f32.mrf.mxu0
    %2159 = vmatprep.mubr.bf16.mxu0 0
    %2160 = vmatmul.mubr.bf16.gmra.mxu0 %v1977
    %v2161 = vpop.f32.mrf.mxu0
    %v2162 = vadd.f32 0.0, %v2161
    %v2163 = vpop.f32.mrf.mxu0
    %v2164 = vpop.f32.mrf.mxu0
    %v2165 = vadd.f32 0.0, %v2164
    %v2166 = vpop.f32.mrf.mxu0
    %2167 = vmatprep.mubr.bf16.mxu0 0
    %2168 = vmatmul.mubr.bf16.gmra.mxu0 %v1980
    %v2169 = vpop.f32.mrf.mxu0
    %v2170 = vadd.f32 0.0, %v2169
    %v2171 = vpop.f32.mrf.mxu0
    %v2172 = vpop.f32.mrf.mxu0
    %v2173 = vadd.f32 0.0, %v2172
    %v2174 = vpop.f32.mrf.mxu0
    %2175 = vmatprep.mubr.bf16.mxu0 0
    %2176 = vmatmul.mubr.bf16.gmra.mxu0 %v1983
    %v2177 = vpop.f32.mrf.mxu0
    %v2178 = vadd.f32 0.0, %v2177
    %v2179 = vpop.f32.mrf.mxu0
    %v2180 = vpop.f32.mrf.mxu0
    %v2181 = vadd.f32 0.0, %v2180
    %v2182 = vpop.f32.mrf.mxu0
    %2183 = vmatprep.mubr.bf16.mxu0 0
    %2184 = vmatmul.mubr.bf16.gmra.mxu0 %v1986
    %v2185 = vpop.f32.mrf.mxu0
    %v2186 = vadd.f32 0.0, %v2185
    %v2187 = vpop.f32.mrf.mxu0
    %v2188 = vpop.f32.mrf.mxu0
    %v2189 = vadd.f32 0.0, %v2188
    %v2190 = vpop.f32.mrf.mxu0
    %2191 = vmatprep.mubr.bf16.mxu0 0
    %2192 = vmatmul.mubr.bf16.gmra.mxu0 %v1989
    %v2193 = vpop.f32.mrf.mxu0
    %v2194 = vadd.f32 0.0, %v2193
    %v2195 = vpop.f32.mrf.mxu0
    %v2196 = vpop.f32.mrf.mxu0
    %v2197 = vadd.f32 0.0, %v2196
    %v2198 = vpop.f32.mrf.mxu0
    %2199 = vmatprep.mubr.bf16.mxu0 0
    %2200 = vmatmul.mubr.bf16.gmra.mxu0 %v1992
    %v2201 = vpop.f32.mrf.mxu0
    %v2202 = vadd.f32 0.0, %v2201
    %v2203 = vpop.f32.mrf.mxu0
    %v2204 = vpop.f32.mrf.mxu0
    %v2205 = vadd.f32 0.0, %v2204
    %v2206 = vpop.f32.mrf.mxu0
    %2207 = vmatprep.mubr.bf16.mxu0 0
    %2208 = vmatmul.mubr.bf16.gmra.mxu0 %v1995
    %v2209 = vpop.f32.mrf.mxu0
    %v2210 = vadd.f32 0.0, %v2209
    %v2211 = vpop.f32.mrf.mxu0
    %v2212 = vpop.f32.mrf.mxu0
    %v2213 = vadd.f32 0.0, %v2212
    %v2214 = vpop.f32.mrf.mxu0
    %2215 = vmatprep.mubr.bf16.mxu0 0
    %2216 = vmatmul.mubr.bf16.gmra.mxu0 %v1998
    %v2217 = vpop.f32.mrf.mxu0
    %v2218 = vadd.f32 0.0, %v2217
    %v2219 = vpop.f32.mrf.mxu0
    %v2220 = vpop.f32.mrf.mxu0
    %v2221 = vadd.f32 0.0, %v2220
    %v2222 = vpop.f32.mrf.mxu0
    %2223 = vmatprep.mubr.bf16.mxu0 0
    %2224 = vmatmul.mubr.bf16.gmra.mxu0 %v2001
    %v2225 = vpop.f32.mrf.mxu0
    %v2226 = vadd.f32 0.0, %v2225
    %v2227 = vpop.f32.mrf.mxu0
    %v2228 = vpop.f32.mrf.mxu0
    %v2229 = vadd.f32 0.0, %v2228
    %v2230 = vpop.f32.mrf.mxu0
    %2231 = vmatprep.mubr.bf16.mxu0 0
    %2232 = vmatmul.mubr.bf16.gmra.mxu0 %v2004
    %v2233 = vpop.f32.mrf.mxu0
    %v2234 = vadd.f32 0.0, %v2233
    %v2235 = vpop.f32.mrf.mxu0
    %v2236 = vpop.f32.mrf.mxu0
    %v2237 = vadd.f32 0.0, %v2236
    %v2238 = vpop.f32.mrf.mxu0
    %2239 = vmatprep.mubr.bf16.mxu0 0
    %2240 = vmatmul.mubr.bf16.gmra.mxu0 %v2007
    %v2241 = vpop.f32.mrf.mxu0
    %v2242 = vadd.f32 0.0, %v2241
    %v2243 = vpop.f32.mrf.mxu0
    %v2244 = vpop.f32.mrf.mxu0
    %v2245 = vadd.f32 0.0, %v2244
    %v2246 = vpop.f32.mrf.mxu0
    %2247 = vmatprep.mubr.bf16.mxu0 0
    %2248 = vmatmul.mubr.bf16.gmra.mxu0 %v2010
    %v2249 = vpop.f32.mrf.mxu0
    %v2250 = vadd.f32 0.0, %v2249
    %v2251 = vpop.f32.mrf.mxu0
    %v2252 = vpop.f32.mrf.mxu0
    %v2253 = vadd.f32 0.0, %v2252
    %v2254 = vpop.f32.mrf.mxu0
    %2255 = vmatprep.mubr.bf16.mxu0 0
    %2256 = vmatmul.mubr.bf16.gmra.mxu0 %v2013
    %v2257 = vpop.f32.mrf.mxu0
    %v2258 = vadd.f32 0.0, %v2257
    %v2259 = vpop.f32.mrf.mxu0
    %v2260 = vpop.f32.mrf.mxu0
    %v2261 = vadd.f32 0.0, %v2260
    %v2262 = vpop.f32.mrf.mxu0
    %2263 = vmatprep.mubr.bf16.mxu0 0
    %2264 = vmatmul.mubr.bf16.gmra.mxu0 %v2016
    %v2265 = vpop.f32.mrf.mxu0
    %v2266 = vadd.f32 0.0, %v2265
    %v2267 = vpop.f32.mrf.mxu0
    %v2268 = vpop.f32.mrf.mxu0
    %v2269 = vadd.f32 0.0, %v2268
    %v2270 = vpop.f32.mrf.mxu0
    %2271 = vmatprep.mubr.bf16.mxu0 0
    %2272 = vmatmul.mubr.bf16.gmra.mxu0 %v2019
    %v2273 = vpop.f32.mrf.mxu0
    %v2274 = vadd.f32 0.0, %v2273
    %v2275 = vpop.f32.mrf.mxu0
    %v2276 = vpop.f32.mrf.mxu0
    %v2277 = vadd.f32 0.0, %v2276
    %v2278 = vpop.f32.mrf.mxu0
    %2279 = vmatprep.mubr.bf16.mxu0 0
    %2280 = vmatmul.mubr.bf16.gmra.mxu0 %v2022
    %v2281 = vpop.f32.mrf.mxu0
    %v2282 = vadd.f32 0.0, %v2281
    %v2283 = vpop.f32.mrf.mxu0
    %v2284 = vpop.f32.mrf.mxu0
    %v2285 = vadd.f32 0.0, %v2284
    %v2286 = vpop.f32.mrf.mxu0
    %2287 = vmatprep.mubr.bf16.mxu0 0
    %2288 = vmatmul.mubr.bf16.gmra.mxu0 %v2025
    %v2289 = vpop.f32.mrf.mxu0
    %v2290 = vadd.f32 0.0, %v2289
    %v2291 = vpop.f32.mrf.mxu0
    %v2292 = vpop.f32.mrf.mxu0
    %v2293 = vadd.f32 0.0, %v2292
    %v2294 = vpop.f32.mrf.mxu0
    %2295 = vmatprep.mubr.bf16.mxu0 0
    %2296 = vmatmul.mubr.bf16.gmra.mxu0 %v2028
    %v2297 = vpop.f32.mrf.mxu0
    %v2298 = vadd.f32 0.0, %v2297
    %v2299 = vpop.f32.mrf.mxu0
    %v2300 = vpop.f32.mrf.mxu0
    %v2301 = vadd.f32 0.0, %v2300
    %v2302 = vpop.f32.mrf.mxu0
    %2303 = vmatprep.mubr.bf16.mxu0 0
    %2304 = vmatmul.mubr.bf16.gmra.mxu0 %v2031
    %v2305 = vpop.f32.mrf.mxu0
    %v2306 = vadd.f32 0.0, %v2305
    %v2307 = vpop.f32.mrf.mxu0
    %v2308 = vpop.f32.mrf.mxu0
    %v2309 = vadd.f32 0.0, %v2308
    %v2310 = vpop.f32.mrf.mxu0
    %2311 = vmatprep.mubr.bf16.mxu0 0
    %2312 = vmatmul.mubr.bf16.gmra.mxu0 %v2034
    %v2313 = vpop.f32.mrf.mxu0
    %v2314 = vadd.f32 0.0, %v2313
    %v2315 = vpop.f32.mrf.mxu0
    %v2316 = vpop.f32.mrf.mxu0
    %v2317 = vadd.f32 0.0, %v2316
    %v2318 = vpop.f32.mrf.mxu0
    %2319 = vmatprep.mubr.bf16.mxu0 0
    %2320 = vmatmul.mubr.bf16.gmra.mxu0 %v2037
    %v2321 = vpop.f32.mrf.mxu0
    %v2322 = vadd.f32 0.0, %v2321
    %v2323 = vpop.f32.mrf.mxu0
    %v2324 = vpop.f32.mrf.mxu0
    %v2325 = vadd.f32 0.0, %v2324
    %v2326 = vpop.f32.mrf.mxu0
    %2327 = vdwg.mxu0
    %v2328 = vadd.f32 %v1380, %v2074
    %v2329 = vadd.f32 %v1383, %v2077
    %v2330 = vadd.f32 %v1388, %v2082
    %v2331 = vadd.f32 %v1391, %v2085
    %v2332 = vadd.f32 %v1396, %v2090
    %v2333 = vadd.f32 %v1399, %v2093
    %v2334 = vadd.f32 %v1404, %v2098
    %v2335 = vadd.f32 %v1407, %v2101
    %v2336 = vadd.f32 %v1412, %v2106
    %v2337 = vadd.f32 %v1415, %v2109
    %v2338 = vadd.f32 %v1420, %v2114
    %v2339 = vadd.f32 %v1423, %v2117
    %v2340 = vadd.f32 %v1428, %v2122
    %v2341 = vadd.f32 %v1431, %v2125
    %v2342 = vadd.f32 %v1436, %v2130
    %v2343 = vadd.f32 %v1439, %v2133
    %v2344 = vadd.f32 %v1444, %v2138
    %v2345 = vadd.f32 %v1447, %v2141
    %v2346 = vadd.f32 %v1452, %v2146
    %v2347 = vadd.f32 %v1455, %v2149
    %v2348 = vadd.f32 %v1460, %v2154
    %v2349 = vadd.f32 %v1463, %v2157
    %v2350 = vadd.f32 %v1468, %v2162
    %v2351 = vadd.f32 %v1471, %v2165
    %v2352 = vadd.f32 %v1476, %v2170
    %v2353 = vadd.f32 %v1479, %v2173
    %v2354 = vadd.f32 %v1484, %v2178
    %v2355 = vadd.f32 %v1487, %v2181
    %v2356 = vadd.f32 %v1492, %v2186
    %v2357 = vadd.f32 %v1495, %v2189
    %v2358 = vadd.f32 %v1500, %v2194
    %v2359 = vadd.f32 %v1503, %v2197
    %v2360 = vadd.f32 %v1508, %v2202
    %v2361 = vadd.f32 %v1511, %v2205
    %v2362 = vadd.f32 %v1516, %v2210
    %v2363 = vadd.f32 %v1519, %v2213
    %v2364 = vadd.f32 %v1524, %v2218
    %v2365 = vadd.f32 %v1527, %v2221
    %v2366 = vadd.f32 %v1532, %v2226
    %v2367 = vadd.f32 %v1535, %v2229
    %v2368 = vadd.f32 %v1540, %v2234
    %v2369 = vadd.f32 %v1543, %v2237
    %v2370 = vadd.f32 %v1548, %v2242
    %v2371 = vadd.f32 %v1551, %v2245
    %v2372 = vadd.f32 %v1556, %v2250
    %v2373 = vadd.f32 %v1559, %v2253
    %v2374 = vadd.f32 %v1564, %v2258
    %v2375 = vadd.f32 %v1567, %v2261
    %v2376 = vadd.f32 %v1572, %v2266
    %v2377 = vadd.f32 %v1575, %v2269
    %v2378 = vadd.f32 %v1580, %v2274
    %v2379 = vadd.f32 %v1583, %v2277
    %v2380 = vadd.f32 %v1588, %v2282
    %v2381 = vadd.f32 %v1591, %v2285
    %v2382 = vadd.f32 %v1596, %v2290
    %v2383 = vadd.f32 %v1599, %v2293
    %v2384 = vadd.f32 %v1604, %v2298
    %v2385 = vadd.f32 %v1607, %v2301
    %v2386 = vadd.f32 %v1612, %v2306
    %v2387 = vadd.f32 %v1615, %v2309
    %v2388 = vadd.f32 %v1620, %v2314
    %v2389 = vadd.f32 %v1623, %v2317
    %v2390 = vadd.f32 %v1628, %v2322
    %v2391 = vadd.f32 %v1631, %v2325
    %s2392 = scalar_lea.vmem [#allocation10], 96
    %v2393 = vld [vmem:[%s2392] sm:$0xf]
    %v2394 = vld [vmem:[%s2392 + $0x4] sm:$0xf]
    %v2395 = vld [vmem:[%s2392 + $0x8] sm:$0xf]
    %v2396 = vld [vmem:[%s2392 + $0xc] sm:$0xf]
    %v2397 = vld [vmem:[%s2392 + $0x10] sm:$0xf]
    %v2398 = vld [vmem:[%s2392 + $0x14] sm:$0xf]
    %v2399 = vld [vmem:[%s2392 + $0x18] sm:$0xf]
    %v2400 = vld [vmem:[%s2392 + $0x1c] sm:$0xf]
    %v2409 = vunpack.c.l.b16 %v2393
    %v2410 = vunpack.c.l.b16 %v2394
    %v2411 = vunpack.c.l.b16 %v2395
    %v2412 = vunpack.c.l.b16 %v2396
    %v2413 = vunpack.c.l.b16 %v2397
    %v2414 = vunpack.c.l.b16 %v2398
    %v2415 = vunpack.c.l.b16 %v2399
    %v2416 = vunpack.c.l.b16 %v2400
    %v2417 = vpack.c.b16 %v2410, %v2409
    %v2418 = vpack.c.b16 %v2412, %v2411
    %v2419 = vpack.c.b16 %v2414, %v2413
    %v2420 = vpack.c.b16 %v2416, %v2415
    %2425 = vmatprep.subr.bf16.mxu0 0
    %2426 = vmatpush1.bf16.msra.mxu0 0
    %2427 = vmatprep.subr.bf16.mxu0 0
    %2428 = vmatpush1.bf16.msra.mxu0 0
    %2429 = vmatprep.subr.bf16.mxu0 0
    %2430 = vmatpush1.bf16.msra.mxu0 0
    %2431 = vmatprep.subr.bf16.mxu0 0
    %2432 = vmatpush1.bf16.msra.mxu0 0
    %2433 = vmatprep.subr.bf16.mxu0 0
    %2434 = vmatpush1.bf16.msra.mxu0 %v2420
    %2435 = vmatprep.subr.bf16.mxu0 0
    %2436 = vmatpush1.bf16.msra.mxu0 %v2419
    %2437 = vmatprep.subr.bf16.mxu0 0
    %2438 = vmatpush1.bf16.msra.mxu0 %v2418
    %2439 = vmatprep.subr.bf16.mxu0 0
    %2440 = vmatpush1.bf16.msra.mxu0 %v2417
    %2441 = vmatprep.subr.bf16.mxu0 0
    %2442 = vmatpush2.bf16.msra.mxu0 0
    %2443 = vmatprep.subr.bf16.mxu0 0
    %2444 = vmatpush2.bf16.msra.mxu0 0
    %2445 = vmatprep.subr.bf16.mxu0 0
    %2446 = vmatpush2.bf16.msra.mxu0 0
    %2447 = vmatprep.subr.bf16.mxu0 0
    %2448 = vmatpush2.bf16.msra.mxu0 0
    %2449 = vmatprep.subr.bf16.mxu0 0
    %2450 = vmatpush2.bf16.msra.mxu0 0
    %2451 = vmatprep.subr.bf16.mxu0 0
    %2452 = vmatpush2.bf16.msra.mxu0 0
    %2453 = vmatprep.subr.bf16.mxu0 0
    %2454 = vmatpush2.bf16.msra.mxu0 0
    %2455 = vmatprep.subr.bf16.mxu0 0
    %2456 = vmatpush2.bf16.msra.mxu0 0
    %2457 = vmatprep.mubr.bf16.mxu0 0
    %2458 = vmatmul.mubr.bf16.gmra.mxu0 %v274
    %v2459 = vpop.f32.mrf.mxu0
    %v2460 = vadd.f32 0.0, %v2459
    %v2461 = vpop.f32.mrf.mxu0
    %v2462 = vpop.f32.mrf.mxu0
    %v2463 = vadd.f32 0.0, %v2462
    %v2464 = vpop.f32.mrf.mxu0
    %2465 = vmatprep.mubr.bf16.mxu0 0
    %2466 = vmatmul.mubr.bf16.gmra.mxu0 %v277
    %v2467 = vpop.f32.mrf.mxu0
    %v2468 = vadd.f32 0.0, %v2467
    %v2469 = vpop.f32.mrf.mxu0
    %v2470 = vpop.f32.mrf.mxu0
    %v2471 = vadd.f32 0.0, %v2470
    %v2472 = vpop.f32.mrf.mxu0
    %2473 = vdwg.mxu0
    %s2474 = scalar_lea.vmem [#allocation8], 768
    %v2475 = vld [vmem:[%s2474] sm:$0xf]
    %v2476 = vld [vmem:[%s2474 + $0x4] sm:$0xf]
    %v2477 = vld [vmem:[%s2474 + $0x8] sm:$0xf]
    %v2478 = vld [vmem:[%s2474 + $0xc] sm:$0xf]
    %v2479 = vld [vmem:[%s2474 + $0x10] sm:$0xf]
    %v2480 = vld [vmem:[%s2474 + $0x14] sm:$0xf]
    %v2481 = vld [vmem:[%s2474 + $0x18] sm:$0xf]
    %v2482 = vld [vmem:[%s2474 + $0x1c] sm:$0xf]
    %v2483 = vld [vmem:[%s2474 + $0x20] sm:$0xf]
    %v2484 = vld [vmem:[%s2474 + $0x24] sm:$0xf]
    %v2485 = vld [vmem:[%s2474 + $0x28] sm:$0xf]
    %v2486 = vld [vmem:[%s2474 + $0x2c] sm:$0xf]
    %v2487 = vld [vmem:[%s2474 + $0x30] sm:$0xf]
    %v2488 = vld [vmem:[%s2474 + $0x34] sm:$0xf]
    %v2489 = vld [vmem:[%s2474 + $0x38] sm:$0xf]
    %v2490 = vld [vmem:[%s2474 + $0x3c] sm:$0xf]
    %v2491 = vld [vmem:[%s2474 + $0x40] sm:$0xf]
    %v2492 = vld [vmem:[%s2474 + $0x44] sm:$0xf]
    %v2493 = vld [vmem:[%s2474 + $0x48] sm:$0xf]
    %v2494 = vld [vmem:[%s2474 + $0x4c] sm:$0xf]
    %v2495 = vld [vmem:[%s2474 + $0x50] sm:$0xf]
    %v2496 = vld [vmem:[%s2474 + $0x54] sm:$0xf]
    %v2497 = vld [vmem:[%s2474 + $0x58] sm:$0xf]
    %v2498 = vld [vmem:[%s2474 + $0x5c] sm:$0xf]
    %v2499 = vld [vmem:[%s2474 + $0x60] sm:$0xf]
    %v2500 = vld [vmem:[%s2474 + $0x64] sm:$0xf]
    %v2501 = vld [vmem:[%s2474 + $0x68] sm:$0xf]
    %v2502 = vld [vmem:[%s2474 + $0x6c] sm:$0xf]
    %v2503 = vld [vmem:[%s2474 + $0x70] sm:$0xf]
    %v2504 = vld [vmem:[%s2474 + $0x74] sm:$0xf]
    %v2505 = vld [vmem:[%s2474 + $0x78] sm:$0xf]
    %v2506 = vld [vmem:[%s2474 + $0x7c] sm:$0xf]
    %v2507 = vld [vmem:[%s2474 + $0x80] sm:$0xf]
    %v2508 = vld [vmem:[%s2474 + $0x84] sm:$0xf]
    %v2509 = vld [vmem:[%s2474 + $0x88] sm:$0xf]
    %v2510 = vld [vmem:[%s2474 + $0x8c] sm:$0xf]
    %v2511 = vld [vmem:[%s2474 + $0x90] sm:$0xf]
    %v2512 = vld [vmem:[%s2474 + $0x94] sm:$0xf]
    %v2513 = vld [vmem:[%s2474 + $0x98] sm:$0xf]
    %v2514 = vld [vmem:[%s2474 + $0x9c] sm:$0xf]
    %v2515 = vld [vmem:[%s2474 + $0xa0] sm:$0xf]
    %v2516 = vld [vmem:[%s2474 + $0xa4] sm:$0xf]
    %v2517 = vld [vmem:[%s2474 + $0xa8] sm:$0xf]
    %v2518 = vld [vmem:[%s2474 + $0xac] sm:$0xf]
    %v2519 = vld [vmem:[%s2474 + $0xb0] sm:$0xf]
    %v2520 = vld [vmem:[%s2474 + $0xb4] sm:$0xf]
    %v2521 = vld [vmem:[%s2474 + $0xb8] sm:$0xf]
    %v2522 = vld [vmem:[%s2474 + $0xbc] sm:$0xf]
    %v2523 = vld [vmem:[%s2474 + $0xc0] sm:$0xf]
    %v2524 = vld [vmem:[%s2474 + $0xc4] sm:$0xf]
    %v2525 = vld [vmem:[%s2474 + $0xc8] sm:$0xf]
    %v2526 = vld [vmem:[%s2474 + $0xcc] sm:$0xf]
    %v2527 = vld [vmem:[%s2474 + $0xd0] sm:$0xf]
    %v2528 = vld [vmem:[%s2474 + $0xd4] sm:$0xf]
    %v2529 = vld [vmem:[%s2474 + $0xd8] sm:$0xf]
    %v2530 = vld [vmem:[%s2474 + $0xdc] sm:$0xf]
    %v2531 = vld [vmem:[%s2474 + $0xe0] sm:$0xf]
    %v2532 = vld [vmem:[%s2474 + $0xe4] sm:$0xf]
    %v2533 = vld [vmem:[%s2474 + $0xe8] sm:$0xf]
    %v2534 = vld [vmem:[%s2474 + $0xec] sm:$0xf]
    %v2535 = vld [vmem:[%s2474 + $0xf0] sm:$0xf]
    %v2536 = vld [vmem:[%s2474 + $0xf4] sm:$0xf]
    %v2537 = vld [vmem:[%s2474 + $0xf8] sm:$0xf]
    %v2538 = vld [vmem:[%s2474 + $0xfc] sm:$0xf]
    %v2539 = vpack.c.bf16 %v2463, %v2460
    %v2540 = vpack.c.bf16 %v2471, %v2468
    %v2605 = vunpack.c.l.b16 %v2475
    %v2606 = vunpack.c.l.b16 %v2476
    %v2607 = vunpack.c.l.b16 %v2477
    %v2608 = vunpack.c.l.b16 %v2478
    %v2609 = vunpack.c.l.b16 %v2479
    %v2610 = vunpack.c.l.b16 %v2480
    %v2611 = vunpack.c.l.b16 %v2481
    %v2612 = vunpack.c.l.b16 %v2482
    %v2613 = vunpack.c.l.b16 %v2483
    %v2614 = vunpack.c.l.b16 %v2484
    %v2615 = vunpack.c.l.b16 %v2485
    %v2616 = vunpack.c.l.b16 %v2486
    %v2617 = vunpack.c.l.b16 %v2487
    %v2618 = vunpack.c.l.b16 %v2488
    %v2619 = vunpack.c.l.b16 %v2489
    %v2620 = vunpack.c.l.b16 %v2490
    %v2621 = vunpack.c.l.b16 %v2491
    %v2622 = vunpack.c.l.b16 %v2492
    %v2623 = vunpack.c.l.b16 %v2493
    %v2624 = vunpack.c.l.b16 %v2494
    %v2625 = vunpack.c.l.b16 %v2495
    %v2626 = vunpack.c.l.b16 %v2496
    %v2627 = vunpack.c.l.b16 %v2497
    %v2628 = vunpack.c.l.b16 %v2498
    %v2629 = vunpack.c.l.b16 %v2499
    %v2630 = vunpack.c.l.b16 %v2500
    %v2631 = vunpack.c.l.b16 %v2501
    %v2632 = vunpack.c.l.b16 %v2502
    %v2633 = vunpack.c.l.b16 %v2503
    %v2634 = vunpack.c.l.b16 %v2504
    %v2635 = vunpack.c.l.b16 %v2505
    %v2636 = vunpack.c.l.b16 %v2506
    %v2637 = vunpack.c.l.b16 %v2507
    %v2638 = vunpack.c.l.b16 %v2508
    %v2639 = vunpack.c.l.b16 %v2509
    %v2640 = vunpack.c.l.b16 %v2510
    %v2641 = vunpack.c.l.b16 %v2511
    %v2642 = vunpack.c.l.b16 %v2512
    %v2643 = vunpack.c.l.b16 %v2513
    %v2644 = vunpack.c.l.b16 %v2514
    %v2645 = vunpack.c.l.b16 %v2515
    %v2646 = vunpack.c.l.b16 %v2516
    %v2647 = vunpack.c.l.b16 %v2517
    %v2648 = vunpack.c.l.b16 %v2518
    %v2649 = vunpack.c.l.b16 %v2519
    %v2650 = vunpack.c.l.b16 %v2520
    %v2651 = vunpack.c.l.b16 %v2521
    %v2652 = vunpack.c.l.b16 %v2522
    %v2653 = vunpack.c.l.b16 %v2523
    %v2654 = vunpack.c.l.b16 %v2524
    %v2655 = vunpack.c.l.b16 %v2525
    %v2656 = vunpack.c.l.b16 %v2526
    %v2657 = vunpack.c.l.b16 %v2527
    %v2658 = vunpack.c.l.b16 %v2528
    %v2659 = vunpack.c.l.b16 %v2529
    %v2660 = vunpack.c.l.b16 %v2530
    %v2661 = vunpack.c.l.b16 %v2531
    %v2662 = vunpack.c.l.b16 %v2532
    %v2663 = vunpack.c.l.b16 %v2533
    %v2664 = vunpack.c.l.b16 %v2534
    %v2665 = vunpack.c.l.b16 %v2535
    %v2666 = vunpack.c.l.b16 %v2536
    %v2667 = vunpack.c.l.b16 %v2537
    %v2668 = vunpack.c.l.b16 %v2538
    %v2669 = vpack.c.b16 %v2606, %v2605
    %v2670 = vpack.c.b16 %v2608, %v2607
    %v2671 = vpack.c.b16 %v2610, %v2609
    %v2672 = vpack.c.b16 %v2612, %v2611
    %v2673 = vpack.c.b16 %v2614, %v2613
    %v2674 = vpack.c.b16 %v2616, %v2615
    %v2675 = vpack.c.b16 %v2618, %v2617
    %v2676 = vpack.c.b16 %v2620, %v2619
    %v2677 = vpack.c.b16 %v2622, %v2621
    %v2678 = vpack.c.b16 %v2624, %v2623
    %v2679 = vpack.c.b16 %v2626, %v2625
    %v2680 = vpack.c.b16 %v2628, %v2627
    %v2681 = vpack.c.b16 %v2630, %v2629
    %v2682 = vpack.c.b16 %v2632, %v2631
    %v2683 = vpack.c.b16 %v2634, %v2633
    %v2684 = vpack.c.b16 %v2636, %v2635
    %v2685 = vpack.c.b16 %v2638, %v2637
    %v2686 = vpack.c.b16 %v2640, %v2639
    %v2687 = vpack.c.b16 %v2642, %v2641
    %v2688 = vpack.c.b16 %v2644, %v2643
    %v2689 = vpack.c.b16 %v2646, %v2645
    %v2690 = vpack.c.b16 %v2648, %v2647
    %v2691 = vpack.c.b16 %v2650, %v2649
    %v2692 = vpack.c.b16 %v2652, %v2651
    %v2693 = vpack.c.b16 %v2654, %v2653
    %v2694 = vpack.c.b16 %v2656, %v2655
    %v2695 = vpack.c.b16 %v2658, %v2657
    %v2696 = vpack.c.b16 %v2660, %v2659
    %v2697 = vpack.c.b16 %v2662, %v2661
    %v2698 = vpack.c.b16 %v2664, %v2663
    %v2699 = vpack.c.b16 %v2666, %v2665
    %v2700 = vpack.c.b16 %v2668, %v2667
    %v2702 = vsel %vm703, %v2669, 0
    %v2705 = vsel %vm703, %v2670, 0
    %v2708 = vsel %vm703, %v2671, 0
    %v2711 = vsel %vm703, %v2672, 0
    %v2714 = vsel %vm703, %v2673, 0
    %v2717 = vsel %vm703, %v2674, 0
    %v2720 = vsel %vm703, %v2675, 0
    %v2723 = vsel %vm703, %v2676, 0
    %v2726 = vsel %vm703, %v2677, 0
    %v2729 = vsel %vm703, %v2678, 0
    %v2732 = vsel %vm703, %v2679, 0
    %v2735 = vsel %vm703, %v2680, 0
    %v2738 = vsel %vm703, %v2681, 0
    %v2741 = vsel %vm703, %v2682, 0
    %v2744 = vsel %vm703, %v2683, 0
    %v2747 = vsel %vm703, %v2684, 0
    %v2750 = vsel %vm703, %v2685, 0
    %v2753 = vsel %vm703, %v2686, 0
    %v2756 = vsel %vm703, %v2687, 0
    %v2759 = vsel %vm703, %v2688, 0
    %v2762 = vsel %vm703, %v2689, 0
    %v2765 = vsel %vm703, %v2690, 0
    %v2768 = vsel %vm703, %v2691, 0
    %v2771 = vsel %vm703, %v2692, 0
    %v2774 = vsel %vm703, %v2693, 0
    %v2777 = vsel %vm703, %v2694, 0
    %v2780 = vsel %vm703, %v2695, 0
    %v2783 = vsel %vm703, %v2696, 0
    %v2786 = vsel %vm703, %v2697, 0
    %v2789 = vsel %vm703, %v2698, 0
    %v2792 = vsel %vm703, %v2699, 0
    %v2795 = vsel %vm703, %v2700, 0
    %2797 = vmatprep.subr.bf16.mxu0 0
    %2798 = vmatpush1.bf16.msra.mxu0 0
    %2799 = vmatprep.subr.bf16.mxu0 0
    %2800 = vmatpush1.bf16.msra.mxu0 0
    %2801 = vmatprep.subr.bf16.mxu0 0
    %2802 = vmatpush1.bf16.msra.mxu0 0
    %2803 = vmatprep.subr.bf16.mxu0 0
    %2804 = vmatpush1.bf16.msra.mxu0 0
    %2805 = vmatprep.subr.bf16.mxu0 0
    %2806 = vmatpush1.bf16.msra.mxu0 0
    %2807 = vmatprep.subr.bf16.mxu0 0
    %2808 = vmatpush1.bf16.msra.mxu0 0
    %2809 = vmatprep.subr.bf16.mxu0 0
    %2810 = vmatpush1.bf16.msra.mxu0 %v2540
    %2811 = vmatprep.subr.bf16.mxu0 0
    %2812 = vmatpush1.bf16.msra.mxu0 %v2539
    %2813 = vmatprep.subr.bf16.mxu0 0
    %2814 = vmatpush2.bf16.msra.mxu0 0
    %2815 = vmatprep.subr.bf16.mxu0 0
    %2816 = vmatpush2.bf16.msra.mxu0 0
    %2817 = vmatprep.subr.bf16.mxu0 0
    %2818 = vmatpush2.bf16.msra.mxu0 0
    %2819 = vmatprep.subr.bf16.mxu0 0
    %2820 = vmatpush2.bf16.msra.mxu0 0
    %2821 = vmatprep.subr.bf16.mxu0 0
    %2822 = vmatpush2.bf16.msra.mxu0 0
    %2823 = vmatprep.subr.bf16.mxu0 0
    %2824 = vmatpush2.bf16.msra.mxu0 0
    %2825 = vmatprep.subr.bf16.mxu0 0
    %2826 = vmatpush2.bf16.msra.mxu0 0
    %2827 = vmatprep.subr.bf16.mxu0 0
    %2828 = vmatpush2.bf16.msra.mxu0 0
    %2829 = vmatprep.mubr.bf16.mxu0 0
    %2830 = vmatmul.mubr.bf16.gmra.mxu0 %v2702
    %v2831 = vpop.f32.mrf.mxu0
    %v2832 = vadd.f32 0.0, %v2831
    %v2833 = vpop.f32.mrf.mxu0
    %v2834 = vpop.f32.mrf.mxu0
    %v2835 = vadd.f32 0.0, %v2834
    %v2836 = vpop.f32.mrf.mxu0
    %2837 = vmatprep.mubr.bf16.mxu0 0
    %2838 = vmatmul.mubr.bf16.gmra.mxu0 %v2705
    %v2839 = vpop.f32.mrf.mxu0
    %v2840 = vadd.f32 0.0, %v2839
    %v2841 = vpop.f32.mrf.mxu0
    %v2842 = vpop.f32.mrf.mxu0
    %v2843 = vadd.f32 0.0, %v2842
    %v2844 = vpop.f32.mrf.mxu0
    %2845 = vmatprep.mubr.bf16.mxu0 0
    %2846 = vmatmul.mubr.bf16.gmra.mxu0 %v2708
    %v2847 = vpop.f32.mrf.mxu0
    %v2848 = vadd.f32 0.0, %v2847
    %v2849 = vpop.f32.mrf.mxu0
    %v2850 = vpop.f32.mrf.mxu0
    %v2851 = vadd.f32 0.0, %v2850
    %v2852 = vpop.f32.mrf.mxu0
    %2853 = vmatprep.mubr.bf16.mxu0 0
    %2854 = vmatmul.mubr.bf16.gmra.mxu0 %v2711
    %v2855 = vpop.f32.mrf.mxu0
    %v2856 = vadd.f32 0.0, %v2855
    %v2857 = vpop.f32.mrf.mxu0
    %v2858 = vpop.f32.mrf.mxu0
    %v2859 = vadd.f32 0.0, %v2858
    %v2860 = vpop.f32.mrf.mxu0
    %2861 = vmatprep.mubr.bf16.mxu0 0
    %2862 = vmatmul.mubr.bf16.gmra.mxu0 %v2714
    %v2863 = vpop.f32.mrf.mxu0
    %v2864 = vadd.f32 0.0, %v2863
    %v2865 = vpop.f32.mrf.mxu0
    %v2866 = vpop.f32.mrf.mxu0
    %v2867 = vadd.f32 0.0, %v2866
    %v2868 = vpop.f32.mrf.mxu0
    %2869 = vmatprep.mubr.bf16.mxu0 0
    %2870 = vmatmul.mubr.bf16.gmra.mxu0 %v2717
    %v2871 = vpop.f32.mrf.mxu0
    %v2872 = vadd.f32 0.0, %v2871
    %v2873 = vpop.f32.mrf.mxu0
    %v2874 = vpop.f32.mrf.mxu0
    %v2875 = vadd.f32 0.0, %v2874
    %v2876 = vpop.f32.mrf.mxu0
    %2877 = vmatprep.mubr.bf16.mxu0 0
    %2878 = vmatmul.mubr.bf16.gmra.mxu0 %v2720
    %v2879 = vpop.f32.mrf.mxu0
    %v2880 = vadd.f32 0.0, %v2879
    %v2881 = vpop.f32.mrf.mxu0
    %v2882 = vpop.f32.mrf.mxu0
    %v2883 = vadd.f32 0.0, %v2882
    %v2884 = vpop.f32.mrf.mxu0
    %2885 = vmatprep.mubr.bf16.mxu0 0
    %2886 = vmatmul.mubr.bf16.gmra.mxu0 %v2723
    %v2887 = vpop.f32.mrf.mxu0
    %v2888 = vadd.f32 0.0, %v2887
    %v2889 = vpop.f32.mrf.mxu0
    %v2890 = vpop.f32.mrf.mxu0
    %v2891 = vadd.f32 0.0, %v2890
    %v2892 = vpop.f32.mrf.mxu0
    %2893 = vmatprep.mubr.bf16.mxu0 0
    %2894 = vmatmul.mubr.bf16.gmra.mxu0 %v2726
    %v2895 = vpop.f32.mrf.mxu0
    %v2896 = vadd.f32 0.0, %v2895
    %v2897 = vpop.f32.mrf.mxu0
    %v2898 = vpop.f32.mrf.mxu0
    %v2899 = vadd.f32 0.0, %v2898
    %v2900 = vpop.f32.mrf.mxu0
    %2901 = vmatprep.mubr.bf16.mxu0 0
    %2902 = vmatmul.mubr.bf16.gmra.mxu0 %v2729
    %v2903 = vpop.f32.mrf.mxu0
    %v2904 = vadd.f32 0.0, %v2903
    %v2905 = vpop.f32.mrf.mxu0
    %v2906 = vpop.f32.mrf.mxu0
    %v2907 = vadd.f32 0.0, %v2906
    %v2908 = vpop.f32.mrf.mxu0
    %2909 = vmatprep.mubr.bf16.mxu0 0
    %2910 = vmatmul.mubr.bf16.gmra.mxu0 %v2732
    %v2911 = vpop.f32.mrf.mxu0
    %v2912 = vadd.f32 0.0, %v2911
    %v2913 = vpop.f32.mrf.mxu0
    %v2914 = vpop.f32.mrf.mxu0
    %v2915 = vadd.f32 0.0, %v2914
    %v2916 = vpop.f32.mrf.mxu0
    %2917 = vmatprep.mubr.bf16.mxu0 0
    %2918 = vmatmul.mubr.bf16.gmra.mxu0 %v2735
    %v2919 = vpop.f32.mrf.mxu0
    %v2920 = vadd.f32 0.0, %v2919
    %v2921 = vpop.f32.mrf.mxu0
    %v2922 = vpop.f32.mrf.mxu0
    %v2923 = vadd.f32 0.0, %v2922
    %v2924 = vpop.f32.mrf.mxu0
    %2925 = vmatprep.mubr.bf16.mxu0 0
    %2926 = vmatmul.mubr.bf16.gmra.mxu0 %v2738
    %v2927 = vpop.f32.mrf.mxu0
    %v2928 = vadd.f32 0.0, %v2927
    %v2929 = vpop.f32.mrf.mxu0
    %v2930 = vpop.f32.mrf.mxu0
    %v2931 = vadd.f32 0.0, %v2930
    %v2932 = vpop.f32.mrf.mxu0
    %2933 = vmatprep.mubr.bf16.mxu0 0
    %2934 = vmatmul.mubr.bf16.gmra.mxu0 %v2741
    %v2935 = vpop.f32.mrf.mxu0
    %v2936 = vadd.f32 0.0, %v2935
    %v2937 = vpop.f32.mrf.mxu0
    %v2938 = vpop.f32.mrf.mxu0
    %v2939 = vadd.f32 0.0, %v2938
    %v2940 = vpop.f32.mrf.mxu0
    %2941 = vmatprep.mubr.bf16.mxu0 0
    %2942 = vmatmul.mubr.bf16.gmra.mxu0 %v2744
    %v2943 = vpop.f32.mrf.mxu0
    %v2944 = vadd.f32 0.0, %v2943
    %v2945 = vpop.f32.mrf.mxu0
    %v2946 = vpop.f32.mrf.mxu0
    %v2947 = vadd.f32 0.0, %v2946
    %v2948 = vpop.f32.mrf.mxu0
    %2949 = vmatprep.mubr.bf16.mxu0 0
    %2950 = vmatmul.mubr.bf16.gmra.mxu0 %v2747
    %v2951 = vpop.f32.mrf.mxu0
    %v2952 = vadd.f32 0.0, %v2951
    %v2953 = vpop.f32.mrf.mxu0
    %v2954 = vpop.f32.mrf.mxu0
    %v2955 = vadd.f32 0.0, %v2954
    %v2956 = vpop.f32.mrf.mxu0
    %2957 = vmatprep.mubr.bf16.mxu0 0
    %2958 = vmatmul.mubr.bf16.gmra.mxu0 %v2750
    %v2959 = vpop.f32.mrf.mxu0
    %v2960 = vadd.f32 0.0, %v2959
    %v2961 = vpop.f32.mrf.mxu0
    %v2962 = vpop.f32.mrf.mxu0
    %v2963 = vadd.f32 0.0, %v2962
    %v2964 = vpop.f32.mrf.mxu0
    %2965 = vmatprep.mubr.bf16.mxu0 0
    %2966 = vmatmul.mubr.bf16.gmra.mxu0 %v2753
    %v2967 = vpop.f32.mrf.mxu0
    %v2968 = vadd.f32 0.0, %v2967
    %v2969 = vpop.f32.mrf.mxu0
    %v2970 = vpop.f32.mrf.mxu0
    %v2971 = vadd.f32 0.0, %v2970
    %v2972 = vpop.f32.mrf.mxu0
    %2973 = vmatprep.mubr.bf16.mxu0 0
    %2974 = vmatmul.mubr.bf16.gmra.mxu0 %v2756
    %v2975 = vpop.f32.mrf.mxu0
    %v2976 = vadd.f32 0.0, %v2975
    %v2977 = vpop.f32.mrf.mxu0
    %v2978 = vpop.f32.mrf.mxu0
    %v2979 = vadd.f32 0.0, %v2978
    %v2980 = vpop.f32.mrf.mxu0
    %2981 = vmatprep.mubr.bf16.mxu0 0
    %2982 = vmatmul.mubr.bf16.gmra.mxu0 %v2759
    %v2983 = vpop.f32.mrf.mxu0
    %v2984 = vadd.f32 0.0, %v2983
    %v2985 = vpop.f32.mrf.mxu0
    %v2986 = vpop.f32.mrf.mxu0
    %v2987 = vadd.f32 0.0, %v2986
    %v2988 = vpop.f32.mrf.mxu0
    %2989 = vmatprep.mubr.bf16.mxu0 0
    %2990 = vmatmul.mubr.bf16.gmra.mxu0 %v2762
    %v2991 = vpop.f32.mrf.mxu0
    %v2992 = vadd.f32 0.0, %v2991
    %v2993 = vpop.f32.mrf.mxu0
    %v2994 = vpop.f32.mrf.mxu0
    %v2995 = vadd.f32 0.0, %v2994
    %v2996 = vpop.f32.mrf.mxu0
    %2997 = vmatprep.mubr.bf16.mxu0 0
    %2998 = vmatmul.mubr.bf16.gmra.mxu0 %v2765
    %v2999 = vpop.f32.mrf.mxu0
    %v3000 = vadd.f32 0.0, %v2999
    %v3001 = vpop.f32.mrf.mxu0
    %v3002 = vpop.f32.mrf.mxu0
    %v3003 = vadd.f32 0.0, %v3002
    %v3004 = vpop.f32.mrf.mxu0
    %3005 = vmatprep.mubr.bf16.mxu0 0
    %3006 = vmatmul.mubr.bf16.gmra.mxu0 %v2768
    %v3007 = vpop.f32.mrf.mxu0
    %v3008 = vadd.f32 0.0, %v3007
    %v3009 = vpop.f32.mrf.mxu0
    %v3010 = vpop.f32.mrf.mxu0
    %v3011 = vadd.f32 0.0, %v3010
    %v3012 = vpop.f32.mrf.mxu0
    %3013 = vmatprep.mubr.bf16.mxu0 0
    %3014 = vmatmul.mubr.bf16.gmra.mxu0 %v2771
    %v3015 = vpop.f32.mrf.mxu0
    %v3016 = vadd.f32 0.0, %v3015
    %v3017 = vpop.f32.mrf.mxu0
    %v3018 = vpop.f32.mrf.mxu0
    %v3019 = vadd.f32 0.0, %v3018
    %v3020 = vpop.f32.mrf.mxu0
    %3021 = vmatprep.mubr.bf16.mxu0 0
    %3022 = vmatmul.mubr.bf16.gmra.mxu0 %v2774
    %v3023 = vpop.f32.mrf.mxu0
    %v3024 = vadd.f32 0.0, %v3023
    %v3025 = vpop.f32.mrf.mxu0
    %v3026 = vpop.f32.mrf.mxu0
    %v3027 = vadd.f32 0.0, %v3026
    %v3028 = vpop.f32.mrf.mxu0
    %3029 = vmatprep.mubr.bf16.mxu0 0
    %3030 = vmatmul.mubr.bf16.gmra.mxu0 %v2777
    %v3031 = vpop.f32.mrf.mxu0
    %v3032 = vadd.f32 0.0, %v3031
    %v3033 = vpop.f32.mrf.mxu0
    %v3034 = vpop.f32.mrf.mxu0
    %v3035 = vadd.f32 0.0, %v3034
    %v3036 = vpop.f32.mrf.mxu0
    %3037 = vmatprep.mubr.bf16.mxu0 0
    %3038 = vmatmul.mubr.bf16.gmra.mxu0 %v2780
    %v3039 = vpop.f32.mrf.mxu0
    %v3040 = vadd.f32 0.0, %v3039
    %v3041 = vpop.f32.mrf.mxu0
    %v3042 = vpop.f32.mrf.mxu0
    %v3043 = vadd.f32 0.0, %v3042
    %v3044 = vpop.f32.mrf.mxu0
    %3045 = vmatprep.mubr.bf16.mxu0 0
    %3046 = vmatmul.mubr.bf16.gmra.mxu0 %v2783
    %v3047 = vpop.f32.mrf.mxu0
    %v3048 = vadd.f32 0.0, %v3047
    %v3049 = vpop.f32.mrf.mxu0
    %v3050 = vpop.f32.mrf.mxu0
    %v3051 = vadd.f32 0.0, %v3050
    %v3052 = vpop.f32.mrf.mxu0
    %3053 = vmatprep.mubr.bf16.mxu0 0
    %3054 = vmatmul.mubr.bf16.gmra.mxu0 %v2786
    %v3055 = vpop.f32.mrf.mxu0
    %v3056 = vadd.f32 0.0, %v3055
    %v3057 = vpop.f32.mrf.mxu0
    %v3058 = vpop.f32.mrf.mxu0
    %v3059 = vadd.f32 0.0, %v3058
    %v3060 = vpop.f32.mrf.mxu0
    %3061 = vmatprep.mubr.bf16.mxu0 0
    %3062 = vmatmul.mubr.bf16.gmra.mxu0 %v2789
    %v3063 = vpop.f32.mrf.mxu0
    %v3064 = vadd.f32 0.0, %v3063
    %v3065 = vpop.f32.mrf.mxu0
    %v3066 = vpop.f32.mrf.mxu0
    %v3067 = vadd.f32 0.0, %v3066
    %v3068 = vpop.f32.mrf.mxu0
    %3069 = vmatprep.mubr.bf16.mxu0 0
    %3070 = vmatmul.mubr.bf16.gmra.mxu0 %v2792
    %v3071 = vpop.f32.mrf.mxu0
    %v3072 = vadd.f32 0.0, %v3071
    %v3073 = vpop.f32.mrf.mxu0
    %v3074 = vpop.f32.mrf.mxu0
    %v3075 = vadd.f32 0.0, %v3074
    %v3076 = vpop.f32.mrf.mxu0
    %3077 = vmatprep.mubr.bf16.mxu0 0
    %3078 = vmatmul.mubr.bf16.gmra.mxu0 %v2795
    %v3079 = vpop.f32.mrf.mxu0
    %v3080 = vadd.f32 0.0, %v3079
    %v3081 = vpop.f32.mrf.mxu0
    %v3082 = vpop.f32.mrf.mxu0
    %v3083 = vadd.f32 0.0, %v3082
    %v3084 = vpop.f32.mrf.mxu0
    %3085 = vdwg.mxu0
    %v3086 = vadd.f32 %v2328, %v2832
    %v3087 = vadd.f32 %v2329, %v2835
    %v3088 = vadd.f32 %v2330, %v2840
    %v3089 = vadd.f32 %v2331, %v2843
    %v3090 = vadd.f32 %v2332, %v2848
    %v3091 = vadd.f32 %v2333, %v2851
    %v3092 = vadd.f32 %v2334, %v2856
    %v3093 = vadd.f32 %v2335, %v2859
    %v3094 = vadd.f32 %v2336, %v2864
    %v3095 = vadd.f32 %v2337, %v2867
    %v3096 = vadd.f32 %v2338, %v2872
    %v3097 = vadd.f32 %v2339, %v2875
    %v3098 = vadd.f32 %v2340, %v2880
    %v3099 = vadd.f32 %v2341, %v2883
    %v3100 = vadd.f32 %v2342, %v2888
    %v3101 = vadd.f32 %v2343, %v2891
    %v3102 = vadd.f32 %v2344, %v2896
    %v3103 = vadd.f32 %v2345, %v2899
    %v3104 = vadd.f32 %v2346, %v2904
    %v3105 = vadd.f32 %v2347, %v2907
    %v3106 = vadd.f32 %v2348, %v2912
    %v3107 = vadd.f32 %v2349, %v2915
    %v3108 = vadd.f32 %v2350, %v2920
    %v3109 = vadd.f32 %v2351, %v2923
    %v3110 = vadd.f32 %v2352, %v2928
    %v3111 = vadd.f32 %v2353, %v2931
    %v3112 = vadd.f32 %v2354, %v2936
    %v3113 = vadd.f32 %v2355, %v2939
    %v3114 = vadd.f32 %v2356, %v2944
    %v3115 = vadd.f32 %v2357, %v2947
    %v3116 = vadd.f32 %v2358, %v2952
    %v3117 = vadd.f32 %v2359, %v2955
    %v3118 = vadd.f32 %v2360, %v2960
    %v3119 = vadd.f32 %v2361, %v2963
    %v3120 = vadd.f32 %v2362, %v2968
    %v3121 = vadd.f32 %v2363, %v2971
    %v3122 = vadd.f32 %v2364, %v2976
    %v3123 = vadd.f32 %v2365, %v2979
    %v3124 = vadd.f32 %v2366, %v2984
    %v3125 = vadd.f32 %v2367, %v2987
    %v3126 = vadd.f32 %v2368, %v2992
    %v3127 = vadd.f32 %v2369, %v2995
    %v3128 = vadd.f32 %v2370, %v3000
    %v3129 = vadd.f32 %v2371, %v3003
    %v3130 = vadd.f32 %v2372, %v3008
    %v3131 = vadd.f32 %v2373, %v3011
    %v3132 = vadd.f32 %v2374, %v3016
    %v3133 = vadd.f32 %v2375, %v3019
    %v3134 = vadd.f32 %v2376, %v3024
    %v3135 = vadd.f32 %v2377, %v3027
    %v3136 = vadd.f32 %v2378, %v3032
    %v3137 = vadd.f32 %v2379, %v3035
    %v3138 = vadd.f32 %v2380, %v3040
    %v3139 = vadd.f32 %v2381, %v3043
    %v3140 = vadd.f32 %v2382, %v3048
    %v3141 = vadd.f32 %v2383, %v3051
    %v3142 = vadd.f32 %v2384, %v3056
    %v3143 = vadd.f32 %v2385, %v3059
    %v3144 = vadd.f32 %v2386, %v3064
    %v3145 = vadd.f32 %v2387, %v3067
    %v3146 = vadd.f32 %v2388, %v3072
    %v3147 = vadd.f32 %v2389, %v3075
    %v3148 = vadd.f32 %v2390, %v3080
    %v3149 = vadd.f32 %v2391, %v3083
    %v3150 = vld [vmem:[#allocation12] sm:$0xff]
    %v3151 = vld [vmem:[#allocation12 + $0x8] sm:$0xff]
    %v3152 = vld [vmem:[#allocation12 + $0x10] sm:$0xff]
    %v3153 = vld [vmem:[#allocation12 + $0x18] sm:$0xff]
    %v3154 = vld [vmem:[#allocation12 + $0x20] sm:$0xff]
    %v3155 = vld [vmem:[#allocation12 + $0x28] sm:$0xff]
    %v3156 = vld [vmem:[#allocation12 + $0x30] sm:$0xff]
    %v3157 = vld [vmem:[#allocation12 + $0x38] sm:$0xff]
    %v3158 = vld [vmem:[#allocation12 + $0x40] sm:$0xff]
    %v3159 = vld [vmem:[#allocation12 + $0x48] sm:$0xff]
    %v3160 = vld [vmem:[#allocation12 + $0x50] sm:$0xff]
    %v3161 = vld [vmem:[#allocation12 + $0x58] sm:$0xff]
    %v3162 = vld [vmem:[#allocation12 + $0x60] sm:$0xff]
    %v3163 = vld [vmem:[#allocation12 + $0x68] sm:$0xff]
    %v3164 = vld [vmem:[#allocation12 + $0x70] sm:$0xff]
    %v3165 = vld [vmem:[#allocation12 + $0x78] sm:$0xff]
    %v3166 = vld [vmem:[#allocation12 + $0x80] sm:$0xff]
    %v3167 = vld [vmem:[#allocation12 + $0x88] sm:$0xff]
    %v3168 = vld [vmem:[#allocation12 + $0x90] sm:$0xff]
    %v3169 = vld [vmem:[#allocation12 + $0x98] sm:$0xff]
    %v3170 = vld [vmem:[#allocation12 + $0xa0] sm:$0xff]
    %v3171 = vld [vmem:[#allocation12 + $0xa8] sm:$0xff]
    %v3172 = vld [vmem:[#allocation12 + $0xb0] sm:$0xff]
    %v3173 = vld [vmem:[#allocation12 + $0xb8] sm:$0xff]
    %v3174 = vld [vmem:[#allocation12 + $0xc0] sm:$0xff]
    %v3175 = vld [vmem:[#allocation12 + $0xc8] sm:$0xff]
    %v3176 = vld [vmem:[#allocation12 + $0xd0] sm:$0xff]
    %v3177 = vld [vmem:[#allocation12 + $0xd8] sm:$0xff]
    %v3178 = vld [vmem:[#allocation12 + $0xe0] sm:$0xff]
    %v3179 = vld [vmem:[#allocation12 + $0xe8] sm:$0xff]
    %v3180 = vld [vmem:[#allocation12 + $0xf0] sm:$0xff]
    %v3181 = vld [vmem:[#allocation12 + $0xf8] sm:$0xff]
    %v3182 = vld [vmem:[#allocation12 + $0x100] sm:$0xff]
    %v3183 = vld [vmem:[#allocation12 + $0x108] sm:$0xff]
    %v3184 = vld [vmem:[#allocation12 + $0x110] sm:$0xff]
    %v3185 = vld [vmem:[#allocation12 + $0x118] sm:$0xff]
    %v3186 = vld [vmem:[#allocation12 + $0x120] sm:$0xff]
    %v3187 = vld [vmem:[#allocation12 + $0x128] sm:$0xff]
    %v3188 = vld [vmem:[#allocation12 + $0x130] sm:$0xff]
    %v3189 = vld [vmem:[#allocation12 + $0x138] sm:$0xff]
    %v3190 = vld [vmem:[#allocation12 + $0x140] sm:$0xff]
    %v3191 = vld [vmem:[#allocation12 + $0x148] sm:$0xff]
    %v3192 = vld [vmem:[#allocation12 + $0x150] sm:$0xff]
    %v3193 = vld [vmem:[#allocation12 + $0x158] sm:$0xff]
    %v3194 = vld [vmem:[#allocation12 + $0x160] sm:$0xff]
    %v3195 = vld [vmem:[#allocation12 + $0x168] sm:$0xff]
    %v3196 = vld [vmem:[#allocation12 + $0x170] sm:$0xff]
    %v3197 = vld [vmem:[#allocation12 + $0x178] sm:$0xff]
    %v3198 = vld [vmem:[#allocation12 + $0x180] sm:$0xff]
    %v3199 = vld [vmem:[#allocation12 + $0x188] sm:$0xff]
    %v3200 = vld [vmem:[#allocation12 + $0x190] sm:$0xff]
    %v3201 = vld [vmem:[#allocation12 + $0x198] sm:$0xff]
    %v3202 = vld [vmem:[#allocation12 + $0x1a0] sm:$0xff]
    %v3203 = vld [vmem:[#allocation12 + $0x1a8] sm:$0xff]
    %v3204 = vld [vmem:[#allocation12 + $0x1b0] sm:$0xff]
    %v3205 = vld [vmem:[#allocation12 + $0x1b8] sm:$0xff]
    %v3206 = vld [vmem:[#allocation12 + $0x1c0] sm:$0xff]
    %v3207 = vld [vmem:[#allocation12 + $0x1c8] sm:$0xff]
    %v3208 = vld [vmem:[#allocation12 + $0x1d0] sm:$0xff]
    %v3209 = vld [vmem:[#allocation12 + $0x1d8] sm:$0xff]
    %v3210 = vld [vmem:[#allocation12 + $0x1e0] sm:$0xff]
    %v3211 = vld [vmem:[#allocation12 + $0x1e8] sm:$0xff]
    %v3212 = vld [vmem:[#allocation12 + $0x1f0] sm:$0xff]
    %v3213 = vld [vmem:[#allocation12 + $0x1f8] sm:$0xff]
    %3215 = vset.pattern.permute.xlu0 0
    %3216 = vperm.xlu0 %3215, %v3150
    %v3217 = vpop.permute.xlu0 %3216
    %3220 = vset.pattern.permute.xlu0 0
    %3221 = vperm.xlu0 %3220, %v3151
    %v3222 = vpop.permute.xlu0 %3221
    %3225 = vset.pattern.permute.xlu0 0
    %3226 = vperm.xlu0 %3225, %v3152
    %v3227 = vpop.permute.xlu0 %3226
    %3230 = vset.pattern.permute.xlu0 0
    %3231 = vperm.xlu0 %3230, %v3153
    %v3232 = vpop.permute.xlu0 %3231
    %3235 = vset.pattern.permute.xlu0 0
    %3236 = vperm.xlu0 %3235, %v3154
    %v3237 = vpop.permute.xlu0 %3236
    %3240 = vset.pattern.permute.xlu0 0
    %3241 = vperm.xlu0 %3240, %v3155
    %v3242 = vpop.permute.xlu0 %3241
    %3245 = vset.pattern.permute.xlu0 0
    %3246 = vperm.xlu0 %3245, %v3156
    %v3247 = vpop.permute.xlu0 %3246
    %3250 = vset.pattern.permute.xlu0 0
    %3251 = vperm.xlu0 %3250, %v3157
    %v3252 = vpop.permute.xlu0 %3251
    %3255 = vset.pattern.permute.xlu0 0
    %3256 = vperm.xlu0 %3255, %v3158
    %v3257 = vpop.permute.xlu0 %3256
    %3260 = vset.pattern.permute.xlu0 0
    %3261 = vperm.xlu0 %3260, %v3159
    %v3262 = vpop.permute.xlu0 %3261
    %3265 = vset.pattern.permute.xlu0 0
    %3266 = vperm.xlu0 %3265, %v3160
    %v3267 = vpop.permute.xlu0 %3266
    %3270 = vset.pattern.permute.xlu0 0
    %3271 = vperm.xlu0 %3270, %v3161
    %v3272 = vpop.permute.xlu0 %3271
    %3275 = vset.pattern.permute.xlu0 0
    %3276 = vperm.xlu0 %3275, %v3162
    %v3277 = vpop.permute.xlu0 %3276
    %3280 = vset.pattern.permute.xlu0 0
    %3281 = vperm.xlu0 %3280, %v3163
    %v3282 = vpop.permute.xlu0 %3281
    %3285 = vset.pattern.permute.xlu0 0
    %3286 = vperm.xlu0 %3285, %v3164
    %v3287 = vpop.permute.xlu0 %3286
    %3290 = vset.pattern.permute.xlu0 0
    %3291 = vperm.xlu0 %3290, %v3165
    %v3292 = vpop.permute.xlu0 %3291
    %3295 = vset.pattern.permute.xlu0 0
    %3296 = vperm.xlu0 %3295, %v3166
    %v3297 = vpop.permute.xlu0 %3296
    %3300 = vset.pattern.permute.xlu0 0
    %3301 = vperm.xlu0 %3300, %v3167
    %v3302 = vpop.permute.xlu0 %3301
    %3305 = vset.pattern.permute.xlu0 0
    %3306 = vperm.xlu0 %3305, %v3168
    %v3307 = vpop.permute.xlu0 %3306
    %3310 = vset.pattern.permute.xlu0 0
    %3311 = vperm.xlu0 %3310, %v3169
    %v3312 = vpop.permute.xlu0 %3311
    %3315 = vset.pattern.permute.xlu0 0
    %3316 = vperm.xlu0 %3315, %v3170
    %v3317 = vpop.permute.xlu0 %3316
    %3320 = vset.pattern.permute.xlu0 0
    %3321 = vperm.xlu0 %3320, %v3171
    %v3322 = vpop.permute.xlu0 %3321
    %3325 = vset.pattern.permute.xlu0 0
    %3326 = vperm.xlu0 %3325, %v3172
    %v3327 = vpop.permute.xlu0 %3326
    %3330 = vset.pattern.permute.xlu0 0
    %3331 = vperm.xlu0 %3330, %v3173
    %v3332 = vpop.permute.xlu0 %3331
    %3335 = vset.pattern.permute.xlu0 0
    %3336 = vperm.xlu0 %3335, %v3174
    %v3337 = vpop.permute.xlu0 %3336
    %3340 = vset.pattern.permute.xlu0 0
    %3341 = vperm.xlu0 %3340, %v3175
    %v3342 = vpop.permute.xlu0 %3341
    %3345 = vset.pattern.permute.xlu0 0
    %3346 = vperm.xlu0 %3345, %v3176
    %v3347 = vpop.permute.xlu0 %3346
    %3350 = vset.pattern.permute.xlu0 0
    %3351 = vperm.xlu0 %3350, %v3177
    %v3352 = vpop.permute.xlu0 %3351
    %3355 = vset.pattern.permute.xlu0 0
    %3356 = vperm.xlu0 %3355, %v3178
    %v3357 = vpop.permute.xlu0 %3356
    %3360 = vset.pattern.permute.xlu0 0
    %3361 = vperm.xlu0 %3360, %v3179
    %v3362 = vpop.permute.xlu0 %3361
    %3365 = vset.pattern.permute.xlu0 0
    %3366 = vperm.xlu0 %3365, %v3180
    %v3367 = vpop.permute.xlu0 %3366
    %3370 = vset.pattern.permute.xlu0 0
    %3371 = vperm.xlu0 %3370, %v3181
    %v3372 = vpop.permute.xlu0 %3371
    %3375 = vset.pattern.permute.xlu0 0
    %3376 = vperm.xlu0 %3375, %v3182
    %v3377 = vpop.permute.xlu0 %3376
    %3380 = vset.pattern.permute.xlu0 0
    %3381 = vperm.xlu0 %3380, %v3183
    %v3382 = vpop.permute.xlu0 %3381
    %3385 = vset.pattern.permute.xlu0 0
    %3386 = vperm.xlu0 %3385, %v3184
    %v3387 = vpop.permute.xlu0 %3386
    %3390 = vset.pattern.permute.xlu0 0
    %3391 = vperm.xlu0 %3390, %v3185
    %v3392 = vpop.permute.xlu0 %3391
    %3395 = vset.pattern.permute.xlu0 0
    %3396 = vperm.xlu0 %3395, %v3186
    %v3397 = vpop.permute.xlu0 %3396
    %3400 = vset.pattern.permute.xlu0 0
    %3401 = vperm.xlu0 %3400, %v3187
    %v3402 = vpop.permute.xlu0 %3401
    %3405 = vset.pattern.permute.xlu0 0
    %3406 = vperm.xlu0 %3405, %v3188
    %v3407 = vpop.permute.xlu0 %3406
    %3410 = vset.pattern.permute.xlu0 0
    %3411 = vperm.xlu0 %3410, %v3189
    %v3412 = vpop.permute.xlu0 %3411
    %3415 = vset.pattern.permute.xlu0 0
    %3416 = vperm.xlu0 %3415, %v3190
    %v3417 = vpop.permute.xlu0 %3416
    %3420 = vset.pattern.permute.xlu0 0
    %3421 = vperm.xlu0 %3420, %v3191
    %v3422 = vpop.permute.xlu0 %3421
    %3425 = vset.pattern.permute.xlu0 0
    %3426 = vperm.xlu0 %3425, %v3192
    %v3427 = vpop.permute.xlu0 %3426
    %3430 = vset.pattern.permute.xlu0 0
    %3431 = vperm.xlu0 %3430, %v3193
    %v3432 = vpop.permute.xlu0 %3431
    %3435 = vset.pattern.permute.xlu0 0
    %3436 = vperm.xlu0 %3435, %v3194
    %v3437 = vpop.permute.xlu0 %3436
    %3440 = vset.pattern.permute.xlu0 0
    %3441 = vperm.xlu0 %3440, %v3195
    %v3442 = vpop.permute.xlu0 %3441
    %3445 = vset.pattern.permute.xlu0 0
    %3446 = vperm.xlu0 %3445, %v3196
    %v3447 = vpop.permute.xlu0 %3446
    %3450 = vset.pattern.permute.xlu0 0
    %3451 = vperm.xlu0 %3450, %v3197
    %v3452 = vpop.permute.xlu0 %3451
    %3455 = vset.pattern.permute.xlu0 0
    %3456 = vperm.xlu0 %3455, %v3198
    %v3457 = vpop.permute.xlu0 %3456
    %3460 = vset.pattern.permute.xlu0 0
    %3461 = vperm.xlu0 %3460, %v3199
    %v3462 = vpop.permute.xlu0 %3461
    %3465 = vset.pattern.permute.xlu0 0
    %3466 = vperm.xlu0 %3465, %v3200
    %v3467 = vpop.permute.xlu0 %3466
    %3470 = vset.pattern.permute.xlu0 0
    %3471 = vperm.xlu0 %3470, %v3201
    %v3472 = vpop.permute.xlu0 %3471
    %3475 = vset.pattern.permute.xlu0 0
    %3476 = vperm.xlu0 %3475, %v3202
    %v3477 = vpop.permute.xlu0 %3476
    %3480 = vset.pattern.permute.xlu0 0
    %3481 = vperm.xlu0 %3480, %v3203
    %v3482 = vpop.permute.xlu0 %3481
    %3485 = vset.pattern.permute.xlu0 0
    %3486 = vperm.xlu0 %3485, %v3204
    %v3487 = vpop.permute.xlu0 %3486
    %3490 = vset.pattern.permute.xlu0 0
    %3491 = vperm.xlu0 %3490, %v3205
    %v3492 = vpop.permute.xlu0 %3491
    %3495 = vset.pattern.permute.xlu0 0
    %3496 = vperm.xlu0 %3495, %v3206
    %v3497 = vpop.permute.xlu0 %3496
    %3500 = vset.pattern.permute.xlu0 0
    %3501 = vperm.xlu0 %3500, %v3207
    %v3502 = vpop.permute.xlu0 %3501
    %3505 = vset.pattern.permute.xlu0 0
    %3506 = vperm.xlu0 %3505, %v3208
    %v3507 = vpop.permute.xlu0 %3506
    %3510 = vset.pattern.permute.xlu0 0
    %3511 = vperm.xlu0 %3510, %v3209
    %v3512 = vpop.permute.xlu0 %3511
    %3515 = vset.pattern.permute.xlu0 0
    %3516 = vperm.xlu0 %3515, %v3210
    %v3517 = vpop.permute.xlu0 %3516
    %3520 = vset.pattern.permute.xlu0 0
    %3521 = vperm.xlu0 %3520, %v3211
    %v3522 = vpop.permute.xlu0 %3521
    %3525 = vset.pattern.permute.xlu0 0
    %3526 = vperm.xlu0 %3525, %v3212
    %v3527 = vpop.permute.xlu0 %3526
    %3530 = vset.pattern.permute.xlu0 0
    %3531 = vperm.xlu0 %3530, %v3213
    %v3532 = vpop.permute.xlu0 %3531
    %v3534 = vadd.f32 %v3086, %v3217
    %v3535 = vadd.f32 %v3087, %v3222
    %v3536 = vadd.f32 %v3088, %v3227
    %v3537 = vadd.f32 %v3089, %v3232
    %v3538 = vadd.f32 %v3090, %v3237
    %v3539 = vadd.f32 %v3091, %v3242
    %v3540 = vadd.f32 %v3092, %v3247
    %v3541 = vadd.f32 %v3093, %v3252
    %v3542 = vadd.f32 %v3094, %v3257
    %v3543 = vadd.f32 %v3095, %v3262
    %v3544 = vadd.f32 %v3096, %v3267
    %v3545 = vadd.f32 %v3097, %v3272
    %v3546 = vadd.f32 %v3098, %v3277
    %v3547 = vadd.f32 %v3099, %v3282
    %v3548 = vadd.f32 %v3100, %v3287
    %v3549 = vadd.f32 %v3101, %v3292
    %v3550 = vadd.f32 %v3102, %v3297
    %v3551 = vadd.f32 %v3103, %v3302
    %v3552 = vadd.f32 %v3104, %v3307
    %v3553 = vadd.f32 %v3105, %v3312
    %v3554 = vadd.f32 %v3106, %v3317
    %v3555 = vadd.f32 %v3107, %v3322
    %v3556 = vadd.f32 %v3108, %v3327
    %v3557 = vadd.f32 %v3109, %v3332
    %v3558 = vadd.f32 %v3110, %v3337
    %v3559 = vadd.f32 %v3111, %v3342
    %v3560 = vadd.f32 %v3112, %v3347
    %v3561 = vadd.f32 %v3113, %v3352
    %v3562 = vadd.f32 %v3114, %v3357
    %v3563 = vadd.f32 %v3115, %v3362
    %v3564 = vadd.f32 %v3116, %v3367
    %v3565 = vadd.f32 %v3117, %v3372
    %v3566 = vadd.f32 %v3118, %v3377
    %v3567 = vadd.f32 %v3119, %v3382
    %v3568 = vadd.f32 %v3120, %v3387
    %v3569 = vadd.f32 %v3121, %v3392
    %v3570 = vadd.f32 %v3122, %v3397
    %v3571 = vadd.f32 %v3123, %v3402
    %v3572 = vadd.f32 %v3124, %v3407
    %v3573 = vadd.f32 %v3125, %v3412
    %v3574 = vadd.f32 %v3126, %v3417
    %v3575 = vadd.f32 %v3127, %v3422
    %v3576 = vadd.f32 %v3128, %v3427
    %v3577 = vadd.f32 %v3129, %v3432
    %v3578 = vadd.f32 %v3130, %v3437
    %v3579 = vadd.f32 %v3131, %v3442
    %v3580 = vadd.f32 %v3132, %v3447
    %v3581 = vadd.f32 %v3133, %v3452
    %v3582 = vadd.f32 %v3134, %v3457
    %v3583 = vadd.f32 %v3135, %v3462
    %v3584 = vadd.f32 %v3136, %v3467
    %v3585 = vadd.f32 %v3137, %v3472
    %v3586 = vadd.f32 %v3138, %v3477
    %v3587 = vadd.f32 %v3139, %v3482
    %v3588 = vadd.f32 %v3140, %v3487
    %v3589 = vadd.f32 %v3141, %v3492
    %v3590 = vadd.f32 %v3142, %v3497
    %v3591 = vadd.f32 %v3143, %v3502
    %v3592 = vadd.f32 %v3144, %v3507
    %v3593 = vadd.f32 %v3145, %v3512
    %v3594 = vadd.f32 %v3146, %v3517
    %v3595 = vadd.f32 %v3147, %v3522
    %v3596 = vadd.f32 %v3148, %v3527
    %v3597 = vadd.f32 %v3149, %v3532
    %v3598 = vmax.f32 %v3534, 0.0
    %v3599 = vmax.f32 %v3535, 0.0
    %v3600 = vmax.f32 %v3536, 0.0
    %v3601 = vmax.f32 %v3537, 0.0
    %v3602 = vmax.f32 %v3538, 0.0
    %v3603 = vmax.f32 %v3539, 0.0
    %v3604 = vmax.f32 %v3540, 0.0
    %v3605 = vmax.f32 %v3541, 0.0
    %v3606 = vmax.f32 %v3542, 0.0
    %v3607 = vmax.f32 %v3543, 0.0
    %v3608 = vmax.f32 %v3544, 0.0
    %v3609 = vmax.f32 %v3545, 0.0
    %v3610 = vmax.f32 %v3546, 0.0
    %v3611 = vmax.f32 %v3547, 0.0
    %v3612 = vmax.f32 %v3548, 0.0
    %v3613 = vmax.f32 %v3549, 0.0
    %v3614 = vmax.f32 %v3550, 0.0
    %v3615 = vmax.f32 %v3551, 0.0
    %v3616 = vmax.f32 %v3552, 0.0
    %v3617 = vmax.f32 %v3553, 0.0
    %v3618 = vmax.f32 %v3554, 0.0
    %v3619 = vmax.f32 %v3555, 0.0
    %v3620 = vmax.f32 %v3556, 0.0
    %v3621 = vmax.f32 %v3557, 0.0
    %v3622 = vmax.f32 %v3558, 0.0
    %v3623 = vmax.f32 %v3559, 0.0
    %v3624 = vmax.f32 %v3560, 0.0
    %v3625 = vmax.f32 %v3561, 0.0
    %v3626 = vmax.f32 %v3562, 0.0
    %v3627 = vmax.f32 %v3563, 0.0
    %v3628 = vmax.f32 %v3564, 0.0
    %v3629 = vmax.f32 %v3565, 0.0
    %v3630 = vmax.f32 %v3566, 0.0
    %v3631 = vmax.f32 %v3567, 0.0
    %v3632 = vmax.f32 %v3568, 0.0
    %v3633 = vmax.f32 %v3569, 0.0
    %v3634 = vmax.f32 %v3570, 0.0
    %v3635 = vmax.f32 %v3571, 0.0
    %v3636 = vmax.f32 %v3572, 0.0
    %v3637 = vmax.f32 %v3573, 0.0
    %v3638 = vmax.f32 %v3574, 0.0
    %v3639 = vmax.f32 %v3575, 0.0
    %v3640 = vmax.f32 %v3576, 0.0
    %v3641 = vmax.f32 %v3577, 0.0
    %v3642 = vmax.f32 %v3578, 0.0
    %v3643 = vmax.f32 %v3579, 0.0
    %v3644 = vmax.f32 %v3580, 0.0
    %v3645 = vmax.f32 %v3581, 0.0
    %v3646 = vmax.f32 %v3582, 0.0
    %v3647 = vmax.f32 %v3583, 0.0
    %v3648 = vmax.f32 %v3584, 0.0
    %v3649 = vmax.f32 %v3585, 0.0
    %v3650 = vmax.f32 %v3586, 0.0
    %v3651 = vmax.f32 %v3587, 0.0
    %v3652 = vmax.f32 %v3588, 0.0
    %v3653 = vmax.f32 %v3589, 0.0
    %v3654 = vmax.f32 %v3590, 0.0
    %v3655 = vmax.f32 %v3591, 0.0
    %v3656 = vmax.f32 %v3592, 0.0
    %v3657 = vmax.f32 %v3593, 0.0
    %v3658 = vmax.f32 %v3594, 0.0
    %v3659 = vmax.f32 %v3595, 0.0
    %v3660 = vmax.f32 %v3596, 0.0
    %v3661 = vmax.f32 %v3597, 0.0
    %s3662 = smul.u32 4, 4
    %s3663 = smul.u32 %s3662, 32
    %s3664 = smul.u32 %s3663, 4
    %s3665 = sshll.u32 %s3664, 4
    %3666 = dma.done [#allocation7], %s3665
    %v3667 = vpack.c.bf16 %v3599, %v3598
    %v3668 = vpack.c.bf16 %v3601, %v3600
    %v3669 = vpack.c.bf16 %v3603, %v3602
    %v3670 = vpack.c.bf16 %v3605, %v3604
    %v3671 = vpack.c.bf16 %v3607, %v3606
    %v3672 = vpack.c.bf16 %v3609, %v3608
    %v3673 = vpack.c.bf16 %v3611, %v3610
    %v3674 = vpack.c.bf16 %v3613, %v3612
    %v3675 = vpack.c.bf16 %v3615, %v3614
    %v3676 = vpack.c.bf16 %v3617, %v3616
    %v3677 = vpack.c.bf16 %v3619, %v3618
    %v3678 = vpack.c.bf16 %v3621, %v3620
    %v3679 = vpack.c.bf16 %v3623, %v3622
    %v3680 = vpack.c.bf16 %v3625, %v3624
    %v3681 = vpack.c.bf16 %v3627, %v3626
    %v3682 = vpack.c.bf16 %v3629, %v3628
    %v3683 = vpack.c.bf16 %v3631, %v3630
    %v3684 = vpack.c.bf16 %v3633, %v3632
    %v3685 = vpack.c.bf16 %v3635, %v3634
    %v3686 = vpack.c.bf16 %v3637, %v3636
    %v3687 = vpack.c.bf16 %v3639, %v3638
    %v3688 = vpack.c.bf16 %v3641, %v3640
    %v3689 = vpack.c.bf16 %v3643, %v3642
    %v3690 = vpack.c.bf16 %v3645, %v3644
    %v3691 = vpack.c.bf16 %v3647, %v3646
    %v3692 = vpack.c.bf16 %v3649, %v3648
    %v3693 = vpack.c.bf16 %v3651, %v3650
    %v3694 = vpack.c.bf16 %v3653, %v3652
    %v3695 = vpack.c.bf16 %v3655, %v3654
    %v3696 = vpack.c.bf16 %v3657, %v3656
    %v3697 = vpack.c.bf16 %v3659, %v3658
    %v3698 = vpack.c.bf16 %v3661, %v3660
    %v3699 = vld [vmem:[%s4] sm:$0xf]
    %v3700 = vld [vmem:[%s4 + $0x4] sm:$0xf]
    %v3701 = vld [vmem:[%s4 + $0x8] sm:$0xf]
    %v3702 = vld [vmem:[%s4 + $0xc] sm:$0xf]
    %v3707 = vunpack.c.l.b16 %v3699
    %v3708 = vunpack.c.l.b16 %v3700
    %v3709 = vunpack.c.l.b16 %v3701
    %v3710 = vunpack.c.l.b16 %v3702
    %v3711 = vpack.c.b16 %v3708, %v3707
    %v3712 = vpack.c.b16 %v3710, %v3709
    %v3716 = vsel %vm703, %v3667, 0
    %v3719 = vsel %vm703, %v3668, 0
    %v3722 = vsel %vm703, %v3669, 0
    %v3725 = vsel %vm703, %v3670, 0
    %v3728 = vsel %vm703, %v3671, 0
    %v3731 = vsel %vm703, %v3672, 0
    %v3734 = vsel %vm703, %v3673, 0
    %v3737 = vsel %vm703, %v3674, 0
    %v3740 = vsel %vm703, %v3675, 0
    %v3743 = vsel %vm703, %v3676, 0
    %v3746 = vsel %vm703, %v3677, 0
    %v3749 = vsel %vm703, %v3678, 0
    %v3752 = vsel %vm703, %v3679, 0
    %v3755 = vsel %vm703, %v3680, 0
    %v3758 = vsel %vm703, %v3681, 0
    %v3761 = vsel %vm703, %v3682, 0
    %v3764 = vsel %vm703, %v3683, 0
    %v3767 = vsel %vm703, %v3684, 0
    %v3770 = vsel %vm703, %v3685, 0
    %v3773 = vsel %vm703, %v3686, 0
    %v3776 = vsel %vm703, %v3687, 0
    %v3779 = vsel %vm703, %v3688, 0
    %v3782 = vsel %vm703, %v3689, 0
    %v3785 = vsel %vm703, %v3690, 0
    %v3788 = vsel %vm703, %v3691, 0
    %v3791 = vsel %vm703, %v3692, 0
    %v3794 = vsel %vm703, %v3693, 0
    %v3797 = vsel %vm703, %v3694, 0
    %v3800 = vsel %vm703, %v3695, 0
    %v3803 = vsel %vm703, %v3696, 0
    %v3806 = vsel %vm703, %v3697, 0
    %v3809 = vsel %vm703, %v3698, 0
    %3811 = vmatprep.subr.bf16.mxu0 0
    %3812 = vmatpush1.bf16.msra.mxu0 0
    %3813 = vmatprep.subr.bf16.mxu0 0
    %3814 = vmatpush1.bf16.msra.mxu0 0
    %3815 = vmatprep.subr.bf16.mxu0 0
    %3816 = vmatpush1.bf16.msra.mxu0 0
    %3817 = vmatprep.subr.bf16.mxu0 0
    %3818 = vmatpush1.bf16.msra.mxu0 0
    %3819 = vmatprep.subr.bf16.mxu0 0
    %3820 = vmatpush1.bf16.msra.mxu0 0
    %3821 = vmatprep.subr.bf16.mxu0 0
    %3822 = vmatpush1.bf16.msra.mxu0 0
    %3823 = vmatprep.subr.bf16.mxu0 0
    %3824 = vmatpush1.bf16.msra.mxu0 %v3712
    %3825 = vmatprep.subr.bf16.mxu0 0
    %3826 = vmatpush1.bf16.msra.mxu0 %v3711
    %3827 = vmatprep.subr.bf16.mxu0 0
    %3828 = vmatpush2.bf16.msra.mxu0 0
    %3829 = vmatprep.subr.bf16.mxu0 0
    %3830 = vmatpush2.bf16.msra.mxu0 0
    %3831 = vmatprep.subr.bf16.mxu0 0
    %3832 = vmatpush2.bf16.msra.mxu0 0
    %3833 = vmatprep.subr.bf16.mxu0 0
    %3834 = vmatpush2.bf16.msra.mxu0 0
    %3835 = vmatprep.subr.bf16.mxu0 0
    %3836 = vmatpush2.bf16.msra.mxu0 0
    %3837 = vmatprep.subr.bf16.mxu0 0
    %3838 = vmatpush2.bf16.msra.mxu0 0
    %3839 = vmatprep.subr.bf16.mxu0 0
    %3840 = vmatpush2.bf16.msra.mxu0 0
    %3841 = vmatprep.subr.bf16.mxu0 0
    %3842 = vmatpush2.bf16.msra.mxu0 0
    %3843 = vmatprep.mubr.bf16.mxu0 0
    %3844 = vmatmul.mubr.bf16.gmra.mxu0 %v3716
    %v3845 = vpop.f32.mrf.mxu0
    %v3846 = vadd.f32 0.0, %v3845
    %v3847 = vpop.f32.mrf.mxu0
    %v3848 = vpop.f32.mrf.mxu0
    %v3849 = vadd.f32 0.0, %v3848
    %v3850 = vpop.f32.mrf.mxu0
    %3851 = vmatprep.mubr.bf16.mxu0 0
    %3852 = vmatmul.mubr.bf16.gmra.mxu0 %v3719
    %v3853 = vpop.f32.mrf.mxu0
    %v3854 = vadd.f32 0.0, %v3853
    %v3855 = vpop.f32.mrf.mxu0
    %v3856 = vpop.f32.mrf.mxu0
    %v3857 = vadd.f32 0.0, %v3856
    %v3858 = vpop.f32.mrf.mxu0
    %3859 = vmatprep.mubr.bf16.mxu0 0
    %3860 = vmatmul.mubr.bf16.gmra.mxu0 %v3722
    %v3861 = vpop.f32.mrf.mxu0
    %v3862 = vadd.f32 0.0, %v3861
    %v3863 = vpop.f32.mrf.mxu0
    %v3864 = vpop.f32.mrf.mxu0
    %v3865 = vadd.f32 0.0, %v3864
    %v3866 = vpop.f32.mrf.mxu0
    %3867 = vmatprep.mubr.bf16.mxu0 0
    %3868 = vmatmul.mubr.bf16.gmra.mxu0 %v3725
    %v3869 = vpop.f32.mrf.mxu0
    %v3870 = vadd.f32 0.0, %v3869
    %v3871 = vpop.f32.mrf.mxu0
    %v3872 = vpop.f32.mrf.mxu0
    %v3873 = vadd.f32 0.0, %v3872
    %v3874 = vpop.f32.mrf.mxu0
    %3875 = vmatprep.mubr.bf16.mxu0 0
    %3876 = vmatmul.mubr.bf16.gmra.mxu0 %v3728
    %v3877 = vpop.f32.mrf.mxu0
    %v3878 = vadd.f32 0.0, %v3877
    %v3879 = vpop.f32.mrf.mxu0
    %v3880 = vpop.f32.mrf.mxu0
    %v3881 = vadd.f32 0.0, %v3880
    %v3882 = vpop.f32.mrf.mxu0
    %3883 = vmatprep.mubr.bf16.mxu0 0
    %3884 = vmatmul.mubr.bf16.gmra.mxu0 %v3731
    %v3885 = vpop.f32.mrf.mxu0
    %v3886 = vadd.f32 0.0, %v3885
    %v3887 = vpop.f32.mrf.mxu0
    %v3888 = vpop.f32.mrf.mxu0
    %v3889 = vadd.f32 0.0, %v3888
    %v3890 = vpop.f32.mrf.mxu0
    %3891 = vmatprep.mubr.bf16.mxu0 0
    %3892 = vmatmul.mubr.bf16.gmra.mxu0 %v3734
    %v3893 = vpop.f32.mrf.mxu0
    %v3894 = vadd.f32 0.0, %v3893
    %v3895 = vpop.f32.mrf.mxu0
    %v3896 = vpop.f32.mrf.mxu0
    %v3897 = vadd.f32 0.0, %v3896
    %v3898 = vpop.f32.mrf.mxu0
    %3899 = vmatprep.mubr.bf16.mxu0 0
    %3900 = vmatmul.mubr.bf16.gmra.mxu0 %v3737
    %v3901 = vpop.f32.mrf.mxu0
    %v3902 = vadd.f32 0.0, %v3901
    %v3903 = vpop.f32.mrf.mxu0
    %v3904 = vpop.f32.mrf.mxu0
    %v3905 = vadd.f32 0.0, %v3904
    %v3906 = vpop.f32.mrf.mxu0
    %3907 = vmatprep.mubr.bf16.mxu0 0
    %3908 = vmatmul.mubr.bf16.gmra.mxu0 %v3740
    %v3909 = vpop.f32.mrf.mxu0
    %v3910 = vadd.f32 0.0, %v3909
    %v3911 = vpop.f32.mrf.mxu0
    %v3912 = vpop.f32.mrf.mxu0
    %v3913 = vadd.f32 0.0, %v3912
    %v3914 = vpop.f32.mrf.mxu0
    %3915 = vmatprep.mubr.bf16.mxu0 0
    %3916 = vmatmul.mubr.bf16.gmra.mxu0 %v3743
    %v3917 = vpop.f32.mrf.mxu0
    %v3918 = vadd.f32 0.0, %v3917
    %v3919 = vpop.f32.mrf.mxu0
    %v3920 = vpop.f32.mrf.mxu0
    %v3921 = vadd.f32 0.0, %v3920
    %v3922 = vpop.f32.mrf.mxu0
    %3923 = vmatprep.mubr.bf16.mxu0 0
    %3924 = vmatmul.mubr.bf16.gmra.mxu0 %v3746
    %v3925 = vpop.f32.mrf.mxu0
    %v3926 = vadd.f32 0.0, %v3925
    %v3927 = vpop.f32.mrf.mxu0
    %v3928 = vpop.f32.mrf.mxu0
    %v3929 = vadd.f32 0.0, %v3928
    %v3930 = vpop.f32.mrf.mxu0
    %3931 = vmatprep.mubr.bf16.mxu0 0
    %3932 = vmatmul.mubr.bf16.gmra.mxu0 %v3749
    %v3933 = vpop.f32.mrf.mxu0
    %v3934 = vadd.f32 0.0, %v3933
    %v3935 = vpop.f32.mrf.mxu0
    %v3936 = vpop.f32.mrf.mxu0
    %v3937 = vadd.f32 0.0, %v3936
    %v3938 = vpop.f32.mrf.mxu0
    %3939 = vmatprep.mubr.bf16.mxu0 0
    %3940 = vmatmul.mubr.bf16.gmra.mxu0 %v3752
    %v3941 = vpop.f32.mrf.mxu0
    %v3942 = vadd.f32 0.0, %v3941
    %v3943 = vpop.f32.mrf.mxu0
    %v3944 = vpop.f32.mrf.mxu0
    %v3945 = vadd.f32 0.0, %v3944
    %v3946 = vpop.f32.mrf.mxu0
    %3947 = vmatprep.mubr.bf16.mxu0 0
    %3948 = vmatmul.mubr.bf16.gmra.mxu0 %v3755
    %v3949 = vpop.f32.mrf.mxu0
    %v3950 = vadd.f32 0.0, %v3949
    %v3951 = vpop.f32.mrf.mxu0
    %v3952 = vpop.f32.mrf.mxu0
    %v3953 = vadd.f32 0.0, %v3952
    %v3954 = vpop.f32.mrf.mxu0
    %3955 = vmatprep.mubr.bf16.mxu0 0
    %3956 = vmatmul.mubr.bf16.gmra.mxu0 %v3758
    %v3957 = vpop.f32.mrf.mxu0
    %v3958 = vadd.f32 0.0, %v3957
    %v3959 = vpop.f32.mrf.mxu0
    %v3960 = vpop.f32.mrf.mxu0
    %v3961 = vadd.f32 0.0, %v3960
    %v3962 = vpop.f32.mrf.mxu0
    %3963 = vmatprep.mubr.bf16.mxu0 0
    %3964 = vmatmul.mubr.bf16.gmra.mxu0 %v3761
    %v3965 = vpop.f32.mrf.mxu0
    %v3966 = vadd.f32 0.0, %v3965
    %v3967 = vpop.f32.mrf.mxu0
    %v3968 = vpop.f32.mrf.mxu0
    %v3969 = vadd.f32 0.0, %v3968
    %v3970 = vpop.f32.mrf.mxu0
    %3971 = vmatprep.mubr.bf16.mxu0 0
    %3972 = vmatmul.mubr.bf16.gmra.mxu0 %v3764
    %v3973 = vpop.f32.mrf.mxu0
    %v3974 = vadd.f32 0.0, %v3973
    %v3975 = vpop.f32.mrf.mxu0
    %v3976 = vpop.f32.mrf.mxu0
    %v3977 = vadd.f32 0.0, %v3976
    %v3978 = vpop.f32.mrf.mxu0
    %3979 = vmatprep.mubr.bf16.mxu0 0
    %3980 = vmatmul.mubr.bf16.gmra.mxu0 %v3767
    %v3981 = vpop.f32.mrf.mxu0
    %v3982 = vadd.f32 0.0, %v3981
    %v3983 = vpop.f32.mrf.mxu0
    %v3984 = vpop.f32.mrf.mxu0
    %v3985 = vadd.f32 0.0, %v3984
    %v3986 = vpop.f32.mrf.mxu0
    %3987 = vmatprep.mubr.bf16.mxu0 0
    %3988 = vmatmul.mubr.bf16.gmra.mxu0 %v3770
    %v3989 = vpop.f32.mrf.mxu0
    %v3990 = vadd.f32 0.0, %v3989
    %v3991 = vpop.f32.mrf.mxu0
    %v3992 = vpop.f32.mrf.mxu0
    %v3993 = vadd.f32 0.0, %v3992
    %v3994 = vpop.f32.mrf.mxu0
    %3995 = vmatprep.mubr.bf16.mxu0 0
    %3996 = vmatmul.mubr.bf16.gmra.mxu0 %v3773
    %v3997 = vpop.f32.mrf.mxu0
    %v3998 = vadd.f32 0.0, %v3997
    %v3999 = vpop.f32.mrf.mxu0
    %v4000 = vpop.f32.mrf.mxu0
    %v4001 = vadd.f32 0.0, %v4000
    %v4002 = vpop.f32.mrf.mxu0
    %4003 = vmatprep.mubr.bf16.mxu0 0
    %4004 = vmatmul.mubr.bf16.gmra.mxu0 %v3776
    %v4005 = vpop.f32.mrf.mxu0
    %v4006 = vadd.f32 0.0, %v4005
    %v4007 = vpop.f32.mrf.mxu0
    %v4008 = vpop.f32.mrf.mxu0
    %v4009 = vadd.f32 0.0, %v4008
    %v4010 = vpop.f32.mrf.mxu0
    %4011 = vmatprep.mubr.bf16.mxu0 0
    %4012 = vmatmul.mubr.bf16.gmra.mxu0 %v3779
    %v4013 = vpop.f32.mrf.mxu0
    %v4014 = vadd.f32 0.0, %v4013
    %v4015 = vpop.f32.mrf.mxu0
    %v4016 = vpop.f32.mrf.mxu0
    %v4017 = vadd.f32 0.0, %v4016
    %v4018 = vpop.f32.mrf.mxu0
    %4019 = vmatprep.mubr.bf16.mxu0 0
    %4020 = vmatmul.mubr.bf16.gmra.mxu0 %v3782
    %v4021 = vpop.f32.mrf.mxu0
    %v4022 = vadd.f32 0.0, %v4021
    %v4023 = vpop.f32.mrf.mxu0
    %v4024 = vpop.f32.mrf.mxu0
    %v4025 = vadd.f32 0.0, %v4024
    %v4026 = vpop.f32.mrf.mxu0
    %4027 = vmatprep.mubr.bf16.mxu0 0
    %4028 = vmatmul.mubr.bf16.gmra.mxu0 %v3785
    %v4029 = vpop.f32.mrf.mxu0
    %v4030 = vadd.f32 0.0, %v4029
    %v4031 = vpop.f32.mrf.mxu0
    %v4032 = vpop.f32.mrf.mxu0
    %v4033 = vadd.f32 0.0, %v4032
    %v4034 = vpop.f32.mrf.mxu0
    %4035 = vmatprep.mubr.bf16.mxu0 0
    %4036 = vmatmul.mubr.bf16.gmra.mxu0 %v3788
    %v4037 = vpop.f32.mrf.mxu0
    %v4038 = vadd.f32 0.0, %v4037
    %v4039 = vpop.f32.mrf.mxu0
    %v4040 = vpop.f32.mrf.mxu0
    %v4041 = vadd.f32 0.0, %v4040
    %v4042 = vpop.f32.mrf.mxu0
    %4043 = vmatprep.mubr.bf16.mxu0 0
    %4044 = vmatmul.mubr.bf16.gmra.mxu0 %v3791
    %v4045 = vpop.f32.mrf.mxu0
    %v4046 = vadd.f32 0.0, %v4045
    %v4047 = vpop.f32.mrf.mxu0
    %v4048 = vpop.f32.mrf.mxu0
    %v4049 = vadd.f32 0.0, %v4048
    %v4050 = vpop.f32.mrf.mxu0
    %4051 = vmatprep.mubr.bf16.mxu0 0
    %4052 = vmatmul.mubr.bf16.gmra.mxu0 %v3794
    %v4053 = vpop.f32.mrf.mxu0
    %v4054 = vadd.f32 0.0, %v4053
    %v4055 = vpop.f32.mrf.mxu0
    %v4056 = vpop.f32.mrf.mxu0
    %v4057 = vadd.f32 0.0, %v4056
    %v4058 = vpop.f32.mrf.mxu0
    %4059 = vmatprep.mubr.bf16.mxu0 0
    %4060 = vmatmul.mubr.bf16.gmra.mxu0 %v3797
    %v4061 = vpop.f32.mrf.mxu0
    %v4062 = vadd.f32 0.0, %v4061
    %v4063 = vpop.f32.mrf.mxu0
    %v4064 = vpop.f32.mrf.mxu0
    %v4065 = vadd.f32 0.0, %v4064
    %v4066 = vpop.f32.mrf.mxu0
    %4067 = vmatprep.mubr.bf16.mxu0 0
    %4068 = vmatmul.mubr.bf16.gmra.mxu0 %v3800
    %v4069 = vpop.f32.mrf.mxu0
    %v4070 = vadd.f32 0.0, %v4069
    %v4071 = vpop.f32.mrf.mxu0
    %v4072 = vpop.f32.mrf.mxu0
    %v4073 = vadd.f32 0.0, %v4072
    %v4074 = vpop.f32.mrf.mxu0
    %4075 = vmatprep.mubr.bf16.mxu0 0
    %4076 = vmatmul.mubr.bf16.gmra.mxu0 %v3803
    %v4077 = vpop.f32.mrf.mxu0
    %v4078 = vadd.f32 0.0, %v4077
    %v4079 = vpop.f32.mrf.mxu0
    %v4080 = vpop.f32.mrf.mxu0
    %v4081 = vadd.f32 0.0, %v4080
    %v4082 = vpop.f32.mrf.mxu0
    %4083 = vmatprep.mubr.bf16.mxu0 0
    %4084 = vmatmul.mubr.bf16.gmra.mxu0 %v3806
    %v4085 = vpop.f32.mrf.mxu0
    %v4086 = vadd.f32 0.0, %v4085
    %v4087 = vpop.f32.mrf.mxu0
    %v4088 = vpop.f32.mrf.mxu0
    %v4089 = vadd.f32 0.0, %v4088
    %v4090 = vpop.f32.mrf.mxu0
    %4091 = vmatprep.mubr.bf16.mxu0 0
    %4092 = vmatmul.mubr.bf16.gmra.mxu0 %v3809
    %v4093 = vpop.f32.mrf.mxu0
    %v4094 = vadd.f32 0.0, %v4093
    %v4095 = vpop.f32.mrf.mxu0
    %v4096 = vpop.f32.mrf.mxu0
    %v4097 = vadd.f32 0.0, %v4096
    %v4098 = vpop.f32.mrf.mxu0
    %4099 = vdwg.mxu0
    %v4100 = vld [vmem:[#allocation2] sm:$0xff]
    %v4101 = vld [vmem:[#allocation2 + $0x8] sm:$0xff]
    %v4102 = vld [vmem:[#allocation2 + $0x10] sm:$0xff]
    %v4103 = vld [vmem:[#allocation2 + $0x18] sm:$0xff]
    %v4104 = vld [vmem:[#allocation2 + $0x20] sm:$0xff]
    %v4105 = vld [vmem:[#allocation2 + $0x28] sm:$0xff]
    %v4106 = vld [vmem:[#allocation2 + $0x30] sm:$0xff]
    %v4107 = vld [vmem:[#allocation2 + $0x38] sm:$0xff]
    %v4108 = vld [vmem:[#allocation2 + $0x40] sm:$0xff]
    %v4109 = vld [vmem:[#allocation2 + $0x48] sm:$0xff]
    %v4110 = vld [vmem:[#allocation2 + $0x50] sm:$0xff]
    %v4111 = vld [vmem:[#allocation2 + $0x58] sm:$0xff]
    %v4112 = vld [vmem:[#allocation2 + $0x60] sm:$0xff]
    %v4113 = vld [vmem:[#allocation2 + $0x68] sm:$0xff]
    %v4114 = vld [vmem:[#allocation2 + $0x70] sm:$0xff]
    %v4115 = vld [vmem:[#allocation2 + $0x78] sm:$0xff]
    %v4116 = vld [vmem:[#allocation2 + $0x80] sm:$0xff]
    %v4117 = vld [vmem:[#allocation2 + $0x88] sm:$0xff]
    %v4118 = vld [vmem:[#allocation2 + $0x90] sm:$0xff]
    %v4119 = vld [vmem:[#allocation2 + $0x98] sm:$0xff]
    %v4120 = vld [vmem:[#allocation2 + $0xa0] sm:$0xff]
    %v4121 = vld [vmem:[#allocation2 + $0xa8] sm:$0xff]
    %v4122 = vld [vmem:[#allocation2 + $0xb0] sm:$0xff]
    %v4123 = vld [vmem:[#allocation2 + $0xb8] sm:$0xff]
    %v4124 = vld [vmem:[#allocation2 + $0xc0] sm:$0xff]
    %v4125 = vld [vmem:[#allocation2 + $0xc8] sm:$0xff]
    %v4126 = vld [vmem:[#allocation2 + $0xd0] sm:$0xff]
    %v4127 = vld [vmem:[#allocation2 + $0xd8] sm:$0xff]
    %v4128 = vld [vmem:[#allocation2 + $0xe0] sm:$0xff]
    %v4129 = vld [vmem:[#allocation2 + $0xe8] sm:$0xff]
    %v4130 = vld [vmem:[#allocation2 + $0xf0] sm:$0xff]
    %v4131 = vld [vmem:[#allocation2 + $0xf8] sm:$0xff]
    %v4132 = vld [vmem:[#allocation2 + $0x100] sm:$0xff]
    %v4133 = vld [vmem:[#allocation2 + $0x108] sm:$0xff]
    %v4134 = vld [vmem:[#allocation2 + $0x110] sm:$0xff]
    %v4135 = vld [vmem:[#allocation2 + $0x118] sm:$0xff]
    %v4136 = vld [vmem:[#allocation2 + $0x120] sm:$0xff]
    %v4137 = vld [vmem:[#allocation2 + $0x128] sm:$0xff]
    %v4138 = vld [vmem:[#allocation2 + $0x130] sm:$0xff]
    %v4139 = vld [vmem:[#allocation2 + $0x138] sm:$0xff]
    %v4140 = vld [vmem:[#allocation2 + $0x140] sm:$0xff]
    %v4141 = vld [vmem:[#allocation2 + $0x148] sm:$0xff]
    %v4142 = vld [vmem:[#allocation2 + $0x150] sm:$0xff]
    %v4143 = vld [vmem:[#allocation2 + $0x158] sm:$0xff]
    %v4144 = vld [vmem:[#allocation2 + $0x160] sm:$0xff]
    %v4145 = vld [vmem:[#allocation2 + $0x168] sm:$0xff]
    %v4146 = vld [vmem:[#allocation2 + $0x170] sm:$0xff]
    %v4147 = vld [vmem:[#allocation2 + $0x178] sm:$0xff]
    %v4148 = vld [vmem:[#allocation2 + $0x180] sm:$0xff]
    %v4149 = vld [vmem:[#allocation2 + $0x188] sm:$0xff]
    %v4150 = vld [vmem:[#allocation2 + $0x190] sm:$0xff]
    %v4151 = vld [vmem:[#allocation2 + $0x198] sm:$0xff]
    %v4152 = vld [vmem:[#allocation2 + $0x1a0] sm:$0xff]
    %v4153 = vld [vmem:[#allocation2 + $0x1a8] sm:$0xff]
    %v4154 = vld [vmem:[#allocation2 + $0x1b0] sm:$0xff]
    %v4155 = vld [vmem:[#allocation2 + $0x1b8] sm:$0xff]
    %v4156 = vld [vmem:[#allocation2 + $0x1c0] sm:$0xff]
    %v4157 = vld [vmem:[#allocation2 + $0x1c8] sm:$0xff]
    %v4158 = vld [vmem:[#allocation2 + $0x1d0] sm:$0xff]
    %v4159 = vld [vmem:[#allocation2 + $0x1d8] sm:$0xff]
    %v4160 = vld [vmem:[#allocation2 + $0x1e0] sm:$0xff]
    %v4161 = vld [vmem:[#allocation2 + $0x1e8] sm:$0xff]
    %v4162 = vld [vmem:[#allocation2 + $0x1f0] sm:$0xff]
    %v4163 = vld [vmem:[#allocation2 + $0x1f8] sm:$0xff]
    %v4164 = vpack.c.bf16 %v3849, %v3846
    %v4165 = vpack.c.bf16 %v3857, %v3854
    %v4166 = vpack.c.bf16 %v3865, %v3862
    %v4167 = vpack.c.bf16 %v3873, %v3870
    %v4168 = vpack.c.bf16 %v3881, %v3878
    %v4169 = vpack.c.bf16 %v3889, %v3886
    %v4170 = vpack.c.bf16 %v3897, %v3894
    %v4171 = vpack.c.bf16 %v3905, %v3902
    %v4172 = vpack.c.bf16 %v3913, %v3910
    %v4173 = vpack.c.bf16 %v3921, %v3918
    %v4174 = vpack.c.bf16 %v3929, %v3926
    %v4175 = vpack.c.bf16 %v3937, %v3934
    %v4176 = vpack.c.bf16 %v3945, %v3942
    %v4177 = vpack.c.bf16 %v3953, %v3950
    %v4178 = vpack.c.bf16 %v3961, %v3958
    %v4179 = vpack.c.bf16 %v3969, %v3966
    %v4180 = vpack.c.bf16 %v3977, %v3974
    %v4181 = vpack.c.bf16 %v3985, %v3982
    %v4182 = vpack.c.bf16 %v3993, %v3990
    %v4183 = vpack.c.bf16 %v4001, %v3998
    %v4184 = vpack.c.bf16 %v4009, %v4006
    %v4185 = vpack.c.bf16 %v4017, %v4014
    %v4186 = vpack.c.bf16 %v4025, %v4022
    %v4187 = vpack.c.bf16 %v4033, %v4030
    %v4188 = vpack.c.bf16 %v4041, %v4038
    %v4189 = vpack.c.bf16 %v4049, %v4046
    %v4190 = vpack.c.bf16 %v4057, %v4054
    %v4191 = vpack.c.bf16 %v4065, %v4062
    %v4192 = vpack.c.bf16 %v4073, %v4070
    %v4193 = vpack.c.bf16 %v4081, %v4078
    %v4194 = vpack.c.bf16 %v4089, %v4086
    %v4195 = vpack.c.bf16 %v4097, %v4094
    %s4196 = scalar_lea.vmem %s4, 16
    %v4197 = vld [vmem:[%s4196] sm:$0xf]
    %v4198 = vld [vmem:[%s4196 + $0x4] sm:$0xf]
    %v4199 = vld [vmem:[%s4196 + $0x8] sm:$0xf]
    %v4200 = vld [vmem:[%s4196 + $0xc] sm:$0xf]
    %v4205 = vunpack.c.l.b16 %v4197
    %v4206 = vunpack.c.l.b16 %v4198
    %v4207 = vunpack.c.l.b16 %v4199
    %v4208 = vunpack.c.l.b16 %v4200
    %v4209 = vpack.c.b16 %v4206, %v4205
    %v4210 = vpack.c.b16 %v4208, %v4207
    %4213 = vmatprep.subr.bf16.mxu0 0
    %4214 = vmatpush1.bf16.msra.mxu0 0
    %4215 = vmatprep.subr.bf16.mxu0 0
    %4216 = vmatpush1.bf16.msra.mxu0 0
    %4217 = vmatprep.subr.bf16.mxu0 0
    %4218 = vmatpush1.bf16.msra.mxu0 0
    %4219 = vmatprep.subr.bf16.mxu0 0
    %4220 = vmatpush1.bf16.msra.mxu0 0
    %4221 = vmatprep.subr.bf16.mxu0 0
    %4222 = vmatpush1.bf16.msra.mxu0 0
    %4223 = vmatprep.subr.bf16.mxu0 0
    %4224 = vmatpush1.bf16.msra.mxu0 0
    %4225 = vmatprep.subr.bf16.mxu0 0
    %4226 = vmatpush1.bf16.msra.mxu0 %v4210
    %4227 = vmatprep.subr.bf16.mxu0 0
    %4228 = vmatpush1.bf16.msra.mxu0 %v4209
    %4229 = vmatprep.subr.bf16.mxu0 0
    %4230 = vmatpush2.bf16.msra.mxu0 0
    %4231 = vmatprep.subr.bf16.mxu0 0
    %4232 = vmatpush2.bf16.msra.mxu0 0
    %4233 = vmatprep.subr.bf16.mxu0 0
    %4234 = vmatpush2.bf16.msra.mxu0 0
    %4235 = vmatprep.subr.bf16.mxu0 0
    %4236 = vmatpush2.bf16.msra.mxu0 0
    %4237 = vmatprep.subr.bf16.mxu0 0
    %4238 = vmatpush2.bf16.msra.mxu0 0
    %4239 = vmatprep.subr.bf16.mxu0 0
    %4240 = vmatpush2.bf16.msra.mxu0 0
    %4241 = vmatprep.subr.bf16.mxu0 0
    %4242 = vmatpush2.bf16.msra.mxu0 0
    %4243 = vmatprep.subr.bf16.mxu0 0
    %4244 = vmatpush2.bf16.msra.mxu0 0
    %4245 = vmatprep.mubr.bf16.mxu0 0
    %4246 = vmatmul.mubr.bf16.gmra.mxu0 %v3716
    %v4247 = vpop.f32.mrf.mxu0
    %v4248 = vadd.f32 0.0, %v4247
    %v4249 = vpop.f32.mrf.mxu0
    %v4250 = vpop.f32.mrf.mxu0
    %v4251 = vadd.f32 0.0, %v4250
    %v4252 = vpop.f32.mrf.mxu0
    %4253 = vmatprep.mubr.bf16.mxu0 0
    %4254 = vmatmul.mubr.bf16.gmra.mxu0 %v3719
    %v4255 = vpop.f32.mrf.mxu0
    %v4256 = vadd.f32 0.0, %v4255
    %v4257 = vpop.f32.mrf.mxu0
    %v4258 = vpop.f32.mrf.mxu0
    %v4259 = vadd.f32 0.0, %v4258
    %v4260 = vpop.f32.mrf.mxu0
    %4261 = vmatprep.mubr.bf16.mxu0 0
    %4262 = vmatmul.mubr.bf16.gmra.mxu0 %v3722
    %v4263 = vpop.f32.mrf.mxu0
    %v4264 = vadd.f32 0.0, %v4263
    %v4265 = vpop.f32.mrf.mxu0
    %v4266 = vpop.f32.mrf.mxu0
    %v4267 = vadd.f32 0.0, %v4266
    %v4268 = vpop.f32.mrf.mxu0
    %4269 = vmatprep.mubr.bf16.mxu0 0
    %4270 = vmatmul.mubr.bf16.gmra.mxu0 %v3725
    %v4271 = vpop.f32.mrf.mxu0
    %v4272 = vadd.f32 0.0, %v4271
    %v4273 = vpop.f32.mrf.mxu0
    %v4274 = vpop.f32.mrf.mxu0
    %v4275 = vadd.f32 0.0, %v4274
    %v4276 = vpop.f32.mrf.mxu0
    %4277 = vmatprep.mubr.bf16.mxu0 0
    %4278 = vmatmul.mubr.bf16.gmra.mxu0 %v3728
    %v4279 = vpop.f32.mrf.mxu0
    %v4280 = vadd.f32 0.0, %v4279
    %v4281 = vpop.f32.mrf.mxu0
    %v4282 = vpop.f32.mrf.mxu0
    %v4283 = vadd.f32 0.0, %v4282
    %v4284 = vpop.f32.mrf.mxu0
    %4285 = vmatprep.mubr.bf16.mxu0 0
    %4286 = vmatmul.mubr.bf16.gmra.mxu0 %v3731
    %v4287 = vpop.f32.mrf.mxu0
    %v4288 = vadd.f32 0.0, %v4287
    %v4289 = vpop.f32.mrf.mxu0
    %v4290 = vpop.f32.mrf.mxu0
    %v4291 = vadd.f32 0.0, %v4290
    %v4292 = vpop.f32.mrf.mxu0
    %4293 = vmatprep.mubr.bf16.mxu0 0
    %4294 = vmatmul.mubr.bf16.gmra.mxu0 %v3734
    %v4295 = vpop.f32.mrf.mxu0
    %v4296 = vadd.f32 0.0, %v4295
    %v4297 = vpop.f32.mrf.mxu0
    %v4298 = vpop.f32.mrf.mxu0
    %v4299 = vadd.f32 0.0, %v4298
    %v4300 = vpop.f32.mrf.mxu0
    %4301 = vmatprep.mubr.bf16.mxu0 0
    %4302 = vmatmul.mubr.bf16.gmra.mxu0 %v3737
    %v4303 = vpop.f32.mrf.mxu0
    %v4304 = vadd.f32 0.0, %v4303
    %v4305 = vpop.f32.mrf.mxu0
    %v4306 = vpop.f32.mrf.mxu0
    %v4307 = vadd.f32 0.0, %v4306
    %v4308 = vpop.f32.mrf.mxu0
    %4309 = vmatprep.mubr.bf16.mxu0 0
    %4310 = vmatmul.mubr.bf16.gmra.mxu0 %v3740
    %v4311 = vpop.f32.mrf.mxu0
    %v4312 = vadd.f32 0.0, %v4311
    %v4313 = vpop.f32.mrf.mxu0
    %v4314 = vpop.f32.mrf.mxu0
    %v4315 = vadd.f32 0.0, %v4314
    %v4316 = vpop.f32.mrf.mxu0
    %4317 = vmatprep.mubr.bf16.mxu0 0
    %4318 = vmatmul.mubr.bf16.gmra.mxu0 %v3743
    %v4319 = vpop.f32.mrf.mxu0
    %v4320 = vadd.f32 0.0, %v4319
    %v4321 = vpop.f32.mrf.mxu0
    %v4322 = vpop.f32.mrf.mxu0
    %v4323 = vadd.f32 0.0, %v4322
    %v4324 = vpop.f32.mrf.mxu0
    %4325 = vmatprep.mubr.bf16.mxu0 0
    %4326 = vmatmul.mubr.bf16.gmra.mxu0 %v3746
    %v4327 = vpop.f32.mrf.mxu0
    %v4328 = vadd.f32 0.0, %v4327
    %v4329 = vpop.f32.mrf.mxu0
    %v4330 = vpop.f32.mrf.mxu0
    %v4331 = vadd.f32 0.0, %v4330
    %v4332 = vpop.f32.mrf.mxu0
    %4333 = vmatprep.mubr.bf16.mxu0 0
    %4334 = vmatmul.mubr.bf16.gmra.mxu0 %v3749
    %v4335 = vpop.f32.mrf.mxu0
    %v4336 = vadd.f32 0.0, %v4335
    %v4337 = vpop.f32.mrf.mxu0
    %v4338 = vpop.f32.mrf.mxu0
    %v4339 = vadd.f32 0.0, %v4338
    %v4340 = vpop.f32.mrf.mxu0
    %4341 = vmatprep.mubr.bf16.mxu0 0
    %4342 = vmatmul.mubr.bf16.gmra.mxu0 %v3752
    %v4343 = vpop.f32.mrf.mxu0
    %v4344 = vadd.f32 0.0, %v4343
    %v4345 = vpop.f32.mrf.mxu0
    %v4346 = vpop.f32.mrf.mxu0
    %v4347 = vadd.f32 0.0, %v4346
    %v4348 = vpop.f32.mrf.mxu0
    %4349 = vmatprep.mubr.bf16.mxu0 0
    %4350 = vmatmul.mubr.bf16.gmra.mxu0 %v3755
    %v4351 = vpop.f32.mrf.mxu0
    %v4352 = vadd.f32 0.0, %v4351
    %v4353 = vpop.f32.mrf.mxu0
    %v4354 = vpop.f32.mrf.mxu0
    %v4355 = vadd.f32 0.0, %v4354
    %v4356 = vpop.f32.mrf.mxu0
    %4357 = vmatprep.mubr.bf16.mxu0 0
    %4358 = vmatmul.mubr.bf16.gmra.mxu0 %v3758
    %v4359 = vpop.f32.mrf.mxu0
    %v4360 = vadd.f32 0.0, %v4359
    %v4361 = vpop.f32.mrf.mxu0
    %v4362 = vpop.f32.mrf.mxu0
    %v4363 = vadd.f32 0.0, %v4362
    %v4364 = vpop.f32.mrf.mxu0
    %4365 = vmatprep.mubr.bf16.mxu0 0
    %4366 = vmatmul.mubr.bf16.gmra.mxu0 %v3761
    %v4367 = vpop.f32.mrf.mxu0
    %v4368 = vadd.f32 0.0, %v4367
    %v4369 = vpop.f32.mrf.mxu0
    %v4370 = vpop.f32.mrf.mxu0
    %v4371 = vadd.f32 0.0, %v4370
    %v4372 = vpop.f32.mrf.mxu0
    %4373 = vmatprep.mubr.bf16.mxu0 0
    %4374 = vmatmul.mubr.bf16.gmra.mxu0 %v3764
    %v4375 = vpop.f32.mrf.mxu0
    %v4376 = vadd.f32 0.0, %v4375
    %v4377 = vpop.f32.mrf.mxu0
    %v4378 = vpop.f32.mrf.mxu0
    %v4379 = vadd.f32 0.0, %v4378
    %v4380 = vpop.f32.mrf.mxu0
    %4381 = vmatprep.mubr.bf16.mxu0 0
    %4382 = vmatmul.mubr.bf16.gmra.mxu0 %v3767
    %v4383 = vpop.f32.mrf.mxu0
    %v4384 = vadd.f32 0.0, %v4383
    %v4385 = vpop.f32.mrf.mxu0
    %v4386 = vpop.f32.mrf.mxu0
    %v4387 = vadd.f32 0.0, %v4386
    %v4388 = vpop.f32.mrf.mxu0
    %4389 = vmatprep.mubr.bf16.mxu0 0
    %4390 = vmatmul.mubr.bf16.gmra.mxu0 %v3770
    %v4391 = vpop.f32.mrf.mxu0
    %v4392 = vadd.f32 0.0, %v4391
    %v4393 = vpop.f32.mrf.mxu0
    %v4394 = vpop.f32.mrf.mxu0
    %v4395 = vadd.f32 0.0, %v4394
    %v4396 = vpop.f32.mrf.mxu0
    %4397 = vmatprep.mubr.bf16.mxu0 0
    %4398 = vmatmul.mubr.bf16.gmra.mxu0 %v3773
    %v4399 = vpop.f32.mrf.mxu0
    %v4400 = vadd.f32 0.0, %v4399
    %v4401 = vpop.f32.mrf.mxu0
    %v4402 = vpop.f32.mrf.mxu0
    %v4403 = vadd.f32 0.0, %v4402
    %v4404 = vpop.f32.mrf.mxu0
    %4405 = vmatprep.mubr.bf16.mxu0 0
    %4406 = vmatmul.mubr.bf16.gmra.mxu0 %v3776
    %v4407 = vpop.f32.mrf.mxu0
    %v4408 = vadd.f32 0.0, %v4407
    %v4409 = vpop.f32.mrf.mxu0
    %v4410 = vpop.f32.mrf.mxu0
    %v4411 = vadd.f32 0.0, %v4410
    %v4412 = vpop.f32.mrf.mxu0
    %4413 = vmatprep.mubr.bf16.mxu0 0
    %4414 = vmatmul.mubr.bf16.gmra.mxu0 %v3779
    %v4415 = vpop.f32.mrf.mxu0
    %v4416 = vadd.f32 0.0, %v4415
    %v4417 = vpop.f32.mrf.mxu0
    %v4418 = vpop.f32.mrf.mxu0
    %v4419 = vadd.f32 0.0, %v4418
    %v4420 = vpop.f32.mrf.mxu0
    %4421 = vmatprep.mubr.bf16.mxu0 0
    %4422 = vmatmul.mubr.bf16.gmra.mxu0 %v3782
    %v4423 = vpop.f32.mrf.mxu0
    %v4424 = vadd.f32 0.0, %v4423
    %v4425 = vpop.f32.mrf.mxu0
    %v4426 = vpop.f32.mrf.mxu0
    %v4427 = vadd.f32 0.0, %v4426
    %v4428 = vpop.f32.mrf.mxu0
    %4429 = vmatprep.mubr.bf16.mxu0 0
    %4430 = vmatmul.mubr.bf16.gmra.mxu0 %v3785
    %v4431 = vpop.f32.mrf.mxu0
    %v4432 = vadd.f32 0.0, %v4431
    %v4433 = vpop.f32.mrf.mxu0
    %v4434 = vpop.f32.mrf.mxu0
    %v4435 = vadd.f32 0.0, %v4434
    %v4436 = vpop.f32.mrf.mxu0
    %4437 = vmatprep.mubr.bf16.mxu0 0
    %4438 = vmatmul.mubr.bf16.gmra.mxu0 %v3788
    %v4439 = vpop.f32.mrf.mxu0
    %v4440 = vadd.f32 0.0, %v4439
    %v4441 = vpop.f32.mrf.mxu0
    %v4442 = vpop.f32.mrf.mxu0
    %v4443 = vadd.f32 0.0, %v4442
    %v4444 = vpop.f32.mrf.mxu0
    %4445 = vmatprep.mubr.bf16.mxu0 0
    %4446 = vmatmul.mubr.bf16.gmra.mxu0 %v3791
    %v4447 = vpop.f32.mrf.mxu0
    %v4448 = vadd.f32 0.0, %v4447
    %v4449 = vpop.f32.mrf.mxu0
    %v4450 = vpop.f32.mrf.mxu0
    %v4451 = vadd.f32 0.0, %v4450
    %v4452 = vpop.f32.mrf.mxu0
    %4453 = vmatprep.mubr.bf16.mxu0 0
    %4454 = vmatmul.mubr.bf16.gmra.mxu0 %v3794
    %v4455 = vpop.f32.mrf.mxu0
    %v4456 = vadd.f32 0.0, %v4455
    %v4457 = vpop.f32.mrf.mxu0
    %v4458 = vpop.f32.mrf.mxu0
    %v4459 = vadd.f32 0.0, %v4458
    %v4460 = vpop.f32.mrf.mxu0
    %4461 = vmatprep.mubr.bf16.mxu0 0
    %4462 = vmatmul.mubr.bf16.gmra.mxu0 %v3797
    %v4463 = vpop.f32.mrf.mxu0
    %v4464 = vadd.f32 0.0, %v4463
    %v4465 = vpop.f32.mrf.mxu0
    %v4466 = vpop.f32.mrf.mxu0
    %v4467 = vadd.f32 0.0, %v4466
    %v4468 = vpop.f32.mrf.mxu0
    %4469 = vmatprep.mubr.bf16.mxu0 0
    %4470 = vmatmul.mubr.bf16.gmra.mxu0 %v3800
    %v4471 = vpop.f32.mrf.mxu0
    %v4472 = vadd.f32 0.0, %v4471
    %v4473 = vpop.f32.mrf.mxu0
    %v4474 = vpop.f32.mrf.mxu0
    %v4475 = vadd.f32 0.0, %v4474
    %v4476 = vpop.f32.mrf.mxu0
    %4477 = vmatprep.mubr.bf16.mxu0 0
    %4478 = vmatmul.mubr.bf16.gmra.mxu0 %v3803
    %v4479 = vpop.f32.mrf.mxu0
    %v4480 = vadd.f32 0.0, %v4479
    %v4481 = vpop.f32.mrf.mxu0
    %v4482 = vpop.f32.mrf.mxu0
    %v4483 = vadd.f32 0.0, %v4482
    %v4484 = vpop.f32.mrf.mxu0
    %4485 = vmatprep.mubr.bf16.mxu0 0
    %4486 = vmatmul.mubr.bf16.gmra.mxu0 %v3806
    %v4487 = vpop.f32.mrf.mxu0
    %v4488 = vadd.f32 0.0, %v4487
    %v4489 = vpop.f32.mrf.mxu0
    %v4490 = vpop.f32.mrf.mxu0
    %v4491 = vadd.f32 0.0, %v4490
    %v4492 = vpop.f32.mrf.mxu0
    %4493 = vmatprep.mubr.bf16.mxu0 0
    %4494 = vmatmul.mubr.bf16.gmra.mxu0 %v3809
    %v4495 = vpop.f32.mrf.mxu0
    %v4496 = vadd.f32 0.0, %v4495
    %v4497 = vpop.f32.mrf.mxu0
    %v4498 = vpop.f32.mrf.mxu0
    %v4499 = vadd.f32 0.0, %v4498
    %v4500 = vpop.f32.mrf.mxu0
    %4501 = vdwg.mxu0
    %s4502 = scalar_lea.vmem [#allocation2], 512
    %v4503 = vld [vmem:[%s4502] sm:$0xff]
    %v4504 = vld [vmem:[%s4502 + $0x8] sm:$0xff]
    %v4505 = vld [vmem:[%s4502 + $0x10] sm:$0xff]
    %v4506 = vld [vmem:[%s4502 + $0x18] sm:$0xff]
    %v4507 = vld [vmem:[%s4502 + $0x20] sm:$0xff]
    %v4508 = vld [vmem:[%s4502 + $0x28] sm:$0xff]
    %v4509 = vld [vmem:[%s4502 + $0x30] sm:$0xff]
    %v4510 = vld [vmem:[%s4502 + $0x38] sm:$0xff]
    %v4511 = vld [vmem:[%s4502 + $0x40] sm:$0xff]
    %v4512 = vld [vmem:[%s4502 + $0x48] sm:$0xff]
    %v4513 = vld [vmem:[%s4502 + $0x50] sm:$0xff]
    %v4514 = vld [vmem:[%s4502 + $0x58] sm:$0xff]
    %v4515 = vld [vmem:[%s4502 + $0x60] sm:$0xff]
    %v4516 = vld [vmem:[%s4502 + $0x68] sm:$0xff]
    %v4517 = vld [vmem:[%s4502 + $0x70] sm:$0xff]
    %v4518 = vld [vmem:[%s4502 + $0x78] sm:$0xff]
    %v4519 = vld [vmem:[%s4502 + $0x80] sm:$0xff]
    %v4520 = vld [vmem:[%s4502 + $0x88] sm:$0xff]
    %v4521 = vld [vmem:[%s4502 + $0x90] sm:$0xff]
    %v4522 = vld [vmem:[%s4502 + $0x98] sm:$0xff]
    %v4523 = vld [vmem:[%s4502 + $0xa0] sm:$0xff]
    %v4524 = vld [vmem:[%s4502 + $0xa8] sm:$0xff]
    %v4525 = vld [vmem:[%s4502 + $0xb0] sm:$0xff]
    %v4526 = vld [vmem:[%s4502 + $0xb8] sm:$0xff]
    %v4527 = vld [vmem:[%s4502 + $0xc0] sm:$0xff]
    %v4528 = vld [vmem:[%s4502 + $0xc8] sm:$0xff]
    %v4529 = vld [vmem:[%s4502 + $0xd0] sm:$0xff]
    %v4530 = vld [vmem:[%s4502 + $0xd8] sm:$0xff]
    %v4531 = vld [vmem:[%s4502 + $0xe0] sm:$0xff]
    %v4532 = vld [vmem:[%s4502 + $0xe8] sm:$0xff]
    %v4533 = vld [vmem:[%s4502 + $0xf0] sm:$0xff]
    %v4534 = vld [vmem:[%s4502 + $0xf8] sm:$0xff]
    %v4535 = vld [vmem:[%s4502 + $0x100] sm:$0xff]
    %v4536 = vld [vmem:[%s4502 + $0x108] sm:$0xff]
    %v4537 = vld [vmem:[%s4502 + $0x110] sm:$0xff]
    %v4538 = vld [vmem:[%s4502 + $0x118] sm:$0xff]
    %v4539 = vld [vmem:[%s4502 + $0x120] sm:$0xff]
    %v4540 = vld [vmem:[%s4502 + $0x128] sm:$0xff]
    %v4541 = vld [vmem:[%s4502 + $0x130] sm:$0xff]
    %v4542 = vld [vmem:[%s4502 + $0x138] sm:$0xff]
    %v4543 = vld [vmem:[%s4502 + $0x140] sm:$0xff]
    %v4544 = vld [vmem:[%s4502 + $0x148] sm:$0xff]
    %v4545 = vld [vmem:[%s4502 + $0x150] sm:$0xff]
    %v4546 = vld [vmem:[%s4502 + $0x158] sm:$0xff]
    %v4547 = vld [vmem:[%s4502 + $0x160] sm:$0xff]
    %v4548 = vld [vmem:[%s4502 + $0x168] sm:$0xff]
    %v4549 = vld [vmem:[%s4502 + $0x170] sm:$0xff]
    %v4550 = vld [vmem:[%s4502 + $0x178] sm:$0xff]
    %v4551 = vld [vmem:[%s4502 + $0x180] sm:$0xff]
    %v4552 = vld [vmem:[%s4502 + $0x188] sm:$0xff]
    %v4553 = vld [vmem:[%s4502 + $0x190] sm:$0xff]
    %v4554 = vld [vmem:[%s4502 + $0x198] sm:$0xff]
    %v4555 = vld [vmem:[%s4502 + $0x1a0] sm:$0xff]
    %v4556 = vld [vmem:[%s4502 + $0x1a8] sm:$0xff]
    %v4557 = vld [vmem:[%s4502 + $0x1b0] sm:$0xff]
    %v4558 = vld [vmem:[%s4502 + $0x1b8] sm:$0xff]
    %v4559 = vld [vmem:[%s4502 + $0x1c0] sm:$0xff]
    %v4560 = vld [vmem:[%s4502 + $0x1c8] sm:$0xff]
    %v4561 = vld [vmem:[%s4502 + $0x1d0] sm:$0xff]
    %v4562 = vld [vmem:[%s4502 + $0x1d8] sm:$0xff]
    %v4563 = vld [vmem:[%s4502 + $0x1e0] sm:$0xff]
    %v4564 = vld [vmem:[%s4502 + $0x1e8] sm:$0xff]
    %v4565 = vld [vmem:[%s4502 + $0x1f0] sm:$0xff]
    %v4566 = vld [vmem:[%s4502 + $0x1f8] sm:$0xff]
    %v4567 = vpack.c.bf16 %v4251, %v4248
    %v4568 = vpack.c.bf16 %v4259, %v4256
    %v4569 = vpack.c.bf16 %v4267, %v4264
    %v4570 = vpack.c.bf16 %v4275, %v4272
    %v4571 = vpack.c.bf16 %v4283, %v4280
    %v4572 = vpack.c.bf16 %v4291, %v4288
    %v4573 = vpack.c.bf16 %v4299, %v4296
    %v4574 = vpack.c.bf16 %v4307, %v4304
    %v4575 = vpack.c.bf16 %v4315, %v4312
    %v4576 = vpack.c.bf16 %v4323, %v4320
    %v4577 = vpack.c.bf16 %v4331, %v4328
    %v4578 = vpack.c.bf16 %v4339, %v4336
    %v4579 = vpack.c.bf16 %v4347, %v4344
    %v4580 = vpack.c.bf16 %v4355, %v4352
    %v4581 = vpack.c.bf16 %v4363, %v4360
    %v4582 = vpack.c.bf16 %v4371, %v4368
    %v4583 = vpack.c.bf16 %v4379, %v4376
    %v4584 = vpack.c.bf16 %v4387, %v4384
    %v4585 = vpack.c.bf16 %v4395, %v4392
    %v4586 = vpack.c.bf16 %v4403, %v4400
    %v4587 = vpack.c.bf16 %v4411, %v4408
    %v4588 = vpack.c.bf16 %v4419, %v4416
    %v4589 = vpack.c.bf16 %v4427, %v4424
    %v4590 = vpack.c.bf16 %v4435, %v4432
    %v4591 = vpack.c.bf16 %v4443, %v4440
    %v4592 = vpack.c.bf16 %v4451, %v4448
    %v4593 = vpack.c.bf16 %v4459, %v4456
    %v4594 = vpack.c.bf16 %v4467, %v4464
    %v4595 = vpack.c.bf16 %v4475, %v4472
    %v4596 = vpack.c.bf16 %v4483, %v4480
    %v4597 = vpack.c.bf16 %v4491, %v4488
    %v4598 = vpack.c.bf16 %v4499, %v4496
    %v4663 = vunpack.c.l.b16 %v4503
    %v4664 = vunpack.c.h.b16 %v4503
    %v4665 = vunpack.c.l.b16 %v4504
    %v4666 = vunpack.c.h.b16 %v4504
    %v4667 = vunpack.c.l.b16 %v4505
    %v4668 = vunpack.c.h.b16 %v4505
    %v4669 = vunpack.c.l.b16 %v4506
    %v4670 = vunpack.c.h.b16 %v4506
    %v4671 = vunpack.c.l.b16 %v4507
    %v4672 = vunpack.c.h.b16 %v4507
    %v4673 = vunpack.c.l.b16 %v4508
    %v4674 = vunpack.c.h.b16 %v4508
    %v4675 = vunpack.c.l.b16 %v4509
    %v4676 = vunpack.c.h.b16 %v4509
    %v4677 = vunpack.c.l.b16 %v4510
    %v4678 = vunpack.c.h.b16 %v4510
    %v4679 = vunpack.c.l.b16 %v4511
    %v4680 = vunpack.c.h.b16 %v4511
    %v4681 = vunpack.c.l.b16 %v4512
    %v4682 = vunpack.c.h.b16 %v4512
    %v4683 = vunpack.c.l.b16 %v4513
    %v4684 = vunpack.c.h.b16 %v4513
    %v4685 = vunpack.c.l.b16 %v4514
    %v4686 = vunpack.c.h.b16 %v4514
    %v4687 = vunpack.c.l.b16 %v4515
    %v4688 = vunpack.c.h.b16 %v4515
    %v4689 = vunpack.c.l.b16 %v4516
    %v4690 = vunpack.c.h.b16 %v4516
    %v4691 = vunpack.c.l.b16 %v4517
    %v4692 = vunpack.c.h.b16 %v4517
    %v4693 = vunpack.c.l.b16 %v4518
    %v4694 = vunpack.c.h.b16 %v4518
    %v4695 = vunpack.c.l.b16 %v4519
    %v4696 = vunpack.c.h.b16 %v4519
    %v4697 = vunpack.c.l.b16 %v4520
    %v4698 = vunpack.c.h.b16 %v4520
    %v4699 = vunpack.c.l.b16 %v4521
    %v4700 = vunpack.c.h.b16 %v4521
    %v4701 = vunpack.c.l.b16 %v4522
    %v4702 = vunpack.c.h.b16 %v4522
    %v4703 = vunpack.c.l.b16 %v4523
    %v4704 = vunpack.c.h.b16 %v4523
    %v4705 = vunpack.c.l.b16 %v4524
    %v4706 = vunpack.c.h.b16 %v4524
    %v4707 = vunpack.c.l.b16 %v4525
    %v4708 = vunpack.c.h.b16 %v4525
    %v4709 = vunpack.c.l.b16 %v4526
    %v4710 = vunpack.c.h.b16 %v4526
    %v4711 = vunpack.c.l.b16 %v4527
    %v4712 = vunpack.c.h.b16 %v4527
    %v4713 = vunpack.c.l.b16 %v4528
    %v4714 = vunpack.c.h.b16 %v4528
    %v4715 = vunpack.c.l.b16 %v4529
    %v4716 = vunpack.c.h.b16 %v4529
    %v4717 = vunpack.c.l.b16 %v4530
    %v4718 = vunpack.c.h.b16 %v4530
    %v4719 = vunpack.c.l.b16 %v4531
    %v4720 = vunpack.c.h.b16 %v4531
    %v4721 = vunpack.c.l.b16 %v4532
    %v4722 = vunpack.c.h.b16 %v4532
    %v4723 = vunpack.c.l.b16 %v4533
    %v4724 = vunpack.c.h.b16 %v4533
    %v4725 = vunpack.c.l.b16 %v4534
    %v4726 = vunpack.c.h.b16 %v4534
    %v4727 = vunpack.c.l.b16 %v4535
    %v4728 = vunpack.c.h.b16 %v4535
    %v4729 = vunpack.c.l.b16 %v4536
    %v4730 = vunpack.c.h.b16 %v4536
    %v4731 = vunpack.c.l.b16 %v4537
    %v4732 = vunpack.c.h.b16 %v4537
    %v4733 = vunpack.c.l.b16 %v4538
    %v4734 = vunpack.c.h.b16 %v4538
    %v4735 = vunpack.c.l.b16 %v4539
    %v4736 = vunpack.c.h.b16 %v4539
    %v4737 = vunpack.c.l.b16 %v4540
    %v4738 = vunpack.c.h.b16 %v4540
    %v4739 = vunpack.c.l.b16 %v4541
    %v4740 = vunpack.c.h.b16 %v4541
    %v4741 = vunpack.c.l.b16 %v4542
    %v4742 = vunpack.c.h.b16 %v4542
    %v4743 = vunpack.c.l.b16 %v4543
    %v4744 = vunpack.c.h.b16 %v4543
    %v4745 = vunpack.c.l.b16 %v4544
    %v4746 = vunpack.c.h.b16 %v4544
    %v4747 = vunpack.c.l.b16 %v4545
    %v4748 = vunpack.c.h.b16 %v4545
    %v4749 = vunpack.c.l.b16 %v4546
    %v4750 = vunpack.c.h.b16 %v4546
    %v4751 = vunpack.c.l.b16 %v4547
    %v4752 = vunpack.c.h.b16 %v4547
    %v4753 = vunpack.c.l.b16 %v4548
    %v4754 = vunpack.c.h.b16 %v4548
    %v4755 = vunpack.c.l.b16 %v4549
    %v4756 = vunpack.c.h.b16 %v4549
    %v4757 = vunpack.c.l.b16 %v4550
    %v4758 = vunpack.c.h.b16 %v4550
    %v4759 = vunpack.c.l.b16 %v4551
    %v4760 = vunpack.c.h.b16 %v4551
    %v4761 = vunpack.c.l.b16 %v4552
    %v4762 = vunpack.c.h.b16 %v4552
    %v4763 = vunpack.c.l.b16 %v4553
    %v4764 = vunpack.c.h.b16 %v4553
    %v4765 = vunpack.c.l.b16 %v4554
    %v4766 = vunpack.c.h.b16 %v4554
    %v4767 = vunpack.c.l.b16 %v4555
    %v4768 = vunpack.c.h.b16 %v4555
    %v4769 = vunpack.c.l.b16 %v4556
    %v4770 = vunpack.c.h.b16 %v4556
    %v4771 = vunpack.c.l.b16 %v4557
    %v4772 = vunpack.c.h.b16 %v4557
    %v4773 = vunpack.c.l.b16 %v4558
    %v4774 = vunpack.c.h.b16 %v4558
    %v4775 = vunpack.c.l.b16 %v4559
    %v4776 = vunpack.c.h.b16 %v4559
    %v4777 = vunpack.c.l.b16 %v4560
    %v4778 = vunpack.c.h.b16 %v4560
    %v4779 = vunpack.c.l.b16 %v4561
    %v4780 = vunpack.c.h.b16 %v4561
    %v4781 = vunpack.c.l.b16 %v4562
    %v4782 = vunpack.c.h.b16 %v4562
    %v4783 = vunpack.c.l.b16 %v4563
    %v4784 = vunpack.c.h.b16 %v4563
    %v4785 = vunpack.c.l.b16 %v4564
    %v4786 = vunpack.c.h.b16 %v4564
    %v4787 = vunpack.c.l.b16 %v4565
    %v4788 = vunpack.c.h.b16 %v4565
    %v4789 = vunpack.c.l.b16 %v4566
    %v4790 = vunpack.c.h.b16 %v4566
    %v4791 = vpack.c.b16 %v4667, %v4663
    %v4792 = vpack.c.b16 %v4668, %v4664
    %v4793 = vpack.c.b16 %v4669, %v4665
    %v4794 = vpack.c.b16 %v4670, %v4666
    %v4795 = vpack.c.b16 %v4675, %v4671
    %v4796 = vpack.c.b16 %v4676, %v4672
    %v4797 = vpack.c.b16 %v4677, %v4673
    %v4798 = vpack.c.b16 %v4678, %v4674
    %v4799 = vpack.c.b16 %v4683, %v4679
    %v4800 = vpack.c.b16 %v4684, %v4680
    %v4801 = vpack.c.b16 %v4685, %v4681
    %v4802 = vpack.c.b16 %v4686, %v4682
    %v4803 = vpack.c.b16 %v4691, %v4687
    %v4804 = vpack.c.b16 %v4692, %v4688
    %v4805 = vpack.c.b16 %v4693, %v4689
    %v4806 = vpack.c.b16 %v4694, %v4690
    %v4807 = vpack.c.b16 %v4699, %v4695
    %v4808 = vpack.c.b16 %v4700, %v4696
    %v4809 = vpack.c.b16 %v4701, %v4697
    %v4810 = vpack.c.b16 %v4702, %v4698
    %v4811 = vpack.c.b16 %v4707, %v4703
    %v4812 = vpack.c.b16 %v4708, %v4704
    %v4813 = vpack.c.b16 %v4709, %v4705
    %v4814 = vpack.c.b16 %v4710, %v4706
    %v4815 = vpack.c.b16 %v4715, %v4711
    %v4816 = vpack.c.b16 %v4716, %v4712
    %v4817 = vpack.c.b16 %v4717, %v4713
    %v4818 = vpack.c.b16 %v4718, %v4714
    %v4819 = vpack.c.b16 %v4723, %v4719
    %v4820 = vpack.c.b16 %v4724, %v4720
    %v4821 = vpack.c.b16 %v4725, %v4721
    %v4822 = vpack.c.b16 %v4726, %v4722
    %v4823 = vpack.c.b16 %v4731, %v4727
    %v4824 = vpack.c.b16 %v4732, %v4728
    %v4825 = vpack.c.b16 %v4733, %v4729
    %v4826 = vpack.c.b16 %v4734, %v4730
    %v4827 = vpack.c.b16 %v4739, %v4735
    %v4828 = vpack.c.b16 %v4740, %v4736
    %v4829 = vpack.c.b16 %v4741, %v4737
    %v4830 = vpack.c.b16 %v4742, %v4738
    %v4831 = vpack.c.b16 %v4747, %v4743
    %v4832 = vpack.c.b16 %v4748, %v4744
    %v4833 = vpack.c.b16 %v4749, %v4745
    %v4834 = vpack.c.b16 %v4750, %v4746
    %v4835 = vpack.c.b16 %v4755, %v4751
    %v4836 = vpack.c.b16 %v4756, %v4752
    %v4837 = vpack.c.b16 %v4757, %v4753
    %v4838 = vpack.c.b16 %v4758, %v4754
    %v4839 = vpack.c.b16 %v4763, %v4759
    %v4840 = vpack.c.b16 %v4764, %v4760
    %v4841 = vpack.c.b16 %v4765, %v4761
    %v4842 = vpack.c.b16 %v4766, %v4762
    %v4843 = vpack.c.b16 %v4771, %v4767
    %v4844 = vpack.c.b16 %v4772, %v4768
    %v4845 = vpack.c.b16 %v4773, %v4769
    %v4846 = vpack.c.b16 %v4774, %v4770
    %v4847 = vpack.c.b16 %v4779, %v4775
    %v4848 = vpack.c.b16 %v4780, %v4776
    %v4849 = vpack.c.b16 %v4781, %v4777
    %v4850 = vpack.c.b16 %v4782, %v4778
    %v4851 = vpack.c.b16 %v4787, %v4783
    %v4852 = vpack.c.b16 %v4788, %v4784
    %v4853 = vpack.c.b16 %v4789, %v4785
    %v4854 = vpack.c.b16 %v4790, %v4786
    %4919 = vmatprep.subr.bf16.mxu0 0
    %4920 = vmatpush1.bf16.msra.mxu0 %v4574
    %4921 = vmatprep.subr.bf16.mxu0 0
    %4922 = vmatpush1.bf16.msra.mxu0 %v4573
    %4923 = vmatprep.subr.bf16.mxu0 0
    %4924 = vmatpush1.bf16.msra.mxu0 %v4572
    %4925 = vmatprep.subr.bf16.mxu0 0
    %4926 = vmatpush1.bf16.msra.mxu0 %v4571
    %4927 = vmatprep.subr.bf16.mxu0 0
    %4928 = vmatpush1.bf16.msra.mxu0 %v4570
    %4929 = vmatprep.subr.bf16.mxu0 0
    %4930 = vmatpush1.bf16.msra.mxu0 %v4569
    %4931 = vmatprep.subr.bf16.mxu0 0
    %4932 = vmatpush1.bf16.msra.mxu0 %v4568
    %4933 = vmatprep.subr.bf16.mxu0 0
    %4934 = vmatpush1.bf16.msra.mxu0 %v4567
    %4935 = vmatprep.subr.bf16.mxu0 0
    %4936 = vmatpush2.bf16.msra.mxu0 %v4582
    %4937 = vmatprep.subr.bf16.mxu0 0
    %4938 = vmatpush2.bf16.msra.mxu0 %v4581
    %4939 = vmatprep.subr.bf16.mxu0 0
    %4940 = vmatpush2.bf16.msra.mxu0 %v4580
    %4941 = vmatprep.subr.bf16.mxu0 0
    %4942 = vmatpush2.bf16.msra.mxu0 %v4579
    %4943 = vmatprep.subr.bf16.mxu0 0
    %4944 = vmatpush2.bf16.msra.mxu0 %v4578
    %4945 = vmatprep.subr.bf16.mxu0 0
    %4946 = vmatpush2.bf16.msra.mxu0 %v4577
    %4947 = vmatprep.subr.bf16.mxu0 0
    %4948 = vmatpush2.bf16.msra.mxu0 %v4576
    %4949 = vmatprep.subr.bf16.mxu0 0
    %4950 = vmatpush2.bf16.msra.mxu0 %v4575
    %4951 = vmatprep.mubr.bf16.mxu0 %v4792
    %4952 = vmatmul.mubr.bf16.gmra.mxu0 %v4791
    %v4953 = vpop.f32.mrf.mxu0
    %v4954 = vadd.f32 0.0, %v4953
    %v4955 = vpop.f32.mrf.mxu0
    %v4956 = vpop.f32.mrf.mxu0
    %v4957 = vadd.f32 0.0, %v4956
    %v4958 = vpop.f32.mrf.mxu0
    %4959 = vmatprep.mubr.bf16.mxu0 %v4796
    %4960 = vmatmul.mubr.bf16.gmra.mxu0 %v4795
    %v4961 = vpop.f32.mrf.mxu0
    %v4962 = vadd.f32 0.0, %v4961
    %v4963 = vpop.f32.mrf.mxu0
    %v4964 = vpop.f32.mrf.mxu0
    %v4965 = vadd.f32 0.0, %v4964
    %v4966 = vpop.f32.mrf.mxu0
    %4967 = vmatprep.mubr.bf16.mxu0 %v4800
    %4968 = vmatmul.mubr.bf16.gmra.mxu0 %v4799
    %v4969 = vpop.f32.mrf.mxu0
    %v4970 = vadd.f32 0.0, %v4969
    %v4971 = vpop.f32.mrf.mxu0
    %v4972 = vpop.f32.mrf.mxu0
    %v4973 = vadd.f32 0.0, %v4972
    %v4974 = vpop.f32.mrf.mxu0
    %4975 = vmatprep.mubr.bf16.mxu0 %v4804
    %4976 = vmatmul.mubr.bf16.gmra.mxu0 %v4803
    %v4977 = vpop.f32.mrf.mxu0
    %v4978 = vadd.f32 0.0, %v4977
    %v4979 = vpop.f32.mrf.mxu0
    %v4980 = vpop.f32.mrf.mxu0
    %v4981 = vadd.f32 0.0, %v4980
    %v4982 = vpop.f32.mrf.mxu0
    %4983 = vmatprep.mubr.bf16.mxu0 %v4808
    %4984 = vmatmul.mubr.bf16.gmra.mxu0 %v4807
    %v4985 = vpop.f32.mrf.mxu0
    %v4986 = vadd.f32 0.0, %v4985
    %v4987 = vpop.f32.mrf.mxu0
    %v4988 = vpop.f32.mrf.mxu0
    %v4989 = vadd.f32 0.0, %v4988
    %v4990 = vpop.f32.mrf.mxu0
    %4991 = vmatprep.mubr.bf16.mxu0 %v4812
    %4992 = vmatmul.mubr.bf16.gmra.mxu0 %v4811
    %v4993 = vpop.f32.mrf.mxu0
    %v4994 = vadd.f32 0.0, %v4993
    %v4995 = vpop.f32.mrf.mxu0
    %v4996 = vpop.f32.mrf.mxu0
    %v4997 = vadd.f32 0.0, %v4996
    %v4998 = vpop.f32.mrf.mxu0
    %4999 = vmatprep.mubr.bf16.mxu0 %v4816
    %5000 = vmatmul.mubr.bf16.gmra.mxu0 %v4815
    %v5001 = vpop.f32.mrf.mxu0
    %v5002 = vadd.f32 0.0, %v5001
    %v5003 = vpop.f32.mrf.mxu0
    %v5004 = vpop.f32.mrf.mxu0
    %v5005 = vadd.f32 0.0, %v5004
    %v5006 = vpop.f32.mrf.mxu0
    %5007 = vmatprep.mubr.bf16.mxu0 %v4820
    %5008 = vmatmul.mubr.bf16.gmra.mxu0 %v4819
    %v5009 = vpop.f32.mrf.mxu0
    %v5010 = vadd.f32 0.0, %v5009
    %v5011 = vpop.f32.mrf.mxu0
    %v5012 = vpop.f32.mrf.mxu0
    %v5013 = vadd.f32 0.0, %v5012
    %v5014 = vpop.f32.mrf.mxu0
    %5015 = vmatprep.mubr.bf16.mxu0 %v4824
    %5016 = vmatmul.mubr.bf16.gmra.mxu0 %v4823
    %v5017 = vpop.f32.mrf.mxu0
    %v5018 = vadd.f32 0.0, %v5017
    %v5019 = vpop.f32.mrf.mxu0
    %v5020 = vpop.f32.mrf.mxu0
    %v5021 = vadd.f32 0.0, %v5020
    %v5022 = vpop.f32.mrf.mxu0
    %5023 = vmatprep.mubr.bf16.mxu0 %v4828
    %5024 = vmatmul.mubr.bf16.gmra.mxu0 %v4827
    %v5025 = vpop.f32.mrf.mxu0
    %v5026 = vadd.f32 0.0, %v5025
    %v5027 = vpop.f32.mrf.mxu0
    %v5028 = vpop.f32.mrf.mxu0
    %v5029 = vadd.f32 0.0, %v5028
    %v5030 = vpop.f32.mrf.mxu0
    %5031 = vmatprep.mubr.bf16.mxu0 %v4832
    %5032 = vmatmul.mubr.bf16.gmra.mxu0 %v4831
    %v5033 = vpop.f32.mrf.mxu0
    %v5034 = vadd.f32 0.0, %v5033
    %v5035 = vpop.f32.mrf.mxu0
    %v5036 = vpop.f32.mrf.mxu0
    %v5037 = vadd.f32 0.0, %v5036
    %v5038 = vpop.f32.mrf.mxu0
    %5039 = vmatprep.mubr.bf16.mxu0 %v4836
    %5040 = vmatmul.mubr.bf16.gmra.mxu0 %v4835
    %v5041 = vpop.f32.mrf.mxu0
    %v5042 = vadd.f32 0.0, %v5041
    %v5043 = vpop.f32.mrf.mxu0
    %v5044 = vpop.f32.mrf.mxu0
    %v5045 = vadd.f32 0.0, %v5044
    %v5046 = vpop.f32.mrf.mxu0
    %5047 = vmatprep.mubr.bf16.mxu0 %v4840
    %5048 = vmatmul.mubr.bf16.gmra.mxu0 %v4839
    %v5049 = vpop.f32.mrf.mxu0
    %v5050 = vadd.f32 0.0, %v5049
    %v5051 = vpop.f32.mrf.mxu0
    %v5052 = vpop.f32.mrf.mxu0
    %v5053 = vadd.f32 0.0, %v5052
    %v5054 = vpop.f32.mrf.mxu0
    %5055 = vmatprep.mubr.bf16.mxu0 %v4844
    %5056 = vmatmul.mubr.bf16.gmra.mxu0 %v4843
    %v5057 = vpop.f32.mrf.mxu0
    %v5058 = vadd.f32 0.0, %v5057
    %v5059 = vpop.f32.mrf.mxu0
    %v5060 = vpop.f32.mrf.mxu0
    %v5061 = vadd.f32 0.0, %v5060
    %v5062 = vpop.f32.mrf.mxu0
    %5063 = vmatprep.mubr.bf16.mxu0 %v4848
    %5064 = vmatmul.mubr.bf16.gmra.mxu0 %v4847
    %v5065 = vpop.f32.mrf.mxu0
    %v5066 = vadd.f32 0.0, %v5065
    %v5067 = vpop.f32.mrf.mxu0
    %v5068 = vpop.f32.mrf.mxu0
    %v5069 = vadd.f32 0.0, %v5068
    %v5070 = vpop.f32.mrf.mxu0
    %5071 = vmatprep.mubr.bf16.mxu0 %v4852
    %5072 = vmatmul.mubr.bf16.gmra.mxu0 %v4851
    %v5073 = vpop.f32.mrf.mxu0
    %v5074 = vadd.f32 0.0, %v5073
    %v5075 = vpop.f32.mrf.mxu0
    %v5076 = vpop.f32.mrf.mxu0
    %v5077 = vadd.f32 0.0, %v5076
    %v5078 = vpop.f32.mrf.mxu0
    %5079 = vdwg.mxu0
    %5080 = vmatprep.subr.bf16.mxu0 0
    %5081 = vmatpush1.bf16.msra.mxu0 %v4590
    %5082 = vmatprep.subr.bf16.mxu0 0
    %5083 = vmatpush1.bf16.msra.mxu0 %v4589
    %5084 = vmatprep.subr.bf16.mxu0 0
    %5085 = vmatpush1.bf16.msra.mxu0 %v4588
    %5086 = vmatprep.subr.bf16.mxu0 0
    %5087 = vmatpush1.bf16.msra.mxu0 %v4587
    %5088 = vmatprep.subr.bf16.mxu0 0
    %5089 = vmatpush1.bf16.msra.mxu0 %v4586
    %5090 = vmatprep.subr.bf16.mxu0 0
    %5091 = vmatpush1.bf16.msra.mxu0 %v4585
    %5092 = vmatprep.subr.bf16.mxu0 0
    %5093 = vmatpush1.bf16.msra.mxu0 %v4584
    %5094 = vmatprep.subr.bf16.mxu0 0
    %5095 = vmatpush1.bf16.msra.mxu0 %v4583
    %5096 = vmatprep.subr.bf16.mxu0 0
    %5097 = vmatpush2.bf16.msra.mxu0 %v4598
    %5098 = vmatprep.subr.bf16.mxu0 0
    %5099 = vmatpush2.bf16.msra.mxu0 %v4597
    %5100 = vmatprep.subr.bf16.mxu0 0
    %5101 = vmatpush2.bf16.msra.mxu0 %v4596
    %5102 = vmatprep.subr.bf16.mxu0 0
    %5103 = vmatpush2.bf16.msra.mxu0 %v4595
    %5104 = vmatprep.subr.bf16.mxu0 0
    %5105 = vmatpush2.bf16.msra.mxu0 %v4594
    %5106 = vmatprep.subr.bf16.mxu0 0
    %5107 = vmatpush2.bf16.msra.mxu0 %v4593
    %5108 = vmatprep.subr.bf16.mxu0 0
    %5109 = vmatpush2.bf16.msra.mxu0 %v4592
    %5110 = vmatprep.subr.bf16.mxu0 0
    %5111 = vmatpush2.bf16.msra.mxu0 %v4591
    %5112 = vmatprep.mubr.bf16.mxu0 %v4794
    %5113 = vmatmul.mubr.bf16.gmra.mxu0 %v4793
    %v5114 = vpop.f32.mrf.mxu0
    %v5115 = vadd.f32 %v4954, %v5114
    %v5116 = vpop.f32.mrf.mxu0
    %v5117 = vpop.f32.mrf.mxu0
    %v5118 = vadd.f32 %v4957, %v5117
    %v5119 = vpop.f32.mrf.mxu0
    %5120 = vmatprep.mubr.bf16.mxu0 %v4798
    %5121 = vmatmul.mubr.bf16.gmra.mxu0 %v4797
    %v5122 = vpop.f32.mrf.mxu0
    %v5123 = vadd.f32 %v4962, %v5122
    %v5124 = vpop.f32.mrf.mxu0
    %v5125 = vpop.f32.mrf.mxu0
    %v5126 = vadd.f32 %v4965, %v5125
    %v5127 = vpop.f32.mrf.mxu0
    %5128 = vmatprep.mubr.bf16.mxu0 %v4802
    %5129 = vmatmul.mubr.bf16.gmra.mxu0 %v4801
    %v5130 = vpop.f32.mrf.mxu0
    %v5131 = vadd.f32 %v4970, %v5130
    %v5132 = vpop.f32.mrf.mxu0
    %v5133 = vpop.f32.mrf.mxu0
    %v5134 = vadd.f32 %v4973, %v5133
    %v5135 = vpop.f32.mrf.mxu0
    %5136 = vmatprep.mubr.bf16.mxu0 %v4806
    %5137 = vmatmul.mubr.bf16.gmra.mxu0 %v4805
    %v5138 = vpop.f32.mrf.mxu0
    %v5139 = vadd.f32 %v4978, %v5138
    %v5140 = vpop.f32.mrf.mxu0
    %v5141 = vpop.f32.mrf.mxu0
    %v5142 = vadd.f32 %v4981, %v5141
    %v5143 = vpop.f32.mrf.mxu0
    %5144 = vmatprep.mubr.bf16.mxu0 %v4810
    %5145 = vmatmul.mubr.bf16.gmra.mxu0 %v4809
    %v5146 = vpop.f32.mrf.mxu0
    %v5147 = vadd.f32 %v4986, %v5146
    %v5148 = vpop.f32.mrf.mxu0
    %v5149 = vpop.f32.mrf.mxu0
    %v5150 = vadd.f32 %v4989, %v5149
    %v5151 = vpop.f32.mrf.mxu0
    %5152 = vmatprep.mubr.bf16.mxu0 %v4814
    %5153 = vmatmul.mubr.bf16.gmra.mxu0 %v4813
    %v5154 = vpop.f32.mrf.mxu0
    %v5155 = vadd.f32 %v4994, %v5154
    %v5156 = vpop.f32.mrf.mxu0
    %v5157 = vpop.f32.mrf.mxu0
    %v5158 = vadd.f32 %v4997, %v5157
    %v5159 = vpop.f32.mrf.mxu0
    %5160 = vmatprep.mubr.bf16.mxu0 %v4818
    %5161 = vmatmul.mubr.bf16.gmra.mxu0 %v4817
    %v5162 = vpop.f32.mrf.mxu0
    %v5163 = vadd.f32 %v5002, %v5162
    %v5164 = vpop.f32.mrf.mxu0
    %v5165 = vpop.f32.mrf.mxu0
    %v5166 = vadd.f32 %v5005, %v5165
    %v5167 = vpop.f32.mrf.mxu0
    %5168 = vmatprep.mubr.bf16.mxu0 %v4822
    %5169 = vmatmul.mubr.bf16.gmra.mxu0 %v4821
    %v5170 = vpop.f32.mrf.mxu0
    %v5171 = vadd.f32 %v5010, %v5170
    %v5172 = vpop.f32.mrf.mxu0
    %v5173 = vpop.f32.mrf.mxu0
    %v5174 = vadd.f32 %v5013, %v5173
    %v5175 = vpop.f32.mrf.mxu0
    %5176 = vmatprep.mubr.bf16.mxu0 %v4826
    %5177 = vmatmul.mubr.bf16.gmra.mxu0 %v4825
    %v5178 = vpop.f32.mrf.mxu0
    %v5179 = vadd.f32 %v5018, %v5178
    %v5180 = vpop.f32.mrf.mxu0
    %v5181 = vpop.f32.mrf.mxu0
    %v5182 = vadd.f32 %v5021, %v5181
    %v5183 = vpop.f32.mrf.mxu0
    %5184 = vmatprep.mubr.bf16.mxu0 %v4830
    %5185 = vmatmul.mubr.bf16.gmra.mxu0 %v4829
    %v5186 = vpop.f32.mrf.mxu0
    %v5187 = vadd.f32 %v5026, %v5186
    %v5188 = vpop.f32.mrf.mxu0
    %v5189 = vpop.f32.mrf.mxu0
    %v5190 = vadd.f32 %v5029, %v5189
    %v5191 = vpop.f32.mrf.mxu0
    %5192 = vmatprep.mubr.bf16.mxu0 %v4834
    %5193 = vmatmul.mubr.bf16.gmra.mxu0 %v4833
    %v5194 = vpop.f32.mrf.mxu0
    %v5195 = vadd.f32 %v5034, %v5194
    %v5196 = vpop.f32.mrf.mxu0
    %v5197 = vpop.f32.mrf.mxu0
    %v5198 = vadd.f32 %v5037, %v5197
    %v5199 = vpop.f32.mrf.mxu0
    %5200 = vmatprep.mubr.bf16.mxu0 %v4838
    %5201 = vmatmul.mubr.bf16.gmra.mxu0 %v4837
    %v5202 = vpop.f32.mrf.mxu0
    %v5203 = vadd.f32 %v5042, %v5202
    %v5204 = vpop.f32.mrf.mxu0
    %v5205 = vpop.f32.mrf.mxu0
    %v5206 = vadd.f32 %v5045, %v5205
    %v5207 = vpop.f32.mrf.mxu0
    %5208 = vmatprep.mubr.bf16.mxu0 %v4842
    %5209 = vmatmul.mubr.bf16.gmra.mxu0 %v4841
    %v5210 = vpop.f32.mrf.mxu0
    %v5211 = vadd.f32 %v5050, %v5210
    %v5212 = vpop.f32.mrf.mxu0
    %v5213 = vpop.f32.mrf.mxu0
    %v5214 = vadd.f32 %v5053, %v5213
    %v5215 = vpop.f32.mrf.mxu0
    %5216 = vmatprep.mubr.bf16.mxu0 %v4846
    %5217 = vmatmul.mubr.bf16.gmra.mxu0 %v4845
    %v5218 = vpop.f32.mrf.mxu0
    %v5219 = vadd.f32 %v5058, %v5218
    %v5220 = vpop.f32.mrf.mxu0
    %v5221 = vpop.f32.mrf.mxu0
    %v5222 = vadd.f32 %v5061, %v5221
    %v5223 = vpop.f32.mrf.mxu0
    %5224 = vmatprep.mubr.bf16.mxu0 %v4850
    %5225 = vmatmul.mubr.bf16.gmra.mxu0 %v4849
    %v5226 = vpop.f32.mrf.mxu0
    %v5227 = vadd.f32 %v5066, %v5226
    %v5228 = vpop.f32.mrf.mxu0
    %v5229 = vpop.f32.mrf.mxu0
    %v5230 = vadd.f32 %v5069, %v5229
    %v5231 = vpop.f32.mrf.mxu0
    %5232 = vmatprep.mubr.bf16.mxu0 %v4854
    %5233 = vmatmul.mubr.bf16.gmra.mxu0 %v4853
    %v5234 = vpop.f32.mrf.mxu0
    %v5235 = vadd.f32 %v5074, %v5234
    %v5236 = vpop.f32.mrf.mxu0
    %v5237 = vpop.f32.mrf.mxu0
    %v5238 = vadd.f32 %v5077, %v5237
    %v5239 = vpop.f32.mrf.mxu0
    %5240 = vdwg.mxu0
    %v5305 = vunpack.c.l.b16 %v4100
    %v5306 = vunpack.c.h.b16 %v4100
    %v5307 = vunpack.c.l.b16 %v4101
    %v5308 = vunpack.c.h.b16 %v4101
    %v5309 = vunpack.c.l.b16 %v4102
    %v5310 = vunpack.c.h.b16 %v4102
    %v5311 = vunpack.c.l.b16 %v4103
    %v5312 = vunpack.c.h.b16 %v4103
    %v5313 = vunpack.c.l.b16 %v4104
    %v5314 = vunpack.c.h.b16 %v4104
    %v5315 = vunpack.c.l.b16 %v4105
    %v5316 = vunpack.c.h.b16 %v4105
    %v5317 = vunpack.c.l.b16 %v4106
    %v5318 = vunpack.c.h.b16 %v4106
    %v5319 = vunpack.c.l.b16 %v4107
    %v5320 = vunpack.c.h.b16 %v4107
    %v5321 = vunpack.c.l.b16 %v4108
    %v5322 = vunpack.c.h.b16 %v4108
    %v5323 = vunpack.c.l.b16 %v4109
    %v5324 = vunpack.c.h.b16 %v4109
    %v5325 = vunpack.c.l.b16 %v4110
    %v5326 = vunpack.c.h.b16 %v4110
    %v5327 = vunpack.c.l.b16 %v4111
    %v5328 = vunpack.c.h.b16 %v4111
    %v5329 = vunpack.c.l.b16 %v4112
    %v5330 = vunpack.c.h.b16 %v4112
    %v5331 = vunpack.c.l.b16 %v4113
    %v5332 = vunpack.c.h.b16 %v4113
    %v5333 = vunpack.c.l.b16 %v4114
    %v5334 = vunpack.c.h.b16 %v4114
    %v5335 = vunpack.c.l.b16 %v4115
    %v5336 = vunpack.c.h.b16 %v4115
    %v5337 = vunpack.c.l.b16 %v4116
    %v5338 = vunpack.c.h.b16 %v4116
    %v5339 = vunpack.c.l.b16 %v4117
    %v5340 = vunpack.c.h.b16 %v4117
    %v5341 = vunpack.c.l.b16 %v4118
    %v5342 = vunpack.c.h.b16 %v4118
    %v5343 = vunpack.c.l.b16 %v4119
    %v5344 = vunpack.c.h.b16 %v4119
    %v5345 = vunpack.c.l.b16 %v4120
    %v5346 = vunpack.c.h.b16 %v4120
    %v5347 = vunpack.c.l.b16 %v4121
    %v5348 = vunpack.c.h.b16 %v4121
    %v5349 = vunpack.c.l.b16 %v4122
    %v5350 = vunpack.c.h.b16 %v4122
    %v5351 = vunpack.c.l.b16 %v4123
    %v5352 = vunpack.c.h.b16 %v4123
    %v5353 = vunpack.c.l.b16 %v4124
    %v5354 = vunpack.c.h.b16 %v4124
    %v5355 = vunpack.c.l.b16 %v4125
    %v5356 = vunpack.c.h.b16 %v4125
    %v5357 = vunpack.c.l.b16 %v4126
    %v5358 = vunpack.c.h.b16 %v4126
    %v5359 = vunpack.c.l.b16 %v4127
    %v5360 = vunpack.c.h.b16 %v4127
    %v5361 = vunpack.c.l.b16 %v4128
    %v5362 = vunpack.c.h.b16 %v4128
    %v5363 = vunpack.c.l.b16 %v4129
    %v5364 = vunpack.c.h.b16 %v4129
    %v5365 = vunpack.c.l.b16 %v4130
    %v5366 = vunpack.c.h.b16 %v4130
    %v5367 = vunpack.c.l.b16 %v4131
    %v5368 = vunpack.c.h.b16 %v4131
    %v5369 = vunpack.c.l.b16 %v4132
    %v5370 = vunpack.c.h.b16 %v4132
    %v5371 = vunpack.c.l.b16 %v4133
    %v5372 = vunpack.c.h.b16 %v4133
    %v5373 = vunpack.c.l.b16 %v4134
    %v5374 = vunpack.c.h.b16 %v4134
    %v5375 = vunpack.c.l.b16 %v4135
    %v5376 = vunpack.c.h.b16 %v4135
    %v5377 = vunpack.c.l.b16 %v4136
    %v5378 = vunpack.c.h.b16 %v4136
    %v5379 = vunpack.c.l.b16 %v4137
    %v5380 = vunpack.c.h.b16 %v4137
    %v5381 = vunpack.c.l.b16 %v4138
    %v5382 = vunpack.c.h.b16 %v4138
    %v5383 = vunpack.c.l.b16 %v4139
    %v5384 = vunpack.c.h.b16 %v4139
    %v5385 = vunpack.c.l.b16 %v4140
    %v5386 = vunpack.c.h.b16 %v4140
    %v5387 = vunpack.c.l.b16 %v4141
    %v5388 = vunpack.c.h.b16 %v4141
    %v5389 = vunpack.c.l.b16 %v4142
    %v5390 = vunpack.c.h.b16 %v4142
    %v5391 = vunpack.c.l.b16 %v4143
    %v5392 = vunpack.c.h.b16 %v4143
    %v5393 = vunpack.c.l.b16 %v4144
    %v5394 = vunpack.c.h.b16 %v4144
    %v5395 = vunpack.c.l.b16 %v4145
    %v5396 = vunpack.c.h.b16 %v4145
    %v5397 = vunpack.c.l.b16 %v4146
    %v5398 = vunpack.c.h.b16 %v4146
    %v5399 = vunpack.c.l.b16 %v4147
    %v5400 = vunpack.c.h.b16 %v4147
    %v5401 = vunpack.c.l.b16 %v4148
    %v5402 = vunpack.c.h.b16 %v4148
    %v5403 = vunpack.c.l.b16 %v4149
    %v5404 = vunpack.c.h.b16 %v4149
    %v5405 = vunpack.c.l.b16 %v4150
    %v5406 = vunpack.c.h.b16 %v4150
    %v5407 = vunpack.c.l.b16 %v4151
    %v5408 = vunpack.c.h.b16 %v4151
    %v5409 = vunpack.c.l.b16 %v4152
    %v5410 = vunpack.c.h.b16 %v4152
    %v5411 = vunpack.c.l.b16 %v4153
    %v5412 = vunpack.c.h.b16 %v4153
    %v5413 = vunpack.c.l.b16 %v4154
    %v5414 = vunpack.c.h.b16 %v4154
    %v5415 = vunpack.c.l.b16 %v4155
    %v5416 = vunpack.c.h.b16 %v4155
    %v5417 = vunpack.c.l.b16 %v4156
    %v5418 = vunpack.c.h.b16 %v4156
    %v5419 = vunpack.c.l.b16 %v4157
    %v5420 = vunpack.c.h.b16 %v4157
    %v5421 = vunpack.c.l.b16 %v4158
    %v5422 = vunpack.c.h.b16 %v4158
    %v5423 = vunpack.c.l.b16 %v4159
    %v5424 = vunpack.c.h.b16 %v4159
    %v5425 = vunpack.c.l.b16 %v4160
    %v5426 = vunpack.c.h.b16 %v4160
    %v5427 = vunpack.c.l.b16 %v4161
    %v5428 = vunpack.c.h.b16 %v4161
    %v5429 = vunpack.c.l.b16 %v4162
    %v5430 = vunpack.c.h.b16 %v4162
    %v5431 = vunpack.c.l.b16 %v4163
    %v5432 = vunpack.c.h.b16 %v4163
    %v5433 = vpack.c.b16 %v5309, %v5305
    %v5434 = vpack.c.b16 %v5310, %v5306
    %v5435 = vpack.c.b16 %v5311, %v5307
    %v5436 = vpack.c.b16 %v5312, %v5308
    %v5437 = vpack.c.b16 %v5317, %v5313
    %v5438 = vpack.c.b16 %v5318, %v5314
    %v5439 = vpack.c.b16 %v5319, %v5315
    %v5440 = vpack.c.b16 %v5320, %v5316
    %v5441 = vpack.c.b16 %v5325, %v5321
    %v5442 = vpack.c.b16 %v5326, %v5322
    %v5443 = vpack.c.b16 %v5327, %v5323
    %v5444 = vpack.c.b16 %v5328, %v5324
    %v5445 = vpack.c.b16 %v5333, %v5329
    %v5446 = vpack.c.b16 %v5334, %v5330
    %v5447 = vpack.c.b16 %v5335, %v5331
    %v5448 = vpack.c.b16 %v5336, %v5332
    %v5449 = vpack.c.b16 %v5341, %v5337
    %v5450 = vpack.c.b16 %v5342, %v5338
    %v5451 = vpack.c.b16 %v5343, %v5339
    %v5452 = vpack.c.b16 %v5344, %v5340
    %v5453 = vpack.c.b16 %v5349, %v5345
    %v5454 = vpack.c.b16 %v5350, %v5346
    %v5455 = vpack.c.b16 %v5351, %v5347
    %v5456 = vpack.c.b16 %v5352, %v5348
    %v5457 = vpack.c.b16 %v5357, %v5353
    %v5458 = vpack.c.b16 %v5358, %v5354
    %v5459 = vpack.c.b16 %v5359, %v5355
    %v5460 = vpack.c.b16 %v5360, %v5356
    %v5461 = vpack.c.b16 %v5365, %v5361
    %v5462 = vpack.c.b16 %v5366, %v5362
    %v5463 = vpack.c.b16 %v5367, %v5363
    %v5464 = vpack.c.b16 %v5368, %v5364
    %v5465 = vpack.c.b16 %v5373, %v5369
    %v5466 = vpack.c.b16 %v5374, %v5370
    %v5467 = vpack.c.b16 %v5375, %v5371
    %v5468 = vpack.c.b16 %v5376, %v5372
    %v5469 = vpack.c.b16 %v5381, %v5377
    %v5470 = vpack.c.b16 %v5382, %v5378
    %v5471 = vpack.c.b16 %v5383, %v5379
    %v5472 = vpack.c.b16 %v5384, %v5380
    %v5473 = vpack.c.b16 %v5389, %v5385
    %v5474 = vpack.c.b16 %v5390, %v5386
    %v5475 = vpack.c.b16 %v5391, %v5387
    %v5476 = vpack.c.b16 %v5392, %v5388
    %v5477 = vpack.c.b16 %v5397, %v5393
    %v5478 = vpack.c.b16 %v5398, %v5394
    %v5479 = vpack.c.b16 %v5399, %v5395
    %v5480 = vpack.c.b16 %v5400, %v5396
    %v5481 = vpack.c.b16 %v5405, %v5401
    %v5482 = vpack.c.b16 %v5406, %v5402
    %v5483 = vpack.c.b16 %v5407, %v5403
    %v5484 = vpack.c.b16 %v5408, %v5404
    %v5485 = vpack.c.b16 %v5413, %v5409
    %v5486 = vpack.c.b16 %v5414, %v5410
    %v5487 = vpack.c.b16 %v5415, %v5411
    %v5488 = vpack.c.b16 %v5416, %v5412
    %v5489 = vpack.c.b16 %v5421, %v5417
    %v5490 = vpack.c.b16 %v5422, %v5418
    %v5491 = vpack.c.b16 %v5423, %v5419
    %v5492 = vpack.c.b16 %v5424, %v5420
    %v5493 = vpack.c.b16 %v5429, %v5425
    %v5494 = vpack.c.b16 %v5430, %v5426
    %v5495 = vpack.c.b16 %v5431, %v5427
    %v5496 = vpack.c.b16 %v5432, %v5428
    %5561 = vmatprep.subr.bf16.mxu0 0
    %5562 = vmatpush1.bf16.msra.mxu0 %v4171
    %5563 = vmatprep.subr.bf16.mxu0 0
    %5564 = vmatpush1.bf16.msra.mxu0 %v4170
    %5565 = vmatprep.subr.bf16.mxu0 0
    %5566 = vmatpush1.bf16.msra.mxu0 %v4169
    %5567 = vmatprep.subr.bf16.mxu0 0
    %5568 = vmatpush1.bf16.msra.mxu0 %v4168
    %5569 = vmatprep.subr.bf16.mxu0 0
    %5570 = vmatpush1.bf16.msra.mxu0 %v4167
    %5571 = vmatprep.subr.bf16.mxu0 0
    %5572 = vmatpush1.bf16.msra.mxu0 %v4166
    %5573 = vmatprep.subr.bf16.mxu0 0
    %5574 = vmatpush1.bf16.msra.mxu0 %v4165
    %5575 = vmatprep.subr.bf16.mxu0 0
    %5576 = vmatpush1.bf16.msra.mxu0 %v4164
    %5577 = vmatprep.subr.bf16.mxu0 0
    %5578 = vmatpush2.bf16.msra.mxu0 %v4179
    %5579 = vmatprep.subr.bf16.mxu0 0
    %5580 = vmatpush2.bf16.msra.mxu0 %v4178
    %5581 = vmatprep.subr.bf16.mxu0 0
    %5582 = vmatpush2.bf16.msra.mxu0 %v4177
    %5583 = vmatprep.subr.bf16.mxu0 0
    %5584 = vmatpush2.bf16.msra.mxu0 %v4176
    %5585 = vmatprep.subr.bf16.mxu0 0
    %5586 = vmatpush2.bf16.msra.mxu0 %v4175
    %5587 = vmatprep.subr.bf16.mxu0 0
    %5588 = vmatpush2.bf16.msra.mxu0 %v4174
    %5589 = vmatprep.subr.bf16.mxu0 0
    %5590 = vmatpush2.bf16.msra.mxu0 %v4173
    %5591 = vmatprep.subr.bf16.mxu0 0
    %5592 = vmatpush2.bf16.msra.mxu0 %v4172
    %5593 = vmatprep.mubr.bf16.mxu0 %v5434
    %5594 = vmatmul.mubr.bf16.gmra.mxu0 %v5433
    %v5595 = vpop.f32.mrf.mxu0
    %v5596 = vadd.f32 %v5115, %v5595
    %v5597 = vpop.f32.mrf.mxu0
    %v5598 = vpop.f32.mrf.mxu0
    %v5599 = vadd.f32 %v5118, %v5598
    %v5600 = vpop.f32.mrf.mxu0
    %5601 = vmatprep.mubr.bf16.mxu0 %v5438
    %5602 = vmatmul.mubr.bf16.gmra.mxu0 %v5437
    %v5603 = vpop.f32.mrf.mxu0
    %v5604 = vadd.f32 %v5123, %v5603
    %v5605 = vpop.f32.mrf.mxu0
    %v5606 = vpop.f32.mrf.mxu0
    %v5607 = vadd.f32 %v5126, %v5606
    %v5608 = vpop.f32.mrf.mxu0
    %5609 = vmatprep.mubr.bf16.mxu0 %v5442
    %5610 = vmatmul.mubr.bf16.gmra.mxu0 %v5441
    %v5611 = vpop.f32.mrf.mxu0
    %v5612 = vadd.f32 %v5131, %v5611
    %v5613 = vpop.f32.mrf.mxu0
    %v5614 = vpop.f32.mrf.mxu0
    %v5615 = vadd.f32 %v5134, %v5614
    %v5616 = vpop.f32.mrf.mxu0
    %5617 = vmatprep.mubr.bf16.mxu0 %v5446
    %5618 = vmatmul.mubr.bf16.gmra.mxu0 %v5445
    %v5619 = vpop.f32.mrf.mxu0
    %v5620 = vadd.f32 %v5139, %v5619
    %v5621 = vpop.f32.mrf.mxu0
    %v5622 = vpop.f32.mrf.mxu0
    %v5623 = vadd.f32 %v5142, %v5622
    %v5624 = vpop.f32.mrf.mxu0
    %5625 = vmatprep.mubr.bf16.mxu0 %v5450
    %5626 = vmatmul.mubr.bf16.gmra.mxu0 %v5449
    %v5627 = vpop.f32.mrf.mxu0
    %v5628 = vadd.f32 %v5147, %v5627
    %v5629 = vpop.f32.mrf.mxu0
    %v5630 = vpop.f32.mrf.mxu0
    %v5631 = vadd.f32 %v5150, %v5630
    %v5632 = vpop.f32.mrf.mxu0
    %5633 = vmatprep.mubr.bf16.mxu0 %v5454
    %5634 = vmatmul.mubr.bf16.gmra.mxu0 %v5453
    %v5635 = vpop.f32.mrf.mxu0
    %v5636 = vadd.f32 %v5155, %v5635
    %v5637 = vpop.f32.mrf.mxu0
    %v5638 = vpop.f32.mrf.mxu0
    %v5639 = vadd.f32 %v5158, %v5638
    %v5640 = vpop.f32.mrf.mxu0
    %5641 = vmatprep.mubr.bf16.mxu0 %v5458
    %5642 = vmatmul.mubr.bf16.gmra.mxu0 %v5457
    %v5643 = vpop.f32.mrf.mxu0
    %v5644 = vadd.f32 %v5163, %v5643
    %v5645 = vpop.f32.mrf.mxu0
    %v5646 = vpop.f32.mrf.mxu0
    %v5647 = vadd.f32 %v5166, %v5646
    %v5648 = vpop.f32.mrf.mxu0
    %5649 = vmatprep.mubr.bf16.mxu0 %v5462
    %5650 = vmatmul.mubr.bf16.gmra.mxu0 %v5461
    %v5651 = vpop.f32.mrf.mxu0
    %v5652 = vadd.f32 %v5171, %v5651
    %v5653 = vpop.f32.mrf.mxu0
    %v5654 = vpop.f32.mrf.mxu0
    %v5655 = vadd.f32 %v5174, %v5654
    %v5656 = vpop.f32.mrf.mxu0
    %5657 = vmatprep.mubr.bf16.mxu0 %v5466
    %5658 = vmatmul.mubr.bf16.gmra.mxu0 %v5465
    %v5659 = vpop.f32.mrf.mxu0
    %v5660 = vadd.f32 %v5179, %v5659
    %v5661 = vpop.f32.mrf.mxu0
    %v5662 = vpop.f32.mrf.mxu0
    %v5663 = vadd.f32 %v5182, %v5662
    %v5664 = vpop.f32.mrf.mxu0
    %5665 = vmatprep.mubr.bf16.mxu0 %v5470
    %5666 = vmatmul.mubr.bf16.gmra.mxu0 %v5469
    %v5667 = vpop.f32.mrf.mxu0
    %v5668 = vadd.f32 %v5187, %v5667
    %v5669 = vpop.f32.mrf.mxu0
    %v5670 = vpop.f32.mrf.mxu0
    %v5671 = vadd.f32 %v5190, %v5670
    %v5672 = vpop.f32.mrf.mxu0
    %5673 = vmatprep.mubr.bf16.mxu0 %v5474
    %5674 = vmatmul.mubr.bf16.gmra.mxu0 %v5473
    %v5675 = vpop.f32.mrf.mxu0
    %v5676 = vadd.f32 %v5195, %v5675
    %v5677 = vpop.f32.mrf.mxu0
    %v5678 = vpop.f32.mrf.mxu0
    %v5679 = vadd.f32 %v5198, %v5678
    %v5680 = vpop.f32.mrf.mxu0
    %5681 = vmatprep.mubr.bf16.mxu0 %v5478
    %5682 = vmatmul.mubr.bf16.gmra.mxu0 %v5477
    %v5683 = vpop.f32.mrf.mxu0
    %v5684 = vadd.f32 %v5203, %v5683
    %v5685 = vpop.f32.mrf.mxu0
    %v5686 = vpop.f32.mrf.mxu0
    %v5687 = vadd.f32 %v5206, %v5686
    %v5688 = vpop.f32.mrf.mxu0
    %5689 = vmatprep.mubr.bf16.mxu0 %v5482
    %5690 = vmatmul.mubr.bf16.gmra.mxu0 %v5481
    %v5691 = vpop.f32.mrf.mxu0
    %v5692 = vadd.f32 %v5211, %v5691
    %v5693 = vpop.f32.mrf.mxu0
    %v5694 = vpop.f32.mrf.mxu0
    %v5695 = vadd.f32 %v5214, %v5694
    %v5696 = vpop.f32.mrf.mxu0
    %5697 = vmatprep.mubr.bf16.mxu0 %v5486
    %5698 = vmatmul.mubr.bf16.gmra.mxu0 %v5485
    %v5699 = vpop.f32.mrf.mxu0
    %v5700 = vadd.f32 %v5219, %v5699
    %v5701 = vpop.f32.mrf.mxu0
    %v5702 = vpop.f32.mrf.mxu0
    %v5703 = vadd.f32 %v5222, %v5702
    %v5704 = vpop.f32.mrf.mxu0
    %5705 = vmatprep.mubr.bf16.mxu0 %v5490
    %5706 = vmatmul.mubr.bf16.gmra.mxu0 %v5489
    %v5707 = vpop.f32.mrf.mxu0
    %v5708 = vadd.f32 %v5227, %v5707
    %v5709 = vpop.f32.mrf.mxu0
    %v5710 = vpop.f32.mrf.mxu0
    %v5711 = vadd.f32 %v5230, %v5710
    %v5712 = vpop.f32.mrf.mxu0
    %5713 = vmatprep.mubr.bf16.mxu0 %v5494
    %5714 = vmatmul.mubr.bf16.gmra.mxu0 %v5493
    %v5715 = vpop.f32.mrf.mxu0
    %v5716 = vadd.f32 %v5235, %v5715
    %v5717 = vpop.f32.mrf.mxu0
    %v5718 = vpop.f32.mrf.mxu0
    %v5719 = vadd.f32 %v5238, %v5718
    %v5720 = vpop.f32.mrf.mxu0
    %5721 = vdwg.mxu0
    %5722 = vmatprep.subr.bf16.mxu0 0
    %5723 = vmatpush1.bf16.msra.mxu0 %v4187
    %5724 = vmatprep.subr.bf16.mxu0 0
    %5725 = vmatpush1.bf16.msra.mxu0 %v4186
    %5726 = vmatprep.subr.bf16.mxu0 0
    %5727 = vmatpush1.bf16.msra.mxu0 %v4185
    %5728 = vmatprep.subr.bf16.mxu0 0
    %5729 = vmatpush1.bf16.msra.mxu0 %v4184
    %5730 = vmatprep.subr.bf16.mxu0 0
    %5731 = vmatpush1.bf16.msra.mxu0 %v4183
    %5732 = vmatprep.subr.bf16.mxu0 0
    %5733 = vmatpush1.bf16.msra.mxu0 %v4182
    %5734 = vmatprep.subr.bf16.mxu0 0
    %5735 = vmatpush1.bf16.msra.mxu0 %v4181
    %5736 = vmatprep.subr.bf16.mxu0 0
    %5737 = vmatpush1.bf16.msra.mxu0 %v4180
    %5738 = vmatprep.subr.bf16.mxu0 0
    %5739 = vmatpush2.bf16.msra.mxu0 %v4195
    %5740 = vmatprep.subr.bf16.mxu0 0
    %5741 = vmatpush2.bf16.msra.mxu0 %v4194
    %5742 = vmatprep.subr.bf16.mxu0 0
    %5743 = vmatpush2.bf16.msra.mxu0 %v4193
    %5744 = vmatprep.subr.bf16.mxu0 0
    %5745 = vmatpush2.bf16.msra.mxu0 %v4192
    %5746 = vmatprep.subr.bf16.mxu0 0
    %5747 = vmatpush2.bf16.msra.mxu0 %v4191
    %5748 = vmatprep.subr.bf16.mxu0 0
    %5749 = vmatpush2.bf16.msra.mxu0 %v4190
    %5750 = vmatprep.subr.bf16.mxu0 0
    %5751 = vmatpush2.bf16.msra.mxu0 %v4189
    %5752 = vmatprep.subr.bf16.mxu0 0
    %5753 = vmatpush2.bf16.msra.mxu0 %v4188
    %5754 = vmatprep.mubr.bf16.mxu0 %v5436
    %5755 = vmatmul.mubr.bf16.gmra.mxu0 %v5435
    %v5756 = vpop.f32.mrf.mxu0
    %v5757 = vadd.f32 %v5596, %v5756
    %v5758 = vpop.f32.mrf.mxu0
    %v5759 = vpop.f32.mrf.mxu0
    %v5760 = vadd.f32 %v5599, %v5759
    %v5761 = vpop.f32.mrf.mxu0
    %5762 = vmatprep.mubr.bf16.mxu0 %v5440
    %5763 = vmatmul.mubr.bf16.gmra.mxu0 %v5439
    %v5764 = vpop.f32.mrf.mxu0
    %v5765 = vadd.f32 %v5604, %v5764
    %v5766 = vpop.f32.mrf.mxu0
    %v5767 = vpop.f32.mrf.mxu0
    %v5768 = vadd.f32 %v5607, %v5767
    %v5769 = vpop.f32.mrf.mxu0
    %5770 = vmatprep.mubr.bf16.mxu0 %v5444
    %5771 = vmatmul.mubr.bf16.gmra.mxu0 %v5443
    %v5772 = vpop.f32.mrf.mxu0
    %v5773 = vadd.f32 %v5612, %v5772
    %v5774 = vpop.f32.mrf.mxu0
    %v5775 = vpop.f32.mrf.mxu0
    %v5776 = vadd.f32 %v5615, %v5775
    %v5777 = vpop.f32.mrf.mxu0
    %5778 = vmatprep.mubr.bf16.mxu0 %v5448
    %5779 = vmatmul.mubr.bf16.gmra.mxu0 %v5447
    %v5780 = vpop.f32.mrf.mxu0
    %v5781 = vadd.f32 %v5620, %v5780
    %v5782 = vpop.f32.mrf.mxu0
    %v5783 = vpop.f32.mrf.mxu0
    %v5784 = vadd.f32 %v5623, %v5783
    %v5785 = vpop.f32.mrf.mxu0
    %5786 = vmatprep.mubr.bf16.mxu0 %v5452
    %5787 = vmatmul.mubr.bf16.gmra.mxu0 %v5451
    %v5788 = vpop.f32.mrf.mxu0
    %v5789 = vadd.f32 %v5628, %v5788
    %v5790 = vpop.f32.mrf.mxu0
    %v5791 = vpop.f32.mrf.mxu0
    %v5792 = vadd.f32 %v5631, %v5791
    %v5793 = vpop.f32.mrf.mxu0
    %5794 = vmatprep.mubr.bf16.mxu0 %v5456
    %5795 = vmatmul.mubr.bf16.gmra.mxu0 %v5455
    %v5796 = vpop.f32.mrf.mxu0
    %v5797 = vadd.f32 %v5636, %v5796
    %v5798 = vpop.f32.mrf.mxu0
    %v5799 = vpop.f32.mrf.mxu0
    %v5800 = vadd.f32 %v5639, %v5799
    %v5801 = vpop.f32.mrf.mxu0
    %5802 = vmatprep.mubr.bf16.mxu0 %v5460
    %5803 = vmatmul.mubr.bf16.gmra.mxu0 %v5459
    %v5804 = vpop.f32.mrf.mxu0
    %v5805 = vadd.f32 %v5644, %v5804
    %v5806 = vpop.f32.mrf.mxu0
    %v5807 = vpop.f32.mrf.mxu0
    %v5808 = vadd.f32 %v5647, %v5807
    %v5809 = vpop.f32.mrf.mxu0
    %5810 = vmatprep.mubr.bf16.mxu0 %v5464
    %5811 = vmatmul.mubr.bf16.gmra.mxu0 %v5463
    %v5812 = vpop.f32.mrf.mxu0
    %v5813 = vadd.f32 %v5652, %v5812
    %v5814 = vpop.f32.mrf.mxu0
    %v5815 = vpop.f32.mrf.mxu0
    %v5816 = vadd.f32 %v5655, %v5815
    %v5817 = vpop.f32.mrf.mxu0
    %5818 = vmatprep.mubr.bf16.mxu0 %v5468
    %5819 = vmatmul.mubr.bf16.gmra.mxu0 %v5467
    %v5820 = vpop.f32.mrf.mxu0
    %v5821 = vadd.f32 %v5660, %v5820
    %v5822 = vpop.f32.mrf.mxu0
    %v5823 = vpop.f32.mrf.mxu0
    %v5824 = vadd.f32 %v5663, %v5823
    %v5825 = vpop.f32.mrf.mxu0
    %5826 = vmatprep.mubr.bf16.mxu0 %v5472
    %5827 = vmatmul.mubr.bf16.gmra.mxu0 %v5471
    %v5828 = vpop.f32.mrf.mxu0
    %v5829 = vadd.f32 %v5668, %v5828
    %v5830 = vpop.f32.mrf.mxu0
    %v5831 = vpop.f32.mrf.mxu0
    %v5832 = vadd.f32 %v5671, %v5831
    %v5833 = vpop.f32.mrf.mxu0
    %5834 = vmatprep.mubr.bf16.mxu0 %v5476
    %5835 = vmatmul.mubr.bf16.gmra.mxu0 %v5475
    %v5836 = vpop.f32.mrf.mxu0
    %v5837 = vadd.f32 %v5676, %v5836
    %v5838 = vpop.f32.mrf.mxu0
    %v5839 = vpop.f32.mrf.mxu0
    %v5840 = vadd.f32 %v5679, %v5839
    %v5841 = vpop.f32.mrf.mxu0
    %5842 = vmatprep.mubr.bf16.mxu0 %v5480
    %5843 = vmatmul.mubr.bf16.gmra.mxu0 %v5479
    %v5844 = vpop.f32.mrf.mxu0
    %v5845 = vadd.f32 %v5684, %v5844
    %v5846 = vpop.f32.mrf.mxu0
    %v5847 = vpop.f32.mrf.mxu0
    %v5848 = vadd.f32 %v5687, %v5847
    %v5849 = vpop.f32.mrf.mxu0
    %5850 = vmatprep.mubr.bf16.mxu0 %v5484
    %5851 = vmatmul.mubr.bf16.gmra.mxu0 %v5483
    %v5852 = vpop.f32.mrf.mxu0
    %v5853 = vadd.f32 %v5692, %v5852
    %v5854 = vpop.f32.mrf.mxu0
    %v5855 = vpop.f32.mrf.mxu0
    %v5856 = vadd.f32 %v5695, %v5855
    %v5857 = vpop.f32.mrf.mxu0
    %5858 = vmatprep.mubr.bf16.mxu0 %v5488
    %5859 = vmatmul.mubr.bf16.gmra.mxu0 %v5487
    %v5860 = vpop.f32.mrf.mxu0
    %v5861 = vadd.f32 %v5700, %v5860
    %v5862 = vpop.f32.mrf.mxu0
    %v5863 = vpop.f32.mrf.mxu0
    %v5864 = vadd.f32 %v5703, %v5863
    %v5865 = vpop.f32.mrf.mxu0
    %5866 = vmatprep.mubr.bf16.mxu0 %v5492
    %5867 = vmatmul.mubr.bf16.gmra.mxu0 %v5491
    %v5868 = vpop.f32.mrf.mxu0
    %v5869 = vadd.f32 %v5708, %v5868
    %v5870 = vpop.f32.mrf.mxu0
    %v5871 = vpop.f32.mrf.mxu0
    %v5872 = vadd.f32 %v5711, %v5871
    %v5873 = vpop.f32.mrf.mxu0
    %5874 = vmatprep.mubr.bf16.mxu0 %v5496
    %5875 = vmatmul.mubr.bf16.gmra.mxu0 %v5495
    %v5876 = vpop.f32.mrf.mxu0
    %v5877 = vadd.f32 %v5716, %v5876
    %v5878 = vpop.f32.mrf.mxu0
    %v5879 = vpop.f32.mrf.mxu0
    %v5880 = vadd.f32 %v5719, %v5879
    %v5881 = vpop.f32.mrf.mxu0
    %5882 = vdwg.mxu0
    %s5883 = scalar_lea.vmem %s4, 32
    %v5884 = vld [vmem:[%s5883] sm:$0xf]
    %v5885 = vld [vmem:[%s5883 + $0x4] sm:$0xf]
    %v5886 = vld [vmem:[%s5883 + $0x8] sm:$0xf]
    %v5887 = vld [vmem:[%s5883 + $0xc] sm:$0xf]
    %v5892 = vunpack.c.l.b16 %v5884
    %v5893 = vunpack.c.l.b16 %v5885
    %v5894 = vunpack.c.l.b16 %v5886
    %v5895 = vunpack.c.l.b16 %v5887
    %v5896 = vpack.c.b16 %v5893, %v5892
    %v5897 = vpack.c.b16 %v5895, %v5894
    %5900 = vmatprep.subr.bf16.mxu0 0
    %5901 = vmatpush1.bf16.msra.mxu0 0
    %5902 = vmatprep.subr.bf16.mxu0 0
    %5903 = vmatpush1.bf16.msra.mxu0 0
    %5904 = vmatprep.subr.bf16.mxu0 0
    %5905 = vmatpush1.bf16.msra.mxu0 0
    %5906 = vmatprep.subr.bf16.mxu0 0
    %5907 = vmatpush1.bf16.msra.mxu0 0
    %5908 = vmatprep.subr.bf16.mxu0 0
    %5909 = vmatpush1.bf16.msra.mxu0 0
    %5910 = vmatprep.subr.bf16.mxu0 0
    %5911 = vmatpush1.bf16.msra.mxu0 0
    %5912 = vmatprep.subr.bf16.mxu0 0
    %5913 = vmatpush1.bf16.msra.mxu0 %v5897
    %5914 = vmatprep.subr.bf16.mxu0 0
    %5915 = vmatpush1.bf16.msra.mxu0 %v5896
    %5916 = vmatprep.subr.bf16.mxu0 0
    %5917 = vmatpush2.bf16.msra.mxu0 0
    %5918 = vmatprep.subr.bf16.mxu0 0
    %5919 = vmatpush2.bf16.msra.mxu0 0
    %5920 = vmatprep.subr.bf16.mxu0 0
    %5921 = vmatpush2.bf16.msra.mxu0 0
    %5922 = vmatprep.subr.bf16.mxu0 0
    %5923 = vmatpush2.bf16.msra.mxu0 0
    %5924 = vmatprep.subr.bf16.mxu0 0
    %5925 = vmatpush2.bf16.msra.mxu0 0
    %5926 = vmatprep.subr.bf16.mxu0 0
    %5927 = vmatpush2.bf16.msra.mxu0 0
    %5928 = vmatprep.subr.bf16.mxu0 0
    %5929 = vmatpush2.bf16.msra.mxu0 0
    %5930 = vmatprep.subr.bf16.mxu0 0
    %5931 = vmatpush2.bf16.msra.mxu0 0
    %5932 = vmatprep.mubr.bf16.mxu0 0
    %5933 = vmatmul.mubr.bf16.gmra.mxu0 %v3716
    %v5934 = vpop.f32.mrf.mxu0
    %v5935 = vadd.f32 0.0, %v5934
    %v5936 = vpop.f32.mrf.mxu0
    %v5937 = vpop.f32.mrf.mxu0
    %v5938 = vadd.f32 0.0, %v5937
    %v5939 = vpop.f32.mrf.mxu0
    %5940 = vmatprep.mubr.bf16.mxu0 0
    %5941 = vmatmul.mubr.bf16.gmra.mxu0 %v3719
    %v5942 = vpop.f32.mrf.mxu0
    %v5943 = vadd.f32 0.0, %v5942
    %v5944 = vpop.f32.mrf.mxu0
    %v5945 = vpop.f32.mrf.mxu0
    %v5946 = vadd.f32 0.0, %v5945
    %v5947 = vpop.f32.mrf.mxu0
    %5948 = vmatprep.mubr.bf16.mxu0 0
    %5949 = vmatmul.mubr.bf16.gmra.mxu0 %v3722
    %v5950 = vpop.f32.mrf.mxu0
    %v5951 = vadd.f32 0.0, %v5950
    %v5952 = vpop.f32.mrf.mxu0
    %v5953 = vpop.f32.mrf.mxu0
    %v5954 = vadd.f32 0.0, %v5953
    %v5955 = vpop.f32.mrf.mxu0
    %5956 = vmatprep.mubr.bf16.mxu0 0
    %5957 = vmatmul.mubr.bf16.gmra.mxu0 %v3725
    %v5958 = vpop.f32.mrf.mxu0
    %v5959 = vadd.f32 0.0, %v5958
    %v5960 = vpop.f32.mrf.mxu0
    %v5961 = vpop.f32.mrf.mxu0
    %v5962 = vadd.f32 0.0, %v5961
    %v5963 = vpop.f32.mrf.mxu0
    %5964 = vmatprep.mubr.bf16.mxu0 0
    %5965 = vmatmul.mubr.bf16.gmra.mxu0 %v3728
    %v5966 = vpop.f32.mrf.mxu0
    %v5967 = vadd.f32 0.0, %v5966
    %v5968 = vpop.f32.mrf.mxu0
    %v5969 = vpop.f32.mrf.mxu0
    %v5970 = vadd.f32 0.0, %v5969
    %v5971 = vpop.f32.mrf.mxu0
    %5972 = vmatprep.mubr.bf16.mxu0 0
    %5973 = vmatmul.mubr.bf16.gmra.mxu0 %v3731
    %v5974 = vpop.f32.mrf.mxu0
    %v5975 = vadd.f32 0.0, %v5974
    %v5976 = vpop.f32.mrf.mxu0
    %v5977 = vpop.f32.mrf.mxu0
    %v5978 = vadd.f32 0.0, %v5977
    %v5979 = vpop.f32.mrf.mxu0
    %5980 = vmatprep.mubr.bf16.mxu0 0
    %5981 = vmatmul.mubr.bf16.gmra.mxu0 %v3734
    %v5982 = vpop.f32.mrf.mxu0
    %v5983 = vadd.f32 0.0, %v5982
    %v5984 = vpop.f32.mrf.mxu0
    %v5985 = vpop.f32.mrf.mxu0
    %v5986 = vadd.f32 0.0, %v5985
    %v5987 = vpop.f32.mrf.mxu0
    %5988 = vmatprep.mubr.bf16.mxu0 0
    %5989 = vmatmul.mubr.bf16.gmra.mxu0 %v3737
    %v5990 = vpop.f32.mrf.mxu0
    %v5991 = vadd.f32 0.0, %v5990
    %v5992 = vpop.f32.mrf.mxu0
    %v5993 = vpop.f32.mrf.mxu0
    %v5994 = vadd.f32 0.0, %v5993
    %v5995 = vpop.f32.mrf.mxu0
    %5996 = vmatprep.mubr.bf16.mxu0 0
    %5997 = vmatmul.mubr.bf16.gmra.mxu0 %v3740
    %v5998 = vpop.f32.mrf.mxu0
    %v5999 = vadd.f32 0.0, %v5998
    %v6000 = vpop.f32.mrf.mxu0
    %v6001 = vpop.f32.mrf.mxu0
    %v6002 = vadd.f32 0.0, %v6001
    %v6003 = vpop.f32.mrf.mxu0
    %6004 = vmatprep.mubr.bf16.mxu0 0
    %6005 = vmatmul.mubr.bf16.gmra.mxu0 %v3743
    %v6006 = vpop.f32.mrf.mxu0
    %v6007 = vadd.f32 0.0, %v6006
    %v6008 = vpop.f32.mrf.mxu0
    %v6009 = vpop.f32.mrf.mxu0
    %v6010 = vadd.f32 0.0, %v6009
    %v6011 = vpop.f32.mrf.mxu0
    %6012 = vmatprep.mubr.bf16.mxu0 0
    %6013 = vmatmul.mubr.bf16.gmra.mxu0 %v3746
    %v6014 = vpop.f32.mrf.mxu0
    %v6015 = vadd.f32 0.0, %v6014
    %v6016 = vpop.f32.mrf.mxu0
    %v6017 = vpop.f32.mrf.mxu0
    %v6018 = vadd.f32 0.0, %v6017
    %v6019 = vpop.f32.mrf.mxu0
    %6020 = vmatprep.mubr.bf16.mxu0 0
    %6021 = vmatmul.mubr.bf16.gmra.mxu0 %v3749
    %v6022 = vpop.f32.mrf.mxu0
    %v6023 = vadd.f32 0.0, %v6022
    %v6024 = vpop.f32.mrf.mxu0
    %v6025 = vpop.f32.mrf.mxu0
    %v6026 = vadd.f32 0.0, %v6025
    %v6027 = vpop.f32.mrf.mxu0
    %6028 = vmatprep.mubr.bf16.mxu0 0
    %6029 = vmatmul.mubr.bf16.gmra.mxu0 %v3752
    %v6030 = vpop.f32.mrf.mxu0
    %v6031 = vadd.f32 0.0, %v6030
    %v6032 = vpop.f32.mrf.mxu0
    %v6033 = vpop.f32.mrf.mxu0
    %v6034 = vadd.f32 0.0, %v6033
    %v6035 = vpop.f32.mrf.mxu0
    %6036 = vmatprep.mubr.bf16.mxu0 0
    %6037 = vmatmul.mubr.bf16.gmra.mxu0 %v3755
    %v6038 = vpop.f32.mrf.mxu0
    %v6039 = vadd.f32 0.0, %v6038
    %v6040 = vpop.f32.mrf.mxu0
    %v6041 = vpop.f32.mrf.mxu0
    %v6042 = vadd.f32 0.0, %v6041
    %v6043 = vpop.f32.mrf.mxu0
    %6044 = vmatprep.mubr.bf16.mxu0 0
    %6045 = vmatmul.mubr.bf16.gmra.mxu0 %v3758
    %v6046 = vpop.f32.mrf.mxu0
    %v6047 = vadd.f32 0.0, %v6046
    %v6048 = vpop.f32.mrf.mxu0
    %v6049 = vpop.f32.mrf.mxu0
    %v6050 = vadd.f32 0.0, %v6049
    %v6051 = vpop.f32.mrf.mxu0
    %6052 = vmatprep.mubr.bf16.mxu0 0
    %6053 = vmatmul.mubr.bf16.gmra.mxu0 %v3761
    %v6054 = vpop.f32.mrf.mxu0
    %v6055 = vadd.f32 0.0, %v6054
    %v6056 = vpop.f32.mrf.mxu0
    %v6057 = vpop.f32.mrf.mxu0
    %v6058 = vadd.f32 0.0, %v6057
    %v6059 = vpop.f32.mrf.mxu0
    %6060 = vmatprep.mubr.bf16.mxu0 0
    %6061 = vmatmul.mubr.bf16.gmra.mxu0 %v3764
    %v6062 = vpop.f32.mrf.mxu0
    %v6063 = vadd.f32 0.0, %v6062
    %v6064 = vpop.f32.mrf.mxu0
    %v6065 = vpop.f32.mrf.mxu0
    %v6066 = vadd.f32 0.0, %v6065
    %v6067 = vpop.f32.mrf.mxu0
    %6068 = vmatprep.mubr.bf16.mxu0 0
    %6069 = vmatmul.mubr.bf16.gmra.mxu0 %v3767
    %v6070 = vpop.f32.mrf.mxu0
    %v6071 = vadd.f32 0.0, %v6070
    %v6072 = vpop.f32.mrf.mxu0
    %v6073 = vpop.f32.mrf.mxu0
    %v6074 = vadd.f32 0.0, %v6073
    %v6075 = vpop.f32.mrf.mxu0
    %6076 = vmatprep.mubr.bf16.mxu0 0
    %6077 = vmatmul.mubr.bf16.gmra.mxu0 %v3770
    %v6078 = vpop.f32.mrf.mxu0
    %v6079 = vadd.f32 0.0, %v6078
    %v6080 = vpop.f32.mrf.mxu0
    %v6081 = vpop.f32.mrf.mxu0
    %v6082 = vadd.f32 0.0, %v6081
    %v6083 = vpop.f32.mrf.mxu0
    %6084 = vmatprep.mubr.bf16.mxu0 0
    %6085 = vmatmul.mubr.bf16.gmra.mxu0 %v3773
    %v6086 = vpop.f32.mrf.mxu0
    %v6087 = vadd.f32 0.0, %v6086
    %v6088 = vpop.f32.mrf.mxu0
    %v6089 = vpop.f32.mrf.mxu0
    %v6090 = vadd.f32 0.0, %v6089
    %v6091 = vpop.f32.mrf.mxu0
    %6092 = vmatprep.mubr.bf16.mxu0 0
    %6093 = vmatmul.mubr.bf16.gmra.mxu0 %v3776
    %v6094 = vpop.f32.mrf.mxu0
    %v6095 = vadd.f32 0.0, %v6094
    %v6096 = vpop.f32.mrf.mxu0
    %v6097 = vpop.f32.mrf.mxu0
    %v6098 = vadd.f32 0.0, %v6097
    %v6099 = vpop.f32.mrf.mxu0
    %6100 = vmatprep.mubr.bf16.mxu0 0
    %6101 = vmatmul.mubr.bf16.gmra.mxu0 %v3779
    %v6102 = vpop.f32.mrf.mxu0
    %v6103 = vadd.f32 0.0, %v6102
    %v6104 = vpop.f32.mrf.mxu0
    %v6105 = vpop.f32.mrf.mxu0
    %v6106 = vadd.f32 0.0, %v6105
    %v6107 = vpop.f32.mrf.mxu0
    %6108 = vmatprep.mubr.bf16.mxu0 0
    %6109 = vmatmul.mubr.bf16.gmra.mxu0 %v3782
    %v6110 = vpop.f32.mrf.mxu0
    %v6111 = vadd.f32 0.0, %v6110
    %v6112 = vpop.f32.mrf.mxu0
    %v6113 = vpop.f32.mrf.mxu0
    %v6114 = vadd.f32 0.0, %v6113
    %v6115 = vpop.f32.mrf.mxu0
    %6116 = vmatprep.mubr.bf16.mxu0 0
    %6117 = vmatmul.mubr.bf16.gmra.mxu0 %v3785
    %v6118 = vpop.f32.mrf.mxu0
    %v6119 = vadd.f32 0.0, %v6118
    %v6120 = vpop.f32.mrf.mxu0
    %v6121 = vpop.f32.mrf.mxu0
    %v6122 = vadd.f32 0.0, %v6121
    %v6123 = vpop.f32.mrf.mxu0
    %6124 = vmatprep.mubr.bf16.mxu0 0
    %6125 = vmatmul.mubr.bf16.gmra.mxu0 %v3788
    %v6126 = vpop.f32.mrf.mxu0
    %v6127 = vadd.f32 0.0, %v6126
    %v6128 = vpop.f32.mrf.mxu0
    %v6129 = vpop.f32.mrf.mxu0
    %v6130 = vadd.f32 0.0, %v6129
    %v6131 = vpop.f32.mrf.mxu0
    %6132 = vmatprep.mubr.bf16.mxu0 0
    %6133 = vmatmul.mubr.bf16.gmra.mxu0 %v3791
    %v6134 = vpop.f32.mrf.mxu0
    %v6135 = vadd.f32 0.0, %v6134
    %v6136 = vpop.f32.mrf.mxu0
    %v6137 = vpop.f32.mrf.mxu0
    %v6138 = vadd.f32 0.0, %v6137
    %v6139 = vpop.f32.mrf.mxu0
    %6140 = vmatprep.mubr.bf16.mxu0 0
    %6141 = vmatmul.mubr.bf16.gmra.mxu0 %v3794
    %v6142 = vpop.f32.mrf.mxu0
    %v6143 = vadd.f32 0.0, %v6142
    %v6144 = vpop.f32.mrf.mxu0
    %v6145 = vpop.f32.mrf.mxu0
    %v6146 = vadd.f32 0.0, %v6145
    %v6147 = vpop.f32.mrf.mxu0
    %6148 = vmatprep.mubr.bf16.mxu0 0
    %6149 = vmatmul.mubr.bf16.gmra.mxu0 %v3797
    %v6150 = vpop.f32.mrf.mxu0
    %v6151 = vadd.f32 0.0, %v6150
    %v6152 = vpop.f32.mrf.mxu0
    %v6153 = vpop.f32.mrf.mxu0
    %v6154 = vadd.f32 0.0, %v6153
    %v6155 = vpop.f32.mrf.mxu0
    %6156 = vmatprep.mubr.bf16.mxu0 0
    %6157 = vmatmul.mubr.bf16.gmra.mxu0 %v3800
    %v6158 = vpop.f32.mrf.mxu0
    %v6159 = vadd.f32 0.0, %v6158
    %v6160 = vpop.f32.mrf.mxu0
    %v6161 = vpop.f32.mrf.mxu0
    %v6162 = vadd.f32 0.0, %v6161
    %v6163 = vpop.f32.mrf.mxu0
    %6164 = vmatprep.mubr.bf16.mxu0 0
    %6165 = vmatmul.mubr.bf16.gmra.mxu0 %v3803
    %v6166 = vpop.f32.mrf.mxu0
    %v6167 = vadd.f32 0.0, %v6166
    %v6168 = vpop.f32.mrf.mxu0
    %v6169 = vpop.f32.mrf.mxu0
    %v6170 = vadd.f32 0.0, %v6169
    %v6171 = vpop.f32.mrf.mxu0
    %6172 = vmatprep.mubr.bf16.mxu0 0
    %6173 = vmatmul.mubr.bf16.gmra.mxu0 %v3806
    %v6174 = vpop.f32.mrf.mxu0
    %v6175 = vadd.f32 0.0, %v6174
    %v6176 = vpop.f32.mrf.mxu0
    %v6177 = vpop.f32.mrf.mxu0
    %v6178 = vadd.f32 0.0, %v6177
    %v6179 = vpop.f32.mrf.mxu0
    %6180 = vmatprep.mubr.bf16.mxu0 0
    %6181 = vmatmul.mubr.bf16.gmra.mxu0 %v3809
    %v6182 = vpop.f32.mrf.mxu0
    %v6183 = vadd.f32 0.0, %v6182
    %v6184 = vpop.f32.mrf.mxu0
    %v6185 = vpop.f32.mrf.mxu0
    %v6186 = vadd.f32 0.0, %v6185
    %v6187 = vpop.f32.mrf.mxu0
    %6188 = vdwg.mxu0
    %s6189 = scalar_lea.vmem [#allocation2], 1024
    %v6190 = vld [vmem:[%s6189] sm:$0xff]
    %v6191 = vld [vmem:[%s6189 + $0x8] sm:$0xff]
    %v6192 = vld [vmem:[%s6189 + $0x10] sm:$0xff]
    %v6193 = vld [vmem:[%s6189 + $0x18] sm:$0xff]
    %v6194 = vld [vmem:[%s6189 + $0x20] sm:$0xff]
    %v6195 = vld [vmem:[%s6189 + $0x28] sm:$0xff]
    %v6196 = vld [vmem:[%s6189 + $0x30] sm:$0xff]
    %v6197 = vld [vmem:[%s6189 + $0x38] sm:$0xff]
    %v6198 = vld [vmem:[%s6189 + $0x40] sm:$0xff]
    %v6199 = vld [vmem:[%s6189 + $0x48] sm:$0xff]
    %v6200 = vld [vmem:[%s6189 + $0x50] sm:$0xff]
    %v6201 = vld [vmem:[%s6189 + $0x58] sm:$0xff]
    %v6202 = vld [vmem:[%s6189 + $0x60] sm:$0xff]
    %v6203 = vld [vmem:[%s6189 + $0x68] sm:$0xff]
    %v6204 = vld [vmem:[%s6189 + $0x70] sm:$0xff]
    %v6205 = vld [vmem:[%s6189 + $0x78] sm:$0xff]
    %v6206 = vld [vmem:[%s6189 + $0x80] sm:$0xff]
    %v6207 = vld [vmem:[%s6189 + $0x88] sm:$0xff]
    %v6208 = vld [vmem:[%s6189 + $0x90] sm:$0xff]
    %v6209 = vld [vmem:[%s6189 + $0x98] sm:$0xff]
    %v6210 = vld [vmem:[%s6189 + $0xa0] sm:$0xff]
    %v6211 = vld [vmem:[%s6189 + $0xa8] sm:$0xff]
    %v6212 = vld [vmem:[%s6189 + $0xb0] sm:$0xff]
    %v6213 = vld [vmem:[%s6189 + $0xb8] sm:$0xff]
    %v6214 = vld [vmem:[%s6189 + $0xc0] sm:$0xff]
    %v6215 = vld [vmem:[%s6189 + $0xc8] sm:$0xff]
    %v6216 = vld [vmem:[%s6189 + $0xd0] sm:$0xff]
    %v6217 = vld [vmem:[%s6189 + $0xd8] sm:$0xff]
    %v6218 = vld [vmem:[%s6189 + $0xe0] sm:$0xff]
    %v6219 = vld [vmem:[%s6189 + $0xe8] sm:$0xff]
    %v6220 = vld [vmem:[%s6189 + $0xf0] sm:$0xff]
    %v6221 = vld [vmem:[%s6189 + $0xf8] sm:$0xff]
    %v6222 = vld [vmem:[%s6189 + $0x100] sm:$0xff]
    %v6223 = vld [vmem:[%s6189 + $0x108] sm:$0xff]
    %v6224 = vld [vmem:[%s6189 + $0x110] sm:$0xff]
    %v6225 = vld [vmem:[%s6189 + $0x118] sm:$0xff]
    %v6226 = vld [vmem:[%s6189 + $0x120] sm:$0xff]
    %v6227 = vld [vmem:[%s6189 + $0x128] sm:$0xff]
    %v6228 = vld [vmem:[%s6189 + $0x130] sm:$0xff]
    %v6229 = vld [vmem:[%s6189 + $0x138] sm:$0xff]
    %v6230 = vld [vmem:[%s6189 + $0x140] sm:$0xff]
    %v6231 = vld [vmem:[%s6189 + $0x148] sm:$0xff]
    %v6232 = vld [vmem:[%s6189 + $0x150] sm:$0xff]
    %v6233 = vld [vmem:[%s6189 + $0x158] sm:$0xff]
    %v6234 = vld [vmem:[%s6189 + $0x160] sm:$0xff]
    %v6235 = vld [vmem:[%s6189 + $0x168] sm:$0xff]
    %v6236 = vld [vmem:[%s6189 + $0x170] sm:$0xff]
    %v6237 = vld [vmem:[%s6189 + $0x178] sm:$0xff]
    %v6238 = vld [vmem:[%s6189 + $0x180] sm:$0xff]
    %v6239 = vld [vmem:[%s6189 + $0x188] sm:$0xff]
    %v6240 = vld [vmem:[%s6189 + $0x190] sm:$0xff]
    %v6241 = vld [vmem:[%s6189 + $0x198] sm:$0xff]
    %v6242 = vld [vmem:[%s6189 + $0x1a0] sm:$0xff]
    %v6243 = vld [vmem:[%s6189 + $0x1a8] sm:$0xff]
    %v6244 = vld [vmem:[%s6189 + $0x1b0] sm:$0xff]
    %v6245 = vld [vmem:[%s6189 + $0x1b8] sm:$0xff]
    %v6246 = vld [vmem:[%s6189 + $0x1c0] sm:$0xff]
    %v6247 = vld [vmem:[%s6189 + $0x1c8] sm:$0xff]
    %v6248 = vld [vmem:[%s6189 + $0x1d0] sm:$0xff]
    %v6249 = vld [vmem:[%s6189 + $0x1d8] sm:$0xff]
    %v6250 = vld [vmem:[%s6189 + $0x1e0] sm:$0xff]
    %v6251 = vld [vmem:[%s6189 + $0x1e8] sm:$0xff]
    %v6252 = vld [vmem:[%s6189 + $0x1f0] sm:$0xff]
    %v6253 = vld [vmem:[%s6189 + $0x1f8] sm:$0xff]
    %v6254 = vpack.c.bf16 %v5938, %v5935
    %v6255 = vpack.c.bf16 %v5946, %v5943
    %v6256 = vpack.c.bf16 %v5954, %v5951
    %v6257 = vpack.c.bf16 %v5962, %v5959
    %v6258 = vpack.c.bf16 %v5970, %v5967
    %v6259 = vpack.c.bf16 %v5978, %v5975
    %v6260 = vpack.c.bf16 %v5986, %v5983
    %v6261 = vpack.c.bf16 %v5994, %v5991
    %v6262 = vpack.c.bf16 %v6002, %v5999
    %v6263 = vpack.c.bf16 %v6010, %v6007
    %v6264 = vpack.c.bf16 %v6018, %v6015
    %v6265 = vpack.c.bf16 %v6026, %v6023
    %v6266 = vpack.c.bf16 %v6034, %v6031
    %v6267 = vpack.c.bf16 %v6042, %v6039
    %v6268 = vpack.c.bf16 %v6050, %v6047
    %v6269 = vpack.c.bf16 %v6058, %v6055
    %v6270 = vpack.c.bf16 %v6066, %v6063
    %v6271 = vpack.c.bf16 %v6074, %v6071
    %v6272 = vpack.c.bf16 %v6082, %v6079
    %v6273 = vpack.c.bf16 %v6090, %v6087
    %v6274 = vpack.c.bf16 %v6098, %v6095
    %v6275 = vpack.c.bf16 %v6106, %v6103
    %v6276 = vpack.c.bf16 %v6114, %v6111
    %v6277 = vpack.c.bf16 %v6122, %v6119
    %v6278 = vpack.c.bf16 %v6130, %v6127
    %v6279 = vpack.c.bf16 %v6138, %v6135
    %v6280 = vpack.c.bf16 %v6146, %v6143
    %v6281 = vpack.c.bf16 %v6154, %v6151
    %v6282 = vpack.c.bf16 %v6162, %v6159
    %v6283 = vpack.c.bf16 %v6170, %v6167
    %v6284 = vpack.c.bf16 %v6178, %v6175
    %v6285 = vpack.c.bf16 %v6186, %v6183
    %v6350 = vunpack.c.l.b16 %v6190
    %v6351 = vunpack.c.h.b16 %v6190
    %v6352 = vunpack.c.l.b16 %v6191
    %v6353 = vunpack.c.h.b16 %v6191
    %v6354 = vunpack.c.l.b16 %v6192
    %v6355 = vunpack.c.h.b16 %v6192
    %v6356 = vunpack.c.l.b16 %v6193
    %v6357 = vunpack.c.h.b16 %v6193
    %v6358 = vunpack.c.l.b16 %v6194
    %v6359 = vunpack.c.h.b16 %v6194
    %v6360 = vunpack.c.l.b16 %v6195
    %v6361 = vunpack.c.h.b16 %v6195
    %v6362 = vunpack.c.l.b16 %v6196
    %v6363 = vunpack.c.h.b16 %v6196
    %v6364 = vunpack.c.l.b16 %v6197
    %v6365 = vunpack.c.h.b16 %v6197
    %v6366 = vunpack.c.l.b16 %v6198
    %v6367 = vunpack.c.h.b16 %v6198
    %v6368 = vunpack.c.l.b16 %v6199
    %v6369 = vunpack.c.h.b16 %v6199
    %v6370 = vunpack.c.l.b16 %v6200
    %v6371 = vunpack.c.h.b16 %v6200
    %v6372 = vunpack.c.l.b16 %v6201
    %v6373 = vunpack.c.h.b16 %v6201
    %v6374 = vunpack.c.l.b16 %v6202
    %v6375 = vunpack.c.h.b16 %v6202
    %v6376 = vunpack.c.l.b16 %v6203
    %v6377 = vunpack.c.h.b16 %v6203
    %v6378 = vunpack.c.l.b16 %v6204
    %v6379 = vunpack.c.h.b16 %v6204
    %v6380 = vunpack.c.l.b16 %v6205
    %v6381 = vunpack.c.h.b16 %v6205
    %v6382 = vunpack.c.l.b16 %v6206
    %v6383 = vunpack.c.h.b16 %v6206
    %v6384 = vunpack.c.l.b16 %v6207
    %v6385 = vunpack.c.h.b16 %v6207
    %v6386 = vunpack.c.l.b16 %v6208
    %v6387 = vunpack.c.h.b16 %v6208
    %v6388 = vunpack.c.l.b16 %v6209
    %v6389 = vunpack.c.h.b16 %v6209
    %v6390 = vunpack.c.l.b16 %v6210
    %v6391 = vunpack.c.h.b16 %v6210
    %v6392 = vunpack.c.l.b16 %v6211
    %v6393 = vunpack.c.h.b16 %v6211
    %v6394 = vunpack.c.l.b16 %v6212
    %v6395 = vunpack.c.h.b16 %v6212
    %v6396 = vunpack.c.l.b16 %v6213
    %v6397 = vunpack.c.h.b16 %v6213
    %v6398 = vunpack.c.l.b16 %v6214
    %v6399 = vunpack.c.h.b16 %v6214
    %v6400 = vunpack.c.l.b16 %v6215
    %v6401 = vunpack.c.h.b16 %v6215
    %v6402 = vunpack.c.l.b16 %v6216
    %v6403 = vunpack.c.h.b16 %v6216
    %v6404 = vunpack.c.l.b16 %v6217
    %v6405 = vunpack.c.h.b16 %v6217
    %v6406 = vunpack.c.l.b16 %v6218
    %v6407 = vunpack.c.h.b16 %v6218
    %v6408 = vunpack.c.l.b16 %v6219
    %v6409 = vunpack.c.h.b16 %v6219
    %v6410 = vunpack.c.l.b16 %v6220
    %v6411 = vunpack.c.h.b16 %v6220
    %v6412 = vunpack.c.l.b16 %v6221
    %v6413 = vunpack.c.h.b16 %v6221
    %v6414 = vunpack.c.l.b16 %v6222
    %v6415 = vunpack.c.h.b16 %v6222
    %v6416 = vunpack.c.l.b16 %v6223
    %v6417 = vunpack.c.h.b16 %v6223
    %v6418 = vunpack.c.l.b16 %v6224
    %v6419 = vunpack.c.h.b16 %v6224
    %v6420 = vunpack.c.l.b16 %v6225
    %v6421 = vunpack.c.h.b16 %v6225
    %v6422 = vunpack.c.l.b16 %v6226
    %v6423 = vunpack.c.h.b16 %v6226
    %v6424 = vunpack.c.l.b16 %v6227
    %v6425 = vunpack.c.h.b16 %v6227
    %v6426 = vunpack.c.l.b16 %v6228
    %v6427 = vunpack.c.h.b16 %v6228
    %v6428 = vunpack.c.l.b16 %v6229
    %v6429 = vunpack.c.h.b16 %v6229
    %v6430 = vunpack.c.l.b16 %v6230
    %v6431 = vunpack.c.h.b16 %v6230
    %v6432 = vunpack.c.l.b16 %v6231
    %v6433 = vunpack.c.h.b16 %v6231
    %v6434 = vunpack.c.l.b16 %v6232
    %v6435 = vunpack.c.h.b16 %v6232
    %v6436 = vunpack.c.l.b16 %v6233
    %v6437 = vunpack.c.h.b16 %v6233
    %v6438 = vunpack.c.l.b16 %v6234
    %v6439 = vunpack.c.h.b16 %v6234
    %v6440 = vunpack.c.l.b16 %v6235
    %v6441 = vunpack.c.h.b16 %v6235
    %v6442 = vunpack.c.l.b16 %v6236
    %v6443 = vunpack.c.h.b16 %v6236
    %v6444 = vunpack.c.l.b16 %v6237
    %v6445 = vunpack.c.h.b16 %v6237
    %v6446 = vunpack.c.l.b16 %v6238
    %v6447 = vunpack.c.h.b16 %v6238
    %v6448 = vunpack.c.l.b16 %v6239
    %v6449 = vunpack.c.h.b16 %v6239
    %v6450 = vunpack.c.l.b16 %v6240
    %v6451 = vunpack.c.h.b16 %v6240
    %v6452 = vunpack.c.l.b16 %v6241
    %v6453 = vunpack.c.h.b16 %v6241
    %v6454 = vunpack.c.l.b16 %v6242
    %v6455 = vunpack.c.h.b16 %v6242
    %v6456 = vunpack.c.l.b16 %v6243
    %v6457 = vunpack.c.h.b16 %v6243
    %v6458 = vunpack.c.l.b16 %v6244
    %v6459 = vunpack.c.h.b16 %v6244
    %v6460 = vunpack.c.l.b16 %v6245
    %v6461 = vunpack.c.h.b16 %v6245
    %v6462 = vunpack.c.l.b16 %v6246
    %v6463 = vunpack.c.h.b16 %v6246
    %v6464 = vunpack.c.l.b16 %v6247
    %v6465 = vunpack.c.h.b16 %v6247
    %v6466 = vunpack.c.l.b16 %v6248
    %v6467 = vunpack.c.h.b16 %v6248
    %v6468 = vunpack.c.l.b16 %v6249
    %v6469 = vunpack.c.h.b16 %v6249
    %v6470 = vunpack.c.l.b16 %v6250
    %v6471 = vunpack.c.h.b16 %v6250
    %v6472 = vunpack.c.l.b16 %v6251
    %v6473 = vunpack.c.h.b16 %v6251
    %v6474 = vunpack.c.l.b16 %v6252
    %v6475 = vunpack.c.h.b16 %v6252
    %v6476 = vunpack.c.l.b16 %v6253
    %v6477 = vunpack.c.h.b16 %v6253
    %v6478 = vpack.c.b16 %v6354, %v6350
    %v6479 = vpack.c.b16 %v6355, %v6351
    %v6480 = vpack.c.b16 %v6356, %v6352
    %v6481 = vpack.c.b16 %v6357, %v6353
    %v6482 = vpack.c.b16 %v6362, %v6358
    %v6483 = vpack.c.b16 %v6363, %v6359
    %v6484 = vpack.c.b16 %v6364, %v6360
    %v6485 = vpack.c.b16 %v6365, %v6361
    %v6486 = vpack.c.b16 %v6370, %v6366
    %v6487 = vpack.c.b16 %v6371, %v6367
    %v6488 = vpack.c.b16 %v6372, %v6368
    %v6489 = vpack.c.b16 %v6373, %v6369
    %v6490 = vpack.c.b16 %v6378, %v6374
    %v6491 = vpack.c.b16 %v6379, %v6375
    %v6492 = vpack.c.b16 %v6380, %v6376
    %v6493 = vpack.c.b16 %v6381, %v6377
    %v6494 = vpack.c.b16 %v6386, %v6382
    %v6495 = vpack.c.b16 %v6387, %v6383
    %v6496 = vpack.c.b16 %v6388, %v6384
    %v6497 = vpack.c.b16 %v6389, %v6385
    %v6498 = vpack.c.b16 %v6394, %v6390
    %v6499 = vpack.c.b16 %v6395, %v6391
    %v6500 = vpack.c.b16 %v6396, %v6392
    %v6501 = vpack.c.b16 %v6397, %v6393
    %v6502 = vpack.c.b16 %v6402, %v6398
    %v6503 = vpack.c.b16 %v6403, %v6399
    %v6504 = vpack.c.b16 %v6404, %v6400
    %v6505 = vpack.c.b16 %v6405, %v6401
    %v6506 = vpack.c.b16 %v6410, %v6406
    %v6507 = vpack.c.b16 %v6411, %v6407
    %v6508 = vpack.c.b16 %v6412, %v6408
    %v6509 = vpack.c.b16 %v6413, %v6409
    %v6510 = vpack.c.b16 %v6418, %v6414
    %v6511 = vpack.c.b16 %v6419, %v6415
    %v6512 = vpack.c.b16 %v6420, %v6416
    %v6513 = vpack.c.b16 %v6421, %v6417
    %v6514 = vpack.c.b16 %v6426, %v6422
    %v6515 = vpack.c.b16 %v6427, %v6423
    %v6516 = vpack.c.b16 %v6428, %v6424
    %v6517 = vpack.c.b16 %v6429, %v6425
    %v6518 = vpack.c.b16 %v6434, %v6430
    %v6519 = vpack.c.b16 %v6435, %v6431
    %v6520 = vpack.c.b16 %v6436, %v6432
    %v6521 = vpack.c.b16 %v6437, %v6433
    %v6522 = vpack.c.b16 %v6442, %v6438
    %v6523 = vpack.c.b16 %v6443, %v6439
    %v6524 = vpack.c.b16 %v6444, %v6440
    %v6525 = vpack.c.b16 %v6445, %v6441
    %v6526 = vpack.c.b16 %v6450, %v6446
    %v6527 = vpack.c.b16 %v6451, %v6447
    %v6528 = vpack.c.b16 %v6452, %v6448
    %v6529 = vpack.c.b16 %v6453, %v6449
    %v6530 = vpack.c.b16 %v6458, %v6454
    %v6531 = vpack.c.b16 %v6459, %v6455
    %v6532 = vpack.c.b16 %v6460, %v6456
    %v6533 = vpack.c.b16 %v6461, %v6457
    %v6534 = vpack.c.b16 %v6466, %v6462
    %v6535 = vpack.c.b16 %v6467, %v6463
    %v6536 = vpack.c.b16 %v6468, %v6464
    %v6537 = vpack.c.b16 %v6469, %v6465
    %v6538 = vpack.c.b16 %v6474, %v6470
    %v6539 = vpack.c.b16 %v6475, %v6471
    %v6540 = vpack.c.b16 %v6476, %v6472
    %v6541 = vpack.c.b16 %v6477, %v6473
    %6606 = vmatprep.subr.bf16.mxu0 0
    %6607 = vmatpush1.bf16.msra.mxu0 %v6261
    %6608 = vmatprep.subr.bf16.mxu0 0
    %6609 = vmatpush1.bf16.msra.mxu0 %v6260
    %6610 = vmatprep.subr.bf16.mxu0 0
    %6611 = vmatpush1.bf16.msra.mxu0 %v6259
    %6612 = vmatprep.subr.bf16.mxu0 0
    %6613 = vmatpush1.bf16.msra.mxu0 %v6258
    %6614 = vmatprep.subr.bf16.mxu0 0
    %6615 = vmatpush1.bf16.msra.mxu0 %v6257
    %6616 = vmatprep.subr.bf16.mxu0 0
    %6617 = vmatpush1.bf16.msra.mxu0 %v6256
    %6618 = vmatprep.subr.bf16.mxu0 0
    %6619 = vmatpush1.bf16.msra.mxu0 %v6255
    %6620 = vmatprep.subr.bf16.mxu0 0
    %6621 = vmatpush1.bf16.msra.mxu0 %v6254
    %6622 = vmatprep.subr.bf16.mxu0 0
    %6623 = vmatpush2.bf16.msra.mxu0 %v6269
    %6624 = vmatprep.subr.bf16.mxu0 0
    %6625 = vmatpush2.bf16.msra.mxu0 %v6268
    %6626 = vmatprep.subr.bf16.mxu0 0
    %6627 = vmatpush2.bf16.msra.mxu0 %v6267
    %6628 = vmatprep.subr.bf16.mxu0 0
    %6629 = vmatpush2.bf16.msra.mxu0 %v6266
    %6630 = vmatprep.subr.bf16.mxu0 0
    %6631 = vmatpush2.bf16.msra.mxu0 %v6265
    %6632 = vmatprep.subr.bf16.mxu0 0
    %6633 = vmatpush2.bf16.msra.mxu0 %v6264
    %6634 = vmatprep.subr.bf16.mxu0 0
    %6635 = vmatpush2.bf16.msra.mxu0 %v6263
    %6636 = vmatprep.subr.bf16.mxu0 0
    %6637 = vmatpush2.bf16.msra.mxu0 %v6262
    %6638 = vmatprep.mubr.bf16.mxu0 %v6479
    %6639 = vmatmul.mubr.bf16.gmra.mxu0 %v6478
    %v6640 = vpop.f32.mrf.mxu0
    %v6641 = vadd.f32 0.0, %v6640
    %v6642 = vpop.f32.mrf.mxu0
    %v6643 = vpop.f32.mrf.mxu0
    %v6644 = vadd.f32 0.0, %v6643
    %v6645 = vpop.f32.mrf.mxu0
    %6646 = vmatprep.mubr.bf16.mxu0 %v6483
    %6647 = vmatmul.mubr.bf16.gmra.mxu0 %v6482
    %v6648 = vpop.f32.mrf.mxu0
    %v6649 = vadd.f32 0.0, %v6648
    %v6650 = vpop.f32.mrf.mxu0
    %v6651 = vpop.f32.mrf.mxu0
    %v6652 = vadd.f32 0.0, %v6651
    %v6653 = vpop.f32.mrf.mxu0
    %6654 = vmatprep.mubr.bf16.mxu0 %v6487
    %6655 = vmatmul.mubr.bf16.gmra.mxu0 %v6486
    %v6656 = vpop.f32.mrf.mxu0
    %v6657 = vadd.f32 0.0, %v6656
    %v6658 = vpop.f32.mrf.mxu0
    %v6659 = vpop.f32.mrf.mxu0
    %v6660 = vadd.f32 0.0, %v6659
    %v6661 = vpop.f32.mrf.mxu0
    %6662 = vmatprep.mubr.bf16.mxu0 %v6491
    %6663 = vmatmul.mubr.bf16.gmra.mxu0 %v6490
    %v6664 = vpop.f32.mrf.mxu0
    %v6665 = vadd.f32 0.0, %v6664
    %v6666 = vpop.f32.mrf.mxu0
    %v6667 = vpop.f32.mrf.mxu0
    %v6668 = vadd.f32 0.0, %v6667
    %v6669 = vpop.f32.mrf.mxu0
    %6670 = vmatprep.mubr.bf16.mxu0 %v6495
    %6671 = vmatmul.mubr.bf16.gmra.mxu0 %v6494
    %v6672 = vpop.f32.mrf.mxu0
    %v6673 = vadd.f32 0.0, %v6672
    %v6674 = vpop.f32.mrf.mxu0
    %v6675 = vpop.f32.mrf.mxu0
    %v6676 = vadd.f32 0.0, %v6675
    %v6677 = vpop.f32.mrf.mxu0
    %6678 = vmatprep.mubr.bf16.mxu0 %v6499
    %6679 = vmatmul.mubr.bf16.gmra.mxu0 %v6498
    %v6680 = vpop.f32.mrf.mxu0
    %v6681 = vadd.f32 0.0, %v6680
    %v6682 = vpop.f32.mrf.mxu0
    %v6683 = vpop.f32.mrf.mxu0
    %v6684 = vadd.f32 0.0, %v6683
    %v6685 = vpop.f32.mrf.mxu0
    %6686 = vmatprep.mubr.bf16.mxu0 %v6503
    %6687 = vmatmul.mubr.bf16.gmra.mxu0 %v6502
    %v6688 = vpop.f32.mrf.mxu0
    %v6689 = vadd.f32 0.0, %v6688
    %v6690 = vpop.f32.mrf.mxu0
    %v6691 = vpop.f32.mrf.mxu0
    %v6692 = vadd.f32 0.0, %v6691
    %v6693 = vpop.f32.mrf.mxu0
    %6694 = vmatprep.mubr.bf16.mxu0 %v6507
    %6695 = vmatmul.mubr.bf16.gmra.mxu0 %v6506
    %v6696 = vpop.f32.mrf.mxu0
    %v6697 = vadd.f32 0.0, %v6696
    %v6698 = vpop.f32.mrf.mxu0
    %v6699 = vpop.f32.mrf.mxu0
    %v6700 = vadd.f32 0.0, %v6699
    %v6701 = vpop.f32.mrf.mxu0
    %6702 = vmatprep.mubr.bf16.mxu0 %v6511
    %6703 = vmatmul.mubr.bf16.gmra.mxu0 %v6510
    %v6704 = vpop.f32.mrf.mxu0
    %v6705 = vadd.f32 0.0, %v6704
    %v6706 = vpop.f32.mrf.mxu0
    %v6707 = vpop.f32.mrf.mxu0
    %v6708 = vadd.f32 0.0, %v6707
    %v6709 = vpop.f32.mrf.mxu0
    %6710 = vmatprep.mubr.bf16.mxu0 %v6515
    %6711 = vmatmul.mubr.bf16.gmra.mxu0 %v6514
    %v6712 = vpop.f32.mrf.mxu0
    %v6713 = vadd.f32 0.0, %v6712
    %v6714 = vpop.f32.mrf.mxu0
    %v6715 = vpop.f32.mrf.mxu0
    %v6716 = vadd.f32 0.0, %v6715
    %v6717 = vpop.f32.mrf.mxu0
    %6718 = vmatprep.mubr.bf16.mxu0 %v6519
    %6719 = vmatmul.mubr.bf16.gmra.mxu0 %v6518
    %v6720 = vpop.f32.mrf.mxu0
    %v6721 = vadd.f32 0.0, %v6720
    %v6722 = vpop.f32.mrf.mxu0
    %v6723 = vpop.f32.mrf.mxu0
    %v6724 = vadd.f32 0.0, %v6723
    %v6725 = vpop.f32.mrf.mxu0
    %6726 = vmatprep.mubr.bf16.mxu0 %v6523
    %6727 = vmatmul.mubr.bf16.gmra.mxu0 %v6522
    %v6728 = vpop.f32.mrf.mxu0
    %v6729 = vadd.f32 0.0, %v6728
    %v6730 = vpop.f32.mrf.mxu0
    %v6731 = vpop.f32.mrf.mxu0
    %v6732 = vadd.f32 0.0, %v6731
    %v6733 = vpop.f32.mrf.mxu0
    %6734 = vmatprep.mubr.bf16.mxu0 %v6527
    %6735 = vmatmul.mubr.bf16.gmra.mxu0 %v6526
    %v6736 = vpop.f32.mrf.mxu0
    %v6737 = vadd.f32 0.0, %v6736
    %v6738 = vpop.f32.mrf.mxu0
    %v6739 = vpop.f32.mrf.mxu0
    %v6740 = vadd.f32 0.0, %v6739
    %v6741 = vpop.f32.mrf.mxu0
    %6742 = vmatprep.mubr.bf16.mxu0 %v6531
    %6743 = vmatmul.mubr.bf16.gmra.mxu0 %v6530
    %v6744 = vpop.f32.mrf.mxu0
    %v6745 = vadd.f32 0.0, %v6744
    %v6746 = vpop.f32.mrf.mxu0
    %v6747 = vpop.f32.mrf.mxu0
    %v6748 = vadd.f32 0.0, %v6747
    %v6749 = vpop.f32.mrf.mxu0
    %6750 = vmatprep.mubr.bf16.mxu0 %v6535
    %6751 = vmatmul.mubr.bf16.gmra.mxu0 %v6534
    %v6752 = vpop.f32.mrf.mxu0
    %v6753 = vadd.f32 0.0, %v6752
    %v6754 = vpop.f32.mrf.mxu0
    %v6755 = vpop.f32.mrf.mxu0
    %v6756 = vadd.f32 0.0, %v6755
    %v6757 = vpop.f32.mrf.mxu0
    %6758 = vmatprep.mubr.bf16.mxu0 %v6539
    %6759 = vmatmul.mubr.bf16.gmra.mxu0 %v6538
    %v6760 = vpop.f32.mrf.mxu0
    %v6761 = vadd.f32 0.0, %v6760
    %v6762 = vpop.f32.mrf.mxu0
    %v6763 = vpop.f32.mrf.mxu0
    %v6764 = vadd.f32 0.0, %v6763
    %v6765 = vpop.f32.mrf.mxu0
    %6766 = vdwg.mxu0
    %6767 = vmatprep.subr.bf16.mxu0 0
    %6768 = vmatpush1.bf16.msra.mxu0 %v6277
    %6769 = vmatprep.subr.bf16.mxu0 0
    %6770 = vmatpush1.bf16.msra.mxu0 %v6276
    %6771 = vmatprep.subr.bf16.mxu0 0
    %6772 = vmatpush1.bf16.msra.mxu0 %v6275
    %6773 = vmatprep.subr.bf16.mxu0 0
    %6774 = vmatpush1.bf16.msra.mxu0 %v6274
    %6775 = vmatprep.subr.bf16.mxu0 0
    %6776 = vmatpush1.bf16.msra.mxu0 %v6273
    %6777 = vmatprep.subr.bf16.mxu0 0
    %6778 = vmatpush1.bf16.msra.mxu0 %v6272
    %6779 = vmatprep.subr.bf16.mxu0 0
    %6780 = vmatpush1.bf16.msra.mxu0 %v6271
    %6781 = vmatprep.subr.bf16.mxu0 0
    %6782 = vmatpush1.bf16.msra.mxu0 %v6270
    %6783 = vmatprep.subr.bf16.mxu0 0
    %6784 = vmatpush2.bf16.msra.mxu0 %v6285
    %6785 = vmatprep.subr.bf16.mxu0 0
    %6786 = vmatpush2.bf16.msra.mxu0 %v6284
    %6787 = vmatprep.subr.bf16.mxu0 0
    %6788 = vmatpush2.bf16.msra.mxu0 %v6283
    %6789 = vmatprep.subr.bf16.mxu0 0
    %6790 = vmatpush2.bf16.msra.mxu0 %v6282
    %6791 = vmatprep.subr.bf16.mxu0 0
    %6792 = vmatpush2.bf16.msra.mxu0 %v6281
    %6793 = vmatprep.subr.bf16.mxu0 0
    %6794 = vmatpush2.bf16.msra.mxu0 %v6280
    %6795 = vmatprep.subr.bf16.mxu0 0
    %6796 = vmatpush2.bf16.msra.mxu0 %v6279
    %6797 = vmatprep.subr.bf16.mxu0 0
    %6798 = vmatpush2.bf16.msra.mxu0 %v6278
    %6799 = vmatprep.mubr.bf16.mxu0 %v6481
    %6800 = vmatmul.mubr.bf16.gmra.mxu0 %v6480
    %v6801 = vpop.f32.mrf.mxu0
    %v6802 = vadd.f32 %v6641, %v6801
    %v6803 = vpop.f32.mrf.mxu0
    %v6804 = vpop.f32.mrf.mxu0
    %v6805 = vadd.f32 %v6644, %v6804
    %v6806 = vpop.f32.mrf.mxu0
    %6807 = vmatprep.mubr.bf16.mxu0 %v6485
    %6808 = vmatmul.mubr.bf16.gmra.mxu0 %v6484
    %v6809 = vpop.f32.mrf.mxu0
    %v6810 = vadd.f32 %v6649, %v6809
    %v6811 = vpop.f32.mrf.mxu0
    %v6812 = vpop.f32.mrf.mxu0
    %v6813 = vadd.f32 %v6652, %v6812
    %v6814 = vpop.f32.mrf.mxu0
    %6815 = vmatprep.mubr.bf16.mxu0 %v6489
    %6816 = vmatmul.mubr.bf16.gmra.mxu0 %v6488
    %v6817 = vpop.f32.mrf.mxu0
    %v6818 = vadd.f32 %v6657, %v6817
    %v6819 = vpop.f32.mrf.mxu0
    %v6820 = vpop.f32.mrf.mxu0
    %v6821 = vadd.f32 %v6660, %v6820
    %v6822 = vpop.f32.mrf.mxu0
    %6823 = vmatprep.mubr.bf16.mxu0 %v6493
    %6824 = vmatmul.mubr.bf16.gmra.mxu0 %v6492
    %v6825 = vpop.f32.mrf.mxu0
    %v6826 = vadd.f32 %v6665, %v6825
    %v6827 = vpop.f32.mrf.mxu0
    %v6828 = vpop.f32.mrf.mxu0
    %v6829 = vadd.f32 %v6668, %v6828
    %v6830 = vpop.f32.mrf.mxu0
    %6831 = vmatprep.mubr.bf16.mxu0 %v6497
    %6832 = vmatmul.mubr.bf16.gmra.mxu0 %v6496
    %v6833 = vpop.f32.mrf.mxu0
    %v6834 = vadd.f32 %v6673, %v6833
    %v6835 = vpop.f32.mrf.mxu0
    %v6836 = vpop.f32.mrf.mxu0
    %v6837 = vadd.f32 %v6676, %v6836
    %v6838 = vpop.f32.mrf.mxu0
    %6839 = vmatprep.mubr.bf16.mxu0 %v6501
    %6840 = vmatmul.mubr.bf16.gmra.mxu0 %v6500
    %v6841 = vpop.f32.mrf.mxu0
    %v6842 = vadd.f32 %v6681, %v6841
    %v6843 = vpop.f32.mrf.mxu0
    %v6844 = vpop.f32.mrf.mxu0
    %v6845 = vadd.f32 %v6684, %v6844
    %v6846 = vpop.f32.mrf.mxu0
    %6847 = vmatprep.mubr.bf16.mxu0 %v6505
    %6848 = vmatmul.mubr.bf16.gmra.mxu0 %v6504
    %v6849 = vpop.f32.mrf.mxu0
    %v6850 = vadd.f32 %v6689, %v6849
    %v6851 = vpop.f32.mrf.mxu0
    %v6852 = vpop.f32.mrf.mxu0
    %v6853 = vadd.f32 %v6692, %v6852
    %v6854 = vpop.f32.mrf.mxu0
    %6855 = vmatprep.mubr.bf16.mxu0 %v6509
    %6856 = vmatmul.mubr.bf16.gmra.mxu0 %v6508
    %v6857 = vpop.f32.mrf.mxu0
    %v6858 = vadd.f32 %v6697, %v6857
    %v6859 = vpop.f32.mrf.mxu0
    %v6860 = vpop.f32.mrf.mxu0
    %v6861 = vadd.f32 %v6700, %v6860
    %v6862 = vpop.f32.mrf.mxu0
    %6863 = vmatprep.mubr.bf16.mxu0 %v6513
    %6864 = vmatmul.mubr.bf16.gmra.mxu0 %v6512
    %v6865 = vpop.f32.mrf.mxu0
    %v6866 = vadd.f32 %v6705, %v6865
    %v6867 = vpop.f32.mrf.mxu0
    %v6868 = vpop.f32.mrf.mxu0
    %v6869 = vadd.f32 %v6708, %v6868
    %v6870 = vpop.f32.mrf.mxu0
    %6871 = vmatprep.mubr.bf16.mxu0 %v6517
    %6872 = vmatmul.mubr.bf16.gmra.mxu0 %v6516
    %v6873 = vpop.f32.mrf.mxu0
    %v6874 = vadd.f32 %v6713, %v6873
    %v6875 = vpop.f32.mrf.mxu0
    %v6876 = vpop.f32.mrf.mxu0
    %v6877 = vadd.f32 %v6716, %v6876
    %v6878 = vpop.f32.mrf.mxu0
    %6879 = vmatprep.mubr.bf16.mxu0 %v6521
    %6880 = vmatmul.mubr.bf16.gmra.mxu0 %v6520
    %v6881 = vpop.f32.mrf.mxu0
    %v6882 = vadd.f32 %v6721, %v6881
    %v6883 = vpop.f32.mrf.mxu0
    %v6884 = vpop.f32.mrf.mxu0
    %v6885 = vadd.f32 %v6724, %v6884
    %v6886 = vpop.f32.mrf.mxu0
    %6887 = vmatprep.mubr.bf16.mxu0 %v6525
    %6888 = vmatmul.mubr.bf16.gmra.mxu0 %v6524
    %v6889 = vpop.f32.mrf.mxu0
    %v6890 = vadd.f32 %v6729, %v6889
    %v6891 = vpop.f32.mrf.mxu0
    %v6892 = vpop.f32.mrf.mxu0
    %v6893 = vadd.f32 %v6732, %v6892
    %v6894 = vpop.f32.mrf.mxu0
    %6895 = vmatprep.mubr.bf16.mxu0 %v6529
    %6896 = vmatmul.mubr.bf16.gmra.mxu0 %v6528
    %v6897 = vpop.f32.mrf.mxu0
    %v6898 = vadd.f32 %v6737, %v6897
    %v6899 = vpop.f32.mrf.mxu0
    %v6900 = vpop.f32.mrf.mxu0
    %v6901 = vadd.f32 %v6740, %v6900
    %v6902 = vpop.f32.mrf.mxu0
    %6903 = vmatprep.mubr.bf16.mxu0 %v6533
    %6904 = vmatmul.mubr.bf16.gmra.mxu0 %v6532
    %v6905 = vpop.f32.mrf.mxu0
    %v6906 = vadd.f32 %v6745, %v6905
    %v6907 = vpop.f32.mrf.mxu0
    %v6908 = vpop.f32.mrf.mxu0
    %v6909 = vadd.f32 %v6748, %v6908
    %v6910 = vpop.f32.mrf.mxu0
    %6911 = vmatprep.mubr.bf16.mxu0 %v6537
    %6912 = vmatmul.mubr.bf16.gmra.mxu0 %v6536
    %v6913 = vpop.f32.mrf.mxu0
    %v6914 = vadd.f32 %v6753, %v6913
    %v6915 = vpop.f32.mrf.mxu0
    %v6916 = vpop.f32.mrf.mxu0
    %v6917 = vadd.f32 %v6756, %v6916
    %v6918 = vpop.f32.mrf.mxu0
    %6919 = vmatprep.mubr.bf16.mxu0 %v6541
    %6920 = vmatmul.mubr.bf16.gmra.mxu0 %v6540
    %v6921 = vpop.f32.mrf.mxu0
    %v6922 = vadd.f32 %v6761, %v6921
    %v6923 = vpop.f32.mrf.mxu0
    %v6924 = vpop.f32.mrf.mxu0
    %v6925 = vadd.f32 %v6764, %v6924
    %v6926 = vpop.f32.mrf.mxu0
    %6927 = vdwg.mxu0
    %v6928 = vadd.f32 %v5757, %v6802
    %v6929 = vadd.f32 %v5760, %v6805
    %v6930 = vadd.f32 %v5765, %v6810
    %v6931 = vadd.f32 %v5768, %v6813
    %v6932 = vadd.f32 %v5773, %v6818
    %v6933 = vadd.f32 %v5776, %v6821
    %v6934 = vadd.f32 %v5781, %v6826
    %v6935 = vadd.f32 %v5784, %v6829
    %v6936 = vadd.f32 %v5789, %v6834
    %v6937 = vadd.f32 %v5792, %v6837
    %v6938 = vadd.f32 %v5797, %v6842
    %v6939 = vadd.f32 %v5800, %v6845
    %v6940 = vadd.f32 %v5805, %v6850
    %v6941 = vadd.f32 %v5808, %v6853
    %v6942 = vadd.f32 %v5813, %v6858
    %v6943 = vadd.f32 %v5816, %v6861
    %v6944 = vadd.f32 %v5821, %v6866
    %v6945 = vadd.f32 %v5824, %v6869
    %v6946 = vadd.f32 %v5829, %v6874
    %v6947 = vadd.f32 %v5832, %v6877
    %v6948 = vadd.f32 %v5837, %v6882
    %v6949 = vadd.f32 %v5840, %v6885
    %v6950 = vadd.f32 %v5845, %v6890
    %v6951 = vadd.f32 %v5848, %v6893
    %v6952 = vadd.f32 %v5853, %v6898
    %v6953 = vadd.f32 %v5856, %v6901
    %v6954 = vadd.f32 %v5861, %v6906
    %v6955 = vadd.f32 %v5864, %v6909
    %v6956 = vadd.f32 %v5869, %v6914
    %v6957 = vadd.f32 %v5872, %v6917
    %v6958 = vadd.f32 %v5877, %v6922
    %v6959 = vadd.f32 %v5880, %v6925
    %s6960 = scalar_lea.vmem %s4, 48
    %v6961 = vld [vmem:[%s6960] sm:$0xf]
    %v6962 = vld [vmem:[%s6960 + $0x4] sm:$0xf]
    %v6963 = vld [vmem:[%s6960 + $0x8] sm:$0xf]
    %v6964 = vld [vmem:[%s6960 + $0xc] sm:$0xf]
    %v6969 = vunpack.c.l.b16 %v6961
    %v6970 = vunpack.c.l.b16 %v6962
    %v6971 = vunpack.c.l.b16 %v6963
    %v6972 = vunpack.c.l.b16 %v6964
    %v6973 = vpack.c.b16 %v6970, %v6969
    %v6974 = vpack.c.b16 %v6972, %v6971
    %6977 = vmatprep.subr.bf16.mxu0 0
    %6978 = vmatpush1.bf16.msra.mxu0 0
    %6979 = vmatprep.subr.bf16.mxu0 0
    %6980 = vmatpush1.bf16.msra.mxu0 0
    %6981 = vmatprep.subr.bf16.mxu0 0
    %6982 = vmatpush1.bf16.msra.mxu0 0
    %6983 = vmatprep.subr.bf16.mxu0 0
    %6984 = vmatpush1.bf16.msra.mxu0 0
    %6985 = vmatprep.subr.bf16.mxu0 0
    %6986 = vmatpush1.bf16.msra.mxu0 0
    %6987 = vmatprep.subr.bf16.mxu0 0
    %6988 = vmatpush1.bf16.msra.mxu0 0
    %6989 = vmatprep.subr.bf16.mxu0 0
    %6990 = vmatpush1.bf16.msra.mxu0 %v6974
    %6991 = vmatprep.subr.bf16.mxu0 0
    %6992 = vmatpush1.bf16.msra.mxu0 %v6973
    %6993 = vmatprep.subr.bf16.mxu0 0
    %6994 = vmatpush2.bf16.msra.mxu0 0
    %6995 = vmatprep.subr.bf16.mxu0 0
    %6996 = vmatpush2.bf16.msra.mxu0 0
    %6997 = vmatprep.subr.bf16.mxu0 0
    %6998 = vmatpush2.bf16.msra.mxu0 0
    %6999 = vmatprep.subr.bf16.mxu0 0
    %7000 = vmatpush2.bf16.msra.mxu0 0
    %7001 = vmatprep.subr.bf16.mxu0 0
    %7002 = vmatpush2.bf16.msra.mxu0 0
    %7003 = vmatprep.subr.bf16.mxu0 0
    %7004 = vmatpush2.bf16.msra.mxu0 0
    %7005 = vmatprep.subr.bf16.mxu0 0
    %7006 = vmatpush2.bf16.msra.mxu0 0
    %7007 = vmatprep.subr.bf16.mxu0 0
    %7008 = vmatpush2.bf16.msra.mxu0 0
    %7009 = vmatprep.mubr.bf16.mxu0 0
    %7010 = vmatmul.mubr.bf16.gmra.mxu0 %v3716
    %v7011 = vpop.f32.mrf.mxu0
    %v7012 = vadd.f32 0.0, %v7011
    %v7013 = vpop.f32.mrf.mxu0
    %v7014 = vpop.f32.mrf.mxu0
    %v7015 = vadd.f32 0.0, %v7014
    %v7016 = vpop.f32.mrf.mxu0
    %7017 = vmatprep.mubr.bf16.mxu0 0
    %7018 = vmatmul.mubr.bf16.gmra.mxu0 %v3719
    %v7019 = vpop.f32.mrf.mxu0
    %v7020 = vadd.f32 0.0, %v7019
    %v7021 = vpop.f32.mrf.mxu0
    %v7022 = vpop.f32.mrf.mxu0
    %v7023 = vadd.f32 0.0, %v7022
    %v7024 = vpop.f32.mrf.mxu0
    %7025 = vmatprep.mubr.bf16.mxu0 0
    %7026 = vmatmul.mubr.bf16.gmra.mxu0 %v3722
    %v7027 = vpop.f32.mrf.mxu0
    %v7028 = vadd.f32 0.0, %v7027
    %v7029 = vpop.f32.mrf.mxu0
    %v7030 = vpop.f32.mrf.mxu0
    %v7031 = vadd.f32 0.0, %v7030
    %v7032 = vpop.f32.mrf.mxu0
    %7033 = vmatprep.mubr.bf16.mxu0 0
    %7034 = vmatmul.mubr.bf16.gmra.mxu0 %v3725
    %v7035 = vpop.f32.mrf.mxu0
    %v7036 = vadd.f32 0.0, %v7035
    %v7037 = vpop.f32.mrf.mxu0
    %v7038 = vpop.f32.mrf.mxu0
    %v7039 = vadd.f32 0.0, %v7038
    %v7040 = vpop.f32.mrf.mxu0
    %7041 = vmatprep.mubr.bf16.mxu0 0
    %7042 = vmatmul.mubr.bf16.gmra.mxu0 %v3728
    %v7043 = vpop.f32.mrf.mxu0
    %v7044 = vadd.f32 0.0, %v7043
    %v7045 = vpop.f32.mrf.mxu0
    %v7046 = vpop.f32.mrf.mxu0
    %v7047 = vadd.f32 0.0, %v7046
    %v7048 = vpop.f32.mrf.mxu0
    %7049 = vmatprep.mubr.bf16.mxu0 0
    %7050 = vmatmul.mubr.bf16.gmra.mxu0 %v3731
    %v7051 = vpop.f32.mrf.mxu0
    %v7052 = vadd.f32 0.0, %v7051
    %v7053 = vpop.f32.mrf.mxu0
    %v7054 = vpop.f32.mrf.mxu0
    %v7055 = vadd.f32 0.0, %v7054
    %v7056 = vpop.f32.mrf.mxu0
    %7057 = vmatprep.mubr.bf16.mxu0 0
    %7058 = vmatmul.mubr.bf16.gmra.mxu0 %v3734
    %v7059 = vpop.f32.mrf.mxu0
    %v7060 = vadd.f32 0.0, %v7059
    %v7061 = vpop.f32.mrf.mxu0
    %v7062 = vpop.f32.mrf.mxu0
    %v7063 = vadd.f32 0.0, %v7062
    %v7064 = vpop.f32.mrf.mxu0
    %7065 = vmatprep.mubr.bf16.mxu0 0
    %7066 = vmatmul.mubr.bf16.gmra.mxu0 %v3737
    %v7067 = vpop.f32.mrf.mxu0
    %v7068 = vadd.f32 0.0, %v7067
    %v7069 = vpop.f32.mrf.mxu0
    %v7070 = vpop.f32.mrf.mxu0
    %v7071 = vadd.f32 0.0, %v7070
    %v7072 = vpop.f32.mrf.mxu0
    %7073 = vmatprep.mubr.bf16.mxu0 0
    %7074 = vmatmul.mubr.bf16.gmra.mxu0 %v3740
    %v7075 = vpop.f32.mrf.mxu0
    %v7076 = vadd.f32 0.0, %v7075
    %v7077 = vpop.f32.mrf.mxu0
    %v7078 = vpop.f32.mrf.mxu0
    %v7079 = vadd.f32 0.0, %v7078
    %v7080 = vpop.f32.mrf.mxu0
    %7081 = vmatprep.mubr.bf16.mxu0 0
    %7082 = vmatmul.mubr.bf16.gmra.mxu0 %v3743
    %v7083 = vpop.f32.mrf.mxu0
    %v7084 = vadd.f32 0.0, %v7083
    %v7085 = vpop.f32.mrf.mxu0
    %v7086 = vpop.f32.mrf.mxu0
    %v7087 = vadd.f32 0.0, %v7086
    %v7088 = vpop.f32.mrf.mxu0
    %7089 = vmatprep.mubr.bf16.mxu0 0
    %7090 = vmatmul.mubr.bf16.gmra.mxu0 %v3746
    %v7091 = vpop.f32.mrf.mxu0
    %v7092 = vadd.f32 0.0, %v7091
    %v7093 = vpop.f32.mrf.mxu0
    %v7094 = vpop.f32.mrf.mxu0
    %v7095 = vadd.f32 0.0, %v7094
    %v7096 = vpop.f32.mrf.mxu0
    %7097 = vmatprep.mubr.bf16.mxu0 0
    %7098 = vmatmul.mubr.bf16.gmra.mxu0 %v3749
    %v7099 = vpop.f32.mrf.mxu0
    %v7100 = vadd.f32 0.0, %v7099
    %v7101 = vpop.f32.mrf.mxu0
    %v7102 = vpop.f32.mrf.mxu0
    %v7103 = vadd.f32 0.0, %v7102
    %v7104 = vpop.f32.mrf.mxu0
    %7105 = vmatprep.mubr.bf16.mxu0 0
    %7106 = vmatmul.mubr.bf16.gmra.mxu0 %v3752
    %v7107 = vpop.f32.mrf.mxu0
    %v7108 = vadd.f32 0.0, %v7107
    %v7109 = vpop.f32.mrf.mxu0
    %v7110 = vpop.f32.mrf.mxu0
    %v7111 = vadd.f32 0.0, %v7110
    %v7112 = vpop.f32.mrf.mxu0
    %7113 = vmatprep.mubr.bf16.mxu0 0
    %7114 = vmatmul.mubr.bf16.gmra.mxu0 %v3755
    %v7115 = vpop.f32.mrf.mxu0
    %v7116 = vadd.f32 0.0, %v7115
    %v7117 = vpop.f32.mrf.mxu0
    %v7118 = vpop.f32.mrf.mxu0
    %v7119 = vadd.f32 0.0, %v7118
    %v7120 = vpop.f32.mrf.mxu0
    %7121 = vmatprep.mubr.bf16.mxu0 0
    %7122 = vmatmul.mubr.bf16.gmra.mxu0 %v3758
    %v7123 = vpop.f32.mrf.mxu0
    %v7124 = vadd.f32 0.0, %v7123
    %v7125 = vpop.f32.mrf.mxu0
    %v7126 = vpop.f32.mrf.mxu0
    %v7127 = vadd.f32 0.0, %v7126
    %v7128 = vpop.f32.mrf.mxu0
    %7129 = vmatprep.mubr.bf16.mxu0 0
    %7130 = vmatmul.mubr.bf16.gmra.mxu0 %v3761
    %v7131 = vpop.f32.mrf.mxu0
    %v7132 = vadd.f32 0.0, %v7131
    %v7133 = vpop.f32.mrf.mxu0
    %v7134 = vpop.f32.mrf.mxu0
    %v7135 = vadd.f32 0.0, %v7134
    %v7136 = vpop.f32.mrf.mxu0
    %7137 = vmatprep.mubr.bf16.mxu0 0
    %7138 = vmatmul.mubr.bf16.gmra.mxu0 %v3764
    %v7139 = vpop.f32.mrf.mxu0
    %v7140 = vadd.f32 0.0, %v7139
    %v7141 = vpop.f32.mrf.mxu0
    %v7142 = vpop.f32.mrf.mxu0
    %v7143 = vadd.f32 0.0, %v7142
    %v7144 = vpop.f32.mrf.mxu0
    %7145 = vmatprep.mubr.bf16.mxu0 0
    %7146 = vmatmul.mubr.bf16.gmra.mxu0 %v3767
    %v7147 = vpop.f32.mrf.mxu0
    %v7148 = vadd.f32 0.0, %v7147
    %v7149 = vpop.f32.mrf.mxu0
    %v7150 = vpop.f32.mrf.mxu0
    %v7151 = vadd.f32 0.0, %v7150
    %v7152 = vpop.f32.mrf.mxu0
    %7153 = vmatprep.mubr.bf16.mxu0 0
    %7154 = vmatmul.mubr.bf16.gmra.mxu0 %v3770
    %v7155 = vpop.f32.mrf.mxu0
    %v7156 = vadd.f32 0.0, %v7155
    %v7157 = vpop.f32.mrf.mxu0
    %v7158 = vpop.f32.mrf.mxu0
    %v7159 = vadd.f32 0.0, %v7158
    %v7160 = vpop.f32.mrf.mxu0
    %7161 = vmatprep.mubr.bf16.mxu0 0
    %7162 = vmatmul.mubr.bf16.gmra.mxu0 %v3773
    %v7163 = vpop.f32.mrf.mxu0
    %v7164 = vadd.f32 0.0, %v7163
    %v7165 = vpop.f32.mrf.mxu0
    %v7166 = vpop.f32.mrf.mxu0
    %v7167 = vadd.f32 0.0, %v7166
    %v7168 = vpop.f32.mrf.mxu0
    %7169 = vmatprep.mubr.bf16.mxu0 0
    %7170 = vmatmul.mubr.bf16.gmra.mxu0 %v3776
    %v7171 = vpop.f32.mrf.mxu0
    %v7172 = vadd.f32 0.0, %v7171
    %v7173 = vpop.f32.mrf.mxu0
    %v7174 = vpop.f32.mrf.mxu0
    %v7175 = vadd.f32 0.0, %v7174
    %v7176 = vpop.f32.mrf.mxu0
    %7177 = vmatprep.mubr.bf16.mxu0 0
    %7178 = vmatmul.mubr.bf16.gmra.mxu0 %v3779
    %v7179 = vpop.f32.mrf.mxu0
    %v7180 = vadd.f32 0.0, %v7179
    %v7181 = vpop.f32.mrf.mxu0
    %v7182 = vpop.f32.mrf.mxu0
    %v7183 = vadd.f32 0.0, %v7182
    %v7184 = vpop.f32.mrf.mxu0
    %7185 = vmatprep.mubr.bf16.mxu0 0
    %7186 = vmatmul.mubr.bf16.gmra.mxu0 %v3782
    %v7187 = vpop.f32.mrf.mxu0
    %v7188 = vadd.f32 0.0, %v7187
    %v7189 = vpop.f32.mrf.mxu0
    %v7190 = vpop.f32.mrf.mxu0
    %v7191 = vadd.f32 0.0, %v7190
    %v7192 = vpop.f32.mrf.mxu0
    %7193 = vmatprep.mubr.bf16.mxu0 0
    %7194 = vmatmul.mubr.bf16.gmra.mxu0 %v3785
    %v7195 = vpop.f32.mrf.mxu0
    %v7196 = vadd.f32 0.0, %v7195
    %v7197 = vpop.f32.mrf.mxu0
    %v7198 = vpop.f32.mrf.mxu0
    %v7199 = vadd.f32 0.0, %v7198
    %v7200 = vpop.f32.mrf.mxu0
    %7201 = vmatprep.mubr.bf16.mxu0 0
    %7202 = vmatmul.mubr.bf16.gmra.mxu0 %v3788
    %v7203 = vpop.f32.mrf.mxu0
    %v7204 = vadd.f32 0.0, %v7203
    %v7205 = vpop.f32.mrf.mxu0
    %v7206 = vpop.f32.mrf.mxu0
    %v7207 = vadd.f32 0.0, %v7206
    %v7208 = vpop.f32.mrf.mxu0
    %7209 = vmatprep.mubr.bf16.mxu0 0
    %7210 = vmatmul.mubr.bf16.gmra.mxu0 %v3791
    %v7211 = vpop.f32.mrf.mxu0
    %v7212 = vadd.f32 0.0, %v7211
    %v7213 = vpop.f32.mrf.mxu0
    %v7214 = vpop.f32.mrf.mxu0
    %v7215 = vadd.f32 0.0, %v7214
    %v7216 = vpop.f32.mrf.mxu0
    %7217 = vmatprep.mubr.bf16.mxu0 0
    %7218 = vmatmul.mubr.bf16.gmra.mxu0 %v3794
    %v7219 = vpop.f32.mrf.mxu0
    %v7220 = vadd.f32 0.0, %v7219
    %v7221 = vpop.f32.mrf.mxu0
    %v7222 = vpop.f32.mrf.mxu0
    %v7223 = vadd.f32 0.0, %v7222
    %v7224 = vpop.f32.mrf.mxu0
    %7225 = vmatprep.mubr.bf16.mxu0 0
    %7226 = vmatmul.mubr.bf16.gmra.mxu0 %v3797
    %v7227 = vpop.f32.mrf.mxu0
    %v7228 = vadd.f32 0.0, %v7227
    %v7229 = vpop.f32.mrf.mxu0
    %v7230 = vpop.f32.mrf.mxu0
    %v7231 = vadd.f32 0.0, %v7230
    %v7232 = vpop.f32.mrf.mxu0
    %7233 = vmatprep.mubr.bf16.mxu0 0
    %7234 = vmatmul.mubr.bf16.gmra.mxu0 %v3800
    %v7235 = vpop.f32.mrf.mxu0
    %v7236 = vadd.f32 0.0, %v7235
    %v7237 = vpop.f32.mrf.mxu0
    %v7238 = vpop.f32.mrf.mxu0
    %v7239 = vadd.f32 0.0, %v7238
    %v7240 = vpop.f32.mrf.mxu0
    %7241 = vmatprep.mubr.bf16.mxu0 0
    %7242 = vmatmul.mubr.bf16.gmra.mxu0 %v3803
    %v7243 = vpop.f32.mrf.mxu0
    %v7244 = vadd.f32 0.0, %v7243
    %v7245 = vpop.f32.mrf.mxu0
    %v7246 = vpop.f32.mrf.mxu0
    %v7247 = vadd.f32 0.0, %v7246
    %v7248 = vpop.f32.mrf.mxu0
    %7249 = vmatprep.mubr.bf16.mxu0 0
    %7250 = vmatmul.mubr.bf16.gmra.mxu0 %v3806
    %v7251 = vpop.f32.mrf.mxu0
    %v7252 = vadd.f32 0.0, %v7251
    %v7253 = vpop.f32.mrf.mxu0
    %v7254 = vpop.f32.mrf.mxu0
    %v7255 = vadd.f32 0.0, %v7254
    %v7256 = vpop.f32.mrf.mxu0
    %7257 = vmatprep.mubr.bf16.mxu0 0
    %7258 = vmatmul.mubr.bf16.gmra.mxu0 %v3809
    %v7259 = vpop.f32.mrf.mxu0
    %v7260 = vadd.f32 0.0, %v7259
    %v7261 = vpop.f32.mrf.mxu0
    %v7262 = vpop.f32.mrf.mxu0
    %v7263 = vadd.f32 0.0, %v7262
    %v7264 = vpop.f32.mrf.mxu0
    %7265 = vdwg.mxu0
    %s7266 = scalar_lea.vmem [#allocation2], 1536
    %v7267 = vld [vmem:[%s7266] sm:$0xff]
    %v7268 = vld [vmem:[%s7266 + $0x8] sm:$0xff]
    %v7269 = vld [vmem:[%s7266 + $0x10] sm:$0xff]
    %v7270 = vld [vmem:[%s7266 + $0x18] sm:$0xff]
    %v7271 = vld [vmem:[%s7266 + $0x20] sm:$0xff]
    %v7272 = vld [vmem:[%s7266 + $0x28] sm:$0xff]
    %v7273 = vld [vmem:[%s7266 + $0x30] sm:$0xff]
    %v7274 = vld [vmem:[%s7266 + $0x38] sm:$0xff]
    %v7275 = vld [vmem:[%s7266 + $0x40] sm:$0xff]
    %v7276 = vld [vmem:[%s7266 + $0x48] sm:$0xff]
    %v7277 = vld [vmem:[%s7266 + $0x50] sm:$0xff]
    %v7278 = vld [vmem:[%s7266 + $0x58] sm:$0xff]
    %v7279 = vld [vmem:[%s7266 + $0x60] sm:$0xff]
    %v7280 = vld [vmem:[%s7266 + $0x68] sm:$0xff]
    %v7281 = vld [vmem:[%s7266 + $0x70] sm:$0xff]
    %v7282 = vld [vmem:[%s7266 + $0x78] sm:$0xff]
    %v7283 = vld [vmem:[%s7266 + $0x80] sm:$0xff]
    %v7284 = vld [vmem:[%s7266 + $0x88] sm:$0xff]
    %v7285 = vld [vmem:[%s7266 + $0x90] sm:$0xff]
    %v7286 = vld [vmem:[%s7266 + $0x98] sm:$0xff]
    %v7287 = vld [vmem:[%s7266 + $0xa0] sm:$0xff]
    %v7288 = vld [vmem:[%s7266 + $0xa8] sm:$0xff]
    %v7289 = vld [vmem:[%s7266 + $0xb0] sm:$0xff]
    %v7290 = vld [vmem:[%s7266 + $0xb8] sm:$0xff]
    %v7291 = vld [vmem:[%s7266 + $0xc0] sm:$0xff]
    %v7292 = vld [vmem:[%s7266 + $0xc8] sm:$0xff]
    %v7293 = vld [vmem:[%s7266 + $0xd0] sm:$0xff]
    %v7294 = vld [vmem:[%s7266 + $0xd8] sm:$0xff]
    %v7295 = vld [vmem:[%s7266 + $0xe0] sm:$0xff]
    %v7296 = vld [vmem:[%s7266 + $0xe8] sm:$0xff]
    %v7297 = vld [vmem:[%s7266 + $0xf0] sm:$0xff]
    %v7298 = vld [vmem:[%s7266 + $0xf8] sm:$0xff]
    %v7299 = vld [vmem:[%s7266 + $0x100] sm:$0xff]
    %v7300 = vld [vmem:[%s7266 + $0x108] sm:$0xff]
    %v7301 = vld [vmem:[%s7266 + $0x110] sm:$0xff]
    %v7302 = vld [vmem:[%s7266 + $0x118] sm:$0xff]
    %v7303 = vld [vmem:[%s7266 + $0x120] sm:$0xff]
    %v7304 = vld [vmem:[%s7266 + $0x128] sm:$0xff]
    %v7305 = vld [vmem:[%s7266 + $0x130] sm:$0xff]
    %v7306 = vld [vmem:[%s7266 + $0x138] sm:$0xff]
    %v7307 = vld [vmem:[%s7266 + $0x140] sm:$0xff]
    %v7308 = vld [vmem:[%s7266 + $0x148] sm:$0xff]
    %v7309 = vld [vmem:[%s7266 + $0x150] sm:$0xff]
    %v7310 = vld [vmem:[%s7266 + $0x158] sm:$0xff]
    %v7311 = vld [vmem:[%s7266 + $0x160] sm:$0xff]
    %v7312 = vld [vmem:[%s7266 + $0x168] sm:$0xff]
    %v7313 = vld [vmem:[%s7266 + $0x170] sm:$0xff]
    %v7314 = vld [vmem:[%s7266 + $0x178] sm:$0xff]
    %v7315 = vld [vmem:[%s7266 + $0x180] sm:$0xff]
    %v7316 = vld [vmem:[%s7266 + $0x188] sm:$0xff]
    %v7317 = vld [vmem:[%s7266 + $0x190] sm:$0xff]
    %v7318 = vld [vmem:[%s7266 + $0x198] sm:$0xff]
    %v7319 = vld [vmem:[%s7266 + $0x1a0] sm:$0xff]
    %v7320 = vld [vmem:[%s7266 + $0x1a8] sm:$0xff]
    %v7321 = vld [vmem:[%s7266 + $0x1b0] sm:$0xff]
    %v7322 = vld [vmem:[%s7266 + $0x1b8] sm:$0xff]
    %v7323 = vld [vmem:[%s7266 + $0x1c0] sm:$0xff]
    %v7324 = vld [vmem:[%s7266 + $0x1c8] sm:$0xff]
    %v7325 = vld [vmem:[%s7266 + $0x1d0] sm:$0xff]
    %v7326 = vld [vmem:[%s7266 + $0x1d8] sm:$0xff]
    %v7327 = vld [vmem:[%s7266 + $0x1e0] sm:$0xff]
    %v7328 = vld [vmem:[%s7266 + $0x1e8] sm:$0xff]
    %v7329 = vld [vmem:[%s7266 + $0x1f0] sm:$0xff]
    %v7330 = vld [vmem:[%s7266 + $0x1f8] sm:$0xff]
    %v7331 = vpack.c.bf16 %v7015, %v7012
    %v7332 = vpack.c.bf16 %v7023, %v7020
    %v7333 = vpack.c.bf16 %v7031, %v7028
    %v7334 = vpack.c.bf16 %v7039, %v7036
    %v7335 = vpack.c.bf16 %v7047, %v7044
    %v7336 = vpack.c.bf16 %v7055, %v7052
    %v7337 = vpack.c.bf16 %v7063, %v7060
    %v7338 = vpack.c.bf16 %v7071, %v7068
    %v7339 = vpack.c.bf16 %v7079, %v7076
    %v7340 = vpack.c.bf16 %v7087, %v7084
    %v7341 = vpack.c.bf16 %v7095, %v7092
    %v7342 = vpack.c.bf16 %v7103, %v7100
    %v7343 = vpack.c.bf16 %v7111, %v7108
    %v7344 = vpack.c.bf16 %v7119, %v7116
    %v7345 = vpack.c.bf16 %v7127, %v7124
    %v7346 = vpack.c.bf16 %v7135, %v7132
    %v7347 = vpack.c.bf16 %v7143, %v7140
    %v7348 = vpack.c.bf16 %v7151, %v7148
    %v7349 = vpack.c.bf16 %v7159, %v7156
    %v7350 = vpack.c.bf16 %v7167, %v7164
    %v7351 = vpack.c.bf16 %v7175, %v7172
    %v7352 = vpack.c.bf16 %v7183, %v7180
    %v7353 = vpack.c.bf16 %v7191, %v7188
    %v7354 = vpack.c.bf16 %v7199, %v7196
    %v7355 = vpack.c.bf16 %v7207, %v7204
    %v7356 = vpack.c.bf16 %v7215, %v7212
    %v7357 = vpack.c.bf16 %v7223, %v7220
    %v7358 = vpack.c.bf16 %v7231, %v7228
    %v7359 = vpack.c.bf16 %v7239, %v7236
    %v7360 = vpack.c.bf16 %v7247, %v7244
    %v7361 = vpack.c.bf16 %v7255, %v7252
    %v7362 = vpack.c.bf16 %v7263, %v7260
    %v7427 = vunpack.c.l.b16 %v7267
    %v7428 = vunpack.c.h.b16 %v7267
    %v7429 = vunpack.c.l.b16 %v7268
    %v7430 = vunpack.c.h.b16 %v7268
    %v7431 = vunpack.c.l.b16 %v7269
    %v7432 = vunpack.c.h.b16 %v7269
    %v7433 = vunpack.c.l.b16 %v7270
    %v7434 = vunpack.c.h.b16 %v7270
    %v7435 = vunpack.c.l.b16 %v7271
    %v7436 = vunpack.c.h.b16 %v7271
    %v7437 = vunpack.c.l.b16 %v7272
    %v7438 = vunpack.c.h.b16 %v7272
    %v7439 = vunpack.c.l.b16 %v7273
    %v7440 = vunpack.c.h.b16 %v7273
    %v7441 = vunpack.c.l.b16 %v7274
    %v7442 = vunpack.c.h.b16 %v7274
    %v7443 = vunpack.c.l.b16 %v7275
    %v7444 = vunpack.c.h.b16 %v7275
    %v7445 = vunpack.c.l.b16 %v7276
    %v7446 = vunpack.c.h.b16 %v7276
    %v7447 = vunpack.c.l.b16 %v7277
    %v7448 = vunpack.c.h.b16 %v7277
    %v7449 = vunpack.c.l.b16 %v7278
    %v7450 = vunpack.c.h.b16 %v7278
    %v7451 = vunpack.c.l.b16 %v7279
    %v7452 = vunpack.c.h.b16 %v7279
    %v7453 = vunpack.c.l.b16 %v7280
    %v7454 = vunpack.c.h.b16 %v7280
    %v7455 = vunpack.c.l.b16 %v7281
    %v7456 = vunpack.c.h.b16 %v7281
    %v7457 = vunpack.c.l.b16 %v7282
    %v7458 = vunpack.c.h.b16 %v7282
    %v7459 = vunpack.c.l.b16 %v7283
    %v7460 = vunpack.c.h.b16 %v7283
    %v7461 = vunpack.c.l.b16 %v7284
    %v7462 = vunpack.c.h.b16 %v7284
    %v7463 = vunpack.c.l.b16 %v7285
    %v7464 = vunpack.c.h.b16 %v7285
    %v7465 = vunpack.c.l.b16 %v7286
    %v7466 = vunpack.c.h.b16 %v7286
    %v7467 = vunpack.c.l.b16 %v7287
    %v7468 = vunpack.c.h.b16 %v7287
    %v7469 = vunpack.c.l.b16 %v7288
    %v7470 = vunpack.c.h.b16 %v7288
    %v7471 = vunpack.c.l.b16 %v7289
    %v7472 = vunpack.c.h.b16 %v7289
    %v7473 = vunpack.c.l.b16 %v7290
    %v7474 = vunpack.c.h.b16 %v7290
    %v7475 = vunpack.c.l.b16 %v7291
    %v7476 = vunpack.c.h.b16 %v7291
    %v7477 = vunpack.c.l.b16 %v7292
    %v7478 = vunpack.c.h.b16 %v7292
    %v7479 = vunpack.c.l.b16 %v7293
    %v7480 = vunpack.c.h.b16 %v7293
    %v7481 = vunpack.c.l.b16 %v7294
    %v7482 = vunpack.c.h.b16 %v7294
    %v7483 = vunpack.c.l.b16 %v7295
    %v7484 = vunpack.c.h.b16 %v7295
    %v7485 = vunpack.c.l.b16 %v7296
    %v7486 = vunpack.c.h.b16 %v7296
    %v7487 = vunpack.c.l.b16 %v7297
    %v7488 = vunpack.c.h.b16 %v7297
    %v7489 = vunpack.c.l.b16 %v7298
    %v7490 = vunpack.c.h.b16 %v7298
    %v7491 = vunpack.c.l.b16 %v7299
    %v7492 = vunpack.c.h.b16 %v7299
    %v7493 = vunpack.c.l.b16 %v7300
    %v7494 = vunpack.c.h.b16 %v7300
    %v7495 = vunpack.c.l.b16 %v7301
    %v7496 = vunpack.c.h.b16 %v7301
    %v7497 = vunpack.c.l.b16 %v7302
    %v7498 = vunpack.c.h.b16 %v7302
    %v7499 = vunpack.c.l.b16 %v7303
    %v7500 = vunpack.c.h.b16 %v7303
    %v7501 = vunpack.c.l.b16 %v7304
    %v7502 = vunpack.c.h.b16 %v7304
    %v7503 = vunpack.c.l.b16 %v7305
    %v7504 = vunpack.c.h.b16 %v7305
    %v7505 = vunpack.c.l.b16 %v7306
    %v7506 = vunpack.c.h.b16 %v7306
    %v7507 = vunpack.c.l.b16 %v7307
    %v7508 = vunpack.c.h.b16 %v7307
    %v7509 = vunpack.c.l.b16 %v7308
    %v7510 = vunpack.c.h.b16 %v7308
    %v7511 = vunpack.c.l.b16 %v7309
    %v7512 = vunpack.c.h.b16 %v7309
    %v7513 = vunpack.c.l.b16 %v7310
    %v7514 = vunpack.c.h.b16 %v7310
    %v7515 = vunpack.c.l.b16 %v7311
    %v7516 = vunpack.c.h.b16 %v7311
    %v7517 = vunpack.c.l.b16 %v7312
    %v7518 = vunpack.c.h.b16 %v7312
    %v7519 = vunpack.c.l.b16 %v7313
    %v7520 = vunpack.c.h.b16 %v7313
    %v7521 = vunpack.c.l.b16 %v7314
    %v7522 = vunpack.c.h.b16 %v7314
    %v7523 = vunpack.c.l.b16 %v7315
    %v7524 = vunpack.c.h.b16 %v7315
    %v7525 = vunpack.c.l.b16 %v7316
    %v7526 = vunpack.c.h.b16 %v7316
    %v7527 = vunpack.c.l.b16 %v7317
    %v7528 = vunpack.c.h.b16 %v7317
    %v7529 = vunpack.c.l.b16 %v7318
    %v7530 = vunpack.c.h.b16 %v7318
    %v7531 = vunpack.c.l.b16 %v7319
    %v7532 = vunpack.c.h.b16 %v7319
    %v7533 = vunpack.c.l.b16 %v7320
    %v7534 = vunpack.c.h.b16 %v7320
    %v7535 = vunpack.c.l.b16 %v7321
    %v7536 = vunpack.c.h.b16 %v7321
    %v7537 = vunpack.c.l.b16 %v7322
    %v7538 = vunpack.c.h.b16 %v7322
    %v7539 = vunpack.c.l.b16 %v7323
    %v7540 = vunpack.c.h.b16 %v7323
    %v7541 = vunpack.c.l.b16 %v7324
    %v7542 = vunpack.c.h.b16 %v7324
    %v7543 = vunpack.c.l.b16 %v7325
    %v7544 = vunpack.c.h.b16 %v7325
    %v7545 = vunpack.c.l.b16 %v7326
    %v7546 = vunpack.c.h.b16 %v7326
    %v7547 = vunpack.c.l.b16 %v7327
    %v7548 = vunpack.c.h.b16 %v7327
    %v7549 = vunpack.c.l.b16 %v7328
    %v7550 = vunpack.c.h.b16 %v7328
    %v7551 = vunpack.c.l.b16 %v7329
    %v7552 = vunpack.c.h.b16 %v7329
    %v7553 = vunpack.c.l.b16 %v7330
    %v7554 = vunpack.c.h.b16 %v7330
    %v7555 = vpack.c.b16 %v7431, %v7427
    %v7556 = vpack.c.b16 %v7432, %v7428
    %v7557 = vpack.c.b16 %v7433, %v7429
    %v7558 = vpack.c.b16 %v7434, %v7430
    %v7559 = vpack.c.b16 %v7439, %v7435
    %v7560 = vpack.c.b16 %v7440, %v7436
    %v7561 = vpack.c.b16 %v7441, %v7437
    %v7562 = vpack.c.b16 %v7442, %v7438
    %v7563 = vpack.c.b16 %v7447, %v7443
    %v7564 = vpack.c.b16 %v7448, %v7444
    %v7565 = vpack.c.b16 %v7449, %v7445
    %v7566 = vpack.c.b16 %v7450, %v7446
    %v7567 = vpack.c.b16 %v7455, %v7451
    %v7568 = vpack.c.b16 %v7456, %v7452
    %v7569 = vpack.c.b16 %v7457, %v7453
    %v7570 = vpack.c.b16 %v7458, %v7454
    %v7571 = vpack.c.b16 %v7463, %v7459
    %v7572 = vpack.c.b16 %v7464, %v7460
    %v7573 = vpack.c.b16 %v7465, %v7461
    %v7574 = vpack.c.b16 %v7466, %v7462
    %v7575 = vpack.c.b16 %v7471, %v7467
    %v7576 = vpack.c.b16 %v7472, %v7468
    %v7577 = vpack.c.b16 %v7473, %v7469
    %v7578 = vpack.c.b16 %v7474, %v7470
    %v7579 = vpack.c.b16 %v7479, %v7475
    %v7580 = vpack.c.b16 %v7480, %v7476
    %v7581 = vpack.c.b16 %v7481, %v7477
    %v7582 = vpack.c.b16 %v7482, %v7478
    %v7583 = vpack.c.b16 %v7487, %v7483
    %v7584 = vpack.c.b16 %v7488, %v7484
    %v7585 = vpack.c.b16 %v7489, %v7485
    %v7586 = vpack.c.b16 %v7490, %v7486
    %v7587 = vpack.c.b16 %v7495, %v7491
    %v7588 = vpack.c.b16 %v7496, %v7492
    %v7589 = vpack.c.b16 %v7497, %v7493
    %v7590 = vpack.c.b16 %v7498, %v7494
    %v7591 = vpack.c.b16 %v7503, %v7499
    %v7592 = vpack.c.b16 %v7504, %v7500
    %v7593 = vpack.c.b16 %v7505, %v7501
    %v7594 = vpack.c.b16 %v7506, %v7502
    %v7595 = vpack.c.b16 %v7511, %v7507
    %v7596 = vpack.c.b16 %v7512, %v7508
    %v7597 = vpack.c.b16 %v7513, %v7509
    %v7598 = vpack.c.b16 %v7514, %v7510
    %v7599 = vpack.c.b16 %v7519, %v7515
    %v7600 = vpack.c.b16 %v7520, %v7516
    %v7601 = vpack.c.b16 %v7521, %v7517
    %v7602 = vpack.c.b16 %v7522, %v7518
    %v7603 = vpack.c.b16 %v7527, %v7523
    %v7604 = vpack.c.b16 %v7528, %v7524
    %v7605 = vpack.c.b16 %v7529, %v7525
    %v7606 = vpack.c.b16 %v7530, %v7526
    %v7607 = vpack.c.b16 %v7535, %v7531
    %v7608 = vpack.c.b16 %v7536, %v7532
    %v7609 = vpack.c.b16 %v7537, %v7533
    %v7610 = vpack.c.b16 %v7538, %v7534
    %v7611 = vpack.c.b16 %v7543, %v7539
    %v7612 = vpack.c.b16 %v7544, %v7540
    %v7613 = vpack.c.b16 %v7545, %v7541
    %v7614 = vpack.c.b16 %v7546, %v7542
    %v7615 = vpack.c.b16 %v7551, %v7547
    %v7616 = vpack.c.b16 %v7552, %v7548
    %v7617 = vpack.c.b16 %v7553, %v7549
    %v7618 = vpack.c.b16 %v7554, %v7550
    %7683 = vmatprep.subr.bf16.mxu0 0
    %7684 = vmatpush1.bf16.msra.mxu0 %v7338
    %7685 = vmatprep.subr.bf16.mxu0 0
    %7686 = vmatpush1.bf16.msra.mxu0 %v7337
    %7687 = vmatprep.subr.bf16.mxu0 0
    %7688 = vmatpush1.bf16.msra.mxu0 %v7336
    %7689 = vmatprep.subr.bf16.mxu0 0
    %7690 = vmatpush1.bf16.msra.mxu0 %v7335
    %7691 = vmatprep.subr.bf16.mxu0 0
    %7692 = vmatpush1.bf16.msra.mxu0 %v7334
    %7693 = vmatprep.subr.bf16.mxu0 0
    %7694 = vmatpush1.bf16.msra.mxu0 %v7333
    %7695 = vmatprep.subr.bf16.mxu0 0
    %7696 = vmatpush1.bf16.msra.mxu0 %v7332
    %7697 = vmatprep.subr.bf16.mxu0 0
    %7698 = vmatpush1.bf16.msra.mxu0 %v7331
    %7699 = vmatprep.subr.bf16.mxu0 0
    %7700 = vmatpush2.bf16.msra.mxu0 %v7346
    %7701 = vmatprep.subr.bf16.mxu0 0
    %7702 = vmatpush2.bf16.msra.mxu0 %v7345
    %7703 = vmatprep.subr.bf16.mxu0 0
    %7704 = vmatpush2.bf16.msra.mxu0 %v7344
    %7705 = vmatprep.subr.bf16.mxu0 0
    %7706 = vmatpush2.bf16.msra.mxu0 %v7343
    %7707 = vmatprep.subr.bf16.mxu0 0
    %7708 = vmatpush2.bf16.msra.mxu0 %v7342
    %7709 = vmatprep.subr.bf16.mxu0 0
    %7710 = vmatpush2.bf16.msra.mxu0 %v7341
    %7711 = vmatprep.subr.bf16.mxu0 0
    %7712 = vmatpush2.bf16.msra.mxu0 %v7340
    %7713 = vmatprep.subr.bf16.mxu0 0
    %7714 = vmatpush2.bf16.msra.mxu0 %v7339
    %7715 = vmatprep.mubr.bf16.mxu0 %v7556
    %7716 = vmatmul.mubr.bf16.gmra.mxu0 %v7555
    %v7717 = vpop.f32.mrf.mxu0
    %v7718 = vadd.f32 0.0, %v7717
    %v7719 = vpop.f32.mrf.mxu0
    %v7720 = vpop.f32.mrf.mxu0
    %v7721 = vadd.f32 0.0, %v7720
    %v7722 = vpop.f32.mrf.mxu0
    %7723 = vmatprep.mubr.bf16.mxu0 %v7560
    %7724 = vmatmul.mubr.bf16.gmra.mxu0 %v7559
    %v7725 = vpop.f32.mrf.mxu0
    %v7726 = vadd.f32 0.0, %v7725
    %v7727 = vpop.f32.mrf.mxu0
    %v7728 = vpop.f32.mrf.mxu0
    %v7729 = vadd.f32 0.0, %v7728
    %v7730 = vpop.f32.mrf.mxu0
    %7731 = vmatprep.mubr.bf16.mxu0 %v7564
    %7732 = vmatmul.mubr.bf16.gmra.mxu0 %v7563
    %v7733 = vpop.f32.mrf.mxu0
    %v7734 = vadd.f32 0.0, %v7733
    %v7735 = vpop.f32.mrf.mxu0
    %v7736 = vpop.f32.mrf.mxu0
    %v7737 = vadd.f32 0.0, %v7736
    %v7738 = vpop.f32.mrf.mxu0
    %7739 = vmatprep.mubr.bf16.mxu0 %v7568
    %7740 = vmatmul.mubr.bf16.gmra.mxu0 %v7567
    %v7741 = vpop.f32.mrf.mxu0
    %v7742 = vadd.f32 0.0, %v7741
    %v7743 = vpop.f32.mrf.mxu0
    %v7744 = vpop.f32.mrf.mxu0
    %v7745 = vadd.f32 0.0, %v7744
    %v7746 = vpop.f32.mrf.mxu0
    %7747 = vmatprep.mubr.bf16.mxu0 %v7572
    %7748 = vmatmul.mubr.bf16.gmra.mxu0 %v7571
    %v7749 = vpop.f32.mrf.mxu0
    %v7750 = vadd.f32 0.0, %v7749
    %v7751 = vpop.f32.mrf.mxu0
    %v7752 = vpop.f32.mrf.mxu0
    %v7753 = vadd.f32 0.0, %v7752
    %v7754 = vpop.f32.mrf.mxu0
    %7755 = vmatprep.mubr.bf16.mxu0 %v7576
    %7756 = vmatmul.mubr.bf16.gmra.mxu0 %v7575
    %v7757 = vpop.f32.mrf.mxu0
    %v7758 = vadd.f32 0.0, %v7757
    %v7759 = vpop.f32.mrf.mxu0
    %v7760 = vpop.f32.mrf.mxu0
    %v7761 = vadd.f32 0.0, %v7760
    %v7762 = vpop.f32.mrf.mxu0
    %7763 = vmatprep.mubr.bf16.mxu0 %v7580
    %7764 = vmatmul.mubr.bf16.gmra.mxu0 %v7579
    %v7765 = vpop.f32.mrf.mxu0
    %v7766 = vadd.f32 0.0, %v7765
    %v7767 = vpop.f32.mrf.mxu0
    %v7768 = vpop.f32.mrf.mxu0
    %v7769 = vadd.f32 0.0, %v7768
    %v7770 = vpop.f32.mrf.mxu0
    %7771 = vmatprep.mubr.bf16.mxu0 %v7584
    %7772 = vmatmul.mubr.bf16.gmra.mxu0 %v7583
    %v7773 = vpop.f32.mrf.mxu0
    %v7774 = vadd.f32 0.0, %v7773
    %v7775 = vpop.f32.mrf.mxu0
    %v7776 = vpop.f32.mrf.mxu0
    %v7777 = vadd.f32 0.0, %v7776
    %v7778 = vpop.f32.mrf.mxu0
    %7779 = vmatprep.mubr.bf16.mxu0 %v7588
    %7780 = vmatmul.mubr.bf16.gmra.mxu0 %v7587
    %v7781 = vpop.f32.mrf.mxu0
    %v7782 = vadd.f32 0.0, %v7781
    %v7783 = vpop.f32.mrf.mxu0
    %v7784 = vpop.f32.mrf.mxu0
    %v7785 = vadd.f32 0.0, %v7784
    %v7786 = vpop.f32.mrf.mxu0
    %7787 = vmatprep.mubr.bf16.mxu0 %v7592
    %7788 = vmatmul.mubr.bf16.gmra.mxu0 %v7591
    %v7789 = vpop.f32.mrf.mxu0
    %v7790 = vadd.f32 0.0, %v7789
    %v7791 = vpop.f32.mrf.mxu0
    %v7792 = vpop.f32.mrf.mxu0
    %v7793 = vadd.f32 0.0, %v7792
    %v7794 = vpop.f32.mrf.mxu0
    %7795 = vmatprep.mubr.bf16.mxu0 %v7596
    %7796 = vmatmul.mubr.bf16.gmra.mxu0 %v7595
    %v7797 = vpop.f32.mrf.mxu0
    %v7798 = vadd.f32 0.0, %v7797
    %v7799 = vpop.f32.mrf.mxu0
    %v7800 = vpop.f32.mrf.mxu0
    %v7801 = vadd.f32 0.0, %v7800
    %v7802 = vpop.f32.mrf.mxu0
    %7803 = vmatprep.mubr.bf16.mxu0 %v7600
    %7804 = vmatmul.mubr.bf16.gmra.mxu0 %v7599
    %v7805 = vpop.f32.mrf.mxu0
    %v7806 = vadd.f32 0.0, %v7805
    %v7807 = vpop.f32.mrf.mxu0
    %v7808 = vpop.f32.mrf.mxu0
    %v7809 = vadd.f32 0.0, %v7808
    %v7810 = vpop.f32.mrf.mxu0
    %7811 = vmatprep.mubr.bf16.mxu0 %v7604
    %7812 = vmatmul.mubr.bf16.gmra.mxu0 %v7603
    %v7813 = vpop.f32.mrf.mxu0
    %v7814 = vadd.f32 0.0, %v7813
    %v7815 = vpop.f32.mrf.mxu0
    %v7816 = vpop.f32.mrf.mxu0
    %v7817 = vadd.f32 0.0, %v7816
    %v7818 = vpop.f32.mrf.mxu0
    %7819 = vmatprep.mubr.bf16.mxu0 %v7608
    %7820 = vmatmul.mubr.bf16.gmra.mxu0 %v7607
    %v7821 = vpop.f32.mrf.mxu0
    %v7822 = vadd.f32 0.0, %v7821
    %v7823 = vpop.f32.mrf.mxu0
    %v7824 = vpop.f32.mrf.mxu0
    %v7825 = vadd.f32 0.0, %v7824
    %v7826 = vpop.f32.mrf.mxu0
    %7827 = vmatprep.mubr.bf16.mxu0 %v7612
    %7828 = vmatmul.mubr.bf16.gmra.mxu0 %v7611
    %v7829 = vpop.f32.mrf.mxu0
    %v7830 = vadd.f32 0.0, %v7829
    %v7831 = vpop.f32.mrf.mxu0
    %v7832 = vpop.f32.mrf.mxu0
    %v7833 = vadd.f32 0.0, %v7832
    %v7834 = vpop.f32.mrf.mxu0
    %7835 = vmatprep.mubr.bf16.mxu0 %v7616
    %7836 = vmatmul.mubr.bf16.gmra.mxu0 %v7615
    %v7837 = vpop.f32.mrf.mxu0
    %v7838 = vadd.f32 0.0, %v7837
    %v7839 = vpop.f32.mrf.mxu0
    %v7840 = vpop.f32.mrf.mxu0
    %v7841 = vadd.f32 0.0, %v7840
    %v7842 = vpop.f32.mrf.mxu0
    %7843 = vdwg.mxu0
    %7844 = vmatprep.subr.bf16.mxu0 0
    %7845 = vmatpush1.bf16.msra.mxu0 %v7354
    %7846 = vmatprep.subr.bf16.mxu0 0
    %7847 = vmatpush1.bf16.msra.mxu0 %v7353
    %7848 = vmatprep.subr.bf16.mxu0 0
    %7849 = vmatpush1.bf16.msra.mxu0 %v7352
    %7850 = vmatprep.subr.bf16.mxu0 0
    %7851 = vmatpush1.bf16.msra.mxu0 %v7351
    %7852 = vmatprep.subr.bf16.mxu0 0
    %7853 = vmatpush1.bf16.msra.mxu0 %v7350
    %7854 = vmatprep.subr.bf16.mxu0 0
    %7855 = vmatpush1.bf16.msra.mxu0 %v7349
    %7856 = vmatprep.subr.bf16.mxu0 0
    %7857 = vmatpush1.bf16.msra.mxu0 %v7348
    %7858 = vmatprep.subr.bf16.mxu0 0
    %7859 = vmatpush1.bf16.msra.mxu0 %v7347
    %7860 = vmatprep.subr.bf16.mxu0 0
    %7861 = vmatpush2.bf16.msra.mxu0 %v7362
    %7862 = vmatprep.subr.bf16.mxu0 0
    %7863 = vmatpush2.bf16.msra.mxu0 %v7361
    %7864 = vmatprep.subr.bf16.mxu0 0
    %7865 = vmatpush2.bf16.msra.mxu0 %v7360
    %7866 = vmatprep.subr.bf16.mxu0 0
    %7867 = vmatpush2.bf16.msra.mxu0 %v7359
    %7868 = vmatprep.subr.bf16.mxu0 0
    %7869 = vmatpush2.bf16.msra.mxu0 %v7358
    %7870 = vmatprep.subr.bf16.mxu0 0
    %7871 = vmatpush2.bf16.msra.mxu0 %v7357
    %7872 = vmatprep.subr.bf16.mxu0 0
    %7873 = vmatpush2.bf16.msra.mxu0 %v7356
    %7874 = vmatprep.subr.bf16.mxu0 0
    %7875 = vmatpush2.bf16.msra.mxu0 %v7355
    %7876 = vmatprep.mubr.bf16.mxu0 %v7558
    %7877 = vmatmul.mubr.bf16.gmra.mxu0 %v7557
    %v7878 = vpop.f32.mrf.mxu0
    %v7879 = vadd.f32 %v7718, %v7878
    %v7880 = vpop.f32.mrf.mxu0
    %v7881 = vpop.f32.mrf.mxu0
    %v7882 = vadd.f32 %v7721, %v7881
    %v7883 = vpop.f32.mrf.mxu0
    %7884 = vmatprep.mubr.bf16.mxu0 %v7562
    %7885 = vmatmul.mubr.bf16.gmra.mxu0 %v7561
    %v7886 = vpop.f32.mrf.mxu0
    %v7887 = vadd.f32 %v7726, %v7886
    %v7888 = vpop.f32.mrf.mxu0
    %v7889 = vpop.f32.mrf.mxu0
    %v7890 = vadd.f32 %v7729, %v7889
    %v7891 = vpop.f32.mrf.mxu0
    %7892 = vmatprep.mubr.bf16.mxu0 %v7566
    %7893 = vmatmul.mubr.bf16.gmra.mxu0 %v7565
    %v7894 = vpop.f32.mrf.mxu0
    %v7895 = vadd.f32 %v7734, %v7894
    %v7896 = vpop.f32.mrf.mxu0
    %v7897 = vpop.f32.mrf.mxu0
    %v7898 = vadd.f32 %v7737, %v7897
    %v7899 = vpop.f32.mrf.mxu0
    %7900 = vmatprep.mubr.bf16.mxu0 %v7570
    %7901 = vmatmul.mubr.bf16.gmra.mxu0 %v7569
    %v7902 = vpop.f32.mrf.mxu0
    %v7903 = vadd.f32 %v7742, %v7902
    %v7904 = vpop.f32.mrf.mxu0
    %v7905 = vpop.f32.mrf.mxu0
    %v7906 = vadd.f32 %v7745, %v7905
    %v7907 = vpop.f32.mrf.mxu0
    %7908 = vmatprep.mubr.bf16.mxu0 %v7574
    %7909 = vmatmul.mubr.bf16.gmra.mxu0 %v7573
    %v7910 = vpop.f32.mrf.mxu0
    %v7911 = vadd.f32 %v7750, %v7910
    %v7912 = vpop.f32.mrf.mxu0
    %v7913 = vpop.f32.mrf.mxu0
    %v7914 = vadd.f32 %v7753, %v7913
    %v7915 = vpop.f32.mrf.mxu0
    %7916 = vmatprep.mubr.bf16.mxu0 %v7578
    %7917 = vmatmul.mubr.bf16.gmra.mxu0 %v7577
    %v7918 = vpop.f32.mrf.mxu0
    %v7919 = vadd.f32 %v7758, %v7918
    %v7920 = vpop.f32.mrf.mxu0
    %v7921 = vpop.f32.mrf.mxu0
    %v7922 = vadd.f32 %v7761, %v7921
    %v7923 = vpop.f32.mrf.mxu0
    %7924 = vmatprep.mubr.bf16.mxu0 %v7582
    %7925 = vmatmul.mubr.bf16.gmra.mxu0 %v7581
    %v7926 = vpop.f32.mrf.mxu0
    %v7927 = vadd.f32 %v7766, %v7926
    %v7928 = vpop.f32.mrf.mxu0
    %v7929 = vpop.f32.mrf.mxu0
    %v7930 = vadd.f32 %v7769, %v7929
    %v7931 = vpop.f32.mrf.mxu0
    %7932 = vmatprep.mubr.bf16.mxu0 %v7586
    %7933 = vmatmul.mubr.bf16.gmra.mxu0 %v7585
    %v7934 = vpop.f32.mrf.mxu0
    %v7935 = vadd.f32 %v7774, %v7934
    %v7936 = vpop.f32.mrf.mxu0
    %v7937 = vpop.f32.mrf.mxu0
    %v7938 = vadd.f32 %v7777, %v7937
    %v7939 = vpop.f32.mrf.mxu0
    %7940 = vmatprep.mubr.bf16.mxu0 %v7590
    %7941 = vmatmul.mubr.bf16.gmra.mxu0 %v7589
    %v7942 = vpop.f32.mrf.mxu0
    %v7943 = vadd.f32 %v7782, %v7942
    %v7944 = vpop.f32.mrf.mxu0
    %v7945 = vpop.f32.mrf.mxu0
    %v7946 = vadd.f32 %v7785, %v7945
    %v7947 = vpop.f32.mrf.mxu0
    %7948 = vmatprep.mubr.bf16.mxu0 %v7594
    %7949 = vmatmul.mubr.bf16.gmra.mxu0 %v7593
    %v7950 = vpop.f32.mrf.mxu0
    %v7951 = vadd.f32 %v7790, %v7950
    %v7952 = vpop.f32.mrf.mxu0
    %v7953 = vpop.f32.mrf.mxu0
    %v7954 = vadd.f32 %v7793, %v7953
    %v7955 = vpop.f32.mrf.mxu0
    %7956 = vmatprep.mubr.bf16.mxu0 %v7598
    %7957 = vmatmul.mubr.bf16.gmra.mxu0 %v7597
    %v7958 = vpop.f32.mrf.mxu0
    %v7959 = vadd.f32 %v7798, %v7958
    %v7960 = vpop.f32.mrf.mxu0
    %v7961 = vpop.f32.mrf.mxu0
    %v7962 = vadd.f32 %v7801, %v7961
    %v7963 = vpop.f32.mrf.mxu0
    %7964 = vmatprep.mubr.bf16.mxu0 %v7602
    %7965 = vmatmul.mubr.bf16.gmra.mxu0 %v7601
    %v7966 = vpop.f32.mrf.mxu0
    %v7967 = vadd.f32 %v7806, %v7966
    %v7968 = vpop.f32.mrf.mxu0
    %v7969 = vpop.f32.mrf.mxu0
    %v7970 = vadd.f32 %v7809, %v7969
    %v7971 = vpop.f32.mrf.mxu0
    %7972 = vmatprep.mubr.bf16.mxu0 %v7606
    %7973 = vmatmul.mubr.bf16.gmra.mxu0 %v7605
    %v7974 = vpop.f32.mrf.mxu0
    %v7975 = vadd.f32 %v7814, %v7974
    %v7976 = vpop.f32.mrf.mxu0
    %v7977 = vpop.f32.mrf.mxu0
    %v7978 = vadd.f32 %v7817, %v7977
    %v7979 = vpop.f32.mrf.mxu0
    %7980 = vmatprep.mubr.bf16.mxu0 %v7610
    %7981 = vmatmul.mubr.bf16.gmra.mxu0 %v7609
    %v7982 = vpop.f32.mrf.mxu0
    %v7983 = vadd.f32 %v7822, %v7982
    %v7984 = vpop.f32.mrf.mxu0
    %v7985 = vpop.f32.mrf.mxu0
    %v7986 = vadd.f32 %v7825, %v7985
    %v7987 = vpop.f32.mrf.mxu0
    %7988 = vmatprep.mubr.bf16.mxu0 %v7614
    %7989 = vmatmul.mubr.bf16.gmra.mxu0 %v7613
    %v7990 = vpop.f32.mrf.mxu0
    %v7991 = vadd.f32 %v7830, %v7990
    %v7992 = vpop.f32.mrf.mxu0
    %v7993 = vpop.f32.mrf.mxu0
    %v7994 = vadd.f32 %v7833, %v7993
    %v7995 = vpop.f32.mrf.mxu0
    %7996 = vmatprep.mubr.bf16.mxu0 %v7618
    %7997 = vmatmul.mubr.bf16.gmra.mxu0 %v7617
    %v7998 = vpop.f32.mrf.mxu0
    %v7999 = vadd.f32 %v7838, %v7998
    %v8000 = vpop.f32.mrf.mxu0
    %v8001 = vpop.f32.mrf.mxu0
    %v8002 = vadd.f32 %v7841, %v8001
    %v8003 = vpop.f32.mrf.mxu0
    %8004 = vdwg.mxu0
    %v8005 = vadd.f32 %v6928, %v7879
    %v8006 = vadd.f32 %v6929, %v7882
    %v8007 = vadd.f32 %v6930, %v7887
    %v8008 = vadd.f32 %v6931, %v7890
    %v8009 = vadd.f32 %v6932, %v7895
    %v8010 = vadd.f32 %v6933, %v7898
    %v8011 = vadd.f32 %v6934, %v7903
    %v8012 = vadd.f32 %v6935, %v7906
    %v8013 = vadd.f32 %v6936, %v7911
    %v8014 = vadd.f32 %v6937, %v7914
    %v8015 = vadd.f32 %v6938, %v7919
    %v8016 = vadd.f32 %v6939, %v7922
    %v8017 = vadd.f32 %v6940, %v7927
    %v8018 = vadd.f32 %v6941, %v7930
    %v8019 = vadd.f32 %v6942, %v7935
    %v8020 = vadd.f32 %v6943, %v7938
    %v8021 = vadd.f32 %v6944, %v7943
    %v8022 = vadd.f32 %v6945, %v7946
    %v8023 = vadd.f32 %v6946, %v7951
    %v8024 = vadd.f32 %v6947, %v7954
    %v8025 = vadd.f32 %v6948, %v7959
    %v8026 = vadd.f32 %v6949, %v7962
    %v8027 = vadd.f32 %v6950, %v7967
    %v8028 = vadd.f32 %v6951, %v7970
    %v8029 = vadd.f32 %v6952, %v7975
    %v8030 = vadd.f32 %v6953, %v7978
    %v8031 = vadd.f32 %v6954, %v7983
    %v8032 = vadd.f32 %v6955, %v7986
    %v8033 = vadd.f32 %v6956, %v7991
    %v8034 = vadd.f32 %v6957, %v7994
    %v8035 = vadd.f32 %v6958, %v7999
    %v8036 = vadd.f32 %v6959, %v8002
    %v8037 = vld [vmem:[#allocation13] sm:$0xff]
    %v8038 = vld [vmem:[#allocation13 + $0x8] sm:$0xff]
    %v8039 = vld [vmem:[#allocation13 + $0x10] sm:$0xff]
    %v8040 = vld [vmem:[#allocation13 + $0x18] sm:$0xff]
    %v8041 = vld [vmem:[#allocation13 + $0x20] sm:$0xff]
    %v8042 = vld [vmem:[#allocation13 + $0x28] sm:$0xff]
    %v8043 = vld [vmem:[#allocation13 + $0x30] sm:$0xff]
    %v8044 = vld [vmem:[#allocation13 + $0x38] sm:$0xff]
    %v8045 = vld [vmem:[#allocation13 + $0x40] sm:$0xff]
    %v8046 = vld [vmem:[#allocation13 + $0x48] sm:$0xff]
    %v8047 = vld [vmem:[#allocation13 + $0x50] sm:$0xff]
    %v8048 = vld [vmem:[#allocation13 + $0x58] sm:$0xff]
    %v8049 = vld [vmem:[#allocation13 + $0x60] sm:$0xff]
    %v8050 = vld [vmem:[#allocation13 + $0x68] sm:$0xff]
    %v8051 = vld [vmem:[#allocation13 + $0x70] sm:$0xff]
    %v8052 = vld [vmem:[#allocation13 + $0x78] sm:$0xff]
    %v8053 = vld [vmem:[#allocation13 + $0x80] sm:$0xff]
    %v8054 = vld [vmem:[#allocation13 + $0x88] sm:$0xff]
    %v8055 = vld [vmem:[#allocation13 + $0x90] sm:$0xff]
    %v8056 = vld [vmem:[#allocation13 + $0x98] sm:$0xff]
    %v8057 = vld [vmem:[#allocation13 + $0xa0] sm:$0xff]
    %v8058 = vld [vmem:[#allocation13 + $0xa8] sm:$0xff]
    %v8059 = vld [vmem:[#allocation13 + $0xb0] sm:$0xff]
    %v8060 = vld [vmem:[#allocation13 + $0xb8] sm:$0xff]
    %v8061 = vld [vmem:[#allocation13 + $0xc0] sm:$0xff]
    %v8062 = vld [vmem:[#allocation13 + $0xc8] sm:$0xff]
    %v8063 = vld [vmem:[#allocation13 + $0xd0] sm:$0xff]
    %v8064 = vld [vmem:[#allocation13 + $0xd8] sm:$0xff]
    %v8065 = vld [vmem:[#allocation13 + $0xe0] sm:$0xff]
    %v8066 = vld [vmem:[#allocation13 + $0xe8] sm:$0xff]
    %v8067 = vld [vmem:[#allocation13 + $0xf0] sm:$0xff]
    %v8068 = vld [vmem:[#allocation13 + $0xf8] sm:$0xff]
    %8070 = vset.pattern.permute.xlu0 0
    %8071 = vperm.xlu0 %8070, %v8037
    %v8072 = vpop.permute.xlu0 %8071
    %8075 = vset.pattern.permute.xlu0 0
    %8076 = vperm.xlu0 %8075, %v8038
    %v8077 = vpop.permute.xlu0 %8076
    %8080 = vset.pattern.permute.xlu0 0
    %8081 = vperm.xlu0 %8080, %v8039
    %v8082 = vpop.permute.xlu0 %8081
    %8085 = vset.pattern.permute.xlu0 0
    %8086 = vperm.xlu0 %8085, %v8040
    %v8087 = vpop.permute.xlu0 %8086
    %8090 = vset.pattern.permute.xlu0 0
    %8091 = vperm.xlu0 %8090, %v8041
    %v8092 = vpop.permute.xlu0 %8091
    %8095 = vset.pattern.permute.xlu0 0
    %8096 = vperm.xlu0 %8095, %v8042
    %v8097 = vpop.permute.xlu0 %8096
    %8100 = vset.pattern.permute.xlu0 0
    %8101 = vperm.xlu0 %8100, %v8043
    %v8102 = vpop.permute.xlu0 %8101
    %8105 = vset.pattern.permute.xlu0 0
    %8106 = vperm.xlu0 %8105, %v8044
    %v8107 = vpop.permute.xlu0 %8106
    %8110 = vset.pattern.permute.xlu0 0
    %8111 = vperm.xlu0 %8110, %v8045
    %v8112 = vpop.permute.xlu0 %8111
    %8115 = vset.pattern.permute.xlu0 0
    %8116 = vperm.xlu0 %8115, %v8046
    %v8117 = vpop.permute.xlu0 %8116
    %8120 = vset.pattern.permute.xlu0 0
    %8121 = vperm.xlu0 %8120, %v8047
    %v8122 = vpop.permute.xlu0 %8121
    %8125 = vset.pattern.permute.xlu0 0
    %8126 = vperm.xlu0 %8125, %v8048
    %v8127 = vpop.permute.xlu0 %8126
    %8130 = vset.pattern.permute.xlu0 0
    %8131 = vperm.xlu0 %8130, %v8049
    %v8132 = vpop.permute.xlu0 %8131
    %8135 = vset.pattern.permute.xlu0 0
    %8136 = vperm.xlu0 %8135, %v8050
    %v8137 = vpop.permute.xlu0 %8136
    %8140 = vset.pattern.permute.xlu0 0
    %8141 = vperm.xlu0 %8140, %v8051
    %v8142 = vpop.permute.xlu0 %8141
    %8145 = vset.pattern.permute.xlu0 0
    %8146 = vperm.xlu0 %8145, %v8052
    %v8147 = vpop.permute.xlu0 %8146
    %8150 = vset.pattern.permute.xlu0 0
    %8151 = vperm.xlu0 %8150, %v8053
    %v8152 = vpop.permute.xlu0 %8151
    %8155 = vset.pattern.permute.xlu0 0
    %8156 = vperm.xlu0 %8155, %v8054
    %v8157 = vpop.permute.xlu0 %8156
    %8160 = vset.pattern.permute.xlu0 0
    %8161 = vperm.xlu0 %8160, %v8055
    %v8162 = vpop.permute.xlu0 %8161
    %8165 = vset.pattern.permute.xlu0 0
    %8166 = vperm.xlu0 %8165, %v8056
    %v8167 = vpop.permute.xlu0 %8166
    %8170 = vset.pattern.permute.xlu0 0
    %8171 = vperm.xlu0 %8170, %v8057
    %v8172 = vpop.permute.xlu0 %8171
    %8175 = vset.pattern.permute.xlu0 0
    %8176 = vperm.xlu0 %8175, %v8058
    %v8177 = vpop.permute.xlu0 %8176
    %8180 = vset.pattern.permute.xlu0 0
    %8181 = vperm.xlu0 %8180, %v8059
    %v8182 = vpop.permute.xlu0 %8181
    %8185 = vset.pattern.permute.xlu0 0
    %8186 = vperm.xlu0 %8185, %v8060
    %v8187 = vpop.permute.xlu0 %8186
    %8190 = vset.pattern.permute.xlu0 0
    %8191 = vperm.xlu0 %8190, %v8061
    %v8192 = vpop.permute.xlu0 %8191
    %8195 = vset.pattern.permute.xlu0 0
    %8196 = vperm.xlu0 %8195, %v8062
    %v8197 = vpop.permute.xlu0 %8196
    %8200 = vset.pattern.permute.xlu0 0
    %8201 = vperm.xlu0 %8200, %v8063
    %v8202 = vpop.permute.xlu0 %8201
    %8205 = vset.pattern.permute.xlu0 0
    %8206 = vperm.xlu0 %8205, %v8064
    %v8207 = vpop.permute.xlu0 %8206
    %8210 = vset.pattern.permute.xlu0 0
    %8211 = vperm.xlu0 %8210, %v8065
    %v8212 = vpop.permute.xlu0 %8211
    %8215 = vset.pattern.permute.xlu0 0
    %8216 = vperm.xlu0 %8215, %v8066
    %v8217 = vpop.permute.xlu0 %8216
    %8220 = vset.pattern.permute.xlu0 0
    %8221 = vperm.xlu0 %8220, %v8067
    %v8222 = vpop.permute.xlu0 %8221
    %8225 = vset.pattern.permute.xlu0 0
    %8226 = vperm.xlu0 %8225, %v8068
    %v8227 = vpop.permute.xlu0 %8226
    %v8229 = vadd.f32 %v8005, %v8072
    %v8230 = vadd.f32 %v8006, %v8077
    %v8231 = vadd.f32 %v8007, %v8082
    %v8232 = vadd.f32 %v8008, %v8087
    %v8233 = vadd.f32 %v8009, %v8092
    %v8234 = vadd.f32 %v8010, %v8097
    %v8235 = vadd.f32 %v8011, %v8102
    %v8236 = vadd.f32 %v8012, %v8107
    %v8237 = vadd.f32 %v8013, %v8112
    %v8238 = vadd.f32 %v8014, %v8117
    %v8239 = vadd.f32 %v8015, %v8122
    %v8240 = vadd.f32 %v8016, %v8127
    %v8241 = vadd.f32 %v8017, %v8132
    %v8242 = vadd.f32 %v8018, %v8137
    %v8243 = vadd.f32 %v8019, %v8142
    %v8244 = vadd.f32 %v8020, %v8147
    %v8245 = vadd.f32 %v8021, %v8152
    %v8246 = vadd.f32 %v8022, %v8157
    %v8247 = vadd.f32 %v8023, %v8162
    %v8248 = vadd.f32 %v8024, %v8167
    %v8249 = vadd.f32 %v8025, %v8172
    %v8250 = vadd.f32 %v8026, %v8177
    %v8251 = vadd.f32 %v8027, %v8182
    %v8252 = vadd.f32 %v8028, %v8187
    %v8253 = vadd.f32 %v8029, %v8192
    %v8254 = vadd.f32 %v8030, %v8197
    %v8255 = vadd.f32 %v8031, %v8202
    %v8256 = vadd.f32 %v8032, %v8207
    %v8257 = vadd.f32 %v8033, %v8212
    %v8258 = vadd.f32 %v8034, %v8217
    %v8259 = vadd.f32 %v8035, %v8222
    %v8260 = vadd.f32 %v8036, %v8227
    %v8261 = vmax.f32 %v8229, 0.0
    %v8262 = vmax.f32 %v8230, 0.0
    %v8263 = vmax.f32 %v8231, 0.0
    %v8264 = vmax.f32 %v8232, 0.0
    %v8265 = vmax.f32 %v8233, 0.0
    %v8266 = vmax.f32 %v8234, 0.0
    %v8267 = vmax.f32 %v8235, 0.0
    %v8268 = vmax.f32 %v8236, 0.0
    %v8269 = vmax.f32 %v8237, 0.0
    %v8270 = vmax.f32 %v8238, 0.0
    %v8271 = vmax.f32 %v8239, 0.0
    %v8272 = vmax.f32 %v8240, 0.0
    %v8273 = vmax.f32 %v8241, 0.0
    %v8274 = vmax.f32 %v8242, 0.0
    %v8275 = vmax.f32 %v8243, 0.0
    %v8276 = vmax.f32 %v8244, 0.0
    %v8277 = vmax.f32 %v8245, 0.0
    %v8278 = vmax.f32 %v8246, 0.0
    %v8279 = vmax.f32 %v8247, 0.0
    %v8280 = vmax.f32 %v8248, 0.0
    %v8281 = vmax.f32 %v8249, 0.0
    %v8282 = vmax.f32 %v8250, 0.0
    %v8283 = vmax.f32 %v8251, 0.0
    %v8284 = vmax.f32 %v8252, 0.0
    %v8285 = vmax.f32 %v8253, 0.0
    %v8286 = vmax.f32 %v8254, 0.0
    %v8287 = vmax.f32 %v8255, 0.0
    %v8288 = vmax.f32 %v8256, 0.0
    %v8289 = vmax.f32 %v8257, 0.0
    %v8290 = vmax.f32 %v8258, 0.0
    %v8291 = vmax.f32 %v8259, 0.0
    %v8292 = vmax.f32 %v8260, 0.0
    %s8293 = smul.u32 %s3662, 16
    %s8294 = smul.u32 %s8293, 2
    %s8295 = sshll.u32 %s8294, 4
    %8296 = dma.done %s150, %s8295
    %v8297 = vpack.c.bf16 %v8262, %v8261
    %v8298 = vpack.c.bf16 %v8264, %v8263
    %v8299 = vpack.c.bf16 %v8266, %v8265
    %v8300 = vpack.c.bf16 %v8268, %v8267
    %v8301 = vpack.c.bf16 %v8270, %v8269
    %v8302 = vpack.c.bf16 %v8272, %v8271
    %v8303 = vpack.c.bf16 %v8274, %v8273
    %v8304 = vpack.c.bf16 %v8276, %v8275
    %v8305 = vpack.c.bf16 %v8278, %v8277
    %v8306 = vpack.c.bf16 %v8280, %v8279
    %v8307 = vpack.c.bf16 %v8282, %v8281
    %v8308 = vpack.c.bf16 %v8284, %v8283
    %v8309 = vpack.c.bf16 %v8286, %v8285
    %v8310 = vpack.c.bf16 %v8288, %v8287
    %v8311 = vpack.c.bf16 %v8290, %v8289
    %v8312 = vpack.c.bf16 %v8292, %v8291
    %v8313 = vld [vmem:[%s6] sm:$0xf]
    %v8314 = vld [vmem:[%s6 + $0x4] sm:$0xf]
    %v8317 = vunpack.c.l.b16 %v8313
    %v8318 = vunpack.c.l.b16 %v8314
    %v8319 = vpack.c.b16 %v8318, %v8317
    %vm8321 = vcmask 130048
    %v8323 = vsel %vm8321, %v8297, 0
    %v8326 = vsel %vm8321, %v8298, 0
    %v8329 = vsel %vm8321, %v8299, 0
    %v8332 = vsel %vm8321, %v8300, 0
    %v8335 = vsel %vm8321, %v8301, 0
    %v8338 = vsel %vm8321, %v8302, 0
    %v8341 = vsel %vm8321, %v8303, 0
    %v8344 = vsel %vm8321, %v8304, 0
    %v8347 = vsel %vm8321, %v8305, 0
    %v8350 = vsel %vm8321, %v8306, 0
    %v8353 = vsel %vm8321, %v8307, 0
    %v8356 = vsel %vm8321, %v8308, 0
    %v8359 = vsel %vm8321, %v8309, 0
    %v8362 = vsel %vm8321, %v8310, 0
    %v8365 = vsel %vm8321, %v8311, 0
    %v8368 = vsel %vm8321, %v8312, 0
    %8370 = vmatprep.subr.bf16.mxu0 0
    %8371 = vmatpush1.bf16.msra.mxu0 0
    %8372 = vmatprep.subr.bf16.mxu0 0
    %8373 = vmatpush1.bf16.msra.mxu0 0
    %8374 = vmatprep.subr.bf16.mxu0 0
    %8375 = vmatpush1.bf16.msra.mxu0 0
    %8376 = vmatprep.subr.bf16.mxu0 0
    %8377 = vmatpush1.bf16.msra.mxu0 0
    %8378 = vmatprep.subr.bf16.mxu0 0
    %8379 = vmatpush1.bf16.msra.mxu0 0
    %8380 = vmatprep.subr.bf16.mxu0 0
    %8381 = vmatpush1.bf16.msra.mxu0 0
    %8382 = vmatprep.subr.bf16.mxu0 0
    %8383 = vmatpush1.bf16.msra.mxu0 0
    %8384 = vmatprep.subr.bf16.mxu0 0
    %8385 = vmatpush1.bf16.msra.mxu0 %v8319
    %8386 = vmatprep.subr.bf16.mxu0 0
    %8387 = vmatpush2.bf16.msra.mxu0 0
    %8388 = vmatprep.subr.bf16.mxu0 0
    %8389 = vmatpush2.bf16.msra.mxu0 0
    %8390 = vmatprep.subr.bf16.mxu0 0
    %8391 = vmatpush2.bf16.msra.mxu0 0
    %8392 = vmatprep.subr.bf16.mxu0 0
    %8393 = vmatpush2.bf16.msra.mxu0 0
    %8394 = vmatprep.subr.bf16.mxu0 0
    %8395 = vmatpush2.bf16.msra.mxu0 0
    %8396 = vmatprep.subr.bf16.mxu0 0
    %8397 = vmatpush2.bf16.msra.mxu0 0
    %8398 = vmatprep.subr.bf16.mxu0 0
    %8399 = vmatpush2.bf16.msra.mxu0 0
    %8400 = vmatprep.subr.bf16.mxu0 0
    %8401 = vmatpush2.bf16.msra.mxu0 0
    %8402 = vmatprep.mubr.bf16.mxu0 0
    %8403 = vmatmul.mubr.bf16.gmra.mxu0 %v8323
    %v8404 = vpop.f32.mrf.mxu0
    %v8405 = vadd.f32 0.0, %v8404
    %v8406 = vpop.f32.mrf.mxu0
    %v8407 = vpop.f32.mrf.mxu0
    %v8408 = vadd.f32 0.0, %v8407
    %v8409 = vpop.f32.mrf.mxu0
    %8410 = vmatprep.mubr.bf16.mxu0 0
    %8411 = vmatmul.mubr.bf16.gmra.mxu0 %v8326
    %v8412 = vpop.f32.mrf.mxu0
    %v8413 = vadd.f32 0.0, %v8412
    %v8414 = vpop.f32.mrf.mxu0
    %v8415 = vpop.f32.mrf.mxu0
    %v8416 = vadd.f32 0.0, %v8415
    %v8417 = vpop.f32.mrf.mxu0
    %8418 = vmatprep.mubr.bf16.mxu0 0
    %8419 = vmatmul.mubr.bf16.gmra.mxu0 %v8329
    %v8420 = vpop.f32.mrf.mxu0
    %v8421 = vadd.f32 0.0, %v8420
    %v8422 = vpop.f32.mrf.mxu0
    %v8423 = vpop.f32.mrf.mxu0
    %v8424 = vadd.f32 0.0, %v8423
    %v8425 = vpop.f32.mrf.mxu0
    %8426 = vmatprep.mubr.bf16.mxu0 0
    %8427 = vmatmul.mubr.bf16.gmra.mxu0 %v8332
    %v8428 = vpop.f32.mrf.mxu0
    %v8429 = vadd.f32 0.0, %v8428
    %v8430 = vpop.f32.mrf.mxu0
    %v8431 = vpop.f32.mrf.mxu0
    %v8432 = vadd.f32 0.0, %v8431
    %v8433 = vpop.f32.mrf.mxu0
    %8434 = vmatprep.mubr.bf16.mxu0 0
    %8435 = vmatmul.mubr.bf16.gmra.mxu0 %v8335
    %v8436 = vpop.f32.mrf.mxu0
    %v8437 = vadd.f32 0.0, %v8436
    %v8438 = vpop.f32.mrf.mxu0
    %v8439 = vpop.f32.mrf.mxu0
    %v8440 = vadd.f32 0.0, %v8439
    %v8441 = vpop.f32.mrf.mxu0
    %8442 = vmatprep.mubr.bf16.mxu0 0
    %8443 = vmatmul.mubr.bf16.gmra.mxu0 %v8338
    %v8444 = vpop.f32.mrf.mxu0
    %v8445 = vadd.f32 0.0, %v8444
    %v8446 = vpop.f32.mrf.mxu0
    %v8447 = vpop.f32.mrf.mxu0
    %v8448 = vadd.f32 0.0, %v8447
    %v8449 = vpop.f32.mrf.mxu0
    %8450 = vmatprep.mubr.bf16.mxu0 0
    %8451 = vmatmul.mubr.bf16.gmra.mxu0 %v8341
    %v8452 = vpop.f32.mrf.mxu0
    %v8453 = vadd.f32 0.0, %v8452
    %v8454 = vpop.f32.mrf.mxu0
    %v8455 = vpop.f32.mrf.mxu0
    %v8456 = vadd.f32 0.0, %v8455
    %v8457 = vpop.f32.mrf.mxu0
    %8458 = vmatprep.mubr.bf16.mxu0 0
    %8459 = vmatmul.mubr.bf16.gmra.mxu0 %v8344
    %v8460 = vpop.f32.mrf.mxu0
    %v8461 = vadd.f32 0.0, %v8460
    %v8462 = vpop.f32.mrf.mxu0
    %v8463 = vpop.f32.mrf.mxu0
    %v8464 = vadd.f32 0.0, %v8463
    %v8465 = vpop.f32.mrf.mxu0
    %8466 = vmatprep.mubr.bf16.mxu0 0
    %8467 = vmatmul.mubr.bf16.gmra.mxu0 %v8347
    %v8468 = vpop.f32.mrf.mxu0
    %v8469 = vadd.f32 0.0, %v8468
    %v8470 = vpop.f32.mrf.mxu0
    %v8471 = vpop.f32.mrf.mxu0
    %v8472 = vadd.f32 0.0, %v8471
    %v8473 = vpop.f32.mrf.mxu0
    %8474 = vmatprep.mubr.bf16.mxu0 0
    %8475 = vmatmul.mubr.bf16.gmra.mxu0 %v8350
    %v8476 = vpop.f32.mrf.mxu0
    %v8477 = vadd.f32 0.0, %v8476
    %v8478 = vpop.f32.mrf.mxu0
    %v8479 = vpop.f32.mrf.mxu0
    %v8480 = vadd.f32 0.0, %v8479
    %v8481 = vpop.f32.mrf.mxu0
    %8482 = vmatprep.mubr.bf16.mxu0 0
    %8483 = vmatmul.mubr.bf16.gmra.mxu0 %v8353
    %v8484 = vpop.f32.mrf.mxu0
    %v8485 = vadd.f32 0.0, %v8484
    %v8486 = vpop.f32.mrf.mxu0
    %v8487 = vpop.f32.mrf.mxu0
    %v8488 = vadd.f32 0.0, %v8487
    %v8489 = vpop.f32.mrf.mxu0
    %8490 = vmatprep.mubr.bf16.mxu0 0
    %8491 = vmatmul.mubr.bf16.gmra.mxu0 %v8356
    %v8492 = vpop.f32.mrf.mxu0
    %v8493 = vadd.f32 0.0, %v8492
    %v8494 = vpop.f32.mrf.mxu0
    %v8495 = vpop.f32.mrf.mxu0
    %v8496 = vadd.f32 0.0, %v8495
    %v8497 = vpop.f32.mrf.mxu0
    %8498 = vmatprep.mubr.bf16.mxu0 0
    %8499 = vmatmul.mubr.bf16.gmra.mxu0 %v8359
    %v8500 = vpop.f32.mrf.mxu0
    %v8501 = vadd.f32 0.0, %v8500
    %v8502 = vpop.f32.mrf.mxu0
    %v8503 = vpop.f32.mrf.mxu0
    %v8504 = vadd.f32 0.0, %v8503
    %v8505 = vpop.f32.mrf.mxu0
    %8506 = vmatprep.mubr.bf16.mxu0 0
    %8507 = vmatmul.mubr.bf16.gmra.mxu0 %v8362
    %v8508 = vpop.f32.mrf.mxu0
    %v8509 = vadd.f32 0.0, %v8508
    %v8510 = vpop.f32.mrf.mxu0
    %v8511 = vpop.f32.mrf.mxu0
    %v8512 = vadd.f32 0.0, %v8511
    %v8513 = vpop.f32.mrf.mxu0
    %8514 = vmatprep.mubr.bf16.mxu0 0
    %8515 = vmatmul.mubr.bf16.gmra.mxu0 %v8365
    %v8516 = vpop.f32.mrf.mxu0
    %v8517 = vadd.f32 0.0, %v8516
    %v8518 = vpop.f32.mrf.mxu0
    %v8519 = vpop.f32.mrf.mxu0
    %v8520 = vadd.f32 0.0, %v8519
    %v8521 = vpop.f32.mrf.mxu0
    %8522 = vmatprep.mubr.bf16.mxu0 0
    %8523 = vmatmul.mubr.bf16.gmra.mxu0 %v8368
    %v8524 = vpop.f32.mrf.mxu0
    %v8525 = vadd.f32 0.0, %v8524
    %v8526 = vpop.f32.mrf.mxu0
    %v8527 = vpop.f32.mrf.mxu0
    %v8528 = vadd.f32 0.0, %v8527
    %v8529 = vpop.f32.mrf.mxu0
    %8530 = vdwg.mxu0
    %v8531 = vld [vmem:[#allocation3] sm:$0xff]
    %v8532 = vld [vmem:[#allocation3 + $0x8] sm:$0xff]
    %v8533 = vld [vmem:[#allocation3 + $0x10] sm:$0xff]
    %v8534 = vld [vmem:[#allocation3 + $0x18] sm:$0xff]
    %v8535 = vld [vmem:[#allocation3 + $0x20] sm:$0xff]
    %v8536 = vld [vmem:[#allocation3 + $0x28] sm:$0xff]
    %v8537 = vld [vmem:[#allocation3 + $0x30] sm:$0xff]
    %v8538 = vld [vmem:[#allocation3 + $0x38] sm:$0xff]
    %v8539 = vld [vmem:[#allocation3 + $0x40] sm:$0xff]
    %v8540 = vld [vmem:[#allocation3 + $0x48] sm:$0xff]
    %v8541 = vld [vmem:[#allocation3 + $0x50] sm:$0xff]
    %v8542 = vld [vmem:[#allocation3 + $0x58] sm:$0xff]
    %v8543 = vld [vmem:[#allocation3 + $0x60] sm:$0xff]
    %v8544 = vld [vmem:[#allocation3 + $0x68] sm:$0xff]
    %v8545 = vld [vmem:[#allocation3 + $0x70] sm:$0xff]
    %v8546 = vld [vmem:[#allocation3 + $0x78] sm:$0xff]
    %v8547 = vpack.c.bf16 %v8408, %v8405
    %v8548 = vpack.c.bf16 %v8416, %v8413
    %v8549 = vpack.c.bf16 %v8424, %v8421
    %v8550 = vpack.c.bf16 %v8432, %v8429
    %v8551 = vpack.c.bf16 %v8440, %v8437
    %v8552 = vpack.c.bf16 %v8448, %v8445
    %v8553 = vpack.c.bf16 %v8456, %v8453
    %v8554 = vpack.c.bf16 %v8464, %v8461
    %v8555 = vpack.c.bf16 %v8472, %v8469
    %v8556 = vpack.c.bf16 %v8480, %v8477
    %v8557 = vpack.c.bf16 %v8488, %v8485
    %v8558 = vpack.c.bf16 %v8496, %v8493
    %v8559 = vpack.c.bf16 %v8504, %v8501
    %v8560 = vpack.c.bf16 %v8512, %v8509
    %v8561 = vpack.c.bf16 %v8520, %v8517
    %v8562 = vpack.c.bf16 %v8528, %v8525
    %s8563 = scalar_lea.vmem %s6, 8
    %v8564 = vld [vmem:[%s8563] sm:$0xf]
    %v8565 = vld [vmem:[%s8563 + $0x4] sm:$0xf]
    %v8568 = vunpack.c.l.b16 %v8564
    %v8569 = vunpack.c.l.b16 %v8565
    %v8570 = vpack.c.b16 %v8569, %v8568
    %8572 = vmatprep.subr.bf16.mxu0 0
    %8573 = vmatpush1.bf16.msra.mxu0 0
    %8574 = vmatprep.subr.bf16.mxu0 0
    %8575 = vmatpush1.bf16.msra.mxu0 0
    %8576 = vmatprep.subr.bf16.mxu0 0
    %8577 = vmatpush1.bf16.msra.mxu0 0
    %8578 = vmatprep.subr.bf16.mxu0 0
    %8579 = vmatpush1.bf16.msra.mxu0 0
    %8580 = vmatprep.subr.bf16.mxu0 0
    %8581 = vmatpush1.bf16.msra.mxu0 0
    %8582 = vmatprep.subr.bf16.mxu0 0
    %8583 = vmatpush1.bf16.msra.mxu0 0
    %8584 = vmatprep.subr.bf16.mxu0 0
    %8585 = vmatpush1.bf16.msra.mxu0 0
    %8586 = vmatprep.subr.bf16.mxu0 0
    %8587 = vmatpush1.bf16.msra.mxu0 %v8570
    %8588 = vmatprep.subr.bf16.mxu0 0
    %8589 = vmatpush2.bf16.msra.mxu0 0
    %8590 = vmatprep.subr.bf16.mxu0 0
    %8591 = vmatpush2.bf16.msra.mxu0 0
    %8592 = vmatprep.subr.bf16.mxu0 0
    %8593 = vmatpush2.bf16.msra.mxu0 0
    %8594 = vmatprep.subr.bf16.mxu0 0
    %8595 = vmatpush2.bf16.msra.mxu0 0
    %8596 = vmatprep.subr.bf16.mxu0 0
    %8597 = vmatpush2.bf16.msra.mxu0 0
    %8598 = vmatprep.subr.bf16.mxu0 0
    %8599 = vmatpush2.bf16.msra.mxu0 0
    %8600 = vmatprep.subr.bf16.mxu0 0
    %8601 = vmatpush2.bf16.msra.mxu0 0
    %8602 = vmatprep.subr.bf16.mxu0 0
    %8603 = vmatpush2.bf16.msra.mxu0 0
    %8604 = vmatprep.mubr.bf16.mxu0 0
    %8605 = vmatmul.mubr.bf16.gmra.mxu0 %v8323
    %v8606 = vpop.f32.mrf.mxu0
    %v8607 = vadd.f32 0.0, %v8606
    %v8608 = vpop.f32.mrf.mxu0
    %v8609 = vpop.f32.mrf.mxu0
    %v8610 = vadd.f32 0.0, %v8609
    %v8611 = vpop.f32.mrf.mxu0
    %8612 = vmatprep.mubr.bf16.mxu0 0
    %8613 = vmatmul.mubr.bf16.gmra.mxu0 %v8326
    %v8614 = vpop.f32.mrf.mxu0
    %v8615 = vadd.f32 0.0, %v8614
    %v8616 = vpop.f32.mrf.mxu0
    %v8617 = vpop.f32.mrf.mxu0
    %v8618 = vadd.f32 0.0, %v8617
    %v8619 = vpop.f32.mrf.mxu0
    %8620 = vmatprep.mubr.bf16.mxu0 0
    %8621 = vmatmul.mubr.bf16.gmra.mxu0 %v8329
    %v8622 = vpop.f32.mrf.mxu0
    %v8623 = vadd.f32 0.0, %v8622
    %v8624 = vpop.f32.mrf.mxu0
    %v8625 = vpop.f32.mrf.mxu0
    %v8626 = vadd.f32 0.0, %v8625
    %v8627 = vpop.f32.mrf.mxu0
    %8628 = vmatprep.mubr.bf16.mxu0 0
    %8629 = vmatmul.mubr.bf16.gmra.mxu0 %v8332
    %v8630 = vpop.f32.mrf.mxu0
    %v8631 = vadd.f32 0.0, %v8630
    %v8632 = vpop.f32.mrf.mxu0
    %v8633 = vpop.f32.mrf.mxu0
    %v8634 = vadd.f32 0.0, %v8633
    %v8635 = vpop.f32.mrf.mxu0
    %8636 = vmatprep.mubr.bf16.mxu0 0
    %8637 = vmatmul.mubr.bf16.gmra.mxu0 %v8335
    %v8638 = vpop.f32.mrf.mxu0
    %v8639 = vadd.f32 0.0, %v8638
    %v8640 = vpop.f32.mrf.mxu0
    %v8641 = vpop.f32.mrf.mxu0
    %v8642 = vadd.f32 0.0, %v8641
    %v8643 = vpop.f32.mrf.mxu0
    %8644 = vmatprep.mubr.bf16.mxu0 0
    %8645 = vmatmul.mubr.bf16.gmra.mxu0 %v8338
    %v8646 = vpop.f32.mrf.mxu0
    %v8647 = vadd.f32 0.0, %v8646
    %v8648 = vpop.f32.mrf.mxu0
    %v8649 = vpop.f32.mrf.mxu0
    %v8650 = vadd.f32 0.0, %v8649
    %v8651 = vpop.f32.mrf.mxu0
    %8652 = vmatprep.mubr.bf16.mxu0 0
    %8653 = vmatmul.mubr.bf16.gmra.mxu0 %v8341
    %v8654 = vpop.f32.mrf.mxu0
    %v8655 = vadd.f32 0.0, %v8654
    %v8656 = vpop.f32.mrf.mxu0
    %v8657 = vpop.f32.mrf.mxu0
    %v8658 = vadd.f32 0.0, %v8657
    %v8659 = vpop.f32.mrf.mxu0
    %8660 = vmatprep.mubr.bf16.mxu0 0
    %8661 = vmatmul.mubr.bf16.gmra.mxu0 %v8344
    %v8662 = vpop.f32.mrf.mxu0
    %v8663 = vadd.f32 0.0, %v8662
    %v8664 = vpop.f32.mrf.mxu0
    %v8665 = vpop.f32.mrf.mxu0
    %v8666 = vadd.f32 0.0, %v8665
    %v8667 = vpop.f32.mrf.mxu0
    %8668 = vmatprep.mubr.bf16.mxu0 0
    %8669 = vmatmul.mubr.bf16.gmra.mxu0 %v8347
    %v8670 = vpop.f32.mrf.mxu0
    %v8671 = vadd.f32 0.0, %v8670
    %v8672 = vpop.f32.mrf.mxu0
    %v8673 = vpop.f32.mrf.mxu0
    %v8674 = vadd.f32 0.0, %v8673
    %v8675 = vpop.f32.mrf.mxu0
    %8676 = vmatprep.mubr.bf16.mxu0 0
    %8677 = vmatmul.mubr.bf16.gmra.mxu0 %v8350
    %v8678 = vpop.f32.mrf.mxu0
    %v8679 = vadd.f32 0.0, %v8678
    %v8680 = vpop.f32.mrf.mxu0
    %v8681 = vpop.f32.mrf.mxu0
    %v8682 = vadd.f32 0.0, %v8681
    %v8683 = vpop.f32.mrf.mxu0
    %8684 = vmatprep.mubr.bf16.mxu0 0
    %8685 = vmatmul.mubr.bf16.gmra.mxu0 %v8353
    %v8686 = vpop.f32.mrf.mxu0
    %v8687 = vadd.f32 0.0, %v8686
    %v8688 = vpop.f32.mrf.mxu0
    %v8689 = vpop.f32.mrf.mxu0
    %v8690 = vadd.f32 0.0, %v8689
    %v8691 = vpop.f32.mrf.mxu0
    %8692 = vmatprep.mubr.bf16.mxu0 0
    %8693 = vmatmul.mubr.bf16.gmra.mxu0 %v8356
    %v8694 = vpop.f32.mrf.mxu0
    %v8695 = vadd.f32 0.0, %v8694
    %v8696 = vpop.f32.mrf.mxu0
    %v8697 = vpop.f32.mrf.mxu0
    %v8698 = vadd.f32 0.0, %v8697
    %v8699 = vpop.f32.mrf.mxu0
    %8700 = vmatprep.mubr.bf16.mxu0 0
    %8701 = vmatmul.mubr.bf16.gmra.mxu0 %v8359
    %v8702 = vpop.f32.mrf.mxu0
    %v8703 = vadd.f32 0.0, %v8702
    %v8704 = vpop.f32.mrf.mxu0
    %v8705 = vpop.f32.mrf.mxu0
    %v8706 = vadd.f32 0.0, %v8705
    %v8707 = vpop.f32.mrf.mxu0
    %8708 = vmatprep.mubr.bf16.mxu0 0
    %8709 = vmatmul.mubr.bf16.gmra.mxu0 %v8362
    %v8710 = vpop.f32.mrf.mxu0
    %v8711 = vadd.f32 0.0, %v8710
    %v8712 = vpop.f32.mrf.mxu0
    %v8713 = vpop.f32.mrf.mxu0
    %v8714 = vadd.f32 0.0, %v8713
    %v8715 = vpop.f32.mrf.mxu0
    %8716 = vmatprep.mubr.bf16.mxu0 0
    %8717 = vmatmul.mubr.bf16.gmra.mxu0 %v8365
    %v8718 = vpop.f32.mrf.mxu0
    %v8719 = vadd.f32 0.0, %v8718
    %v8720 = vpop.f32.mrf.mxu0
    %v8721 = vpop.f32.mrf.mxu0
    %v8722 = vadd.f32 0.0, %v8721
    %v8723 = vpop.f32.mrf.mxu0
    %8724 = vmatprep.mubr.bf16.mxu0 0
    %8725 = vmatmul.mubr.bf16.gmra.mxu0 %v8368
    %v8726 = vpop.f32.mrf.mxu0
    %v8727 = vadd.f32 0.0, %v8726
    %v8728 = vpop.f32.mrf.mxu0
    %v8729 = vpop.f32.mrf.mxu0
    %v8730 = vadd.f32 0.0, %v8729
    %v8731 = vpop.f32.mrf.mxu0
    %8732 = vdwg.mxu0
    %s8733 = scalar_lea.vmem [#allocation3], 128
    %v8734 = vld [vmem:[%s8733] sm:$0xff]
    %v8735 = vld [vmem:[%s8733 + $0x8] sm:$0xff]
    %v8736 = vld [vmem:[%s8733 + $0x10] sm:$0xff]
    %v8737 = vld [vmem:[%s8733 + $0x18] sm:$0xff]
    %v8738 = vld [vmem:[%s8733 + $0x20] sm:$0xff]
    %v8739 = vld [vmem:[%s8733 + $0x28] sm:$0xff]
    %v8740 = vld [vmem:[%s8733 + $0x30] sm:$0xff]
    %v8741 = vld [vmem:[%s8733 + $0x38] sm:$0xff]
    %v8742 = vld [vmem:[%s8733 + $0x40] sm:$0xff]
    %v8743 = vld [vmem:[%s8733 + $0x48] sm:$0xff]
    %v8744 = vld [vmem:[%s8733 + $0x50] sm:$0xff]
    %v8745 = vld [vmem:[%s8733 + $0x58] sm:$0xff]
    %v8746 = vld [vmem:[%s8733 + $0x60] sm:$0xff]
    %v8747 = vld [vmem:[%s8733 + $0x68] sm:$0xff]
    %v8748 = vld [vmem:[%s8733 + $0x70] sm:$0xff]
    %v8749 = vld [vmem:[%s8733 + $0x78] sm:$0xff]
    %v8750 = vpack.c.bf16 %v8610, %v8607
    %v8751 = vpack.c.bf16 %v8618, %v8615
    %v8752 = vpack.c.bf16 %v8626, %v8623
    %v8753 = vpack.c.bf16 %v8634, %v8631
    %v8754 = vpack.c.bf16 %v8642, %v8639
    %v8755 = vpack.c.bf16 %v8650, %v8647
    %v8756 = vpack.c.bf16 %v8658, %v8655
    %v8757 = vpack.c.bf16 %v8666, %v8663
    %v8758 = vpack.c.bf16 %v8674, %v8671
    %v8759 = vpack.c.bf16 %v8682, %v8679
    %v8760 = vpack.c.bf16 %v8690, %v8687
    %v8761 = vpack.c.bf16 %v8698, %v8695
    %v8762 = vpack.c.bf16 %v8706, %v8703
    %v8763 = vpack.c.bf16 %v8714, %v8711
    %v8764 = vpack.c.bf16 %v8722, %v8719
    %v8765 = vpack.c.bf16 %v8730, %v8727
    %v8782 = vunpack.c.l.b16 %v8734
    %v8783 = vunpack.c.h.b16 %v8734
    %v8784 = vunpack.c.l.b16 %v8735
    %v8785 = vunpack.c.h.b16 %v8735
    %v8786 = vunpack.c.l.b16 %v8736
    %v8787 = vunpack.c.h.b16 %v8736
    %v8788 = vunpack.c.l.b16 %v8737
    %v8789 = vunpack.c.h.b16 %v8737
    %v8790 = vunpack.c.l.b16 %v8738
    %v8791 = vunpack.c.h.b16 %v8738
    %v8792 = vunpack.c.l.b16 %v8739
    %v8793 = vunpack.c.h.b16 %v8739
    %v8794 = vunpack.c.l.b16 %v8740
    %v8795 = vunpack.c.h.b16 %v8740
    %v8796 = vunpack.c.l.b16 %v8741
    %v8797 = vunpack.c.h.b16 %v8741
    %v8798 = vunpack.c.l.b16 %v8742
    %v8799 = vunpack.c.h.b16 %v8742
    %v8800 = vunpack.c.l.b16 %v8743
    %v8801 = vunpack.c.h.b16 %v8743
    %v8802 = vunpack.c.l.b16 %v8744
    %v8803 = vunpack.c.h.b16 %v8744
    %v8804 = vunpack.c.l.b16 %v8745
    %v8805 = vunpack.c.h.b16 %v8745
    %v8806 = vunpack.c.l.b16 %v8746
    %v8807 = vunpack.c.h.b16 %v8746
    %v8808 = vunpack.c.l.b16 %v8747
    %v8809 = vunpack.c.h.b16 %v8747
    %v8810 = vunpack.c.l.b16 %v8748
    %v8811 = vunpack.c.h.b16 %v8748
    %v8812 = vunpack.c.l.b16 %v8749
    %v8813 = vunpack.c.h.b16 %v8749
    %v8814 = vpack.c.b16 %v8784, %v8782
    %v8815 = vpack.c.b16 %v8785, %v8783
    %v8816 = vpack.c.b16 %v8788, %v8786
    %v8817 = vpack.c.b16 %v8789, %v8787
    %v8818 = vpack.c.b16 %v8792, %v8790
    %v8819 = vpack.c.b16 %v8793, %v8791
    %v8820 = vpack.c.b16 %v8796, %v8794
    %v8821 = vpack.c.b16 %v8797, %v8795
    %v8822 = vpack.c.b16 %v8800, %v8798
    %v8823 = vpack.c.b16 %v8801, %v8799
    %v8824 = vpack.c.b16 %v8804, %v8802
    %v8825 = vpack.c.b16 %v8805, %v8803
    %v8826 = vpack.c.b16 %v8808, %v8806
    %v8827 = vpack.c.b16 %v8809, %v8807
    %v8828 = vpack.c.b16 %v8812, %v8810
    %v8829 = vpack.c.b16 %v8813, %v8811
    %8846 = vmatprep.subr.bf16.mxu0 0
    %8847 = vmatpush1.bf16.msra.mxu0 %v8757
    %8848 = vmatprep.subr.bf16.mxu0 0
    %8849 = vmatpush1.bf16.msra.mxu0 %v8756
    %8850 = vmatprep.subr.bf16.mxu0 0
    %8851 = vmatpush1.bf16.msra.mxu0 %v8755
    %8852 = vmatprep.subr.bf16.mxu0 0
    %8853 = vmatpush1.bf16.msra.mxu0 %v8754
    %8854 = vmatprep.subr.bf16.mxu0 0
    %8855 = vmatpush1.bf16.msra.mxu0 %v8753
    %8856 = vmatprep.subr.bf16.mxu0 0
    %8857 = vmatpush1.bf16.msra.mxu0 %v8752
    %8858 = vmatprep.subr.bf16.mxu0 0
    %8859 = vmatpush1.bf16.msra.mxu0 %v8751
    %8860 = vmatprep.subr.bf16.mxu0 0
    %8861 = vmatpush1.bf16.msra.mxu0 %v8750
    %8862 = vmatprep.subr.bf16.mxu0 0
    %8863 = vmatpush2.bf16.msra.mxu0 %v8765
    %8864 = vmatprep.subr.bf16.mxu0 0
    %8865 = vmatpush2.bf16.msra.mxu0 %v8764
    %8866 = vmatprep.subr.bf16.mxu0 0
    %8867 = vmatpush2.bf16.msra.mxu0 %v8763
    %8868 = vmatprep.subr.bf16.mxu0 0
    %8869 = vmatpush2.bf16.msra.mxu0 %v8762
    %8870 = vmatprep.subr.bf16.mxu0 0
    %8871 = vmatpush2.bf16.msra.mxu0 %v8761
    %8872 = vmatprep.subr.bf16.mxu0 0
    %8873 = vmatpush2.bf16.msra.mxu0 %v8760
    %8874 = vmatprep.subr.bf16.mxu0 0
    %8875 = vmatpush2.bf16.msra.mxu0 %v8759
    %8876 = vmatprep.subr.bf16.mxu0 0
    %8877 = vmatpush2.bf16.msra.mxu0 %v8758
    %8878 = vmatprep.mubr.bf16.mxu0 %v8815
    %8879 = vmatmul.mubr.bf16.gmra.mxu0 %v8814
    %v8880 = vpop.f32.mrf.mxu0
    %v8881 = vadd.f32 0.0, %v8880
    %v8882 = vpop.f32.mrf.mxu0
    %v8883 = vpop.f32.mrf.mxu0
    %v8884 = vadd.f32 0.0, %v8883
    %v8885 = vpop.f32.mrf.mxu0
    %8886 = vmatprep.mubr.bf16.mxu0 %v8817
    %8887 = vmatmul.mubr.bf16.gmra.mxu0 %v8816
    %v8888 = vpop.f32.mrf.mxu0
    %v8889 = vadd.f32 0.0, %v8888
    %v8890 = vpop.f32.mrf.mxu0
    %v8891 = vpop.f32.mrf.mxu0
    %v8892 = vadd.f32 0.0, %v8891
    %v8893 = vpop.f32.mrf.mxu0
    %8894 = vmatprep.mubr.bf16.mxu0 %v8819
    %8895 = vmatmul.mubr.bf16.gmra.mxu0 %v8818
    %v8896 = vpop.f32.mrf.mxu0
    %v8897 = vadd.f32 0.0, %v8896
    %v8898 = vpop.f32.mrf.mxu0
    %v8899 = vpop.f32.mrf.mxu0
    %v8900 = vadd.f32 0.0, %v8899
    %v8901 = vpop.f32.mrf.mxu0
    %8902 = vmatprep.mubr.bf16.mxu0 %v8821
    %8903 = vmatmul.mubr.bf16.gmra.mxu0 %v8820
    %v8904 = vpop.f32.mrf.mxu0
    %v8905 = vadd.f32 0.0, %v8904
    %v8906 = vpop.f32.mrf.mxu0
    %v8907 = vpop.f32.mrf.mxu0
    %v8908 = vadd.f32 0.0, %v8907
    %v8909 = vpop.f32.mrf.mxu0
    %8910 = vmatprep.mubr.bf16.mxu0 %v8823
    %8911 = vmatmul.mubr.bf16.gmra.mxu0 %v8822
    %v8912 = vpop.f32.mrf.mxu0
    %v8913 = vadd.f32 0.0, %v8912
    %v8914 = vpop.f32.mrf.mxu0
    %v8915 = vpop.f32.mrf.mxu0
    %v8916 = vadd.f32 0.0, %v8915
    %v8917 = vpop.f32.mrf.mxu0
    %8918 = vmatprep.mubr.bf16.mxu0 %v8825
    %8919 = vmatmul.mubr.bf16.gmra.mxu0 %v8824
    %v8920 = vpop.f32.mrf.mxu0
    %v8921 = vadd.f32 0.0, %v8920
    %v8922 = vpop.f32.mrf.mxu0
    %v8923 = vpop.f32.mrf.mxu0
    %v8924 = vadd.f32 0.0, %v8923
    %v8925 = vpop.f32.mrf.mxu0
    %8926 = vmatprep.mubr.bf16.mxu0 %v8827
    %8927 = vmatmul.mubr.bf16.gmra.mxu0 %v8826
    %v8928 = vpop.f32.mrf.mxu0
    %v8929 = vadd.f32 0.0, %v8928
    %v8930 = vpop.f32.mrf.mxu0
    %v8931 = vpop.f32.mrf.mxu0
    %v8932 = vadd.f32 0.0, %v8931
    %v8933 = vpop.f32.mrf.mxu0
    %8934 = vmatprep.mubr.bf16.mxu0 %v8829
    %8935 = vmatmul.mubr.bf16.gmra.mxu0 %v8828
    %v8936 = vpop.f32.mrf.mxu0
    %v8937 = vadd.f32 0.0, %v8936
    %v8938 = vpop.f32.mrf.mxu0
    %v8939 = vpop.f32.mrf.mxu0
    %v8940 = vadd.f32 0.0, %v8939
    %v8941 = vpop.f32.mrf.mxu0
    %8942 = vdwg.mxu0
    %v8959 = vunpack.c.l.b16 %v8531
    %v8960 = vunpack.c.h.b16 %v8531
    %v8961 = vunpack.c.l.b16 %v8532
    %v8962 = vunpack.c.h.b16 %v8532
    %v8963 = vunpack.c.l.b16 %v8533
    %v8964 = vunpack.c.h.b16 %v8533
    %v8965 = vunpack.c.l.b16 %v8534
    %v8966 = vunpack.c.h.b16 %v8534
    %v8967 = vunpack.c.l.b16 %v8535
    %v8968 = vunpack.c.h.b16 %v8535
    %v8969 = vunpack.c.l.b16 %v8536
    %v8970 = vunpack.c.h.b16 %v8536
    %v8971 = vunpack.c.l.b16 %v8537
    %v8972 = vunpack.c.h.b16 %v8537
    %v8973 = vunpack.c.l.b16 %v8538
    %v8974 = vunpack.c.h.b16 %v8538
    %v8975 = vunpack.c.l.b16 %v8539
    %v8976 = vunpack.c.h.b16 %v8539
    %v8977 = vunpack.c.l.b16 %v8540
    %v8978 = vunpack.c.h.b16 %v8540
    %v8979 = vunpack.c.l.b16 %v8541
    %v8980 = vunpack.c.h.b16 %v8541
    %v8981 = vunpack.c.l.b16 %v8542
    %v8982 = vunpack.c.h.b16 %v8542
    %v8983 = vunpack.c.l.b16 %v8543
    %v8984 = vunpack.c.h.b16 %v8543
    %v8985 = vunpack.c.l.b16 %v8544
    %v8986 = vunpack.c.h.b16 %v8544
    %v8987 = vunpack.c.l.b16 %v8545
    %v8988 = vunpack.c.h.b16 %v8545
    %v8989 = vunpack.c.l.b16 %v8546
    %v8990 = vunpack.c.h.b16 %v8546
    %v8991 = vpack.c.b16 %v8961, %v8959
    %v8992 = vpack.c.b16 %v8962, %v8960
    %v8993 = vpack.c.b16 %v8965, %v8963
    %v8994 = vpack.c.b16 %v8966, %v8964
    %v8995 = vpack.c.b16 %v8969, %v8967
    %v8996 = vpack.c.b16 %v8970, %v8968
    %v8997 = vpack.c.b16 %v8973, %v8971
    %v8998 = vpack.c.b16 %v8974, %v8972
    %v8999 = vpack.c.b16 %v8977, %v8975
    %v9000 = vpack.c.b16 %v8978, %v8976
    %v9001 = vpack.c.b16 %v8981, %v8979
    %v9002 = vpack.c.b16 %v8982, %v8980
    %v9003 = vpack.c.b16 %v8985, %v8983
    %v9004 = vpack.c.b16 %v8986, %v8984
    %v9005 = vpack.c.b16 %v8989, %v8987
    %v9006 = vpack.c.b16 %v8990, %v8988
    %9023 = vmatprep.subr.bf16.mxu0 0
    %9024 = vmatpush1.bf16.msra.mxu0 %v8554
    %9025 = vmatprep.subr.bf16.mxu0 0
    %9026 = vmatpush1.bf16.msra.mxu0 %v8553
    %9027 = vmatprep.subr.bf16.mxu0 0
    %9028 = vmatpush1.bf16.msra.mxu0 %v8552
    %9029 = vmatprep.subr.bf16.mxu0 0
    %9030 = vmatpush1.bf16.msra.mxu0 %v8551
    %9031 = vmatprep.subr.bf16.mxu0 0
    %9032 = vmatpush1.bf16.msra.mxu0 %v8550
    %9033 = vmatprep.subr.bf16.mxu0 0
    %9034 = vmatpush1.bf16.msra.mxu0 %v8549
    %9035 = vmatprep.subr.bf16.mxu0 0
    %9036 = vmatpush1.bf16.msra.mxu0 %v8548
    %9037 = vmatprep.subr.bf16.mxu0 0
    %9038 = vmatpush1.bf16.msra.mxu0 %v8547
    %9039 = vmatprep.subr.bf16.mxu0 0
    %9040 = vmatpush2.bf16.msra.mxu0 %v8562
    %9041 = vmatprep.subr.bf16.mxu0 0
    %9042 = vmatpush2.bf16.msra.mxu0 %v8561
    %9043 = vmatprep.subr.bf16.mxu0 0
    %9044 = vmatpush2.bf16.msra.mxu0 %v8560
    %9045 = vmatprep.subr.bf16.mxu0 0
    %9046 = vmatpush2.bf16.msra.mxu0 %v8559
    %9047 = vmatprep.subr.bf16.mxu0 0
    %9048 = vmatpush2.bf16.msra.mxu0 %v8558
    %9049 = vmatprep.subr.bf16.mxu0 0
    %9050 = vmatpush2.bf16.msra.mxu0 %v8557
    %9051 = vmatprep.subr.bf16.mxu0 0
    %9052 = vmatpush2.bf16.msra.mxu0 %v8556
    %9053 = vmatprep.subr.bf16.mxu0 0
    %9054 = vmatpush2.bf16.msra.mxu0 %v8555
    %9055 = vmatprep.mubr.bf16.mxu0 %v8992
    %9056 = vmatmul.mubr.bf16.gmra.mxu0 %v8991
    %v9057 = vpop.f32.mrf.mxu0
    %v9058 = vadd.f32 %v8881, %v9057
    %v9059 = vpop.f32.mrf.mxu0
    %v9060 = vpop.f32.mrf.mxu0
    %v9061 = vadd.f32 %v8884, %v9060
    %v9062 = vpop.f32.mrf.mxu0
    %9063 = vmatprep.mubr.bf16.mxu0 %v8994
    %9064 = vmatmul.mubr.bf16.gmra.mxu0 %v8993
    %v9065 = vpop.f32.mrf.mxu0
    %v9066 = vadd.f32 %v8889, %v9065
    %v9067 = vpop.f32.mrf.mxu0
    %v9068 = vpop.f32.mrf.mxu0
    %v9069 = vadd.f32 %v8892, %v9068
    %v9070 = vpop.f32.mrf.mxu0
    %9071 = vmatprep.mubr.bf16.mxu0 %v8996
    %9072 = vmatmul.mubr.bf16.gmra.mxu0 %v8995
    %v9073 = vpop.f32.mrf.mxu0
    %v9074 = vadd.f32 %v8897, %v9073
    %v9075 = vpop.f32.mrf.mxu0
    %v9076 = vpop.f32.mrf.mxu0
    %v9077 = vadd.f32 %v8900, %v9076
    %v9078 = vpop.f32.mrf.mxu0
    %9079 = vmatprep.mubr.bf16.mxu0 %v8998
    %9080 = vmatmul.mubr.bf16.gmra.mxu0 %v8997
    %v9081 = vpop.f32.mrf.mxu0
    %v9082 = vadd.f32 %v8905, %v9081
    %v9083 = vpop.f32.mrf.mxu0
    %v9084 = vpop.f32.mrf.mxu0
    %v9085 = vadd.f32 %v8908, %v9084
    %v9086 = vpop.f32.mrf.mxu0
    %9087 = vmatprep.mubr.bf16.mxu0 %v9000
    %9088 = vmatmul.mubr.bf16.gmra.mxu0 %v8999
    %v9089 = vpop.f32.mrf.mxu0
    %v9090 = vadd.f32 %v8913, %v9089
    %v9091 = vpop.f32.mrf.mxu0
    %v9092 = vpop.f32.mrf.mxu0
    %v9093 = vadd.f32 %v8916, %v9092
    %v9094 = vpop.f32.mrf.mxu0
    %9095 = vmatprep.mubr.bf16.mxu0 %v9002
    %9096 = vmatmul.mubr.bf16.gmra.mxu0 %v9001
    %v9097 = vpop.f32.mrf.mxu0
    %v9098 = vadd.f32 %v8921, %v9097
    %v9099 = vpop.f32.mrf.mxu0
    %v9100 = vpop.f32.mrf.mxu0
    %v9101 = vadd.f32 %v8924, %v9100
    %v9102 = vpop.f32.mrf.mxu0
    %9103 = vmatprep.mubr.bf16.mxu0 %v9004
    %9104 = vmatmul.mubr.bf16.gmra.mxu0 %v9003
    %v9105 = vpop.f32.mrf.mxu0
    %v9106 = vadd.f32 %v8929, %v9105
    %v9107 = vpop.f32.mrf.mxu0
    %v9108 = vpop.f32.mrf.mxu0
    %v9109 = vadd.f32 %v8932, %v9108
    %v9110 = vpop.f32.mrf.mxu0
    %9111 = vmatprep.mubr.bf16.mxu0 %v9006
    %9112 = vmatmul.mubr.bf16.gmra.mxu0 %v9005
    %v9113 = vpop.f32.mrf.mxu0
    %v9114 = vadd.f32 %v8937, %v9113
    %v9115 = vpop.f32.mrf.mxu0
    %v9116 = vpop.f32.mrf.mxu0
    %v9117 = vadd.f32 %v8940, %v9116
    %v9118 = vpop.f32.mrf.mxu0
    %9119 = vdwg.mxu0
    %s9120 = scalar_lea.vmem %s6, 16
    %v9121 = vld [vmem:[%s9120] sm:$0xf]
    %v9122 = vld [vmem:[%s9120 + $0x4] sm:$0xf]
    %v9125 = vunpack.c.l.b16 %v9121
    %v9126 = vunpack.c.l.b16 %v9122
    %v9127 = vpack.c.b16 %v9126, %v9125
    %9129 = vmatprep.subr.bf16.mxu0 0
    %9130 = vmatpush1.bf16.msra.mxu0 0
    %9131 = vmatprep.subr.bf16.mxu0 0
    %9132 = vmatpush1.bf16.msra.mxu0 0
    %9133 = vmatprep.subr.bf16.mxu0 0
    %9134 = vmatpush1.bf16.msra.mxu0 0
    %9135 = vmatprep.subr.bf16.mxu0 0
    %9136 = vmatpush1.bf16.msra.mxu0 0
    %9137 = vmatprep.subr.bf16.mxu0 0
    %9138 = vmatpush1.bf16.msra.mxu0 0
    %9139 = vmatprep.subr.bf16.mxu0 0
    %9140 = vmatpush1.bf16.msra.mxu0 0
    %9141 = vmatprep.subr.bf16.mxu0 0
    %9142 = vmatpush1.bf16.msra.mxu0 0
    %9143 = vmatprep.subr.bf16.mxu0 0
    %9144 = vmatpush1.bf16.msra.mxu0 %v9127
    %9145 = vmatprep.subr.bf16.mxu0 0
    %9146 = vmatpush2.bf16.msra.mxu0 0
    %9147 = vmatprep.subr.bf16.mxu0 0
    %9148 = vmatpush2.bf16.msra.mxu0 0
    %9149 = vmatprep.subr.bf16.mxu0 0
    %9150 = vmatpush2.bf16.msra.mxu0 0
    %9151 = vmatprep.subr.bf16.mxu0 0
    %9152 = vmatpush2.bf16.msra.mxu0 0
    %9153 = vmatprep.subr.bf16.mxu0 0
    %9154 = vmatpush2.bf16.msra.mxu0 0
    %9155 = vmatprep.subr.bf16.mxu0 0
    %9156 = vmatpush2.bf16.msra.mxu0 0
    %9157 = vmatprep.subr.bf16.mxu0 0
    %9158 = vmatpush2.bf16.msra.mxu0 0
    %9159 = vmatprep.subr.bf16.mxu0 0
    %9160 = vmatpush2.bf16.msra.mxu0 0
    %9161 = vmatprep.mubr.bf16.mxu0 0
    %9162 = vmatmul.mubr.bf16.gmra.mxu0 %v8323
    %v9163 = vpop.f32.mrf.mxu0
    %v9164 = vadd.f32 0.0, %v9163
    %v9165 = vpop.f32.mrf.mxu0
    %v9166 = vpop.f32.mrf.mxu0
    %v9167 = vadd.f32 0.0, %v9166
    %v9168 = vpop.f32.mrf.mxu0
    %9169 = vmatprep.mubr.bf16.mxu0 0
    %9170 = vmatmul.mubr.bf16.gmra.mxu0 %v8326
    %v9171 = vpop.f32.mrf.mxu0
    %v9172 = vadd.f32 0.0, %v9171
    %v9173 = vpop.f32.mrf.mxu0
    %v9174 = vpop.f32.mrf.mxu0
    %v9175 = vadd.f32 0.0, %v9174
    %v9176 = vpop.f32.mrf.mxu0
    %9177 = vmatprep.mubr.bf16.mxu0 0
    %9178 = vmatmul.mubr.bf16.gmra.mxu0 %v8329
    %v9179 = vpop.f32.mrf.mxu0
    %v9180 = vadd.f32 0.0, %v9179
    %v9181 = vpop.f32.mrf.mxu0
    %v9182 = vpop.f32.mrf.mxu0
    %v9183 = vadd.f32 0.0, %v9182
    %v9184 = vpop.f32.mrf.mxu0
    %9185 = vmatprep.mubr.bf16.mxu0 0
    %9186 = vmatmul.mubr.bf16.gmra.mxu0 %v8332
    %v9187 = vpop.f32.mrf.mxu0
    %v9188 = vadd.f32 0.0, %v9187
    %v9189 = vpop.f32.mrf.mxu0
    %v9190 = vpop.f32.mrf.mxu0
    %v9191 = vadd.f32 0.0, %v9190
    %v9192 = vpop.f32.mrf.mxu0
    %9193 = vmatprep.mubr.bf16.mxu0 0
    %9194 = vmatmul.mubr.bf16.gmra.mxu0 %v8335
    %v9195 = vpop.f32.mrf.mxu0
    %v9196 = vadd.f32 0.0, %v9195
    %v9197 = vpop.f32.mrf.mxu0
    %v9198 = vpop.f32.mrf.mxu0
    %v9199 = vadd.f32 0.0, %v9198
    %v9200 = vpop.f32.mrf.mxu0
    %9201 = vmatprep.mubr.bf16.mxu0 0
    %9202 = vmatmul.mubr.bf16.gmra.mxu0 %v8338
    %v9203 = vpop.f32.mrf.mxu0
    %v9204 = vadd.f32 0.0, %v9203
    %v9205 = vpop.f32.mrf.mxu0
    %v9206 = vpop.f32.mrf.mxu0
    %v9207 = vadd.f32 0.0, %v9206
    %v9208 = vpop.f32.mrf.mxu0
    %9209 = vmatprep.mubr.bf16.mxu0 0
    %9210 = vmatmul.mubr.bf16.gmra.mxu0 %v8341
    %v9211 = vpop.f32.mrf.mxu0
    %v9212 = vadd.f32 0.0, %v9211
    %v9213 = vpop.f32.mrf.mxu0
    %v9214 = vpop.f32.mrf.mxu0
    %v9215 = vadd.f32 0.0, %v9214
    %v9216 = vpop.f32.mrf.mxu0
    %9217 = vmatprep.mubr.bf16.mxu0 0
    %9218 = vmatmul.mubr.bf16.gmra.mxu0 %v8344
    %v9219 = vpop.f32.mrf.mxu0
    %v9220 = vadd.f32 0.0, %v9219
    %v9221 = vpop.f32.mrf.mxu0
    %v9222 = vpop.f32.mrf.mxu0
    %v9223 = vadd.f32 0.0, %v9222
    %v9224 = vpop.f32.mrf.mxu0
    %9225 = vmatprep.mubr.bf16.mxu0 0
    %9226 = vmatmul.mubr.bf16.gmra.mxu0 %v8347
    %v9227 = vpop.f32.mrf.mxu0
    %v9228 = vadd.f32 0.0, %v9227
    %v9229 = vpop.f32.mrf.mxu0
    %v9230 = vpop.f32.mrf.mxu0
    %v9231 = vadd.f32 0.0, %v9230
    %v9232 = vpop.f32.mrf.mxu0
    %9233 = vmatprep.mubr.bf16.mxu0 0
    %9234 = vmatmul.mubr.bf16.gmra.mxu0 %v8350
    %v9235 = vpop.f32.mrf.mxu0
    %v9236 = vadd.f32 0.0, %v9235
    %v9237 = vpop.f32.mrf.mxu0
    %v9238 = vpop.f32.mrf.mxu0
    %v9239 = vadd.f32 0.0, %v9238
    %v9240 = vpop.f32.mrf.mxu0
    %9241 = vmatprep.mubr.bf16.mxu0 0
    %9242 = vmatmul.mubr.bf16.gmra.mxu0 %v8353
    %v9243 = vpop.f32.mrf.mxu0
    %v9244 = vadd.f32 0.0, %v9243
    %v9245 = vpop.f32.mrf.mxu0
    %v9246 = vpop.f32.mrf.mxu0
    %v9247 = vadd.f32 0.0, %v9246
    %v9248 = vpop.f32.mrf.mxu0
    %9249 = vmatprep.mubr.bf16.mxu0 0
    %9250 = vmatmul.mubr.bf16.gmra.mxu0 %v8356
    %v9251 = vpop.f32.mrf.mxu0
    %v9252 = vadd.f32 0.0, %v9251
    %v9253 = vpop.f32.mrf.mxu0
    %v9254 = vpop.f32.mrf.mxu0
    %v9255 = vadd.f32 0.0, %v9254
    %v9256 = vpop.f32.mrf.mxu0
    %9257 = vmatprep.mubr.bf16.mxu0 0
    %9258 = vmatmul.mubr.bf16.gmra.mxu0 %v8359
    %v9259 = vpop.f32.mrf.mxu0
    %v9260 = vadd.f32 0.0, %v9259
    %v9261 = vpop.f32.mrf.mxu0
    %v9262 = vpop.f32.mrf.mxu0
    %v9263 = vadd.f32 0.0, %v9262
    %v9264 = vpop.f32.mrf.mxu0
    %9265 = vmatprep.mubr.bf16.mxu0 0
    %9266 = vmatmul.mubr.bf16.gmra.mxu0 %v8362
    %v9267 = vpop.f32.mrf.mxu0
    %v9268 = vadd.f32 0.0, %v9267
    %v9269 = vpop.f32.mrf.mxu0
    %v9270 = vpop.f32.mrf.mxu0
    %v9271 = vadd.f32 0.0, %v9270
    %v9272 = vpop.f32.mrf.mxu0
    %9273 = vmatprep.mubr.bf16.mxu0 0
    %9274 = vmatmul.mubr.bf16.gmra.mxu0 %v8365
    %v9275 = vpop.f32.mrf.mxu0
    %v9276 = vadd.f32 0.0, %v9275
    %v9277 = vpop.f32.mrf.mxu0
    %v9278 = vpop.f32.mrf.mxu0
    %v9279 = vadd.f32 0.0, %v9278
    %v9280 = vpop.f32.mrf.mxu0
    %9281 = vmatprep.mubr.bf16.mxu0 0
    %9282 = vmatmul.mubr.bf16.gmra.mxu0 %v8368
    %v9283 = vpop.f32.mrf.mxu0
    %v9284 = vadd.f32 0.0, %v9283
    %v9285 = vpop.f32.mrf.mxu0
    %v9286 = vpop.f32.mrf.mxu0
    %v9287 = vadd.f32 0.0, %v9286
    %v9288 = vpop.f32.mrf.mxu0
    %9289 = vdwg.mxu0
    %s9290 = scalar_lea.vmem [#allocation3], 256
    %v9291 = vld [vmem:[%s9290] sm:$0xff]
    %v9292 = vld [vmem:[%s9290 + $0x8] sm:$0xff]
    %v9293 = vld [vmem:[%s9290 + $0x10] sm:$0xff]
    %v9294 = vld [vmem:[%s9290 + $0x18] sm:$0xff]
    %v9295 = vld [vmem:[%s9290 + $0x20] sm:$0xff]
    %v9296 = vld [vmem:[%s9290 + $0x28] sm:$0xff]
    %v9297 = vld [vmem:[%s9290 + $0x30] sm:$0xff]
    %v9298 = vld [vmem:[%s9290 + $0x38] sm:$0xff]
    %v9299 = vld [vmem:[%s9290 + $0x40] sm:$0xff]
    %v9300 = vld [vmem:[%s9290 + $0x48] sm:$0xff]
    %v9301 = vld [vmem:[%s9290 + $0x50] sm:$0xff]
    %v9302 = vld [vmem:[%s9290 + $0x58] sm:$0xff]
    %v9303 = vld [vmem:[%s9290 + $0x60] sm:$0xff]
    %v9304 = vld [vmem:[%s9290 + $0x68] sm:$0xff]
    %v9305 = vld [vmem:[%s9290 + $0x70] sm:$0xff]
    %v9306 = vld [vmem:[%s9290 + $0x78] sm:$0xff]
    %v9307 = vpack.c.bf16 %v9167, %v9164
    %v9308 = vpack.c.bf16 %v9175, %v9172
    %v9309 = vpack.c.bf16 %v9183, %v9180
    %v9310 = vpack.c.bf16 %v9191, %v9188
    %v9311 = vpack.c.bf16 %v9199, %v9196
    %v9312 = vpack.c.bf16 %v9207, %v9204
    %v9313 = vpack.c.bf16 %v9215, %v9212
    %v9314 = vpack.c.bf16 %v9223, %v9220
    %v9315 = vpack.c.bf16 %v9231, %v9228
    %v9316 = vpack.c.bf16 %v9239, %v9236
    %v9317 = vpack.c.bf16 %v9247, %v9244
    %v9318 = vpack.c.bf16 %v9255, %v9252
    %v9319 = vpack.c.bf16 %v9263, %v9260
    %v9320 = vpack.c.bf16 %v9271, %v9268
    %v9321 = vpack.c.bf16 %v9279, %v9276
    %v9322 = vpack.c.bf16 %v9287, %v9284
    %v9339 = vunpack.c.l.b16 %v9291
    %v9340 = vunpack.c.h.b16 %v9291
    %v9341 = vunpack.c.l.b16 %v9292
    %v9342 = vunpack.c.h.b16 %v9292
    %v9343 = vunpack.c.l.b16 %v9293
    %v9344 = vunpack.c.h.b16 %v9293
    %v9345 = vunpack.c.l.b16 %v9294
    %v9346 = vunpack.c.h.b16 %v9294
    %v9347 = vunpack.c.l.b16 %v9295
    %v9348 = vunpack.c.h.b16 %v9295
    %v9349 = vunpack.c.l.b16 %v9296
    %v9350 = vunpack.c.h.b16 %v9296
    %v9351 = vunpack.c.l.b16 %v9297
    %v9352 = vunpack.c.h.b16 %v9297
    %v9353 = vunpack.c.l.b16 %v9298
    %v9354 = vunpack.c.h.b16 %v9298
    %v9355 = vunpack.c.l.b16 %v9299
    %v9356 = vunpack.c.h.b16 %v9299
    %v9357 = vunpack.c.l.b16 %v9300
    %v9358 = vunpack.c.h.b16 %v9300
    %v9359 = vunpack.c.l.b16 %v9301
    %v9360 = vunpack.c.h.b16 %v9301
    %v9361 = vunpack.c.l.b16 %v9302
    %v9362 = vunpack.c.h.b16 %v9302
    %v9363 = vunpack.c.l.b16 %v9303
    %v9364 = vunpack.c.h.b16 %v9303
    %v9365 = vunpack.c.l.b16 %v9304
    %v9366 = vunpack.c.h.b16 %v9304
    %v9367 = vunpack.c.l.b16 %v9305
    %v9368 = vunpack.c.h.b16 %v9305
    %v9369 = vunpack.c.l.b16 %v9306
    %v9370 = vunpack.c.h.b16 %v9306
    %v9371 = vpack.c.b16 %v9341, %v9339
    %v9372 = vpack.c.b16 %v9342, %v9340
    %v9373 = vpack.c.b16 %v9345, %v9343
    %v9374 = vpack.c.b16 %v9346, %v9344
    %v9375 = vpack.c.b16 %v9349, %v9347
    %v9376 = vpack.c.b16 %v9350, %v9348
    %v9377 = vpack.c.b16 %v9353, %v9351
    %v9378 = vpack.c.b16 %v9354, %v9352
    %v9379 = vpack.c.b16 %v9357, %v9355
    %v9380 = vpack.c.b16 %v9358, %v9356
    %v9381 = vpack.c.b16 %v9361, %v9359
    %v9382 = vpack.c.b16 %v9362, %v9360
    %v9383 = vpack.c.b16 %v9365, %v9363
    %v9384 = vpack.c.b16 %v9366, %v9364
    %v9385 = vpack.c.b16 %v9369, %v9367
    %v9386 = vpack.c.b16 %v9370, %v9368
    %9403 = vmatprep.subr.bf16.mxu0 0
    %9404 = vmatpush1.bf16.msra.mxu0 %v9314
    %9405 = vmatprep.subr.bf16.mxu0 0
    %9406 = vmatpush1.bf16.msra.mxu0 %v9313
    %9407 = vmatprep.subr.bf16.mxu0 0
    %9408 = vmatpush1.bf16.msra.mxu0 %v9312
    %9409 = vmatprep.subr.bf16.mxu0 0
    %9410 = vmatpush1.bf16.msra.mxu0 %v9311
    %9411 = vmatprep.subr.bf16.mxu0 0
    %9412 = vmatpush1.bf16.msra.mxu0 %v9310
    %9413 = vmatprep.subr.bf16.mxu0 0
    %9414 = vmatpush1.bf16.msra.mxu0 %v9309
    %9415 = vmatprep.subr.bf16.mxu0 0
    %9416 = vmatpush1.bf16.msra.mxu0 %v9308
    %9417 = vmatprep.subr.bf16.mxu0 0
    %9418 = vmatpush1.bf16.msra.mxu0 %v9307
    %9419 = vmatprep.subr.bf16.mxu0 0
    %9420 = vmatpush2.bf16.msra.mxu0 %v9322
    %9421 = vmatprep.subr.bf16.mxu0 0
    %9422 = vmatpush2.bf16.msra.mxu0 %v9321
    %9423 = vmatprep.subr.bf16.mxu0 0
    %9424 = vmatpush2.bf16.msra.mxu0 %v9320
    %9425 = vmatprep.subr.bf16.mxu0 0
    %9426 = vmatpush2.bf16.msra.mxu0 %v9319
    %9427 = vmatprep.subr.bf16.mxu0 0
    %9428 = vmatpush2.bf16.msra.mxu0 %v9318
    %9429 = vmatprep.subr.bf16.mxu0 0
    %9430 = vmatpush2.bf16.msra.mxu0 %v9317
    %9431 = vmatprep.subr.bf16.mxu0 0
    %9432 = vmatpush2.bf16.msra.mxu0 %v9316
    %9433 = vmatprep.subr.bf16.mxu0 0
    %9434 = vmatpush2.bf16.msra.mxu0 %v9315
    %9435 = vmatprep.mubr.bf16.mxu0 %v9372
    %9436 = vmatmul.mubr.bf16.gmra.mxu0 %v9371
    %v9437 = vpop.f32.mrf.mxu0
    %v9438 = vadd.f32 0.0, %v9437
    %v9439 = vpop.f32.mrf.mxu0
    %v9440 = vpop.f32.mrf.mxu0
    %v9441 = vadd.f32 0.0, %v9440
    %v9442 = vpop.f32.mrf.mxu0
    %9443 = vmatprep.mubr.bf16.mxu0 %v9374
    %9444 = vmatmul.mubr.bf16.gmra.mxu0 %v9373
    %v9445 = vpop.f32.mrf.mxu0
    %v9446 = vadd.f32 0.0, %v9445
    %v9447 = vpop.f32.mrf.mxu0
    %v9448 = vpop.f32.mrf.mxu0
    %v9449 = vadd.f32 0.0, %v9448
    %v9450 = vpop.f32.mrf.mxu0
    %9451 = vmatprep.mubr.bf16.mxu0 %v9376
    %9452 = vmatmul.mubr.bf16.gmra.mxu0 %v9375
    %v9453 = vpop.f32.mrf.mxu0
    %v9454 = vadd.f32 0.0, %v9453
    %v9455 = vpop.f32.mrf.mxu0
    %v9456 = vpop.f32.mrf.mxu0
    %v9457 = vadd.f32 0.0, %v9456
    %v9458 = vpop.f32.mrf.mxu0
    %9459 = vmatprep.mubr.bf16.mxu0 %v9378
    %9460 = vmatmul.mubr.bf16.gmra.mxu0 %v9377
    %v9461 = vpop.f32.mrf.mxu0
    %v9462 = vadd.f32 0.0, %v9461
    %v9463 = vpop.f32.mrf.mxu0
    %v9464 = vpop.f32.mrf.mxu0
    %v9465 = vadd.f32 0.0, %v9464
    %v9466 = vpop.f32.mrf.mxu0
    %9467 = vmatprep.mubr.bf16.mxu0 %v9380
    %9468 = vmatmul.mubr.bf16.gmra.mxu0 %v9379
    %v9469 = vpop.f32.mrf.mxu0
    %v9470 = vadd.f32 0.0, %v9469
    %v9471 = vpop.f32.mrf.mxu0
    %v9472 = vpop.f32.mrf.mxu0
    %v9473 = vadd.f32 0.0, %v9472
    %v9474 = vpop.f32.mrf.mxu0
    %9475 = vmatprep.mubr.bf16.mxu0 %v9382
    %9476 = vmatmul.mubr.bf16.gmra.mxu0 %v9381
    %v9477 = vpop.f32.mrf.mxu0
    %v9478 = vadd.f32 0.0, %v9477
    %v9479 = vpop.f32.mrf.mxu0
    %v9480 = vpop.f32.mrf.mxu0
    %v9481 = vadd.f32 0.0, %v9480
    %v9482 = vpop.f32.mrf.mxu0
    %9483 = vmatprep.mubr.bf16.mxu0 %v9384
    %9484 = vmatmul.mubr.bf16.gmra.mxu0 %v9383
    %v9485 = vpop.f32.mrf.mxu0
    %v9486 = vadd.f32 0.0, %v9485
    %v9487 = vpop.f32.mrf.mxu0
    %v9488 = vpop.f32.mrf.mxu0
    %v9489 = vadd.f32 0.0, %v9488
    %v9490 = vpop.f32.mrf.mxu0
    %9491 = vmatprep.mubr.bf16.mxu0 %v9386
    %9492 = vmatmul.mubr.bf16.gmra.mxu0 %v9385
    %v9493 = vpop.f32.mrf.mxu0
    %v9494 = vadd.f32 0.0, %v9493
    %v9495 = vpop.f32.mrf.mxu0
    %v9496 = vpop.f32.mrf.mxu0
    %v9497 = vadd.f32 0.0, %v9496
    %v9498 = vpop.f32.mrf.mxu0
    %9499 = vdwg.mxu0
    %v9500 = vadd.f32 %v9058, %v9438
    %v9501 = vadd.f32 %v9061, %v9441
    %v9502 = vadd.f32 %v9066, %v9446
    %v9503 = vadd.f32 %v9069, %v9449
    %v9504 = vadd.f32 %v9074, %v9454
    %v9505 = vadd.f32 %v9077, %v9457
    %v9506 = vadd.f32 %v9082, %v9462
    %v9507 = vadd.f32 %v9085, %v9465
    %v9508 = vadd.f32 %v9090, %v9470
    %v9509 = vadd.f32 %v9093, %v9473
    %v9510 = vadd.f32 %v9098, %v9478
    %v9511 = vadd.f32 %v9101, %v9481
    %v9512 = vadd.f32 %v9106, %v9486
    %v9513 = vadd.f32 %v9109, %v9489
    %v9514 = vadd.f32 %v9114, %v9494
    %v9515 = vadd.f32 %v9117, %v9497
    %s9516 = scalar_lea.vmem %s6, 24
    %v9517 = vld [vmem:[%s9516] sm:$0xf]
    %v9518 = vld [vmem:[%s9516 + $0x4] sm:$0xf]
    %v9521 = vunpack.c.l.b16 %v9517
    %v9522 = vunpack.c.l.b16 %v9518
    %v9523 = vpack.c.b16 %v9522, %v9521
    %9525 = vmatprep.subr.bf16.mxu0 0
    %9526 = vmatpush1.bf16.msra.mxu0 0
    %9527 = vmatprep.subr.bf16.mxu0 0
    %9528 = vmatpush1.bf16.msra.mxu0 0
    %9529 = vmatprep.subr.bf16.mxu0 0
    %9530 = vmatpush1.bf16.msra.mxu0 0
    %9531 = vmatprep.subr.bf16.mxu0 0
    %9532 = vmatpush1.bf16.msra.mxu0 0
    %9533 = vmatprep.subr.bf16.mxu0 0
    %9534 = vmatpush1.bf16.msra.mxu0 0
    %9535 = vmatprep.subr.bf16.mxu0 0
    %9536 = vmatpush1.bf16.msra.mxu0 0
    %9537 = vmatprep.subr.bf16.mxu0 0
    %9538 = vmatpush1.bf16.msra.mxu0 0
    %9539 = vmatprep.subr.bf16.mxu0 0
    %9540 = vmatpush1.bf16.msra.mxu0 %v9523
    %9541 = vmatprep.subr.bf16.mxu0 0
    %9542 = vmatpush2.bf16.msra.mxu0 0
    %9543 = vmatprep.subr.bf16.mxu0 0
    %9544 = vmatpush2.bf16.msra.mxu0 0
    %9545 = vmatprep.subr.bf16.mxu0 0
    %9546 = vmatpush2.bf16.msra.mxu0 0
    %9547 = vmatprep.subr.bf16.mxu0 0
    %9548 = vmatpush2.bf16.msra.mxu0 0
    %9549 = vmatprep.subr.bf16.mxu0 0
    %9550 = vmatpush2.bf16.msra.mxu0 0
    %9551 = vmatprep.subr.bf16.mxu0 0
    %9552 = vmatpush2.bf16.msra.mxu0 0
    %9553 = vmatprep.subr.bf16.mxu0 0
    %9554 = vmatpush2.bf16.msra.mxu0 0
    %9555 = vmatprep.subr.bf16.mxu0 0
    %9556 = vmatpush2.bf16.msra.mxu0 0
    %9557 = vmatprep.mubr.bf16.mxu0 0
    %9558 = vmatmul.mubr.bf16.gmra.mxu0 %v8323
    %v9559 = vpop.f32.mrf.mxu0
    %v9560 = vadd.f32 0.0, %v9559
    %v9561 = vpop.f32.mrf.mxu0
    %v9562 = vpop.f32.mrf.mxu0
    %v9563 = vadd.f32 0.0, %v9562
    %v9564 = vpop.f32.mrf.mxu0
    %9565 = vmatprep.mubr.bf16.mxu0 0
    %9566 = vmatmul.mubr.bf16.gmra.mxu0 %v8326
    %v9567 = vpop.f32.mrf.mxu0
    %v9568 = vadd.f32 0.0, %v9567
    %v9569 = vpop.f32.mrf.mxu0
    %v9570 = vpop.f32.mrf.mxu0
    %v9571 = vadd.f32 0.0, %v9570
    %v9572 = vpop.f32.mrf.mxu0
    %9573 = vmatprep.mubr.bf16.mxu0 0
    %9574 = vmatmul.mubr.bf16.gmra.mxu0 %v8329
    %v9575 = vpop.f32.mrf.mxu0
    %v9576 = vadd.f32 0.0, %v9575
    %v9577 = vpop.f32.mrf.mxu0
    %v9578 = vpop.f32.mrf.mxu0
    %v9579 = vadd.f32 0.0, %v9578
    %v9580 = vpop.f32.mrf.mxu0
    %9581 = vmatprep.mubr.bf16.mxu0 0
    %9582 = vmatmul.mubr.bf16.gmra.mxu0 %v8332
    %v9583 = vpop.f32.mrf.mxu0
    %v9584 = vadd.f32 0.0, %v9583
    %v9585 = vpop.f32.mrf.mxu0
    %v9586 = vpop.f32.mrf.mxu0
    %v9587 = vadd.f32 0.0, %v9586
    %v9588 = vpop.f32.mrf.mxu0
    %9589 = vmatprep.mubr.bf16.mxu0 0
    %9590 = vmatmul.mubr.bf16.gmra.mxu0 %v8335
    %v9591 = vpop.f32.mrf.mxu0
    %v9592 = vadd.f32 0.0, %v9591
    %v9593 = vpop.f32.mrf.mxu0
    %v9594 = vpop.f32.mrf.mxu0
    %v9595 = vadd.f32 0.0, %v9594
    %v9596 = vpop.f32.mrf.mxu0
    %9597 = vmatprep.mubr.bf16.mxu0 0
    %9598 = vmatmul.mubr.bf16.gmra.mxu0 %v8338
    %v9599 = vpop.f32.mrf.mxu0
    %v9600 = vadd.f32 0.0, %v9599
    %v9601 = vpop.f32.mrf.mxu0
    %v9602 = vpop.f32.mrf.mxu0
    %v9603 = vadd.f32 0.0, %v9602
    %v9604 = vpop.f32.mrf.mxu0
    %9605 = vmatprep.mubr.bf16.mxu0 0
    %9606 = vmatmul.mubr.bf16.gmra.mxu0 %v8341
    %v9607 = vpop.f32.mrf.mxu0
    %v9608 = vadd.f32 0.0, %v9607
    %v9609 = vpop.f32.mrf.mxu0
    %v9610 = vpop.f32.mrf.mxu0
    %v9611 = vadd.f32 0.0, %v9610
    %v9612 = vpop.f32.mrf.mxu0
    %9613 = vmatprep.mubr.bf16.mxu0 0
    %9614 = vmatmul.mubr.bf16.gmra.mxu0 %v8344
    %v9615 = vpop.f32.mrf.mxu0
    %v9616 = vadd.f32 0.0, %v9615
    %v9617 = vpop.f32.mrf.mxu0
    %v9618 = vpop.f32.mrf.mxu0
    %v9619 = vadd.f32 0.0, %v9618
    %v9620 = vpop.f32.mrf.mxu0
    %9621 = vmatprep.mubr.bf16.mxu0 0
    %9622 = vmatmul.mubr.bf16.gmra.mxu0 %v8347
    %v9623 = vpop.f32.mrf.mxu0
    %v9624 = vadd.f32 0.0, %v9623
    %v9625 = vpop.f32.mrf.mxu0
    %v9626 = vpop.f32.mrf.mxu0
    %v9627 = vadd.f32 0.0, %v9626
    %v9628 = vpop.f32.mrf.mxu0
    %9629 = vmatprep.mubr.bf16.mxu0 0
    %9630 = vmatmul.mubr.bf16.gmra.mxu0 %v8350
    %v9631 = vpop.f32.mrf.mxu0
    %v9632 = vadd.f32 0.0, %v9631
    %v9633 = vpop.f32.mrf.mxu0
    %v9634 = vpop.f32.mrf.mxu0
    %v9635 = vadd.f32 0.0, %v9634
    %v9636 = vpop.f32.mrf.mxu0
    %9637 = vmatprep.mubr.bf16.mxu0 0
    %9638 = vmatmul.mubr.bf16.gmra.mxu0 %v8353
    %v9639 = vpop.f32.mrf.mxu0
    %v9640 = vadd.f32 0.0, %v9639
    %v9641 = vpop.f32.mrf.mxu0
    %v9642 = vpop.f32.mrf.mxu0
    %v9643 = vadd.f32 0.0, %v9642
    %v9644 = vpop.f32.mrf.mxu0
    %9645 = vmatprep.mubr.bf16.mxu0 0
    %9646 = vmatmul.mubr.bf16.gmra.mxu0 %v8356
    %v9647 = vpop.f32.mrf.mxu0
    %v9648 = vadd.f32 0.0, %v9647
    %v9649 = vpop.f32.mrf.mxu0
    %v9650 = vpop.f32.mrf.mxu0
    %v9651 = vadd.f32 0.0, %v9650
    %v9652 = vpop.f32.mrf.mxu0
    %9653 = vmatprep.mubr.bf16.mxu0 0
    %9654 = vmatmul.mubr.bf16.gmra.mxu0 %v8359
    %v9655 = vpop.f32.mrf.mxu0
    %v9656 = vadd.f32 0.0, %v9655
    %v9657 = vpop.f32.mrf.mxu0
    %v9658 = vpop.f32.mrf.mxu0
    %v9659 = vadd.f32 0.0, %v9658
    %v9660 = vpop.f32.mrf.mxu0
    %9661 = vmatprep.mubr.bf16.mxu0 0
    %9662 = vmatmul.mubr.bf16.gmra.mxu0 %v8362
    %v9663 = vpop.f32.mrf.mxu0
    %v9664 = vadd.f32 0.0, %v9663
    %v9665 = vpop.f32.mrf.mxu0
    %v9666 = vpop.f32.mrf.mxu0
    %v9667 = vadd.f32 0.0, %v9666
    %v9668 = vpop.f32.mrf.mxu0
    %9669 = vmatprep.mubr.bf16.mxu0 0
    %9670 = vmatmul.mubr.bf16.gmra.mxu0 %v8365
    %v9671 = vpop.f32.mrf.mxu0
    %v9672 = vadd.f32 0.0, %v9671
    %v9673 = vpop.f32.mrf.mxu0
    %v9674 = vpop.f32.mrf.mxu0
    %v9675 = vadd.f32 0.0, %v9674
    %v9676 = vpop.f32.mrf.mxu0
    %9677 = vmatprep.mubr.bf16.mxu0 0
    %9678 = vmatmul.mubr.bf16.gmra.mxu0 %v8368
    %v9679 = vpop.f32.mrf.mxu0
    %v9680 = vadd.f32 0.0, %v9679
    %v9681 = vpop.f32.mrf.mxu0
    %v9682 = vpop.f32.mrf.mxu0
    %v9683 = vadd.f32 0.0, %v9682
    %v9684 = vpop.f32.mrf.mxu0
    %9685 = vdwg.mxu0
    %s9686 = scalar_lea.vmem [#allocation3], 384
    %v9687 = vld [vmem:[%s9686] sm:$0xff]
    %v9688 = vld [vmem:[%s9686 + $0x8] sm:$0xff]
    %v9689 = vld [vmem:[%s9686 + $0x10] sm:$0xff]
    %v9690 = vld [vmem:[%s9686 + $0x18] sm:$0xff]
    %v9691 = vld [vmem:[%s9686 + $0x20] sm:$0xff]
    %v9692 = vld [vmem:[%s9686 + $0x28] sm:$0xff]
    %v9693 = vld [vmem:[%s9686 + $0x30] sm:$0xff]
    %v9694 = vld [vmem:[%s9686 + $0x38] sm:$0xff]
    %v9695 = vld [vmem:[%s9686 + $0x40] sm:$0xff]
    %v9696 = vld [vmem:[%s9686 + $0x48] sm:$0xff]
    %v9697 = vld [vmem:[%s9686 + $0x50] sm:$0xff]
    %v9698 = vld [vmem:[%s9686 + $0x58] sm:$0xff]
    %v9699 = vld [vmem:[%s9686 + $0x60] sm:$0xff]
    %v9700 = vld [vmem:[%s9686 + $0x68] sm:$0xff]
    %v9701 = vld [vmem:[%s9686 + $0x70] sm:$0xff]
    %v9702 = vld [vmem:[%s9686 + $0x78] sm:$0xff]
    %v9703 = vpack.c.bf16 %v9563, %v9560
    %v9704 = vpack.c.bf16 %v9571, %v9568
    %v9705 = vpack.c.bf16 %v9579, %v9576
    %v9706 = vpack.c.bf16 %v9587, %v9584
    %v9707 = vpack.c.bf16 %v9595, %v9592
    %v9708 = vpack.c.bf16 %v9603, %v9600
    %v9709 = vpack.c.bf16 %v9611, %v9608
    %v9710 = vpack.c.bf16 %v9619, %v9616
    %v9711 = vpack.c.bf16 %v9627, %v9624
    %v9712 = vpack.c.bf16 %v9635, %v9632
    %v9713 = vpack.c.bf16 %v9643, %v9640
    %v9714 = vpack.c.bf16 %v9651, %v9648
    %v9715 = vpack.c.bf16 %v9659, %v9656
    %v9716 = vpack.c.bf16 %v9667, %v9664
    %v9717 = vpack.c.bf16 %v9675, %v9672
    %v9718 = vpack.c.bf16 %v9683, %v9680
    %v9735 = vunpack.c.l.b16 %v9687
    %v9736 = vunpack.c.h.b16 %v9687
    %v9737 = vunpack.c.l.b16 %v9688
    %v9738 = vunpack.c.h.b16 %v9688
    %v9739 = vunpack.c.l.b16 %v9689
    %v9740 = vunpack.c.h.b16 %v9689
    %v9741 = vunpack.c.l.b16 %v9690
    %v9742 = vunpack.c.h.b16 %v9690
    %v9743 = vunpack.c.l.b16 %v9691
    %v9744 = vunpack.c.h.b16 %v9691
    %v9745 = vunpack.c.l.b16 %v9692
    %v9746 = vunpack.c.h.b16 %v9692
    %v9747 = vunpack.c.l.b16 %v9693
    %v9748 = vunpack.c.h.b16 %v9693
    %v9749 = vunpack.c.l.b16 %v9694
    %v9750 = vunpack.c.h.b16 %v9694
    %v9751 = vunpack.c.l.b16 %v9695
    %v9752 = vunpack.c.h.b16 %v9695
    %v9753 = vunpack.c.l.b16 %v9696
    %v9754 = vunpack.c.h.b16 %v9696
    %v9755 = vunpack.c.l.b16 %v9697
    %v9756 = vunpack.c.h.b16 %v9697
    %v9757 = vunpack.c.l.b16 %v9698
    %v9758 = vunpack.c.h.b16 %v9698
    %v9759 = vunpack.c.l.b16 %v9699
    %v9760 = vunpack.c.h.b16 %v9699
    %v9761 = vunpack.c.l.b16 %v9700
    %v9762 = vunpack.c.h.b16 %v9700
    %v9763 = vunpack.c.l.b16 %v9701
    %v9764 = vunpack.c.h.b16 %v9701
    %v9765 = vunpack.c.l.b16 %v9702
    %v9766 = vunpack.c.h.b16 %v9702
    %v9767 = vpack.c.b16 %v9737, %v9735
    %v9768 = vpack.c.b16 %v9738, %v9736
    %v9769 = vpack.c.b16 %v9741, %v9739
    %v9770 = vpack.c.b16 %v9742, %v9740
    %v9771 = vpack.c.b16 %v9745, %v9743
    %v9772 = vpack.c.b16 %v9746, %v9744
    %v9773 = vpack.c.b16 %v9749, %v9747
    %v9774 = vpack.c.b16 %v9750, %v9748
    %v9775 = vpack.c.b16 %v9753, %v9751
    %v9776 = vpack.c.b16 %v9754, %v9752
    %v9777 = vpack.c.b16 %v9757, %v9755
    %v9778 = vpack.c.b16 %v9758, %v9756
    %v9779 = vpack.c.b16 %v9761, %v9759
    %v9780 = vpack.c.b16 %v9762, %v9760
    %v9781 = vpack.c.b16 %v9765, %v9763
    %v9782 = vpack.c.b16 %v9766, %v9764
    %9799 = vmatprep.subr.bf16.mxu0 0
    %9800 = vmatpush1.bf16.msra.mxu0 %v9710
    %9801 = vmatprep.subr.bf16.mxu0 0
    %9802 = vmatpush1.bf16.msra.mxu0 %v9709
    %9803 = vmatprep.subr.bf16.mxu0 0
    %9804 = vmatpush1.bf16.msra.mxu0 %v9708
    %9805 = vmatprep.subr.bf16.mxu0 0
    %9806 = vmatpush1.bf16.msra.mxu0 %v9707
    %9807 = vmatprep.subr.bf16.mxu0 0
    %9808 = vmatpush1.bf16.msra.mxu0 %v9706
    %9809 = vmatprep.subr.bf16.mxu0 0
    %9810 = vmatpush1.bf16.msra.mxu0 %v9705
    %9811 = vmatprep.subr.bf16.mxu0 0
    %9812 = vmatpush1.bf16.msra.mxu0 %v9704
    %9813 = vmatprep.subr.bf16.mxu0 0
    %9814 = vmatpush1.bf16.msra.mxu0 %v9703
    %9815 = vmatprep.subr.bf16.mxu0 0
    %9816 = vmatpush2.bf16.msra.mxu0 %v9718
    %9817 = vmatprep.subr.bf16.mxu0 0
    %9818 = vmatpush2.bf16.msra.mxu0 %v9717
    %9819 = vmatprep.subr.bf16.mxu0 0
    %9820 = vmatpush2.bf16.msra.mxu0 %v9716
    %9821 = vmatprep.subr.bf16.mxu0 0
    %9822 = vmatpush2.bf16.msra.mxu0 %v9715
    %9823 = vmatprep.subr.bf16.mxu0 0
    %9824 = vmatpush2.bf16.msra.mxu0 %v9714
    %9825 = vmatprep.subr.bf16.mxu0 0
    %9826 = vmatpush2.bf16.msra.mxu0 %v9713
    %9827 = vmatprep.subr.bf16.mxu0 0
    %9828 = vmatpush2.bf16.msra.mxu0 %v9712
    %9829 = vmatprep.subr.bf16.mxu0 0
    %9830 = vmatpush2.bf16.msra.mxu0 %v9711
    %9831 = vmatprep.mubr.bf16.mxu0 %v9768
    %9832 = vmatmul.mubr.bf16.gmra.mxu0 %v9767
    %v9833 = vpop.f32.mrf.mxu0
    %v9834 = vadd.f32 0.0, %v9833
    %v9835 = vpop.f32.mrf.mxu0
    %v9836 = vpop.f32.mrf.mxu0
    %v9837 = vadd.f32 0.0, %v9836
    %v9838 = vpop.f32.mrf.mxu0
    %9839 = vmatprep.mubr.bf16.mxu0 %v9770
    %9840 = vmatmul.mubr.bf16.gmra.mxu0 %v9769
    %v9841 = vpop.f32.mrf.mxu0
    %v9842 = vadd.f32 0.0, %v9841
    %v9843 = vpop.f32.mrf.mxu0
    %v9844 = vpop.f32.mrf.mxu0
    %v9845 = vadd.f32 0.0, %v9844
    %v9846 = vpop.f32.mrf.mxu0
    %9847 = vmatprep.mubr.bf16.mxu0 %v9772
    %9848 = vmatmul.mubr.bf16.gmra.mxu0 %v9771
    %v9849 = vpop.f32.mrf.mxu0
    %v9850 = vadd.f32 0.0, %v9849
    %v9851 = vpop.f32.mrf.mxu0
    %v9852 = vpop.f32.mrf.mxu0
    %v9853 = vadd.f32 0.0, %v9852
    %v9854 = vpop.f32.mrf.mxu0
    %9855 = vmatprep.mubr.bf16.mxu0 %v9774
    %9856 = vmatmul.mubr.bf16.gmra.mxu0 %v9773
    %v9857 = vpop.f32.mrf.mxu0
    %v9858 = vadd.f32 0.0, %v9857
    %v9859 = vpop.f32.mrf.mxu0
    %v9860 = vpop.f32.mrf.mxu0
    %v9861 = vadd.f32 0.0, %v9860
    %v9862 = vpop.f32.mrf.mxu0
    %9863 = vmatprep.mubr.bf16.mxu0 %v9776
    %9864 = vmatmul.mubr.bf16.gmra.mxu0 %v9775
    %v9865 = vpop.f32.mrf.mxu0
    %v9866 = vadd.f32 0.0, %v9865
    %v9867 = vpop.f32.mrf.mxu0
    %v9868 = vpop.f32.mrf.mxu0
    %v9869 = vadd.f32 0.0, %v9868
    %v9870 = vpop.f32.mrf.mxu0
    %9871 = vmatprep.mubr.bf16.mxu0 %v9778
    %9872 = vmatmul.mubr.bf16.gmra.mxu0 %v9777
    %v9873 = vpop.f32.mrf.mxu0
    %v9874 = vadd.f32 0.0, %v9873
    %v9875 = vpop.f32.mrf.mxu0
    %v9876 = vpop.f32.mrf.mxu0
    %v9877 = vadd.f32 0.0, %v9876
    %v9878 = vpop.f32.mrf.mxu0
    %9879 = vmatprep.mubr.bf16.mxu0 %v9780
    %9880 = vmatmul.mubr.bf16.gmra.mxu0 %v9779
    %v9881 = vpop.f32.mrf.mxu0
    %v9882 = vadd.f32 0.0, %v9881
    %v9883 = vpop.f32.mrf.mxu0
    %v9884 = vpop.f32.mrf.mxu0
    %v9885 = vadd.f32 0.0, %v9884
    %v9886 = vpop.f32.mrf.mxu0
    %9887 = vmatprep.mubr.bf16.mxu0 %v9782
    %9888 = vmatmul.mubr.bf16.gmra.mxu0 %v9781
    %v9889 = vpop.f32.mrf.mxu0
    %v9890 = vadd.f32 0.0, %v9889
    %v9891 = vpop.f32.mrf.mxu0
    %v9892 = vpop.f32.mrf.mxu0
    %v9893 = vadd.f32 0.0, %v9892
    %v9894 = vpop.f32.mrf.mxu0
    %9895 = vdwg.mxu0
    %v9896 = vadd.f32 %v9500, %v9834
    %v9897 = vadd.f32 %v9501, %v9837
    %v9898 = vadd.f32 %v9502, %v9842
    %v9899 = vadd.f32 %v9503, %v9845
    %v9900 = vadd.f32 %v9504, %v9850
    %v9901 = vadd.f32 %v9505, %v9853
    %v9902 = vadd.f32 %v9506, %v9858
    %v9903 = vadd.f32 %v9507, %v9861
    %v9904 = vadd.f32 %v9508, %v9866
    %v9905 = vadd.f32 %v9509, %v9869
    %v9906 = vadd.f32 %v9510, %v9874
    %v9907 = vadd.f32 %v9511, %v9877
    %v9908 = vadd.f32 %v9512, %v9882
    %v9909 = vadd.f32 %v9513, %v9885
    %v9910 = vadd.f32 %v9514, %v9890
    %v9911 = vadd.f32 %v9515, %v9893
    %v9912 = vld [vmem:[%s7] sm:$0xff]
    %v9913 = vld [vmem:[%s7 + $0x8] sm:$0xff]
    %v9914 = vld [vmem:[%s7 + $0x10] sm:$0xff]
    %v9915 = vld [vmem:[%s7 + $0x18] sm:$0xff]
    %v9916 = vld [vmem:[%s7 + $0x20] sm:$0xff]
    %v9917 = vld [vmem:[%s7 + $0x28] sm:$0xff]
    %v9918 = vld [vmem:[%s7 + $0x30] sm:$0xff]
    %v9919 = vld [vmem:[%s7 + $0x38] sm:$0xff]
    %v9920 = vld [vmem:[%s7 + $0x40] sm:$0xff]
    %v9921 = vld [vmem:[%s7 + $0x48] sm:$0xff]
    %v9922 = vld [vmem:[%s7 + $0x50] sm:$0xff]
    %v9923 = vld [vmem:[%s7 + $0x58] sm:$0xff]
    %v9924 = vld [vmem:[%s7 + $0x60] sm:$0xff]
    %v9925 = vld [vmem:[%s7 + $0x68] sm:$0xff]
    %v9926 = vld [vmem:[%s7 + $0x70] sm:$0xff]
    %v9927 = vld [vmem:[%s7 + $0x78] sm:$0xff]
    %9929 = vset.pattern.permute.xlu0 0
    %9930 = vperm.xlu0 %9929, %v9912
    %v9931 = vpop.permute.xlu0 %9930
    %9934 = vset.pattern.permute.xlu0 0
    %9935 = vperm.xlu0 %9934, %v9913
    %v9936 = vpop.permute.xlu0 %9935
    %9939 = vset.pattern.permute.xlu0 0
    %9940 = vperm.xlu0 %9939, %v9914
    %v9941 = vpop.permute.xlu0 %9940
    %9944 = vset.pattern.permute.xlu0 0
    %9945 = vperm.xlu0 %9944, %v9915
    %v9946 = vpop.permute.xlu0 %9945
    %9949 = vset.pattern.permute.xlu0 0
    %9950 = vperm.xlu0 %9949, %v9916
    %v9951 = vpop.permute.xlu0 %9950
    %9954 = vset.pattern.permute.xlu0 0
    %9955 = vperm.xlu0 %9954, %v9917
    %v9956 = vpop.permute.xlu0 %9955
    %9959 = vset.pattern.permute.xlu0 0
    %9960 = vperm.xlu0 %9959, %v9918
    %v9961 = vpop.permute.xlu0 %9960
    %9964 = vset.pattern.permute.xlu0 0
    %9965 = vperm.xlu0 %9964, %v9919
    %v9966 = vpop.permute.xlu0 %9965
    %9969 = vset.pattern.permute.xlu0 0
    %9970 = vperm.xlu0 %9969, %v9920
    %v9971 = vpop.permute.xlu0 %9970
    %9974 = vset.pattern.permute.xlu0 0
    %9975 = vperm.xlu0 %9974, %v9921
    %v9976 = vpop.permute.xlu0 %9975
    %9979 = vset.pattern.permute.xlu0 0
    %9980 = vperm.xlu0 %9979, %v9922
    %v9981 = vpop.permute.xlu0 %9980
    %9984 = vset.pattern.permute.xlu0 0
    %9985 = vperm.xlu0 %9984, %v9923
    %v9986 = vpop.permute.xlu0 %9985
    %9989 = vset.pattern.permute.xlu0 0
    %9990 = vperm.xlu0 %9989, %v9924
    %v9991 = vpop.permute.xlu0 %9990
    %9994 = vset.pattern.permute.xlu0 0
    %9995 = vperm.xlu0 %9994, %v9925
    %v9996 = vpop.permute.xlu0 %9995
    %9999 = vset.pattern.permute.xlu0 0
    %10000 = vperm.xlu0 %9999, %v9926
    %v10001 = vpop.permute.xlu0 %10000
    %10004 = vset.pattern.permute.xlu0 0
    %10005 = vperm.xlu0 %10004, %v9927
    %v10006 = vpop.permute.xlu0 %10005
    %v10008 = vadd.f32 %v9896, %v9931
    %v10009 = vadd.f32 %v9897, %v9936
    %v10010 = vadd.f32 %v9898, %v9941
    %v10011 = vadd.f32 %v9899, %v9946
    %v10012 = vadd.f32 %v9900, %v9951
    %v10013 = vadd.f32 %v9901, %v9956
    %v10014 = vadd.f32 %v9902, %v9961
    %v10015 = vadd.f32 %v9903, %v9966
    %v10016 = vadd.f32 %v9904, %v9971
    %v10017 = vadd.f32 %v9905, %v9976
    %v10018 = vadd.f32 %v9906, %v9981
    %v10019 = vadd.f32 %v9907, %v9986
    %v10020 = vadd.f32 %v9908, %v9991
    %v10021 = vadd.f32 %v9909, %v9996
    %v10022 = vadd.f32 %v9910, %v10001
    %v10023 = vadd.f32 %v9911, %v10006
    %v10024 = vmax.f32 %v10008, 0.0
    %v10025 = vmax.f32 %v10009, 0.0
    %v10026 = vmax.f32 %v10010, 0.0
    %v10027 = vmax.f32 %v10011, 0.0
    %v10028 = vmax.f32 %v10012, 0.0
    %v10029 = vmax.f32 %v10013, 0.0
    %v10030 = vmax.f32 %v10014, 0.0
    %v10031 = vmax.f32 %v10015, 0.0
    %v10032 = vmax.f32 %v10016, 0.0
    %v10033 = vmax.f32 %v10017, 0.0
    %v10034 = vmax.f32 %v10018, 0.0
    %v10035 = vmax.f32 %v10019, 0.0
    %v10036 = vmax.f32 %v10020, 0.0
    %v10037 = vmax.f32 %v10021, 0.0
    %v10038 = vmax.f32 %v10022, 0.0
    %v10039 = vmax.f32 %v10023, 0.0
    %s10040 = smul.u32 %s3663, 1
    %s10041 = sshll.u32 %s10040, 4
    %10042 = dma.done %s162, %s10041
    %v10043 = vpack.c.bf16 %v10025, %v10024
    %v10044 = vpack.c.bf16 %v10027, %v10026
    %v10045 = vpack.c.bf16 %v10029, %v10028
    %v10046 = vpack.c.bf16 %v10031, %v10030
    %v10047 = vpack.c.bf16 %v10033, %v10032
    %v10048 = vpack.c.bf16 %v10035, %v10034
    %v10049 = vpack.c.bf16 %v10037, %v10036
    %v10050 = vpack.c.bf16 %v10039, %v10038
    %v10051 = vld [vmem:[#allocation4] sm:$0xf]
    %v10052 = vld [vmem:[#allocation4 + $0x4] sm:$0xf]
    %v10053 = vld [vmem:[#allocation4 + $0x8] sm:$0xf]
    %v10054 = vld [vmem:[#allocation4 + $0xc] sm:$0xf]
    %v10055 = vld [vmem:[#allocation4 + $0x10] sm:$0xf]
    %v10056 = vld [vmem:[#allocation4 + $0x14] sm:$0xf]
    %v10057 = vld [vmem:[#allocation4 + $0x18] sm:$0xf]
    %v10058 = vld [vmem:[#allocation4 + $0x1c] sm:$0xf]
    %v10059 = vld [vmem:[#allocation4 + $0x20] sm:$0xf]
    %v10060 = vld [vmem:[#allocation4 + $0x24] sm:$0xf]
    %v10061 = vld [vmem:[#allocation4 + $0x28] sm:$0xf]
    %v10062 = vld [vmem:[#allocation4 + $0x2c] sm:$0xf]
    %v10063 = vld [vmem:[#allocation4 + $0x30] sm:$0xf]
    %v10064 = vld [vmem:[#allocation4 + $0x34] sm:$0xf]
    %v10065 = vld [vmem:[#allocation4 + $0x38] sm:$0xf]
    %v10066 = vld [vmem:[#allocation4 + $0x3c] sm:$0xf]
    %v10067 = vld [vmem:[#allocation4 + $0x40] sm:$0xf]
    %v10068 = vld [vmem:[#allocation4 + $0x44] sm:$0xf]
    %v10069 = vld [vmem:[#allocation4 + $0x48] sm:$0xf]
    %v10070 = vld [vmem:[#allocation4 + $0x4c] sm:$0xf]
    %v10071 = vld [vmem:[#allocation4 + $0x50] sm:$0xf]
    %v10072 = vld [vmem:[#allocation4 + $0x54] sm:$0xf]
    %v10073 = vld [vmem:[#allocation4 + $0x58] sm:$0xf]
    %v10074 = vld [vmem:[#allocation4 + $0x5c] sm:$0xf]
    %v10075 = vld [vmem:[#allocation4 + $0x60] sm:$0xf]
    %v10076 = vld [vmem:[#allocation4 + $0x64] sm:$0xf]
    %v10077 = vld [vmem:[#allocation4 + $0x68] sm:$0xf]
    %v10078 = vld [vmem:[#allocation4 + $0x6c] sm:$0xf]
    %v10079 = vld [vmem:[#allocation4 + $0x70] sm:$0xf]
    %v10080 = vld [vmem:[#allocation4 + $0x74] sm:$0xf]
    %v10081 = vld [vmem:[#allocation4 + $0x78] sm:$0xf]
    %v10082 = vld [vmem:[#allocation4 + $0x7c] sm:$0xf]
    %s10083 = scalar_lea.vmem [#allocation4], 128
    %v10084 = vld [vmem:[%s10083] sm:$0xf]
    %v10085 = vld [vmem:[%s10083 + $0x4] sm:$0xf]
    %v10086 = vld [vmem:[%s10083 + $0x8] sm:$0xf]
    %v10087 = vld [vmem:[%s10083 + $0xc] sm:$0xf]
    %v10088 = vld [vmem:[%s10083 + $0x10] sm:$0xf]
    %v10089 = vld [vmem:[%s10083 + $0x14] sm:$0xf]
    %v10090 = vld [vmem:[%s10083 + $0x18] sm:$0xf]
    %v10091 = vld [vmem:[%s10083 + $0x1c] sm:$0xf]
    %v10092 = vld [vmem:[%s10083 + $0x20] sm:$0xf]
    %v10093 = vld [vmem:[%s10083 + $0x24] sm:$0xf]
    %v10094 = vld [vmem:[%s10083 + $0x28] sm:$0xf]
    %v10095 = vld [vmem:[%s10083 + $0x2c] sm:$0xf]
    %v10096 = vld [vmem:[%s10083 + $0x30] sm:$0xf]
    %v10097 = vld [vmem:[%s10083 + $0x34] sm:$0xf]
    %v10098 = vld [vmem:[%s10083 + $0x38] sm:$0xf]
    %v10099 = vld [vmem:[%s10083 + $0x3c] sm:$0xf]
    %v10100 = vld [vmem:[%s10083 + $0x40] sm:$0xf]
    %v10101 = vld [vmem:[%s10083 + $0x44] sm:$0xf]
    %v10102 = vld [vmem:[%s10083 + $0x48] sm:$0xf]
    %v10103 = vld [vmem:[%s10083 + $0x4c] sm:$0xf]
    %v10104 = vld [vmem:[%s10083 + $0x50] sm:$0xf]
    %v10105 = vld [vmem:[%s10083 + $0x54] sm:$0xf]
    %v10106 = vld [vmem:[%s10083 + $0x58] sm:$0xf]
    %v10107 = vld [vmem:[%s10083 + $0x5c] sm:$0xf]
    %v10108 = vld [vmem:[%s10083 + $0x60] sm:$0xf]
    %v10109 = vld [vmem:[%s10083 + $0x64] sm:$0xf]
    %v10110 = vld [vmem:[%s10083 + $0x68] sm:$0xf]
    %v10111 = vld [vmem:[%s10083 + $0x6c] sm:$0xf]
    %v10112 = vld [vmem:[%s10083 + $0x70] sm:$0xf]
    %v10113 = vld [vmem:[%s10083 + $0x74] sm:$0xf]
    %v10114 = vld [vmem:[%s10083 + $0x78] sm:$0xf]
    %v10115 = vld [vmem:[%s10083 + $0x7c] sm:$0xf]
    %v10148 = vunpack.c.l.b16 %v10084
    %v10149 = vunpack.c.l.b16 %v10085
    %v10150 = vunpack.c.l.b16 %v10086
    %v10151 = vunpack.c.l.b16 %v10087
    %v10152 = vunpack.c.l.b16 %v10088
    %v10153 = vunpack.c.l.b16 %v10089
    %v10154 = vunpack.c.l.b16 %v10090
    %v10155 = vunpack.c.l.b16 %v10091
    %v10156 = vunpack.c.l.b16 %v10092
    %v10157 = vunpack.c.l.b16 %v10093
    %v10158 = vunpack.c.l.b16 %v10094
    %v10159 = vunpack.c.l.b16 %v10095
    %v10160 = vunpack.c.l.b16 %v10096
    %v10161 = vunpack.c.l.b16 %v10097
    %v10162 = vunpack.c.l.b16 %v10098
    %v10163 = vunpack.c.l.b16 %v10099
    %v10164 = vunpack.c.l.b16 %v10100
    %v10165 = vunpack.c.l.b16 %v10101
    %v10166 = vunpack.c.l.b16 %v10102
    %v10167 = vunpack.c.l.b16 %v10103
    %v10168 = vunpack.c.l.b16 %v10104
    %v10169 = vunpack.c.l.b16 %v10105
    %v10170 = vunpack.c.l.b16 %v10106
    %v10171 = vunpack.c.l.b16 %v10107
    %v10172 = vunpack.c.l.b16 %v10108
    %v10173 = vunpack.c.l.b16 %v10109
    %v10174 = vunpack.c.l.b16 %v10110
    %v10175 = vunpack.c.l.b16 %v10111
    %v10176 = vunpack.c.l.b16 %v10112
    %v10177 = vunpack.c.l.b16 %v10113
    %v10178 = vunpack.c.l.b16 %v10114
    %v10179 = vunpack.c.l.b16 %v10115
    %v10180 = vpack.c.b16 %v10149, %v10148
    %v10181 = vpack.c.b16 %v10151, %v10150
    %v10182 = vpack.c.b16 %v10153, %v10152
    %v10183 = vpack.c.b16 %v10155, %v10154
    %v10184 = vpack.c.b16 %v10157, %v10156
    %v10185 = vpack.c.b16 %v10159, %v10158
    %v10186 = vpack.c.b16 %v10161, %v10160
    %v10187 = vpack.c.b16 %v10163, %v10162
    %v10188 = vpack.c.b16 %v10165, %v10164
    %v10189 = vpack.c.b16 %v10167, %v10166
    %v10190 = vpack.c.b16 %v10169, %v10168
    %v10191 = vpack.c.b16 %v10171, %v10170
    %v10192 = vpack.c.b16 %v10173, %v10172
    %v10193 = vpack.c.b16 %v10175, %v10174
    %v10194 = vpack.c.b16 %v10177, %v10176
    %v10195 = vpack.c.b16 %v10179, %v10178
    %10220 = vrot.lane.b32.xlu0 %v10043, 126
    %v10221 = vpop.permute.xlu0 %10220
    %10222 = vrot.lane.b32.xlu0 %v10044, 126
    %v10223 = vpop.permute.xlu0 %10222
    %10224 = vrot.lane.b32.xlu0 %v10045, 126
    %v10225 = vpop.permute.xlu0 %10224
    %10226 = vrot.lane.b32.xlu0 %v10046, 126
    %v10227 = vpop.permute.xlu0 %10226
    %10228 = vrot.lane.b32.xlu0 %v10047, 126
    %v10229 = vpop.permute.xlu0 %10228
    %10230 = vrot.lane.b32.xlu0 %v10048, 126
    %v10231 = vpop.permute.xlu0 %10230
    %10232 = vrot.lane.b32.xlu0 %v10049, 126
    %v10233 = vpop.permute.xlu0 %10232
    %10234 = vrot.lane.b32.xlu0 %v10050, 126
    %v10235 = vpop.permute.xlu0 %10234
    %10244 = vmatprep.subr.bf16.mxu0 0
    %10245 = vmatpush1.bf16.msra.mxu0 %v10235
    %10246 = vmatprep.subr.bf16.mxu0 0
    %10247 = vmatpush1.bf16.msra.mxu0 %v10233
    %10248 = vmatprep.subr.bf16.mxu0 0
    %10249 = vmatpush1.bf16.msra.mxu0 %v10231
    %10250 = vmatprep.subr.bf16.mxu0 0
    %10251 = vmatpush1.bf16.msra.mxu0 %v10229
    %10252 = vmatprep.subr.bf16.mxu0 0
    %10253 = vmatpush1.bf16.msra.mxu0 %v10227
    %10254 = vmatprep.subr.bf16.mxu0 0
    %10255 = vmatpush1.bf16.msra.mxu0 %v10225
    %10256 = vmatprep.subr.bf16.mxu0 0
    %10257 = vmatpush1.bf16.msra.mxu0 %v10223
    %10258 = vmatprep.subr.bf16.mxu0 0
    %10259 = vmatpush1.bf16.msra.mxu0 %v10221
    %10260 = vmatprep.subr.bf16.mxu0 0
    %10261 = vmatpush2.bf16.msra.mxu0 0
    %10262 = vmatprep.subr.bf16.mxu0 0
    %10263 = vmatpush2.bf16.msra.mxu0 0
    %10264 = vmatprep.subr.bf16.mxu0 0
    %10265 = vmatpush2.bf16.msra.mxu0 0
    %10266 = vmatprep.subr.bf16.mxu0 0
    %10267 = vmatpush2.bf16.msra.mxu0 0
    %10268 = vmatprep.subr.bf16.mxu0 0
    %10269 = vmatpush2.bf16.msra.mxu0 0
    %10270 = vmatprep.subr.bf16.mxu0 0
    %10271 = vmatpush2.bf16.msra.mxu0 0
    %10272 = vmatprep.subr.bf16.mxu0 0
    %10273 = vmatpush2.bf16.msra.mxu0 0
    %10274 = vmatprep.subr.bf16.mxu0 0
    %10275 = vmatpush2.bf16.msra.mxu0 0
    %10276 = vmatprep.mubr.bf16.mxu0 0
    %10277 = vmatmul.mubr.bf16.gmra.mxu0 %v10180
    %v10278 = vpop.f32.mrf.mxu0
    %v10279 = vadd.f32 0.0, %v10278
    %v10280 = vpop.f32.mrf.mxu0
    %v10281 = vpop.f32.mrf.mxu0
    %v10282 = vadd.f32 0.0, %v10281
    %v10283 = vpop.f32.mrf.mxu0
    %10284 = vmatprep.mubr.bf16.mxu0 0
    %10285 = vmatmul.mubr.bf16.gmra.mxu0 %v10181
    %v10286 = vpop.f32.mrf.mxu0
    %v10287 = vadd.f32 0.0, %v10286
    %v10288 = vpop.f32.mrf.mxu0
    %v10289 = vpop.f32.mrf.mxu0
    %v10290 = vadd.f32 0.0, %v10289
    %v10291 = vpop.f32.mrf.mxu0
    %10292 = vmatprep.mubr.bf16.mxu0 0
    %10293 = vmatmul.mubr.bf16.gmra.mxu0 %v10182
    %v10294 = vpop.f32.mrf.mxu0
    %v10295 = vadd.f32 0.0, %v10294
    %v10296 = vpop.f32.mrf.mxu0
    %v10297 = vpop.f32.mrf.mxu0
    %v10298 = vadd.f32 0.0, %v10297
    %v10299 = vpop.f32.mrf.mxu0
    %10300 = vmatprep.mubr.bf16.mxu0 0
    %10301 = vmatmul.mubr.bf16.gmra.mxu0 %v10183
    %v10302 = vpop.f32.mrf.mxu0
    %v10303 = vadd.f32 0.0, %v10302
    %v10304 = vpop.f32.mrf.mxu0
    %v10305 = vpop.f32.mrf.mxu0
    %v10306 = vadd.f32 0.0, %v10305
    %v10307 = vpop.f32.mrf.mxu0
    %10308 = vmatprep.mubr.bf16.mxu0 0
    %10309 = vmatmul.mubr.bf16.gmra.mxu0 %v10184
    %v10310 = vpop.f32.mrf.mxu0
    %v10311 = vadd.f32 0.0, %v10310
    %v10312 = vpop.f32.mrf.mxu0
    %v10313 = vpop.f32.mrf.mxu0
    %v10314 = vadd.f32 0.0, %v10313
    %v10315 = vpop.f32.mrf.mxu0
    %10316 = vmatprep.mubr.bf16.mxu0 0
    %10317 = vmatmul.mubr.bf16.gmra.mxu0 %v10185
    %v10318 = vpop.f32.mrf.mxu0
    %v10319 = vadd.f32 0.0, %v10318
    %v10320 = vpop.f32.mrf.mxu0
    %v10321 = vpop.f32.mrf.mxu0
    %v10322 = vadd.f32 0.0, %v10321
    %v10323 = vpop.f32.mrf.mxu0
    %10324 = vmatprep.mubr.bf16.mxu0 0
    %10325 = vmatmul.mubr.bf16.gmra.mxu0 %v10186
    %v10326 = vpop.f32.mrf.mxu0
    %v10327 = vadd.f32 0.0, %v10326
    %v10328 = vpop.f32.mrf.mxu0
    %v10329 = vpop.f32.mrf.mxu0
    %v10330 = vadd.f32 0.0, %v10329
    %v10331 = vpop.f32.mrf.mxu0
    %10332 = vmatprep.mubr.bf16.mxu0 0
    %10333 = vmatmul.mubr.bf16.gmra.mxu0 %v10187
    %v10334 = vpop.f32.mrf.mxu0
    %v10335 = vadd.f32 0.0, %v10334
    %v10336 = vpop.f32.mrf.mxu0
    %v10337 = vpop.f32.mrf.mxu0
    %v10338 = vadd.f32 0.0, %v10337
    %v10339 = vpop.f32.mrf.mxu0
    %10340 = vmatprep.mubr.bf16.mxu0 0
    %10341 = vmatmul.mubr.bf16.gmra.mxu0 %v10188
    %v10342 = vpop.f32.mrf.mxu0
    %v10343 = vadd.f32 0.0, %v10342
    %v10344 = vpop.f32.mrf.mxu0
    %v10345 = vpop.f32.mrf.mxu0
    %v10346 = vadd.f32 0.0, %v10345
    %v10347 = vpop.f32.mrf.mxu0
    %10348 = vmatprep.mubr.bf16.mxu0 0
    %10349 = vmatmul.mubr.bf16.gmra.mxu0 %v10189
    %v10350 = vpop.f32.mrf.mxu0
    %v10351 = vadd.f32 0.0, %v10350
    %v10352 = vpop.f32.mrf.mxu0
    %v10353 = vpop.f32.mrf.mxu0
    %v10354 = vadd.f32 0.0, %v10353
    %v10355 = vpop.f32.mrf.mxu0
    %10356 = vmatprep.mubr.bf16.mxu0 0
    %10357 = vmatmul.mubr.bf16.gmra.mxu0 %v10190
    %v10358 = vpop.f32.mrf.mxu0
    %v10359 = vadd.f32 0.0, %v10358
    %v10360 = vpop.f32.mrf.mxu0
    %v10361 = vpop.f32.mrf.mxu0
    %v10362 = vadd.f32 0.0, %v10361
    %v10363 = vpop.f32.mrf.mxu0
    %10364 = vmatprep.mubr.bf16.mxu0 0
    %10365 = vmatmul.mubr.bf16.gmra.mxu0 %v10191
    %v10366 = vpop.f32.mrf.mxu0
    %v10367 = vadd.f32 0.0, %v10366
    %v10368 = vpop.f32.mrf.mxu0
    %v10369 = vpop.f32.mrf.mxu0
    %v10370 = vadd.f32 0.0, %v10369
    %v10371 = vpop.f32.mrf.mxu0
    %10372 = vmatprep.mubr.bf16.mxu0 0
    %10373 = vmatmul.mubr.bf16.gmra.mxu0 %v10192
    %v10374 = vpop.f32.mrf.mxu0
    %v10375 = vadd.f32 0.0, %v10374
    %v10376 = vpop.f32.mrf.mxu0
    %v10377 = vpop.f32.mrf.mxu0
    %v10378 = vadd.f32 0.0, %v10377
    %v10379 = vpop.f32.mrf.mxu0
    %10380 = vmatprep.mubr.bf16.mxu0 0
    %10381 = vmatmul.mubr.bf16.gmra.mxu0 %v10193
    %v10382 = vpop.f32.mrf.mxu0
    %v10383 = vadd.f32 0.0, %v10382
    %v10384 = vpop.f32.mrf.mxu0
    %v10385 = vpop.f32.mrf.mxu0
    %v10386 = vadd.f32 0.0, %v10385
    %v10387 = vpop.f32.mrf.mxu0
    %10388 = vmatprep.mubr.bf16.mxu0 0
    %10389 = vmatmul.mubr.bf16.gmra.mxu0 %v10194
    %v10390 = vpop.f32.mrf.mxu0
    %v10391 = vadd.f32 0.0, %v10390
    %v10392 = vpop.f32.mrf.mxu0
    %v10393 = vpop.f32.mrf.mxu0
    %v10394 = vadd.f32 0.0, %v10393
    %v10395 = vpop.f32.mrf.mxu0
    %10396 = vmatprep.mubr.bf16.mxu0 0
    %10397 = vmatmul.mubr.bf16.gmra.mxu0 %v10195
    %v10398 = vpop.f32.mrf.mxu0
    %v10399 = vadd.f32 0.0, %v10398
    %v10400 = vpop.f32.mrf.mxu0
    %v10401 = vpop.f32.mrf.mxu0
    %v10402 = vadd.f32 0.0, %v10401
    %v10403 = vpop.f32.mrf.mxu0
    %10404 = vdwg.mxu0
    %v10437 = vunpack.c.l.b16 %v10051
    %v10438 = vunpack.c.l.b16 %v10052
    %v10439 = vunpack.c.l.b16 %v10053
    %v10440 = vunpack.c.l.b16 %v10054
    %v10441 = vunpack.c.l.b16 %v10055
    %v10442 = vunpack.c.l.b16 %v10056
    %v10443 = vunpack.c.l.b16 %v10057
    %v10444 = vunpack.c.l.b16 %v10058
    %v10445 = vunpack.c.l.b16 %v10059
    %v10446 = vunpack.c.l.b16 %v10060
    %v10447 = vunpack.c.l.b16 %v10061
    %v10448 = vunpack.c.l.b16 %v10062
    %v10449 = vunpack.c.l.b16 %v10063
    %v10450 = vunpack.c.l.b16 %v10064
    %v10451 = vunpack.c.l.b16 %v10065
    %v10452 = vunpack.c.l.b16 %v10066
    %v10453 = vunpack.c.l.b16 %v10067
    %v10454 = vunpack.c.l.b16 %v10068
    %v10455 = vunpack.c.l.b16 %v10069
    %v10456 = vunpack.c.l.b16 %v10070
    %v10457 = vunpack.c.l.b16 %v10071
    %v10458 = vunpack.c.l.b16 %v10072
    %v10459 = vunpack.c.l.b16 %v10073
    %v10460 = vunpack.c.l.b16 %v10074
    %v10461 = vunpack.c.l.b16 %v10075
    %v10462 = vunpack.c.l.b16 %v10076
    %v10463 = vunpack.c.l.b16 %v10077
    %v10464 = vunpack.c.l.b16 %v10078
    %v10465 = vunpack.c.l.b16 %v10079
    %v10466 = vunpack.c.l.b16 %v10080
    %v10467 = vunpack.c.l.b16 %v10081
    %v10468 = vunpack.c.l.b16 %v10082
    %v10469 = vpack.c.b16 %v10438, %v10437
    %v10470 = vpack.c.b16 %v10440, %v10439
    %v10471 = vpack.c.b16 %v10442, %v10441
    %v10472 = vpack.c.b16 %v10444, %v10443
    %v10473 = vpack.c.b16 %v10446, %v10445
    %v10474 = vpack.c.b16 %v10448, %v10447
    %v10475 = vpack.c.b16 %v10450, %v10449
    %v10476 = vpack.c.b16 %v10452, %v10451
    %v10477 = vpack.c.b16 %v10454, %v10453
    %v10478 = vpack.c.b16 %v10456, %v10455
    %v10479 = vpack.c.b16 %v10458, %v10457
    %v10480 = vpack.c.b16 %v10460, %v10459
    %v10481 = vpack.c.b16 %v10462, %v10461
    %v10482 = vpack.c.b16 %v10464, %v10463
    %v10483 = vpack.c.b16 %v10466, %v10465
    %v10484 = vpack.c.b16 %v10468, %v10467
    %10501 = vmatprep.subr.bf16.mxu0 0
    %10502 = vmatpush1.bf16.msra.mxu0 %v10050
    %10503 = vmatprep.subr.bf16.mxu0 0
    %10504 = vmatpush1.bf16.msra.mxu0 %v10049
    %10505 = vmatprep.subr.bf16.mxu0 0
    %10506 = vmatpush1.bf16.msra.mxu0 %v10048
    %10507 = vmatprep.subr.bf16.mxu0 0
    %10508 = vmatpush1.bf16.msra.mxu0 %v10047
    %10509 = vmatprep.subr.bf16.mxu0 0
    %10510 = vmatpush1.bf16.msra.mxu0 %v10046
    %10511 = vmatprep.subr.bf16.mxu0 0
    %10512 = vmatpush1.bf16.msra.mxu0 %v10045
    %10513 = vmatprep.subr.bf16.mxu0 0
    %10514 = vmatpush1.bf16.msra.mxu0 %v10044
    %10515 = vmatprep.subr.bf16.mxu0 0
    %10516 = vmatpush1.bf16.msra.mxu0 %v10043
    %10517 = vmatprep.subr.bf16.mxu0 0
    %10518 = vmatpush2.bf16.msra.mxu0 0
    %10519 = vmatprep.subr.bf16.mxu0 0
    %10520 = vmatpush2.bf16.msra.mxu0 0
    %10521 = vmatprep.subr.bf16.mxu0 0
    %10522 = vmatpush2.bf16.msra.mxu0 0
    %10523 = vmatprep.subr.bf16.mxu0 0
    %10524 = vmatpush2.bf16.msra.mxu0 0
    %10525 = vmatprep.subr.bf16.mxu0 0
    %10526 = vmatpush2.bf16.msra.mxu0 0
    %10527 = vmatprep.subr.bf16.mxu0 0
    %10528 = vmatpush2.bf16.msra.mxu0 0
    %10529 = vmatprep.subr.bf16.mxu0 0
    %10530 = vmatpush2.bf16.msra.mxu0 0
    %10531 = vmatprep.subr.bf16.mxu0 0
    %10532 = vmatpush2.bf16.msra.mxu0 0
    %10533 = vmatprep.mubr.bf16.mxu0 0
    %10534 = vmatmul.mubr.bf16.gmra.mxu0 %v10469
    %v10535 = vpop.f32.mrf.mxu0
    %v10536 = vadd.f32 %v10279, %v10535
    %v10537 = vpop.f32.mrf.mxu0
    %v10538 = vpop.f32.mrf.mxu0
    %v10539 = vadd.f32 %v10282, %v10538
    %v10540 = vpop.f32.mrf.mxu0
    %10541 = vmatprep.mubr.bf16.mxu0 0
    %10542 = vmatmul.mubr.bf16.gmra.mxu0 %v10470
    %v10543 = vpop.f32.mrf.mxu0
    %v10544 = vadd.f32 %v10287, %v10543
    %v10545 = vpop.f32.mrf.mxu0
    %v10546 = vpop.f32.mrf.mxu0
    %v10547 = vadd.f32 %v10290, %v10546
    %v10548 = vpop.f32.mrf.mxu0
    %10549 = vmatprep.mubr.bf16.mxu0 0
    %10550 = vmatmul.mubr.bf16.gmra.mxu0 %v10471
    %v10551 = vpop.f32.mrf.mxu0
    %v10552 = vadd.f32 %v10295, %v10551
    %v10553 = vpop.f32.mrf.mxu0
    %v10554 = vpop.f32.mrf.mxu0
    %v10555 = vadd.f32 %v10298, %v10554
    %v10556 = vpop.f32.mrf.mxu0
    %10557 = vmatprep.mubr.bf16.mxu0 0
    %10558 = vmatmul.mubr.bf16.gmra.mxu0 %v10472
    %v10559 = vpop.f32.mrf.mxu0
    %v10560 = vadd.f32 %v10303, %v10559
    %v10561 = vpop.f32.mrf.mxu0
    %v10562 = vpop.f32.mrf.mxu0
    %v10563 = vadd.f32 %v10306, %v10562
    %v10564 = vpop.f32.mrf.mxu0
    %10565 = vmatprep.mubr.bf16.mxu0 0
    %10566 = vmatmul.mubr.bf16.gmra.mxu0 %v10473
    %v10567 = vpop.f32.mrf.mxu0
    %v10568 = vadd.f32 %v10311, %v10567
    %v10569 = vpop.f32.mrf.mxu0
    %v10570 = vpop.f32.mrf.mxu0
    %v10571 = vadd.f32 %v10314, %v10570
    %v10572 = vpop.f32.mrf.mxu0
    %10573 = vmatprep.mubr.bf16.mxu0 0
    %10574 = vmatmul.mubr.bf16.gmra.mxu0 %v10474
    %v10575 = vpop.f32.mrf.mxu0
    %v10576 = vadd.f32 %v10319, %v10575
    %v10577 = vpop.f32.mrf.mxu0
    %v10578 = vpop.f32.mrf.mxu0
    %v10579 = vadd.f32 %v10322, %v10578
    %v10580 = vpop.f32.mrf.mxu0
    %10581 = vmatprep.mubr.bf16.mxu0 0
    %10582 = vmatmul.mubr.bf16.gmra.mxu0 %v10475
    %v10583 = vpop.f32.mrf.mxu0
    %v10584 = vadd.f32 %v10327, %v10583
    %v10585 = vpop.f32.mrf.mxu0
    %v10586 = vpop.f32.mrf.mxu0
    %v10587 = vadd.f32 %v10330, %v10586
    %v10588 = vpop.f32.mrf.mxu0
    %10589 = vmatprep.mubr.bf16.mxu0 0
    %10590 = vmatmul.mubr.bf16.gmra.mxu0 %v10476
    %v10591 = vpop.f32.mrf.mxu0
    %v10592 = vadd.f32 %v10335, %v10591
    %v10593 = vpop.f32.mrf.mxu0
    %v10594 = vpop.f32.mrf.mxu0
    %v10595 = vadd.f32 %v10338, %v10594
    %v10596 = vpop.f32.mrf.mxu0
    %10597 = vmatprep.mubr.bf16.mxu0 0
    %10598 = vmatmul.mubr.bf16.gmra.mxu0 %v10477
    %v10599 = vpop.f32.mrf.mxu0
    %v10600 = vadd.f32 %v10343, %v10599
    %v10601 = vpop.f32.mrf.mxu0
    %v10602 = vpop.f32.mrf.mxu0
    %v10603 = vadd.f32 %v10346, %v10602
    %v10604 = vpop.f32.mrf.mxu0
    %10605 = vmatprep.mubr.bf16.mxu0 0
    %10606 = vmatmul.mubr.bf16.gmra.mxu0 %v10478
    %v10607 = vpop.f32.mrf.mxu0
    %v10608 = vadd.f32 %v10351, %v10607
    %v10609 = vpop.f32.mrf.mxu0
    %v10610 = vpop.f32.mrf.mxu0
    %v10611 = vadd.f32 %v10354, %v10610
    %v10612 = vpop.f32.mrf.mxu0
    %10613 = vmatprep.mubr.bf16.mxu0 0
    %10614 = vmatmul.mubr.bf16.gmra.mxu0 %v10479
    %v10615 = vpop.f32.mrf.mxu0
    %v10616 = vadd.f32 %v10359, %v10615
    %v10617 = vpop.f32.mrf.mxu0
    %v10618 = vpop.f32.mrf.mxu0
    %v10619 = vadd.f32 %v10362, %v10618
    %v10620 = vpop.f32.mrf.mxu0
    %10621 = vmatprep.mubr.bf16.mxu0 0
    %10622 = vmatmul.mubr.bf16.gmra.mxu0 %v10480
    %v10623 = vpop.f32.mrf.mxu0
    %v10624 = vadd.f32 %v10367, %v10623
    %v10625 = vpop.f32.mrf.mxu0
    %v10626 = vpop.f32.mrf.mxu0
    %v10627 = vadd.f32 %v10370, %v10626
    %v10628 = vpop.f32.mrf.mxu0
    %10629 = vmatprep.mubr.bf16.mxu0 0
    %10630 = vmatmul.mubr.bf16.gmra.mxu0 %v10481
    %v10631 = vpop.f32.mrf.mxu0
    %v10632 = vadd.f32 %v10375, %v10631
    %v10633 = vpop.f32.mrf.mxu0
    %v10634 = vpop.f32.mrf.mxu0
    %v10635 = vadd.f32 %v10378, %v10634
    %v10636 = vpop.f32.mrf.mxu0
    %10637 = vmatprep.mubr.bf16.mxu0 0
    %10638 = vmatmul.mubr.bf16.gmra.mxu0 %v10482
    %v10639 = vpop.f32.mrf.mxu0
    %v10640 = vadd.f32 %v10383, %v10639
    %v10641 = vpop.f32.mrf.mxu0
    %v10642 = vpop.f32.mrf.mxu0
    %v10643 = vadd.f32 %v10386, %v10642
    %v10644 = vpop.f32.mrf.mxu0
    %10645 = vmatprep.mubr.bf16.mxu0 0
    %10646 = vmatmul.mubr.bf16.gmra.mxu0 %v10483
    %v10647 = vpop.f32.mrf.mxu0
    %v10648 = vadd.f32 %v10391, %v10647
    %v10649 = vpop.f32.mrf.mxu0
    %v10650 = vpop.f32.mrf.mxu0
    %v10651 = vadd.f32 %v10394, %v10650
    %v10652 = vpop.f32.mrf.mxu0
    %10653 = vmatprep.mubr.bf16.mxu0 0
    %10654 = vmatmul.mubr.bf16.gmra.mxu0 %v10484
    %v10655 = vpop.f32.mrf.mxu0
    %v10656 = vadd.f32 %v10399, %v10655
    %v10657 = vpop.f32.mrf.mxu0
    %v10658 = vpop.f32.mrf.mxu0
    %v10659 = vadd.f32 %v10402, %v10658
    %v10660 = vpop.f32.mrf.mxu0
    %10661 = vdwg.mxu0
    %s10662 = scalar_lea.vmem [#allocation4], 256
    %v10663 = vld [vmem:[%s10662] sm:$0xf]
    %v10664 = vld [vmem:[%s10662 + $0x4] sm:$0xf]
    %v10665 = vld [vmem:[%s10662 + $0x8] sm:$0xf]
    %v10666 = vld [vmem:[%s10662 + $0xc] sm:$0xf]
    %v10667 = vld [vmem:[%s10662 + $0x10] sm:$0xf]
    %v10668 = vld [vmem:[%s10662 + $0x14] sm:$0xf]
    %v10669 = vld [vmem:[%s10662 + $0x18] sm:$0xf]
    %v10670 = vld [vmem:[%s10662 + $0x1c] sm:$0xf]
    %v10671 = vld [vmem:[%s10662 + $0x20] sm:$0xf]
    %v10672 = vld [vmem:[%s10662 + $0x24] sm:$0xf]
    %v10673 = vld [vmem:[%s10662 + $0x28] sm:$0xf]
    %v10674 = vld [vmem:[%s10662 + $0x2c] sm:$0xf]
    %v10675 = vld [vmem:[%s10662 + $0x30] sm:$0xf]
    %v10676 = vld [vmem:[%s10662 + $0x34] sm:$0xf]
    %v10677 = vld [vmem:[%s10662 + $0x38] sm:$0xf]
    %v10678 = vld [vmem:[%s10662 + $0x3c] sm:$0xf]
    %v10679 = vld [vmem:[%s10662 + $0x40] sm:$0xf]
    %v10680 = vld [vmem:[%s10662 + $0x44] sm:$0xf]
    %v10681 = vld [vmem:[%s10662 + $0x48] sm:$0xf]
    %v10682 = vld [vmem:[%s10662 + $0x4c] sm:$0xf]
    %v10683 = vld [vmem:[%s10662 + $0x50] sm:$0xf]
    %v10684 = vld [vmem:[%s10662 + $0x54] sm:$0xf]
    %v10685 = vld [vmem:[%s10662 + $0x58] sm:$0xf]
    %v10686 = vld [vmem:[%s10662 + $0x5c] sm:$0xf]
    %v10687 = vld [vmem:[%s10662 + $0x60] sm:$0xf]
    %v10688 = vld [vmem:[%s10662 + $0x64] sm:$0xf]
    %v10689 = vld [vmem:[%s10662 + $0x68] sm:$0xf]
    %v10690 = vld [vmem:[%s10662 + $0x6c] sm:$0xf]
    %v10691 = vld [vmem:[%s10662 + $0x70] sm:$0xf]
    %v10692 = vld [vmem:[%s10662 + $0x74] sm:$0xf]
    %v10693 = vld [vmem:[%s10662 + $0x78] sm:$0xf]
    %v10694 = vld [vmem:[%s10662 + $0x7c] sm:$0xf]
    %v10727 = vunpack.c.l.b16 %v10663
    %v10728 = vunpack.c.l.b16 %v10664
    %v10729 = vunpack.c.l.b16 %v10665
    %v10730 = vunpack.c.l.b16 %v10666
    %v10731 = vunpack.c.l.b16 %v10667
    %v10732 = vunpack.c.l.b16 %v10668
    %v10733 = vunpack.c.l.b16 %v10669
    %v10734 = vunpack.c.l.b16 %v10670
    %v10735 = vunpack.c.l.b16 %v10671
    %v10736 = vunpack.c.l.b16 %v10672
    %v10737 = vunpack.c.l.b16 %v10673
    %v10738 = vunpack.c.l.b16 %v10674
    %v10739 = vunpack.c.l.b16 %v10675
    %v10740 = vunpack.c.l.b16 %v10676
    %v10741 = vunpack.c.l.b16 %v10677
    %v10742 = vunpack.c.l.b16 %v10678
    %v10743 = vunpack.c.l.b16 %v10679
    %v10744 = vunpack.c.l.b16 %v10680
    %v10745 = vunpack.c.l.b16 %v10681
    %v10746 = vunpack.c.l.b16 %v10682
    %v10747 = vunpack.c.l.b16 %v10683
    %v10748 = vunpack.c.l.b16 %v10684
    %v10749 = vunpack.c.l.b16 %v10685
    %v10750 = vunpack.c.l.b16 %v10686
    %v10751 = vunpack.c.l.b16 %v10687
    %v10752 = vunpack.c.l.b16 %v10688
    %v10753 = vunpack.c.l.b16 %v10689
    %v10754 = vunpack.c.l.b16 %v10690
    %v10755 = vunpack.c.l.b16 %v10691
    %v10756 = vunpack.c.l.b16 %v10692
    %v10757 = vunpack.c.l.b16 %v10693
    %v10758 = vunpack.c.l.b16 %v10694
    %v10759 = vpack.c.b16 %v10728, %v10727
    %v10760 = vpack.c.b16 %v10730, %v10729
    %v10761 = vpack.c.b16 %v10732, %v10731
    %v10762 = vpack.c.b16 %v10734, %v10733
    %v10763 = vpack.c.b16 %v10736, %v10735
    %v10764 = vpack.c.b16 %v10738, %v10737
    %v10765 = vpack.c.b16 %v10740, %v10739
    %v10766 = vpack.c.b16 %v10742, %v10741
    %v10767 = vpack.c.b16 %v10744, %v10743
    %v10768 = vpack.c.b16 %v10746, %v10745
    %v10769 = vpack.c.b16 %v10748, %v10747
    %v10770 = vpack.c.b16 %v10750, %v10749
    %v10771 = vpack.c.b16 %v10752, %v10751
    %v10772 = vpack.c.b16 %v10754, %v10753
    %v10773 = vpack.c.b16 %v10756, %v10755
    %v10774 = vpack.c.b16 %v10758, %v10757
    %10791 = vrot.lane.b32.xlu0 %v10043, 124
    %v10792 = vpop.permute.xlu0 %10791
    %10793 = vrot.lane.b32.xlu0 %v10044, 124
    %v10794 = vpop.permute.xlu0 %10793
    %10795 = vrot.lane.b32.xlu0 %v10045, 124
    %v10796 = vpop.permute.xlu0 %10795
    %10797 = vrot.lane.b32.xlu0 %v10046, 124
    %v10798 = vpop.permute.xlu0 %10797
    %10799 = vrot.lane.b32.xlu0 %v10047, 124
    %v10800 = vpop.permute.xlu0 %10799
    %10801 = vrot.lane.b32.xlu0 %v10048, 124
    %v10802 = vpop.permute.xlu0 %10801
    %10803 = vrot.lane.b32.xlu0 %v10049, 124
    %v10804 = vpop.permute.xlu0 %10803
    %10805 = vrot.lane.b32.xlu0 %v10050, 124
    %v10806 = vpop.permute.xlu0 %10805
    %10815 = vmatprep.subr.bf16.mxu0 0
    %10816 = vmatpush1.bf16.msra.mxu0 %v10806
    %10817 = vmatprep.subr.bf16.mxu0 0
    %10818 = vmatpush1.bf16.msra.mxu0 %v10804
    %10819 = vmatprep.subr.bf16.mxu0 0
    %10820 = vmatpush1.bf16.msra.mxu0 %v10802
    %10821 = vmatprep.subr.bf16.mxu0 0
    %10822 = vmatpush1.bf16.msra.mxu0 %v10800
    %10823 = vmatprep.subr.bf16.mxu0 0
    %10824 = vmatpush1.bf16.msra.mxu0 %v10798
    %10825 = vmatprep.subr.bf16.mxu0 0
    %10826 = vmatpush1.bf16.msra.mxu0 %v10796
    %10827 = vmatprep.subr.bf16.mxu0 0
    %10828 = vmatpush1.bf16.msra.mxu0 %v10794
    %10829 = vmatprep.subr.bf16.mxu0 0
    %10830 = vmatpush1.bf16.msra.mxu0 %v10792
    %10831 = vmatprep.subr.bf16.mxu0 0
    %10832 = vmatpush2.bf16.msra.mxu0 0
    %10833 = vmatprep.subr.bf16.mxu0 0
    %10834 = vmatpush2.bf16.msra.mxu0 0
    %10835 = vmatprep.subr.bf16.mxu0 0
    %10836 = vmatpush2.bf16.msra.mxu0 0
    %10837 = vmatprep.subr.bf16.mxu0 0
    %10838 = vmatpush2.bf16.msra.mxu0 0
    %10839 = vmatprep.subr.bf16.mxu0 0
    %10840 = vmatpush2.bf16.msra.mxu0 0
    %10841 = vmatprep.subr.bf16.mxu0 0
    %10842 = vmatpush2.bf16.msra.mxu0 0
    %10843 = vmatprep.subr.bf16.mxu0 0
    %10844 = vmatpush2.bf16.msra.mxu0 0
    %10845 = vmatprep.subr.bf16.mxu0 0
    %10846 = vmatpush2.bf16.msra.mxu0 0
    %10847 = vmatprep.mubr.bf16.mxu0 0
    %10848 = vmatmul.mubr.bf16.gmra.mxu0 %v10759
    %v10849 = vpop.f32.mrf.mxu0
    %v10850 = vadd.f32 0.0, %v10849
    %v10851 = vpop.f32.mrf.mxu0
    %v10852 = vpop.f32.mrf.mxu0
    %v10853 = vadd.f32 0.0, %v10852
    %v10854 = vpop.f32.mrf.mxu0
    %10855 = vmatprep.mubr.bf16.mxu0 0
    %10856 = vmatmul.mubr.bf16.gmra.mxu0 %v10760
    %v10857 = vpop.f32.mrf.mxu0
    %v10858 = vadd.f32 0.0, %v10857
    %v10859 = vpop.f32.mrf.mxu0
    %v10860 = vpop.f32.mrf.mxu0
    %v10861 = vadd.f32 0.0, %v10860
    %v10862 = vpop.f32.mrf.mxu0
    %10863 = vmatprep.mubr.bf16.mxu0 0
    %10864 = vmatmul.mubr.bf16.gmra.mxu0 %v10761
    %v10865 = vpop.f32.mrf.mxu0
    %v10866 = vadd.f32 0.0, %v10865
    %v10867 = vpop.f32.mrf.mxu0
    %v10868 = vpop.f32.mrf.mxu0
    %v10869 = vadd.f32 0.0, %v10868
    %v10870 = vpop.f32.mrf.mxu0
    %10871 = vmatprep.mubr.bf16.mxu0 0
    %10872 = vmatmul.mubr.bf16.gmra.mxu0 %v10762
    %v10873 = vpop.f32.mrf.mxu0
    %v10874 = vadd.f32 0.0, %v10873
    %v10875 = vpop.f32.mrf.mxu0
    %v10876 = vpop.f32.mrf.mxu0
    %v10877 = vadd.f32 0.0, %v10876
    %v10878 = vpop.f32.mrf.mxu0
    %10879 = vmatprep.mubr.bf16.mxu0 0
    %10880 = vmatmul.mubr.bf16.gmra.mxu0 %v10763
    %v10881 = vpop.f32.mrf.mxu0
    %v10882 = vadd.f32 0.0, %v10881
    %v10883 = vpop.f32.mrf.mxu0
    %v10884 = vpop.f32.mrf.mxu0
    %v10885 = vadd.f32 0.0, %v10884
    %v10886 = vpop.f32.mrf.mxu0
    %10887 = vmatprep.mubr.bf16.mxu0 0
    %10888 = vmatmul.mubr.bf16.gmra.mxu0 %v10764
    %v10889 = vpop.f32.mrf.mxu0
    %v10890 = vadd.f32 0.0, %v10889
    %v10891 = vpop.f32.mrf.mxu0
    %v10892 = vpop.f32.mrf.mxu0
    %v10893 = vadd.f32 0.0, %v10892
    %v10894 = vpop.f32.mrf.mxu0
    %10895 = vmatprep.mubr.bf16.mxu0 0
    %10896 = vmatmul.mubr.bf16.gmra.mxu0 %v10765
    %v10897 = vpop.f32.mrf.mxu0
    %v10898 = vadd.f32 0.0, %v10897
    %v10899 = vpop.f32.mrf.mxu0
    %v10900 = vpop.f32.mrf.mxu0
    %v10901 = vadd.f32 0.0, %v10900
    %v10902 = vpop.f32.mrf.mxu0
    %10903 = vmatprep.mubr.bf16.mxu0 0
    %10904 = vmatmul.mubr.bf16.gmra.mxu0 %v10766
    %v10905 = vpop.f32.mrf.mxu0
    %v10906 = vadd.f32 0.0, %v10905
    %v10907 = vpop.f32.mrf.mxu0
    %v10908 = vpop.f32.mrf.mxu0
    %v10909 = vadd.f32 0.0, %v10908
    %v10910 = vpop.f32.mrf.mxu0
    %10911 = vmatprep.mubr.bf16.mxu0 0
    %10912 = vmatmul.mubr.bf16.gmra.mxu0 %v10767
    %v10913 = vpop.f32.mrf.mxu0
    %v10914 = vadd.f32 0.0, %v10913
    %v10915 = vpop.f32.mrf.mxu0
    %v10916 = vpop.f32.mrf.mxu0
    %v10917 = vadd.f32 0.0, %v10916
    %v10918 = vpop.f32.mrf.mxu0
    %10919 = vmatprep.mubr.bf16.mxu0 0
    %10920 = vmatmul.mubr.bf16.gmra.mxu0 %v10768
    %v10921 = vpop.f32.mrf.mxu0
    %v10922 = vadd.f32 0.0, %v10921
    %v10923 = vpop.f32.mrf.mxu0
    %v10924 = vpop.f32.mrf.mxu0
    %v10925 = vadd.f32 0.0, %v10924
    %v10926 = vpop.f32.mrf.mxu0
    %10927 = vmatprep.mubr.bf16.mxu0 0
    %10928 = vmatmul.mubr.bf16.gmra.mxu0 %v10769
    %v10929 = vpop.f32.mrf.mxu0
    %v10930 = vadd.f32 0.0, %v10929
    %v10931 = vpop.f32.mrf.mxu0
    %v10932 = vpop.f32.mrf.mxu0
    %v10933 = vadd.f32 0.0, %v10932
    %v10934 = vpop.f32.mrf.mxu0
    %10935 = vmatprep.mubr.bf16.mxu0 0
    %10936 = vmatmul.mubr.bf16.gmra.mxu0 %v10770
    %v10937 = vpop.f32.mrf.mxu0
    %v10938 = vadd.f32 0.0, %v10937
    %v10939 = vpop.f32.mrf.mxu0
    %v10940 = vpop.f32.mrf.mxu0
    %v10941 = vadd.f32 0.0, %v10940
    %v10942 = vpop.f32.mrf.mxu0
    %10943 = vmatprep.mubr.bf16.mxu0 0
    %10944 = vmatmul.mubr.bf16.gmra.mxu0 %v10771
    %v10945 = vpop.f32.mrf.mxu0
    %v10946 = vadd.f32 0.0, %v10945
    %v10947 = vpop.f32.mrf.mxu0
    %v10948 = vpop.f32.mrf.mxu0
    %v10949 = vadd.f32 0.0, %v10948
    %v10950 = vpop.f32.mrf.mxu0
    %10951 = vmatprep.mubr.bf16.mxu0 0
    %10952 = vmatmul.mubr.bf16.gmra.mxu0 %v10772
    %v10953 = vpop.f32.mrf.mxu0
    %v10954 = vadd.f32 0.0, %v10953
    %v10955 = vpop.f32.mrf.mxu0
    %v10956 = vpop.f32.mrf.mxu0
    %v10957 = vadd.f32 0.0, %v10956
    %v10958 = vpop.f32.mrf.mxu0
    %10959 = vmatprep.mubr.bf16.mxu0 0
    %10960 = vmatmul.mubr.bf16.gmra.mxu0 %v10773
    %v10961 = vpop.f32.mrf.mxu0
    %v10962 = vadd.f32 0.0, %v10961
    %v10963 = vpop.f32.mrf.mxu0
    %v10964 = vpop.f32.mrf.mxu0
    %v10965 = vadd.f32 0.0, %v10964
    %v10966 = vpop.f32.mrf.mxu0
    %10967 = vmatprep.mubr.bf16.mxu0 0
    %10968 = vmatmul.mubr.bf16.gmra.mxu0 %v10774
    %v10969 = vpop.f32.mrf.mxu0
    %v10970 = vadd.f32 0.0, %v10969
    %v10971 = vpop.f32.mrf.mxu0
    %v10972 = vpop.f32.mrf.mxu0
    %v10973 = vadd.f32 0.0, %v10972
    %v10974 = vpop.f32.mrf.mxu0
    %10975 = vdwg.mxu0
    %v10976 = vadd.f32 %v10536, %v10850
    %v10977 = vadd.f32 %v10539, %v10853
    %v10978 = vadd.f32 %v10544, %v10858
    %v10979 = vadd.f32 %v10547, %v10861
    %v10980 = vadd.f32 %v10552, %v10866
    %v10981 = vadd.f32 %v10555, %v10869
    %v10982 = vadd.f32 %v10560, %v10874
    %v10983 = vadd.f32 %v10563, %v10877
    %v10984 = vadd.f32 %v10568, %v10882
    %v10985 = vadd.f32 %v10571, %v10885
    %v10986 = vadd.f32 %v10576, %v10890
    %v10987 = vadd.f32 %v10579, %v10893
    %v10988 = vadd.f32 %v10584, %v10898
    %v10989 = vadd.f32 %v10587, %v10901
    %v10990 = vadd.f32 %v10592, %v10906
    %v10991 = vadd.f32 %v10595, %v10909
    %v10992 = vadd.f32 %v10600, %v10914
    %v10993 = vadd.f32 %v10603, %v10917
    %v10994 = vadd.f32 %v10608, %v10922
    %v10995 = vadd.f32 %v10611, %v10925
    %v10996 = vadd.f32 %v10616, %v10930
    %v10997 = vadd.f32 %v10619, %v10933
    %v10998 = vadd.f32 %v10624, %v10938
    %v10999 = vadd.f32 %v10627, %v10941
    %v11000 = vadd.f32 %v10632, %v10946
    %v11001 = vadd.f32 %v10635, %v10949
    %v11002 = vadd.f32 %v10640, %v10954
    %v11003 = vadd.f32 %v10643, %v10957
    %v11004 = vadd.f32 %v10648, %v10962
    %v11005 = vadd.f32 %v10651, %v10965
    %v11006 = vadd.f32 %v10656, %v10970
    %v11007 = vadd.f32 %v10659, %v10973
    %s11008 = scalar_lea.vmem [#allocation4], 384
    %v11009 = vld [vmem:[%s11008] sm:$0xf]
    %v11010 = vld [vmem:[%s11008 + $0x4] sm:$0xf]
    %v11011 = vld [vmem:[%s11008 + $0x8] sm:$0xf]
    %v11012 = vld [vmem:[%s11008 + $0xc] sm:$0xf]
    %v11013 = vld [vmem:[%s11008 + $0x10] sm:$0xf]
    %v11014 = vld [vmem:[%s11008 + $0x14] sm:$0xf]
    %v11015 = vld [vmem:[%s11008 + $0x18] sm:$0xf]
    %v11016 = vld [vmem:[%s11008 + $0x1c] sm:$0xf]
    %v11017 = vld [vmem:[%s11008 + $0x20] sm:$0xf]
    %v11018 = vld [vmem:[%s11008 + $0x24] sm:$0xf]
    %v11019 = vld [vmem:[%s11008 + $0x28] sm:$0xf]
    %v11020 = vld [vmem:[%s11008 + $0x2c] sm:$0xf]
    %v11021 = vld [vmem:[%s11008 + $0x30] sm:$0xf]
    %v11022 = vld [vmem:[%s11008 + $0x34] sm:$0xf]
    %v11023 = vld [vmem:[%s11008 + $0x38] sm:$0xf]
    %v11024 = vld [vmem:[%s11008 + $0x3c] sm:$0xf]
    %v11025 = vld [vmem:[%s11008 + $0x40] sm:$0xf]
    %v11026 = vld [vmem:[%s11008 + $0x44] sm:$0xf]
    %v11027 = vld [vmem:[%s11008 + $0x48] sm:$0xf]
    %v11028 = vld [vmem:[%s11008 + $0x4c] sm:$0xf]
    %v11029 = vld [vmem:[%s11008 + $0x50] sm:$0xf]
    %v11030 = vld [vmem:[%s11008 + $0x54] sm:$0xf]
    %v11031 = vld [vmem:[%s11008 + $0x58] sm:$0xf]
    %v11032 = vld [vmem:[%s11008 + $0x5c] sm:$0xf]
    %v11033 = vld [vmem:[%s11008 + $0x60] sm:$0xf]
    %v11034 = vld [vmem:[%s11008 + $0x64] sm:$0xf]
    %v11035 = vld [vmem:[%s11008 + $0x68] sm:$0xf]
    %v11036 = vld [vmem:[%s11008 + $0x6c] sm:$0xf]
    %v11037 = vld [vmem:[%s11008 + $0x70] sm:$0xf]
    %v11038 = vld [vmem:[%s11008 + $0x74] sm:$0xf]
    %v11039 = vld [vmem:[%s11008 + $0x78] sm:$0xf]
    %v11040 = vld [vmem:[%s11008 + $0x7c] sm:$0xf]
    %v11073 = vunpack.c.l.b16 %v11009
    %v11074 = vunpack.c.l.b16 %v11010
    %v11075 = vunpack.c.l.b16 %v11011
    %v11076 = vunpack.c.l.b16 %v11012
    %v11077 = vunpack.c.l.b16 %v11013
    %v11078 = vunpack.c.l.b16 %v11014
    %v11079 = vunpack.c.l.b16 %v11015
    %v11080 = vunpack.c.l.b16 %v11016
    %v11081 = vunpack.c.l.b16 %v11017
    %v11082 = vunpack.c.l.b16 %v11018
    %v11083 = vunpack.c.l.b16 %v11019
    %v11084 = vunpack.c.l.b16 %v11020
    %v11085 = vunpack.c.l.b16 %v11021
    %v11086 = vunpack.c.l.b16 %v11022
    %v11087 = vunpack.c.l.b16 %v11023
    %v11088 = vunpack.c.l.b16 %v11024
    %v11089 = vunpack.c.l.b16 %v11025
    %v11090 = vunpack.c.l.b16 %v11026
    %v11091 = vunpack.c.l.b16 %v11027
    %v11092 = vunpack.c.l.b16 %v11028
    %v11093 = vunpack.c.l.b16 %v11029
    %v11094 = vunpack.c.l.b16 %v11030
    %v11095 = vunpack.c.l.b16 %v11031
    %v11096 = vunpack.c.l.b16 %v11032
    %v11097 = vunpack.c.l.b16 %v11033
    %v11098 = vunpack.c.l.b16 %v11034
    %v11099 = vunpack.c.l.b16 %v11035
    %v11100 = vunpack.c.l.b16 %v11036
    %v11101 = vunpack.c.l.b16 %v11037
    %v11102 = vunpack.c.l.b16 %v11038
    %v11103 = vunpack.c.l.b16 %v11039
    %v11104 = vunpack.c.l.b16 %v11040
    %v11105 = vpack.c.b16 %v11074, %v11073
    %v11106 = vpack.c.b16 %v11076, %v11075
    %v11107 = vpack.c.b16 %v11078, %v11077
    %v11108 = vpack.c.b16 %v11080, %v11079
    %v11109 = vpack.c.b16 %v11082, %v11081
    %v11110 = vpack.c.b16 %v11084, %v11083
    %v11111 = vpack.c.b16 %v11086, %v11085
    %v11112 = vpack.c.b16 %v11088, %v11087
    %v11113 = vpack.c.b16 %v11090, %v11089
    %v11114 = vpack.c.b16 %v11092, %v11091
    %v11115 = vpack.c.b16 %v11094, %v11093
    %v11116 = vpack.c.b16 %v11096, %v11095
    %v11117 = vpack.c.b16 %v11098, %v11097
    %v11118 = vpack.c.b16 %v11100, %v11099
    %v11119 = vpack.c.b16 %v11102, %v11101
    %v11120 = vpack.c.b16 %v11104, %v11103
    %11137 = vrot.lane.b32.xlu0 %v10043, 122
    %v11138 = vpop.permute.xlu0 %11137
    %11139 = vrot.lane.b32.xlu0 %v10044, 122
    %v11140 = vpop.permute.xlu0 %11139
    %11141 = vrot.lane.b32.xlu0 %v10045, 122
    %v11142 = vpop.permute.xlu0 %11141
    %11143 = vrot.lane.b32.xlu0 %v10046, 122
    %v11144 = vpop.permute.xlu0 %11143
    %11145 = vrot.lane.b32.xlu0 %v10047, 122
    %v11146 = vpop.permute.xlu0 %11145
    %11147 = vrot.lane.b32.xlu0 %v10048, 122
    %v11148 = vpop.permute.xlu0 %11147
    %11149 = vrot.lane.b32.xlu0 %v10049, 122
    %v11150 = vpop.permute.xlu0 %11149
    %11151 = vrot.lane.b32.xlu0 %v10050, 122
    %v11152 = vpop.permute.xlu0 %11151
    %11161 = vmatprep.subr.bf16.mxu0 0
    %11162 = vmatpush1.bf16.msra.mxu0 %v11152
    %11163 = vmatprep.subr.bf16.mxu0 0
    %11164 = vmatpush1.bf16.msra.mxu0 %v11150
    %11165 = vmatprep.subr.bf16.mxu0 0
    %11166 = vmatpush1.bf16.msra.mxu0 %v11148
    %11167 = vmatprep.subr.bf16.mxu0 0
    %11168 = vmatpush1.bf16.msra.mxu0 %v11146
    %11169 = vmatprep.subr.bf16.mxu0 0
    %11170 = vmatpush1.bf16.msra.mxu0 %v11144
    %11171 = vmatprep.subr.bf16.mxu0 0
    %11172 = vmatpush1.bf16.msra.mxu0 %v11142
    %11173 = vmatprep.subr.bf16.mxu0 0
    %11174 = vmatpush1.bf16.msra.mxu0 %v11140
    %11175 = vmatprep.subr.bf16.mxu0 0
    %11176 = vmatpush1.bf16.msra.mxu0 %v11138
    %11177 = vmatprep.subr.bf16.mxu0 0
    %11178 = vmatpush2.bf16.msra.mxu0 0
    %11179 = vmatprep.subr.bf16.mxu0 0
    %11180 = vmatpush2.bf16.msra.mxu0 0
    %11181 = vmatprep.subr.bf16.mxu0 0
    %11182 = vmatpush2.bf16.msra.mxu0 0
    %11183 = vmatprep.subr.bf16.mxu0 0
    %11184 = vmatpush2.bf16.msra.mxu0 0
    %11185 = vmatprep.subr.bf16.mxu0 0
    %11186 = vmatpush2.bf16.msra.mxu0 0
    %11187 = vmatprep.subr.bf16.mxu0 0
    %11188 = vmatpush2.bf16.msra.mxu0 0
    %11189 = vmatprep.subr.bf16.mxu0 0
    %11190 = vmatpush2.bf16.msra.mxu0 0
    %11191 = vmatprep.subr.bf16.mxu0 0
    %11192 = vmatpush2.bf16.msra.mxu0 0
    %11193 = vmatprep.mubr.bf16.mxu0 0
    %11194 = vmatmul.mubr.bf16.gmra.mxu0 %v11105
    %v11195 = vpop.f32.mrf.mxu0
    %v11196 = vadd.f32 0.0, %v11195
    %v11197 = vpop.f32.mrf.mxu0
    %v11198 = vpop.f32.mrf.mxu0
    %v11199 = vadd.f32 0.0, %v11198
    %v11200 = vpop.f32.mrf.mxu0
    %11201 = vmatprep.mubr.bf16.mxu0 0
    %11202 = vmatmul.mubr.bf16.gmra.mxu0 %v11106
    %v11203 = vpop.f32.mrf.mxu0
    %v11204 = vadd.f32 0.0, %v11203
    %v11205 = vpop.f32.mrf.mxu0
    %v11206 = vpop.f32.mrf.mxu0
    %v11207 = vadd.f32 0.0, %v11206
    %v11208 = vpop.f32.mrf.mxu0
    %11209 = vmatprep.mubr.bf16.mxu0 0
    %11210 = vmatmul.mubr.bf16.gmra.mxu0 %v11107
    %v11211 = vpop.f32.mrf.mxu0
    %v11212 = vadd.f32 0.0, %v11211
    %v11213 = vpop.f32.mrf.mxu0
    %v11214 = vpop.f32.mrf.mxu0
    %v11215 = vadd.f32 0.0, %v11214
    %v11216 = vpop.f32.mrf.mxu0
    %11217 = vmatprep.mubr.bf16.mxu0 0
    %11218 = vmatmul.mubr.bf16.gmra.mxu0 %v11108
    %v11219 = vpop.f32.mrf.mxu0
    %v11220 = vadd.f32 0.0, %v11219
    %v11221 = vpop.f32.mrf.mxu0
    %v11222 = vpop.f32.mrf.mxu0
    %v11223 = vadd.f32 0.0, %v11222
    %v11224 = vpop.f32.mrf.mxu0
    %11225 = vmatprep.mubr.bf16.mxu0 0
    %11226 = vmatmul.mubr.bf16.gmra.mxu0 %v11109
    %v11227 = vpop.f32.mrf.mxu0
    %v11228 = vadd.f32 0.0, %v11227
    %v11229 = vpop.f32.mrf.mxu0
    %v11230 = vpop.f32.mrf.mxu0
    %v11231 = vadd.f32 0.0, %v11230
    %v11232 = vpop.f32.mrf.mxu0
    %11233 = vmatprep.mubr.bf16.mxu0 0
    %11234 = vmatmul.mubr.bf16.gmra.mxu0 %v11110
    %v11235 = vpop.f32.mrf.mxu0
    %v11236 = vadd.f32 0.0, %v11235
    %v11237 = vpop.f32.mrf.mxu0
    %v11238 = vpop.f32.mrf.mxu0
    %v11239 = vadd.f32 0.0, %v11238
    %v11240 = vpop.f32.mrf.mxu0
    %11241 = vmatprep.mubr.bf16.mxu0 0
    %11242 = vmatmul.mubr.bf16.gmra.mxu0 %v11111
    %v11243 = vpop.f32.mrf.mxu0
    %v11244 = vadd.f32 0.0, %v11243
    %v11245 = vpop.f32.mrf.mxu0
    %v11246 = vpop.f32.mrf.mxu0
    %v11247 = vadd.f32 0.0, %v11246
    %v11248 = vpop.f32.mrf.mxu0
    %11249 = vmatprep.mubr.bf16.mxu0 0
    %11250 = vmatmul.mubr.bf16.gmra.mxu0 %v11112
    %v11251 = vpop.f32.mrf.mxu0
    %v11252 = vadd.f32 0.0, %v11251
    %v11253 = vpop.f32.mrf.mxu0
    %v11254 = vpop.f32.mrf.mxu0
    %v11255 = vadd.f32 0.0, %v11254
    %v11256 = vpop.f32.mrf.mxu0
    %11257 = vmatprep.mubr.bf16.mxu0 0
    %11258 = vmatmul.mubr.bf16.gmra.mxu0 %v11113
    %v11259 = vpop.f32.mrf.mxu0
    %v11260 = vadd.f32 0.0, %v11259
    %v11261 = vpop.f32.mrf.mxu0
    %v11262 = vpop.f32.mrf.mxu0
    %v11263 = vadd.f32 0.0, %v11262
    %v11264 = vpop.f32.mrf.mxu0
    %11265 = vmatprep.mubr.bf16.mxu0 0
    %11266 = vmatmul.mubr.bf16.gmra.mxu0 %v11114
    %v11267 = vpop.f32.mrf.mxu0
    %v11268 = vadd.f32 0.0, %v11267
    %v11269 = vpop.f32.mrf.mxu0
    %v11270 = vpop.f32.mrf.mxu0
    %v11271 = vadd.f32 0.0, %v11270
    %v11272 = vpop.f32.mrf.mxu0
    %11273 = vmatprep.mubr.bf16.mxu0 0
    %11274 = vmatmul.mubr.bf16.gmra.mxu0 %v11115
    %v11275 = vpop.f32.mrf.mxu0
    %v11276 = vadd.f32 0.0, %v11275
    %v11277 = vpop.f32.mrf.mxu0
    %v11278 = vpop.f32.mrf.mxu0
    %v11279 = vadd.f32 0.0, %v11278
    %v11280 = vpop.f32.mrf.mxu0
    %11281 = vmatprep.mubr.bf16.mxu0 0
    %11282 = vmatmul.mubr.bf16.gmra.mxu0 %v11116
    %v11283 = vpop.f32.mrf.mxu0
    %v11284 = vadd.f32 0.0, %v11283
    %v11285 = vpop.f32.mrf.mxu0
    %v11286 = vpop.f32.mrf.mxu0
    %v11287 = vadd.f32 0.0, %v11286
    %v11288 = vpop.f32.mrf.mxu0
    %11289 = vmatprep.mubr.bf16.mxu0 0
    %11290 = vmatmul.mubr.bf16.gmra.mxu0 %v11117
    %v11291 = vpop.f32.mrf.mxu0
    %v11292 = vadd.f32 0.0, %v11291
    %v11293 = vpop.f32.mrf.mxu0
    %v11294 = vpop.f32.mrf.mxu0
    %v11295 = vadd.f32 0.0, %v11294
    %v11296 = vpop.f32.mrf.mxu0
    %11297 = vmatprep.mubr.bf16.mxu0 0
    %11298 = vmatmul.mubr.bf16.gmra.mxu0 %v11118
    %v11299 = vpop.f32.mrf.mxu0
    %v11300 = vadd.f32 0.0, %v11299
    %v11301 = vpop.f32.mrf.mxu0
    %v11302 = vpop.f32.mrf.mxu0
    %v11303 = vadd.f32 0.0, %v11302
    %v11304 = vpop.f32.mrf.mxu0
    %11305 = vmatprep.mubr.bf16.mxu0 0
    %11306 = vmatmul.mubr.bf16.gmra.mxu0 %v11119
    %v11307 = vpop.f32.mrf.mxu0
    %v11308 = vadd.f32 0.0, %v11307
    %v11309 = vpop.f32.mrf.mxu0
    %v11310 = vpop.f32.mrf.mxu0
    %v11311 = vadd.f32 0.0, %v11310
    %v11312 = vpop.f32.mrf.mxu0
    %11313 = vmatprep.mubr.bf16.mxu0 0
    %11314 = vmatmul.mubr.bf16.gmra.mxu0 %v11120
    %v11315 = vpop.f32.mrf.mxu0
    %v11316 = vadd.f32 0.0, %v11315
    %v11317 = vpop.f32.mrf.mxu0
    %v11318 = vpop.f32.mrf.mxu0
    %v11319 = vadd.f32 0.0, %v11318
    %v11320 = vpop.f32.mrf.mxu0
    %11321 = vdwg.mxu0
    %v11322 = vadd.f32 %v10976, %v11196
    %v11323 = vadd.f32 %v10977, %v11199
    %v11324 = vadd.f32 %v10978, %v11204
    %v11325 = vadd.f32 %v10979, %v11207
    %v11326 = vadd.f32 %v10980, %v11212
    %v11327 = vadd.f32 %v10981, %v11215
    %v11328 = vadd.f32 %v10982, %v11220
    %v11329 = vadd.f32 %v10983, %v11223
    %v11330 = vadd.f32 %v10984, %v11228
    %v11331 = vadd.f32 %v10985, %v11231
    %v11332 = vadd.f32 %v10986, %v11236
    %v11333 = vadd.f32 %v10987, %v11239
    %v11334 = vadd.f32 %v10988, %v11244
    %v11335 = vadd.f32 %v10989, %v11247
    %v11336 = vadd.f32 %v10990, %v11252
    %v11337 = vadd.f32 %v10991, %v11255
    %v11338 = vadd.f32 %v10992, %v11260
    %v11339 = vadd.f32 %v10993, %v11263
    %v11340 = vadd.f32 %v10994, %v11268
    %v11341 = vadd.f32 %v10995, %v11271
    %v11342 = vadd.f32 %v10996, %v11276
    %v11343 = vadd.f32 %v10997, %v11279
    %v11344 = vadd.f32 %v10998, %v11284
    %v11345 = vadd.f32 %v10999, %v11287
    %v11346 = vadd.f32 %v11000, %v11292
    %v11347 = vadd.f32 %v11001, %v11295
    %v11348 = vadd.f32 %v11002, %v11300
    %v11349 = vadd.f32 %v11003, %v11303
    %v11350 = vadd.f32 %v11004, %v11308
    %v11351 = vadd.f32 %v11005, %v11311
    %v11352 = vadd.f32 %v11006, %v11316
    %v11353 = vadd.f32 %v11007, %v11319
    %v11354 = vld [vmem:[#allocation15] sm:$0xff]
    %v11355 = vld [vmem:[#allocation15 + $0x8] sm:$0xff]
    %v11356 = vld [vmem:[#allocation15 + $0x10] sm:$0xff]
    %v11357 = vld [vmem:[#allocation15 + $0x18] sm:$0xff]
    %v11358 = vld [vmem:[#allocation15 + $0x20] sm:$0xff]
    %v11359 = vld [vmem:[#allocation15 + $0x28] sm:$0xff]
    %v11360 = vld [vmem:[#allocation15 + $0x30] sm:$0xff]
    %v11361 = vld [vmem:[#allocation15 + $0x38] sm:$0xff]
    %v11362 = vld [vmem:[#allocation15 + $0x40] sm:$0xff]
    %v11363 = vld [vmem:[#allocation15 + $0x48] sm:$0xff]
    %v11364 = vld [vmem:[#allocation15 + $0x50] sm:$0xff]
    %v11365 = vld [vmem:[#allocation15 + $0x58] sm:$0xff]
    %v11366 = vld [vmem:[#allocation15 + $0x60] sm:$0xff]
    %v11367 = vld [vmem:[#allocation15 + $0x68] sm:$0xff]
    %v11368 = vld [vmem:[#allocation15 + $0x70] sm:$0xff]
    %v11369 = vld [vmem:[#allocation15 + $0x78] sm:$0xff]
    %v11370 = vld [vmem:[#allocation15 + $0x80] sm:$0xff]
    %v11371 = vld [vmem:[#allocation15 + $0x88] sm:$0xff]
    %v11372 = vld [vmem:[#allocation15 + $0x90] sm:$0xff]
    %v11373 = vld [vmem:[#allocation15 + $0x98] sm:$0xff]
    %v11374 = vld [vmem:[#allocation15 + $0xa0] sm:$0xff]
    %v11375 = vld [vmem:[#allocation15 + $0xa8] sm:$0xff]
    %v11376 = vld [vmem:[#allocation15 + $0xb0] sm:$0xff]
    %v11377 = vld [vmem:[#allocation15 + $0xb8] sm:$0xff]
    %v11378 = vld [vmem:[#allocation15 + $0xc0] sm:$0xff]
    %v11379 = vld [vmem:[#allocation15 + $0xc8] sm:$0xff]
    %v11380 = vld [vmem:[#allocation15 + $0xd0] sm:$0xff]
    %v11381 = vld [vmem:[#allocation15 + $0xd8] sm:$0xff]
    %v11382 = vld [vmem:[#allocation15 + $0xe0] sm:$0xff]
    %v11383 = vld [vmem:[#allocation15 + $0xe8] sm:$0xff]
    %v11384 = vld [vmem:[#allocation15 + $0xf0] sm:$0xff]
    %v11385 = vld [vmem:[#allocation15 + $0xf8] sm:$0xff]
    %11387 = vset.pattern.permute.xlu0 0
    %11388 = vperm.xlu0 %11387, %v11354
    %v11389 = vpop.permute.xlu0 %11388
    %11392 = vset.pattern.permute.xlu0 0
    %11393 = vperm.xlu0 %11392, %v11355
    %v11394 = vpop.permute.xlu0 %11393
    %11397 = vset.pattern.permute.xlu0 0
    %11398 = vperm.xlu0 %11397, %v11356
    %v11399 = vpop.permute.xlu0 %11398
    %11402 = vset.pattern.permute.xlu0 0
    %11403 = vperm.xlu0 %11402, %v11357
    %v11404 = vpop.permute.xlu0 %11403
    %11407 = vset.pattern.permute.xlu0 0
    %11408 = vperm.xlu0 %11407, %v11358
    %v11409 = vpop.permute.xlu0 %11408
    %11412 = vset.pattern.permute.xlu0 0
    %11413 = vperm.xlu0 %11412, %v11359
    %v11414 = vpop.permute.xlu0 %11413
    %11417 = vset.pattern.permute.xlu0 0
    %11418 = vperm.xlu0 %11417, %v11360
    %v11419 = vpop.permute.xlu0 %11418
    %11422 = vset.pattern.permute.xlu0 0
    %11423 = vperm.xlu0 %11422, %v11361
    %v11424 = vpop.permute.xlu0 %11423
    %11427 = vset.pattern.permute.xlu0 0
    %11428 = vperm.xlu0 %11427, %v11362
    %v11429 = vpop.permute.xlu0 %11428
    %11432 = vset.pattern.permute.xlu0 0
    %11433 = vperm.xlu0 %11432, %v11363
    %v11434 = vpop.permute.xlu0 %11433
    %11437 = vset.pattern.permute.xlu0 0
    %11438 = vperm.xlu0 %11437, %v11364
    %v11439 = vpop.permute.xlu0 %11438
    %11442 = vset.pattern.permute.xlu0 0
    %11443 = vperm.xlu0 %11442, %v11365
    %v11444 = vpop.permute.xlu0 %11443
    %11447 = vset.pattern.permute.xlu0 0
    %11448 = vperm.xlu0 %11447, %v11366
    %v11449 = vpop.permute.xlu0 %11448
    %11452 = vset.pattern.permute.xlu0 0
    %11453 = vperm.xlu0 %11452, %v11367
    %v11454 = vpop.permute.xlu0 %11453
    %11457 = vset.pattern.permute.xlu0 0
    %11458 = vperm.xlu0 %11457, %v11368
    %v11459 = vpop.permute.xlu0 %11458
    %11462 = vset.pattern.permute.xlu0 0
    %11463 = vperm.xlu0 %11462, %v11369
    %v11464 = vpop.permute.xlu0 %11463
    %11467 = vset.pattern.permute.xlu0 0
    %11468 = vperm.xlu0 %11467, %v11370
    %v11469 = vpop.permute.xlu0 %11468
    %11472 = vset.pattern.permute.xlu0 0
    %11473 = vperm.xlu0 %11472, %v11371
    %v11474 = vpop.permute.xlu0 %11473
    %11477 = vset.pattern.permute.xlu0 0
    %11478 = vperm.xlu0 %11477, %v11372
    %v11479 = vpop.permute.xlu0 %11478
    %11482 = vset.pattern.permute.xlu0 0
    %11483 = vperm.xlu0 %11482, %v11373
    %v11484 = vpop.permute.xlu0 %11483
    %11487 = vset.pattern.permute.xlu0 0
    %11488 = vperm.xlu0 %11487, %v11374
    %v11489 = vpop.permute.xlu0 %11488
    %11492 = vset.pattern.permute.xlu0 0
    %11493 = vperm.xlu0 %11492, %v11375
    %v11494 = vpop.permute.xlu0 %11493
    %11497 = vset.pattern.permute.xlu0 0
    %11498 = vperm.xlu0 %11497, %v11376
    %v11499 = vpop.permute.xlu0 %11498
    %11502 = vset.pattern.permute.xlu0 0
    %11503 = vperm.xlu0 %11502, %v11377
    %v11504 = vpop.permute.xlu0 %11503
    %11507 = vset.pattern.permute.xlu0 0
    %11508 = vperm.xlu0 %11507, %v11378
    %v11509 = vpop.permute.xlu0 %11508
    %11512 = vset.pattern.permute.xlu0 0
    %11513 = vperm.xlu0 %11512, %v11379
    %v11514 = vpop.permute.xlu0 %11513
    %11517 = vset.pattern.permute.xlu0 0
    %11518 = vperm.xlu0 %11517, %v11380
    %v11519 = vpop.permute.xlu0 %11518
    %11522 = vset.pattern.permute.xlu0 0
    %11523 = vperm.xlu0 %11522, %v11381
    %v11524 = vpop.permute.xlu0 %11523
    %11527 = vset.pattern.permute.xlu0 0
    %11528 = vperm.xlu0 %11527, %v11382
    %v11529 = vpop.permute.xlu0 %11528
    %11532 = vset.pattern.permute.xlu0 0
    %11533 = vperm.xlu0 %11532, %v11383
    %v11534 = vpop.permute.xlu0 %11533
    %11537 = vset.pattern.permute.xlu0 0
    %11538 = vperm.xlu0 %11537, %v11384
    %v11539 = vpop.permute.xlu0 %11538
    %11542 = vset.pattern.permute.xlu0 0
    %11543 = vperm.xlu0 %11542, %v11385
    %v11544 = vpop.permute.xlu0 %11543
    %v11546 = vadd.f32 %v11322, %v11389
    %v11547 = vadd.f32 %v11323, %v11394
    %v11548 = vadd.f32 %v11324, %v11399
    %v11549 = vadd.f32 %v11325, %v11404
    %v11550 = vadd.f32 %v11326, %v11409
    %v11551 = vadd.f32 %v11327, %v11414
    %v11552 = vadd.f32 %v11328, %v11419
    %v11553 = vadd.f32 %v11329, %v11424
    %v11554 = vadd.f32 %v11330, %v11429
    %v11555 = vadd.f32 %v11331, %v11434
    %v11556 = vadd.f32 %v11332, %v11439
    %v11557 = vadd.f32 %v11333, %v11444
    %v11558 = vadd.f32 %v11334, %v11449
    %v11559 = vadd.f32 %v11335, %v11454
    %v11560 = vadd.f32 %v11336, %v11459
    %v11561 = vadd.f32 %v11337, %v11464
    %v11562 = vadd.f32 %v11338, %v11469
    %v11563 = vadd.f32 %v11339, %v11474
    %v11564 = vadd.f32 %v11340, %v11479
    %v11565 = vadd.f32 %v11341, %v11484
    %v11566 = vadd.f32 %v11342, %v11489
    %v11567 = vadd.f32 %v11343, %v11494
    %v11568 = vadd.f32 %v11344, %v11499
    %v11569 = vadd.f32 %v11345, %v11504
    %v11570 = vadd.f32 %v11346, %v11509
    %v11571 = vadd.f32 %v11347, %v11514
    %v11572 = vadd.f32 %v11348, %v11519
    %v11573 = vadd.f32 %v11349, %v11524
    %v11574 = vadd.f32 %v11350, %v11529
    %v11575 = vadd.f32 %v11351, %v11534
    %v11576 = vadd.f32 %v11352, %v11539
    %v11577 = vadd.f32 %v11353, %v11544
    %v11578 = vmax.f32 %v11546, 0.0
    %v11579 = vmax.f32 %v11547, 0.0
    %v11580 = vmax.f32 %v11548, 0.0
    %v11581 = vmax.f32 %v11549, 0.0
    %v11582 = vmax.f32 %v11550, 0.0
    %v11583 = vmax.f32 %v11551, 0.0
    %v11584 = vmax.f32 %v11552, 0.0
    %v11585 = vmax.f32 %v11553, 0.0
    %v11586 = vmax.f32 %v11554, 0.0
    %v11587 = vmax.f32 %v11555, 0.0
    %v11588 = vmax.f32 %v11556, 0.0
    %v11589 = vmax.f32 %v11557, 0.0
    %v11590 = vmax.f32 %v11558, 0.0
    %v11591 = vmax.f32 %v11559, 0.0
    %v11592 = vmax.f32 %v11560, 0.0
    %v11593 = vmax.f32 %v11561, 0.0
    %v11594 = vmax.f32 %v11562, 0.0
    %v11595 = vmax.f32 %v11563, 0.0
    %v11596 = vmax.f32 %v11564, 0.0
    %v11597 = vmax.f32 %v11565, 0.0
    %v11598 = vmax.f32 %v11566, 0.0
    %v11599 = vmax.f32 %v11567, 0.0
    %v11600 = vmax.f32 %v11568, 0.0
    %v11601 = vmax.f32 %v11569, 0.0
    %v11602 = vmax.f32 %v11570, 0.0
    %v11603 = vmax.f32 %v11571, 0.0
    %v11604 = vmax.f32 %v11572, 0.0
    %v11605 = vmax.f32 %v11573, 0.0
    %v11606 = vmax.f32 %v11574, 0.0
    %v11607 = vmax.f32 %v11575, 0.0
    %v11608 = vmax.f32 %v11576, 0.0
    %v11609 = vmax.f32 %v11577, 0.0
    %s11610 = smul.u32 4, 32
    %s11611 = smul.u32 %s11610, 2
    %s11612 = sshll.u32 %s11611, 4
    %11613 = dma.done %s174, %s11612
    %v11614 = vld [vmem:[#allocation5] sm:$0xff]
    %v11615 = vld [vmem:[#allocation5 + $0x8] sm:$0xff]
    %v11616 = vld [vmem:[#allocation5 + $0x10] sm:$0xff]
    %v11617 = vld [vmem:[#allocation5 + $0x18] sm:$0xff]
    %v11618 = vld [vmem:[#allocation5 + $0x20] sm:$0xff]
    %v11619 = vld [vmem:[#allocation5 + $0x28] sm:$0xff]
    %v11620 = vld [vmem:[#allocation5 + $0x30] sm:$0xff]
    %v11621 = vld [vmem:[#allocation5 + $0x38] sm:$0xff]
    %v11622 = vld [vmem:[#allocation5 + $0x40] sm:$0xff]
    %v11623 = vld [vmem:[#allocation5 + $0x48] sm:$0xff]
    %v11624 = vld [vmem:[#allocation5 + $0x50] sm:$0xff]
    %v11625 = vld [vmem:[#allocation5 + $0x58] sm:$0xff]
    %v11626 = vld [vmem:[#allocation5 + $0x60] sm:$0xff]
    %v11627 = vld [vmem:[#allocation5 + $0x68] sm:$0xff]
    %v11628 = vld [vmem:[#allocation5 + $0x70] sm:$0xff]
    %v11629 = vld [vmem:[#allocation5 + $0x78] sm:$0xff]
    %v11630 = vld [vmem:[#allocation5 + $0x80] sm:$0xff]
    %v11631 = vld [vmem:[#allocation5 + $0x88] sm:$0xff]
    %v11632 = vld [vmem:[#allocation5 + $0x90] sm:$0xff]
    %v11633 = vld [vmem:[#allocation5 + $0x98] sm:$0xff]
    %v11634 = vld [vmem:[#allocation5 + $0xa0] sm:$0xff]
    %v11635 = vld [vmem:[#allocation5 + $0xa8] sm:$0xff]
    %v11636 = vld [vmem:[#allocation5 + $0xb0] sm:$0xff]
    %v11637 = vld [vmem:[#allocation5 + $0xb8] sm:$0xff]
    %v11638 = vld [vmem:[#allocation5 + $0xc0] sm:$0xff]
    %v11639 = vld [vmem:[#allocation5 + $0xc8] sm:$0xff]
    %v11640 = vld [vmem:[#allocation5 + $0xd0] sm:$0xff]
    %v11641 = vld [vmem:[#allocation5 + $0xd8] sm:$0xff]
    %v11642 = vld [vmem:[#allocation5 + $0xe0] sm:$0xff]
    %v11643 = vld [vmem:[#allocation5 + $0xe8] sm:$0xff]
    %v11644 = vld [vmem:[#allocation5 + $0xf0] sm:$0xff]
    %v11645 = vld [vmem:[#allocation5 + $0xf8] sm:$0xff]
    %v11646 = vpack.c.bf16 %v11579, %v11578
    %v11647 = vpack.c.bf16 %v11581, %v11580
    %v11648 = vpack.c.bf16 %v11583, %v11582
    %v11649 = vpack.c.bf16 %v11585, %v11584
    %v11650 = vpack.c.bf16 %v11587, %v11586
    %v11651 = vpack.c.bf16 %v11589, %v11588
    %v11652 = vpack.c.bf16 %v11591, %v11590
    %v11653 = vpack.c.bf16 %v11593, %v11592
    %v11654 = vpack.c.bf16 %v11595, %v11594
    %v11655 = vpack.c.bf16 %v11597, %v11596
    %v11656 = vpack.c.bf16 %v11599, %v11598
    %v11657 = vpack.c.bf16 %v11601, %v11600
    %v11658 = vpack.c.bf16 %v11603, %v11602
    %v11659 = vpack.c.bf16 %v11605, %v11604
    %v11660 = vpack.c.bf16 %v11607, %v11606
    %v11661 = vpack.c.bf16 %v11609, %v11608
    %v11662 = vld [vmem:[#allocation16] sm:$0xff]
    %v11663 = vld [vmem:[#allocation16 + $0x8] sm:$0xff]
    %v11664 = vld [vmem:[#allocation16 + $0x10] sm:$0xff]
    %v11665 = vld [vmem:[#allocation16 + $0x18] sm:$0xff]
    %v11666 = vld [vmem:[#allocation16 + $0x20] sm:$0xff]
    %v11667 = vld [vmem:[#allocation16 + $0x28] sm:$0xff]
    %v11668 = vld [vmem:[#allocation16 + $0x30] sm:$0xff]
    %v11669 = vld [vmem:[#allocation16 + $0x38] sm:$0xff]
    %v11670 = vld [vmem:[#allocation16 + $0x40] sm:$0xff]
    %v11671 = vld [vmem:[#allocation16 + $0x48] sm:$0xff]
    %v11672 = vld [vmem:[#allocation16 + $0x50] sm:$0xff]
    %v11673 = vld [vmem:[#allocation16 + $0x58] sm:$0xff]
    %v11674 = vld [vmem:[#allocation16 + $0x60] sm:$0xff]
    %v11675 = vld [vmem:[#allocation16 + $0x68] sm:$0xff]
    %v11676 = vld [vmem:[#allocation16 + $0x70] sm:$0xff]
    %v11677 = vld [vmem:[#allocation16 + $0x78] sm:$0xff]
    %v11678 = vld [vmem:[#allocation16 + $0x80] sm:$0xff]
    %v11679 = vld [vmem:[#allocation16 + $0x88] sm:$0xff]
    %v11680 = vld [vmem:[#allocation16 + $0x90] sm:$0xff]
    %v11681 = vld [vmem:[#allocation16 + $0x98] sm:$0xff]
    %v11682 = vld [vmem:[#allocation16 + $0xa0] sm:$0xff]
    %v11683 = vld [vmem:[#allocation16 + $0xa8] sm:$0xff]
    %v11684 = vld [vmem:[#allocation16 + $0xb0] sm:$0xff]
    %v11685 = vld [vmem:[#allocation16 + $0xb8] sm:$0xff]
    %v11686 = vld [vmem:[#allocation16 + $0xc0] sm:$0xff]
    %v11687 = vld [vmem:[#allocation16 + $0xc8] sm:$0xff]
    %v11688 = vld [vmem:[#allocation16 + $0xd0] sm:$0xff]
    %v11689 = vld [vmem:[#allocation16 + $0xd8] sm:$0xff]
    %v11690 = vld [vmem:[#allocation16 + $0xe0] sm:$0xff]
    %v11691 = vld [vmem:[#allocation16 + $0xe8] sm:$0xff]
    %v11692 = vld [vmem:[#allocation16 + $0xf0] sm:$0xff]
    %v11693 = vld [vmem:[#allocation16 + $0xf8] sm:$0xff]
    %11695 = vset.pattern.permute.xlu0 0
    %11696 = vperm.xlu0 %11695, %v11662
    %v11697 = vpop.permute.xlu0 %11696
    %11700 = vset.pattern.permute.xlu0 0
    %11701 = vperm.xlu0 %11700, %v11663
    %v11702 = vpop.permute.xlu0 %11701
    %11705 = vset.pattern.permute.xlu0 0
    %11706 = vperm.xlu0 %11705, %v11664
    %v11707 = vpop.permute.xlu0 %11706
    %11710 = vset.pattern.permute.xlu0 0
    %11711 = vperm.xlu0 %11710, %v11665
    %v11712 = vpop.permute.xlu0 %11711
    %11715 = vset.pattern.permute.xlu0 0
    %11716 = vperm.xlu0 %11715, %v11666
    %v11717 = vpop.permute.xlu0 %11716
    %11720 = vset.pattern.permute.xlu0 0
    %11721 = vperm.xlu0 %11720, %v11667
    %v11722 = vpop.permute.xlu0 %11721
    %11725 = vset.pattern.permute.xlu0 0
    %11726 = vperm.xlu0 %11725, %v11668
    %v11727 = vpop.permute.xlu0 %11726
    %11730 = vset.pattern.permute.xlu0 0
    %11731 = vperm.xlu0 %11730, %v11669
    %v11732 = vpop.permute.xlu0 %11731
    %11735 = vset.pattern.permute.xlu0 0
    %11736 = vperm.xlu0 %11735, %v11670
    %v11737 = vpop.permute.xlu0 %11736
    %11740 = vset.pattern.permute.xlu0 0
    %11741 = vperm.xlu0 %11740, %v11671
    %v11742 = vpop.permute.xlu0 %11741
    %11745 = vset.pattern.permute.xlu0 0
    %11746 = vperm.xlu0 %11745, %v11672
    %v11747 = vpop.permute.xlu0 %11746
    %11750 = vset.pattern.permute.xlu0 0
    %11751 = vperm.xlu0 %11750, %v11673
    %v11752 = vpop.permute.xlu0 %11751
    %11755 = vset.pattern.permute.xlu0 0
    %11756 = vperm.xlu0 %11755, %v11674
    %v11757 = vpop.permute.xlu0 %11756
    %11760 = vset.pattern.permute.xlu0 0
    %11761 = vperm.xlu0 %11760, %v11675
    %v11762 = vpop.permute.xlu0 %11761
    %11765 = vset.pattern.permute.xlu0 0
    %11766 = vperm.xlu0 %11765, %v11676
    %v11767 = vpop.permute.xlu0 %11766
    %11770 = vset.pattern.permute.xlu0 0
    %11771 = vperm.xlu0 %11770, %v11677
    %v11772 = vpop.permute.xlu0 %11771
    %11775 = vset.pattern.permute.xlu0 0
    %11776 = vperm.xlu0 %11775, %v11678
    %v11777 = vpop.permute.xlu0 %11776
    %11780 = vset.pattern.permute.xlu0 0
    %11781 = vperm.xlu0 %11780, %v11679
    %v11782 = vpop.permute.xlu0 %11781
    %11785 = vset.pattern.permute.xlu0 0
    %11786 = vperm.xlu0 %11785, %v11680
    %v11787 = vpop.permute.xlu0 %11786
    %11790 = vset.pattern.permute.xlu0 0
    %11791 = vperm.xlu0 %11790, %v11681
    %v11792 = vpop.permute.xlu0 %11791
    %11795 = vset.pattern.permute.xlu0 0
    %11796 = vperm.xlu0 %11795, %v11682
    %v11797 = vpop.permute.xlu0 %11796
    %11800 = vset.pattern.permute.xlu0 0
    %11801 = vperm.xlu0 %11800, %v11683
    %v11802 = vpop.permute.xlu0 %11801
    %11805 = vset.pattern.permute.xlu0 0
    %11806 = vperm.xlu0 %11805, %v11684
    %v11807 = vpop.permute.xlu0 %11806
    %11810 = vset.pattern.permute.xlu0 0
    %11811 = vperm.xlu0 %11810, %v11685
    %v11812 = vpop.permute.xlu0 %11811
    %11815 = vset.pattern.permute.xlu0 0
    %11816 = vperm.xlu0 %11815, %v11686
    %v11817 = vpop.permute.xlu0 %11816
    %11820 = vset.pattern.permute.xlu0 0
    %11821 = vperm.xlu0 %11820, %v11687
    %v11822 = vpop.permute.xlu0 %11821
    %11825 = vset.pattern.permute.xlu0 0
    %11826 = vperm.xlu0 %11825, %v11688
    %v11827 = vpop.permute.xlu0 %11826
    %11830 = vset.pattern.permute.xlu0 0
    %11831 = vperm.xlu0 %11830, %v11689
    %v11832 = vpop.permute.xlu0 %11831
    %11835 = vset.pattern.permute.xlu0 0
    %11836 = vperm.xlu0 %11835, %v11690
    %v11837 = vpop.permute.xlu0 %11836
    %11840 = vset.pattern.permute.xlu0 0
    %11841 = vperm.xlu0 %11840, %v11691
    %v11842 = vpop.permute.xlu0 %11841
    %11845 = vset.pattern.permute.xlu0 0
    %11846 = vperm.xlu0 %11845, %v11692
    %v11847 = vpop.permute.xlu0 %11846
    %11850 = vset.pattern.permute.xlu0 0
    %11851 = vperm.xlu0 %11850, %v11693
    %v11852 = vpop.permute.xlu0 %11851
    %v11886 = vunpack.c.l.b16 %v11614
    %v11887 = vunpack.c.h.b16 %v11614
    %v11888 = vunpack.c.l.b16 %v11615
    %v11889 = vunpack.c.h.b16 %v11615
    %v11890 = vunpack.c.l.b16 %v11616
    %v11891 = vunpack.c.h.b16 %v11616
    %v11892 = vunpack.c.l.b16 %v11617
    %v11893 = vunpack.c.h.b16 %v11617
    %v11894 = vunpack.c.l.b16 %v11618
    %v11895 = vunpack.c.h.b16 %v11618
    %v11896 = vunpack.c.l.b16 %v11619
    %v11897 = vunpack.c.h.b16 %v11619
    %v11898 = vunpack.c.l.b16 %v11620
    %v11899 = vunpack.c.h.b16 %v11620
    %v11900 = vunpack.c.l.b16 %v11621
    %v11901 = vunpack.c.h.b16 %v11621
    %v11902 = vunpack.c.l.b16 %v11622
    %v11903 = vunpack.c.h.b16 %v11622
    %v11904 = vunpack.c.l.b16 %v11623
    %v11905 = vunpack.c.h.b16 %v11623
    %v11906 = vunpack.c.l.b16 %v11624
    %v11907 = vunpack.c.h.b16 %v11624
    %v11908 = vunpack.c.l.b16 %v11625
    %v11909 = vunpack.c.h.b16 %v11625
    %v11910 = vunpack.c.l.b16 %v11626
    %v11911 = vunpack.c.h.b16 %v11626
    %v11912 = vunpack.c.l.b16 %v11627
    %v11913 = vunpack.c.h.b16 %v11627
    %v11914 = vunpack.c.l.b16 %v11628
    %v11915 = vunpack.c.h.b16 %v11628
    %v11916 = vunpack.c.l.b16 %v11629
    %v11917 = vunpack.c.h.b16 %v11629
    %v11918 = vunpack.c.l.b16 %v11630
    %v11919 = vunpack.c.h.b16 %v11630
    %v11920 = vunpack.c.l.b16 %v11631
    %v11921 = vunpack.c.h.b16 %v11631
    %v11922 = vunpack.c.l.b16 %v11632
    %v11923 = vunpack.c.h.b16 %v11632
    %v11924 = vunpack.c.l.b16 %v11633
    %v11925 = vunpack.c.h.b16 %v11633
    %v11926 = vunpack.c.l.b16 %v11634
    %v11927 = vunpack.c.h.b16 %v11634
    %v11928 = vunpack.c.l.b16 %v11635
    %v11929 = vunpack.c.h.b16 %v11635
    %v11930 = vunpack.c.l.b16 %v11636
    %v11931 = vunpack.c.h.b16 %v11636
    %v11932 = vunpack.c.l.b16 %v11637
    %v11933 = vunpack.c.h.b16 %v11637
    %v11934 = vunpack.c.l.b16 %v11638
    %v11935 = vunpack.c.h.b16 %v11638
    %v11936 = vunpack.c.l.b16 %v11639
    %v11937 = vunpack.c.h.b16 %v11639
    %v11938 = vunpack.c.l.b16 %v11640
    %v11939 = vunpack.c.h.b16 %v11640
    %v11940 = vunpack.c.l.b16 %v11641
    %v11941 = vunpack.c.h.b16 %v11641
    %v11942 = vunpack.c.l.b16 %v11642
    %v11943 = vunpack.c.h.b16 %v11642
    %v11944 = vunpack.c.l.b16 %v11643
    %v11945 = vunpack.c.h.b16 %v11643
    %v11946 = vunpack.c.l.b16 %v11644
    %v11947 = vunpack.c.h.b16 %v11644
    %v11948 = vunpack.c.l.b16 %v11645
    %v11949 = vunpack.c.h.b16 %v11645
    %v11950 = vpack.c.b16 %v11888, %v11886
    %v11951 = vpack.c.b16 %v11889, %v11887
    %v11952 = vpack.c.b16 %v11892, %v11890
    %v11953 = vpack.c.b16 %v11893, %v11891
    %v11954 = vpack.c.b16 %v11896, %v11894
    %v11955 = vpack.c.b16 %v11897, %v11895
    %v11956 = vpack.c.b16 %v11900, %v11898
    %v11957 = vpack.c.b16 %v11901, %v11899
    %v11958 = vpack.c.b16 %v11904, %v11902
    %v11959 = vpack.c.b16 %v11905, %v11903
    %v11960 = vpack.c.b16 %v11908, %v11906
    %v11961 = vpack.c.b16 %v11909, %v11907
    %v11962 = vpack.c.b16 %v11912, %v11910
    %v11963 = vpack.c.b16 %v11913, %v11911
    %v11964 = vpack.c.b16 %v11916, %v11914
    %v11965 = vpack.c.b16 %v11917, %v11915
    %v11966 = vpack.c.b16 %v11920, %v11918
    %v11967 = vpack.c.b16 %v11921, %v11919
    %v11968 = vpack.c.b16 %v11924, %v11922
    %v11969 = vpack.c.b16 %v11925, %v11923
    %v11970 = vpack.c.b16 %v11928, %v11926
    %v11971 = vpack.c.b16 %v11929, %v11927
    %v11972 = vpack.c.b16 %v11932, %v11930
    %v11973 = vpack.c.b16 %v11933, %v11931
    %v11974 = vpack.c.b16 %v11936, %v11934
    %v11975 = vpack.c.b16 %v11937, %v11935
    %v11976 = vpack.c.b16 %v11940, %v11938
    %v11977 = vpack.c.b16 %v11941, %v11939
    %v11978 = vpack.c.b16 %v11944, %v11942
    %v11979 = vpack.c.b16 %v11945, %v11943
    %v11980 = vpack.c.b16 %v11948, %v11946
    %v11981 = vpack.c.b16 %v11949, %v11947
    %12014 = vmatprep.subr.bf16.mxu0 0
    %12015 = vmatpush1.bf16.msra.mxu0 %v11653
    %12016 = vmatprep.subr.bf16.mxu0 0
    %12017 = vmatpush1.bf16.msra.mxu0 %v11652
    %12018 = vmatprep.subr.bf16.mxu0 0
    %12019 = vmatpush1.bf16.msra.mxu0 %v11651
    %12020 = vmatprep.subr.bf16.mxu0 0
    %12021 = vmatpush1.bf16.msra.mxu0 %v11650
    %12022 = vmatprep.subr.bf16.mxu0 0
    %12023 = vmatpush1.bf16.msra.mxu0 %v11649
    %12024 = vmatprep.subr.bf16.mxu0 0
    %12025 = vmatpush1.bf16.msra.mxu0 %v11648
    %12026 = vmatprep.subr.bf16.mxu0 0
    %12027 = vmatpush1.bf16.msra.mxu0 %v11647
    %12028 = vmatprep.subr.bf16.mxu0 0
    %12029 = vmatpush1.bf16.msra.mxu0 %v11646
    %12030 = vmatprep.subr.bf16.mxu0 0
    %12031 = vmatpush2.bf16.msra.mxu0 %v11661
    %12032 = vmatprep.subr.bf16.mxu0 0
    %12033 = vmatpush2.bf16.msra.mxu0 %v11660
    %12034 = vmatprep.subr.bf16.mxu0 0
    %12035 = vmatpush2.bf16.msra.mxu0 %v11659
    %12036 = vmatprep.subr.bf16.mxu0 0
    %12037 = vmatpush2.bf16.msra.mxu0 %v11658
    %12038 = vmatprep.subr.bf16.mxu0 0
    %12039 = vmatpush2.bf16.msra.mxu0 %v11657
    %12040 = vmatprep.subr.bf16.mxu0 0
    %12041 = vmatpush2.bf16.msra.mxu0 %v11656
    %12042 = vmatprep.subr.bf16.mxu0 0
    %12043 = vmatpush2.bf16.msra.mxu0 %v11655
    %12044 = vmatprep.subr.bf16.mxu0 0
    %12045 = vmatpush2.bf16.msra.mxu0 %v11654
    %12046 = vmatprep.mubr.bf16.mxu0 %v11951
    %12047 = vmatmul.mubr.bf16.gmra.mxu0 %v11950
    %v12048 = vpop.f32.mrf.mxu0
    %v12049 = vadd.f32 %v11697, %v12048
    %v12050 = vpop.f32.mrf.mxu0
    %v12051 = vpop.f32.mrf.mxu0
    %v12052 = vadd.f32 %v11702, %v12051
    %v12053 = vpop.f32.mrf.mxu0
    %12054 = vmatprep.mubr.bf16.mxu0 %v11953
    %12055 = vmatmul.mubr.bf16.gmra.mxu0 %v11952
    %v12056 = vpop.f32.mrf.mxu0
    %v12057 = vadd.f32 %v11707, %v12056
    %v12058 = vpop.f32.mrf.mxu0
    %v12059 = vpop.f32.mrf.mxu0
    %v12060 = vadd.f32 %v11712, %v12059
    %v12061 = vpop.f32.mrf.mxu0
    %12062 = vmatprep.mubr.bf16.mxu0 %v11955
    %12063 = vmatmul.mubr.bf16.gmra.mxu0 %v11954
    %v12064 = vpop.f32.mrf.mxu0
    %v12065 = vadd.f32 %v11717, %v12064
    %v12066 = vpop.f32.mrf.mxu0
    %v12067 = vpop.f32.mrf.mxu0
    %v12068 = vadd.f32 %v11722, %v12067
    %v12069 = vpop.f32.mrf.mxu0
    %12070 = vmatprep.mubr.bf16.mxu0 %v11957
    %12071 = vmatmul.mubr.bf16.gmra.mxu0 %v11956
    %v12072 = vpop.f32.mrf.mxu0
    %v12073 = vadd.f32 %v11727, %v12072
    %v12074 = vpop.f32.mrf.mxu0
    %v12075 = vpop.f32.mrf.mxu0
    %v12076 = vadd.f32 %v11732, %v12075
    %v12077 = vpop.f32.mrf.mxu0
    %12078 = vmatprep.mubr.bf16.mxu0 %v11959
    %12079 = vmatmul.mubr.bf16.gmra.mxu0 %v11958
    %v12080 = vpop.f32.mrf.mxu0
    %v12081 = vadd.f32 %v11737, %v12080
    %v12082 = vpop.f32.mrf.mxu0
    %v12083 = vpop.f32.mrf.mxu0
    %v12084 = vadd.f32 %v11742, %v12083
    %v12085 = vpop.f32.mrf.mxu0
    %12086 = vmatprep.mubr.bf16.mxu0 %v11961
    %12087 = vmatmul.mubr.bf16.gmra.mxu0 %v11960
    %v12088 = vpop.f32.mrf.mxu0
    %v12089 = vadd.f32 %v11747, %v12088
    %v12090 = vpop.f32.mrf.mxu0
    %v12091 = vpop.f32.mrf.mxu0
    %v12092 = vadd.f32 %v11752, %v12091
    %v12093 = vpop.f32.mrf.mxu0
    %12094 = vmatprep.mubr.bf16.mxu0 %v11963
    %12095 = vmatmul.mubr.bf16.gmra.mxu0 %v11962
    %v12096 = vpop.f32.mrf.mxu0
    %v12097 = vadd.f32 %v11757, %v12096
    %v12098 = vpop.f32.mrf.mxu0
    %v12099 = vpop.f32.mrf.mxu0
    %v12100 = vadd.f32 %v11762, %v12099
    %v12101 = vpop.f32.mrf.mxu0
    %12102 = vmatprep.mubr.bf16.mxu0 %v11965
    %12103 = vmatmul.mubr.bf16.gmra.mxu0 %v11964
    %v12104 = vpop.f32.mrf.mxu0
    %v12105 = vadd.f32 %v11767, %v12104
    %v12106 = vpop.f32.mrf.mxu0
    %v12107 = vpop.f32.mrf.mxu0
    %v12108 = vadd.f32 %v11772, %v12107
    %v12109 = vpop.f32.mrf.mxu0
    %12110 = vmatprep.mubr.bf16.mxu0 %v11967
    %12111 = vmatmul.mubr.bf16.gmra.mxu0 %v11966
    %v12112 = vpop.f32.mrf.mxu0
    %v12113 = vadd.f32 %v11777, %v12112
    %v12114 = vpop.f32.mrf.mxu0
    %v12115 = vpop.f32.mrf.mxu0
    %v12116 = vadd.f32 %v11782, %v12115
    %v12117 = vpop.f32.mrf.mxu0
    %12118 = vmatprep.mubr.bf16.mxu0 %v11969
    %12119 = vmatmul.mubr.bf16.gmra.mxu0 %v11968
    %v12120 = vpop.f32.mrf.mxu0
    %v12121 = vadd.f32 %v11787, %v12120
    %v12122 = vpop.f32.mrf.mxu0
    %v12123 = vpop.f32.mrf.mxu0
    %v12124 = vadd.f32 %v11792, %v12123
    %v12125 = vpop.f32.mrf.mxu0
    %12126 = vmatprep.mubr.bf16.mxu0 %v11971
    %12127 = vmatmul.mubr.bf16.gmra.mxu0 %v11970
    %v12128 = vpop.f32.mrf.mxu0
    %v12129 = vadd.f32 %v11797, %v12128
    %v12130 = vpop.f32.mrf.mxu0
    %v12131 = vpop.f32.mrf.mxu0
    %v12132 = vadd.f32 %v11802, %v12131
    %v12133 = vpop.f32.mrf.mxu0
    %12134 = vmatprep.mubr.bf16.mxu0 %v11973
    %12135 = vmatmul.mubr.bf16.gmra.mxu0 %v11972
    %v12136 = vpop.f32.mrf.mxu0
    %v12137 = vadd.f32 %v11807, %v12136
    %v12138 = vpop.f32.mrf.mxu0
    %v12139 = vpop.f32.mrf.mxu0
    %v12140 = vadd.f32 %v11812, %v12139
    %v12141 = vpop.f32.mrf.mxu0
    %12142 = vmatprep.mubr.bf16.mxu0 %v11975
    %12143 = vmatmul.mubr.bf16.gmra.mxu0 %v11974
    %v12144 = vpop.f32.mrf.mxu0
    %v12145 = vadd.f32 %v11817, %v12144
    %v12146 = vpop.f32.mrf.mxu0
    %v12147 = vpop.f32.mrf.mxu0
    %v12148 = vadd.f32 %v11822, %v12147
    %v12149 = vpop.f32.mrf.mxu0
    %12150 = vmatprep.mubr.bf16.mxu0 %v11977
    %12151 = vmatmul.mubr.bf16.gmra.mxu0 %v11976
    %v12152 = vpop.f32.mrf.mxu0
    %v12153 = vadd.f32 %v11827, %v12152
    %v12154 = vpop.f32.mrf.mxu0
    %v12155 = vpop.f32.mrf.mxu0
    %v12156 = vadd.f32 %v11832, %v12155
    %v12157 = vpop.f32.mrf.mxu0
    %12158 = vmatprep.mubr.bf16.mxu0 %v11979
    %12159 = vmatmul.mubr.bf16.gmra.mxu0 %v11978
    %v12160 = vpop.f32.mrf.mxu0
    %v12161 = vadd.f32 %v11837, %v12160
    %v12162 = vpop.f32.mrf.mxu0
    %v12163 = vpop.f32.mrf.mxu0
    %v12164 = vadd.f32 %v11842, %v12163
    %v12165 = vpop.f32.mrf.mxu0
    %12166 = vmatprep.mubr.bf16.mxu0 %v11981
    %12167 = vmatmul.mubr.bf16.gmra.mxu0 %v11980
    %v12168 = vpop.f32.mrf.mxu0
    %v12169 = vadd.f32 %v11847, %v12168
    %v12170 = vpop.f32.mrf.mxu0
    %v12171 = vpop.f32.mrf.mxu0
    %v12172 = vadd.f32 %v11852, %v12171
    %v12173 = vpop.f32.mrf.mxu0
    %12174 = vdwg.mxu0
    %v12175 = vmax.f32 %v12049, 0.0
    %v12176 = vmax.f32 %v12052, 0.0
    %v12177 = vmax.f32 %v12057, 0.0
    %v12178 = vmax.f32 %v12060, 0.0
    %v12179 = vmax.f32 %v12065, 0.0
    %v12180 = vmax.f32 %v12068, 0.0
    %v12181 = vmax.f32 %v12073, 0.0
    %v12182 = vmax.f32 %v12076, 0.0
    %v12183 = vmax.f32 %v12081, 0.0
    %v12184 = vmax.f32 %v12084, 0.0
    %v12185 = vmax.f32 %v12089, 0.0
    %v12186 = vmax.f32 %v12092, 0.0
    %v12187 = vmax.f32 %v12097, 0.0
    %v12188 = vmax.f32 %v12100, 0.0
    %v12189 = vmax.f32 %v12105, 0.0
    %v12190 = vmax.f32 %v12108, 0.0
    %v12191 = vmax.f32 %v12113, 0.0
    %v12192 = vmax.f32 %v12116, 0.0
    %v12193 = vmax.f32 %v12121, 0.0
    %v12194 = vmax.f32 %v12124, 0.0
    %v12195 = vmax.f32 %v12129, 0.0
    %v12196 = vmax.f32 %v12132, 0.0
    %v12197 = vmax.f32 %v12137, 0.0
    %v12198 = vmax.f32 %v12140, 0.0
    %v12199 = vmax.f32 %v12145, 0.0
    %v12200 = vmax.f32 %v12148, 0.0
    %v12201 = vmax.f32 %v12153, 0.0
    %v12202 = vmax.f32 %v12156, 0.0
    %v12203 = vmax.f32 %v12161, 0.0
    %v12204 = vmax.f32 %v12164, 0.0
    %v12205 = vmax.f32 %v12169, 0.0
    %v12206 = vmax.f32 %v12172, 0.0
    %s12207 = smul.u32 4, 3
    %s12208 = smul.u32 %s12207, 2
    %s12209 = sshll.u32 %s12208, 4
    %12210 = dma.done %s186, %s12209
    %v12211 = vld [vmem:[#allocation6] sm:$0xff]
    %v12212 = vld [vmem:[#allocation6 + $0x8] sm:$0xff]
    %v12213 = vld [vmem:[#allocation6 + $0x10] sm:$0xff]
    %v12214 = vpack.c.bf16 %v12176, %v12175
    %v12215 = vpack.c.bf16 %v12178, %v12177
    %v12216 = vpack.c.bf16 %v12180, %v12179
    %v12217 = vpack.c.bf16 %v12182, %v12181
    %v12218 = vpack.c.bf16 %v12184, %v12183
    %v12219 = vpack.c.bf16 %v12186, %v12185
    %v12220 = vpack.c.bf16 %v12188, %v12187
    %v12221 = vpack.c.bf16 %v12190, %v12189
    %v12222 = vpack.c.bf16 %v12192, %v12191
    %v12223 = vpack.c.bf16 %v12194, %v12193
    %v12224 = vpack.c.bf16 %v12196, %v12195
    %v12225 = vpack.c.bf16 %v12198, %v12197
    %v12226 = vpack.c.bf16 %v12200, %v12199
    %v12227 = vpack.c.bf16 %v12202, %v12201
    %v12228 = vpack.c.bf16 %v12204, %v12203
    %v12229 = vpack.c.bf16 %v12206, %v12205
    %v12230 = vld [vmem:[#allocation18] sm:$0xff]
    %v12231 = vld [vmem:[#allocation18 + $0x8] sm:$0xff]
    %v12232 = vld [vmem:[#allocation18 + $0x10] sm:$0xff]
    %12234 = vset.pattern.permute.xlu0 0
    %12235 = vperm.xlu0 %12234, %v12230
    %v12236 = vpop.permute.xlu0 %12235
    %12239 = vset.pattern.permute.xlu0 0
    %12240 = vperm.xlu0 %12239, %v12231
    %v12241 = vpop.permute.xlu0 %12240
    %12244 = vset.pattern.permute.xlu0 0
    %12245 = vperm.xlu0 %12244, %v12232
    %v12246 = vpop.permute.xlu0 %12245
    %v12251 = vunpack.c.l.b16 %v12211
    %v12252 = vunpack.c.h.b16 %v12211
    %v12253 = vunpack.c.l.b16 %v12212
    %v12254 = vunpack.c.h.b16 %v12212
    %v12255 = vunpack.c.l.b16 %v12213
    %v12256 = vunpack.c.h.b16 %v12213
    %v12257 = vpack.c.b16 %v12253, %v12251
    %v12258 = vpack.c.b16 %v12254, %v12252
    %v12259 = vpack.c.b16 %v12255, %v12255
    %v12260 = vpack.c.b16 %v12256, %v12256
    %12265 = vmatprep.subr.bf16.mxu0 0
    %12266 = vmatpush1.bf16.msra.mxu0 %v12221
    %12267 = vmatprep.subr.bf16.mxu0 0
    %12268 = vmatpush1.bf16.msra.mxu0 %v12220
    %12269 = vmatprep.subr.bf16.mxu0 0
    %12270 = vmatpush1.bf16.msra.mxu0 %v12219
    %12271 = vmatprep.subr.bf16.mxu0 0
    %12272 = vmatpush1.bf16.msra.mxu0 %v12218
    %12273 = vmatprep.subr.bf16.mxu0 0
    %12274 = vmatpush1.bf16.msra.mxu0 %v12217
    %12275 = vmatprep.subr.bf16.mxu0 0
    %12276 = vmatpush1.bf16.msra.mxu0 %v12216
    %12277 = vmatprep.subr.bf16.mxu0 0
    %12278 = vmatpush1.bf16.msra.mxu0 %v12215
    %12279 = vmatprep.subr.bf16.mxu0 0
    %12280 = vmatpush1.bf16.msra.mxu0 %v12214
    %12281 = vmatprep.subr.bf16.mxu0 0
    %12282 = vmatpush2.bf16.msra.mxu0 %v12229
    %12283 = vmatprep.subr.bf16.mxu0 0
    %12284 = vmatpush2.bf16.msra.mxu0 %v12228
    %12285 = vmatprep.subr.bf16.mxu0 0
    %12286 = vmatpush2.bf16.msra.mxu0 %v12227
    %12287 = vmatprep.subr.bf16.mxu0 0
    %12288 = vmatpush2.bf16.msra.mxu0 %v12226
    %12289 = vmatprep.subr.bf16.mxu0 0
    %12290 = vmatpush2.bf16.msra.mxu0 %v12225
    %12291 = vmatprep.subr.bf16.mxu0 0
    %12292 = vmatpush2.bf16.msra.mxu0 %v12224
    %12293 = vmatprep.subr.bf16.mxu0 0
    %12294 = vmatpush2.bf16.msra.mxu0 %v12223
    %12295 = vmatprep.subr.bf16.mxu0 0
    %12296 = vmatpush2.bf16.msra.mxu0 %v12222
    %12297 = vmatprep.mubr.bf16.mxu0 %v12258
    %12298 = vmatmul.mubr.bf16.gmra.mxu0 %v12257
    %v12299 = vpop.f32.mrf.mxu0
    %v12300 = vadd.f32 %v12236, %v12299
    %v12301 = vpop.f32.mrf.mxu0
    %v12302 = vpop.f32.mrf.mxu0
    %v12303 = vadd.f32 %v12241, %v12302
    %v12304 = vpop.f32.mrf.mxu0
    %12305 = vmatprep.mubr.bf16.mxu0 %v12260
    %12306 = vmatmul.mubr.bf16.gmra.mxu0 %v12259
    %v12307 = vpop.f32.mrf.mxu0
    %v12308 = vadd.f32 %v12246, %v12307
    %v12309 = vpop.f32.mrf.mxu0
    %v12310 = vpop.f32.mrf.mxu0
    %v12311 = vpop.f32.mrf.mxu0
    %12312 = vdwg.mxu0
    %vm12313 = vcmask 15360
    %12314 = vst.msk [vmem:[%s16] sm:$0xff] %vm12313, %v12300
    %12315 = vst.msk [vmem:[%s16 + $0x8] sm:$0xff] %vm12313, %v12303
    %12316 = vst.msk [vmem:[%s16 + $0x10] sm:$0xff] %vm12313, %v12308
    // Predicated region
    $region124: #{forward.1} parent=1 // pred_check
      _
    $region125: #{forward.1} parent=1 // pred_check_branch
      %12318 = sbr.rel (0) target = $region127
    $region126: #{forward.1} parent=1 // pred_region
      _
    $region127: #{forward.1} parent=1 // pred_fallthru
      _
    // Predicated region
    $region128: #{forward.1} parent=1 // pred_check
      _
    $region129: #{forward.1} parent=1 // pred_check_branch
      %12320 = sbr.rel (0) target = $region131
    $region130: #{forward.1} parent=1 // pred_region
      _
    $region131: #{forward.1} parent=1 // pred_fallthru
      _
    %12321 = vsyncpa [#allocation9], 1
    %12322 = vsyncpa [#allocation11], 1
    %12323 = vsyncpa [#allocation14], 1
    %12324 = vsyncpa [#allocation17], 1
  %12325 = vsyncmov [#allocation7]
  %s12326 = vpop.sfrf %12325
  %p12327 = scmp.eq.s32.totalorder %s12326, 0
  %p12328 = pneg %p12327
  %12330 = shalt.err (%p12328)
  %s12331 = scalar_lea.sflag [#allocation7], 1
  %12332 = vsyncmov %s12331
  %s12333 = vpop.sfrf %12332
  %p12334 = scmp.eq.s32.totalorder %s12333, 0
  %p12335 = pneg %p12334
  %12337 = shalt.err (%p12335)
  %s12338 = scalar_lea.sflag [#allocation7], 2
  %12339 = vsyncmov %s12338
  %s12340 = vpop.sfrf %12339
  %p12341 = scmp.eq.s32.totalorder %s12340, 0
  %p12342 = pneg %p12341
  %12344 = shalt.err (%p12342)
  %s12345 = scalar_lea.sflag [#allocation7], 3
  %12346 = vsyncmov %s12345
  %s12347 = vpop.sfrf %12346
  %p12348 = scmp.eq.s32.totalorder %s12347, 0
  %p12349 = pneg %p12348
  %12351 = shalt.err (%p12349)
  %s12352 = scalar_lea.sflag [#allocation7], 4
  %12353 = vsyncmov %s12352
  %s12354 = vpop.sfrf %12353
  %p12355 = scmp.eq.s32.totalorder %s12354, 0
  %p12356 = pneg %p12355
  %12358 = shalt.err (%p12356)

</llo_original>
